<compile_context>
chip_gen: v7x
topology: tpu7x:2x2x1
jax: 0.10.0
libtpu: 0.0.40
codegen_flags: <defaults>
</compile_context>

<pallas_src>
import functools
import numpy as np
import jax
import jax.numpy as jnp
from jax.experimental import pallas as pl
from jax.experimental.pallas import tpu as pltpu

# ----------------------------- config (consistent with the module) ------------
INPUT_DIM   = 4      # config.input_dim   (conv in-channels)
CNN_DIM     = 16     # config.cnn_1_dim   (conv out-channels)
CNN_K       = 3      # config.cnn_1_kernel_size
CNN_STRIDE  = 2      # config.cnn_1_stride
HID_DIM     = 32     # config.hid_dim
NUM_LAYERS  = 2      # config.num_layers
VOCAB_SIZE  = 24     # config.vocab_size
N_EMBD      = 16     # config.n_embd
BLOCK_SIZE  = 16     # config.block_size

GEM_K   = 6          # GeM(kernel_size=6)
GEM_P   = 3.0        # GeM p parameter (init value of the learnable scalar)
GEM_EPS = 1e-6
BN_EPS  = 1e-5

B_SZ    = 2          # batch
SEQ_L   = 101        # raw signal length -> L_conv = 50 -> L_gem = 8
TRG_LEN = 9          # decoder consumes trg[:, :-1] -> 8 steps

LANES = 128          # f32 vreg lane width; slabs are padded to this


def _round8(n):
    return (n + 7) // 8 * 8


def _pack_slab(entries):
    """Pack small 2-D f32 arrays into one (rows, 128) slab.

    Each sub-array is zero-padded to (round8(rows), 128) so its row offset in
    the slab is a multiple of 8 (sublane-tile aligned).  Returns the slab and a
    dict of *static* row offsets for in-kernel slicing."""
    chunks, offs, row = [], {}, 0
    for name, a in entries:
        r, c = a.shape
        rp = _round8(r)
        chunks.append(jnp.pad(a.astype(jnp.float32), ((0, rp - r), (0, LANES - c))))
        offs[name] = row
        row += rp
    return jnp.concatenate(chunks, axis=0), offs


# ----------------------------- fused Pallas kernel ----------------------------
def seq2seq_fused_kernel(w_ref, x_ref, out_ref, gx_scr, y_scr, *,
                         batch, t_enc, t_dec, n_sig, woff, xoff):
    f32 = jnp.float32
    H, H3 = HID_DIM, 3 * HID_DIM
    B = batch
    CK = INPUT_DIM * CNN_K

    def w(name, rows, cols):
        o = woff[name]
        return w_ref[o:o + rows, 0:cols]

    # ---- Conv1d (one im2col matmul) + GeM pool + BatchNorm1d(eval) + SiLU -----
    oc = woff["chanvec"]
    conv_b = w_ref[oc:oc + 1, 0:CNN_DIM]
    bn_s   = w_ref[oc + 1:oc + 2, 0:CNN_DIM]
    bn_t   = w_ref[oc + 2:oc + 3, 0:CNN_DIM]

    patches = x_ref[xoff["pat"]:xoff["pat"] + n_sig, 0:CK]             # (B*Lc, Cin*K)
    y = jnp.dot(patches, w("convw", CK, CNN_DIM),
                preferred_element_type=f32) + conv_b                   # (B*Lc, Cout)
    yc = jnp.maximum(y, GEM_EPS)
    yp = yc * yc * yc                       # clamp(min=eps)**p with p==3: VALU only
    pooled = jnp.dot(w("pool", t_enc * B, n_sig), yp,
                     preferred_element_type=f32)                       # (Lg*B, Cout)
    feat = jnp.exp(jnp.log(pooled) * (1.0 / GEM_P))                    # **(1/p)
    feat = feat * bn_s + bn_t                                          # BN, running stats
    feat = feat * jax.nn.sigmoid(feat)                                 # SiLU

    # ---- biases (rows of the packed bias block; unaligned-row ref slices) -----
    ob = woff["bias"]
    e_bi0 = w_ref[ob:ob + 1, 0:H3]
    e_bh0 = w_ref[ob + 1:ob + 2, 0:H3]
    e_bi1 = w_ref[ob + 2:ob + 3, 0:H3]
    e_bh1 = w_ref[ob + 3:ob + 4, 0:H3]
    d_bi0 = w_ref[ob + 4:ob + 5, 0:H3]
    d_bh0 = w_ref[ob + 5:ob + 6, 0:H3]
    d_bi1 = w_ref[ob + 6:ob + 7, 0:H3]
    d_bh1 = w_ref[ob + 7:ob + 8, 0:H3]
    fc_b  = w_ref[ob + 8:ob + 9, 0:VOCAB_SIZE]

    def gru_cell(gx, gh, h):
        # r and z share a single fused sigmoid over the [r|z] 2H slice
        # (one EUP push); n keeps its own tanh -> 2 transcendentals per step.
        rz = jax.nn.sigmoid(gx[:, 0:2 * H] + gh[:, 0:2 * H])
        n = jnp.tanh(gx[:, 2 * H:H3] + rz[:, 0:H] * gh[:, 2 * H:H3])
        z = rz[:, H:2 * H]
        return (1.0 - z) * n + z * h

    def run_stack(n_steps, h0, h1, wh0, bh0, wi1, bi1, wh1, bh1,
                  gx0_const=None, out_scr=None):
        """Two stacked GRU layers, wavefronted: layer-1's input projection is
        computed per step (no hoisted-matmul barrier between the layers), so
        the scheduler can overlap layer-1 step t with layer-0 step t+1 inside
        this fully-unrolled basic block.  Layer-0's input projection is hoisted
        (written once to gx_scr) since its inputs are known ahead of time."""
        for t in range(n_steps):                      # tiny trip count -> unrolled
            gx0 = gx_scr[t * B:(t + 1) * B, :]
            if gx0_const is not None:
                gx0 = gx0 + gx0_const
            gh0 = jnp.dot(h0, wh0, preferred_element_type=f32) + bh0
            h0 = gru_cell(gx0, gh0, h0)
            gx1 = jnp.dot(h0, wi1, preferred_element_type=f32) + bi1
            gh1 = jnp.dot(h1, wh1, preferred_element_type=f32) + bh1
            h1 = gru_cell(gx1, gh1, h1)
            if out_scr is not None:
                out_scr[t * B:(t + 1) * B, :] = h1
        return h0, h1

    # ---- Encoder GRU (2 layers); context = final hidden of each layer ---------
    gx_scr[0:t_enc * B, :] = jnp.dot(feat, w("e_wi0", CNN_DIM, H3),
                                     preferred_element_type=f32) + e_bi0
    h_zero = jnp.zeros((B, H), f32)
    hc0, hc1 = run_stack(t_enc, h_zero, h_zero,
                         w("e_wh0", H, H3), e_bh0,
                         w("e_wi1", H, H3), e_bi1,
                         w("e_wh1", H, H3), e_bh1)

    # ---- Decoder GRU (2 layers); layer-0 input = [token+pos emb, context_top] -
    emb = x_ref[xoff["emb"]:xoff["emb"] + t_dec * B, 0:N_EMBD]
    gx_scr[0:t_dec * B, :] = jnp.dot(emb, w("d_wie0", N_EMBD, H3),
                                     preferred_element_type=f32) + d_bi0
    gx_ctx = jnp.dot(hc1, w("d_wic0", H, H3), preferred_element_type=f32)
    run_stack(t_dec, hc0, hc1,
              w("d_wh0", H, H3), d_bh0,
              w("d_wi1", H, H3), d_bi1,
              w("d_wh1", H, H3), d_bh1,
              gx0_const=gx_ctx, out_scr=y_scr)

    # ---- fc_out fused into the epilogue ----------------------------------------
    out_ref[...] = (jnp.dot(y_scr[...], w("fc_w", H, VOCAB_SIZE),
                            preferred_element_type=f32) + fc_b).astype(out_ref.dtype)


# ----------------------------- wrapper -----------------------------------------
def seq2seq_forward(x, trg, params):
    """x: (B, Cin, L) raw signal (NCL); trg: (B, T) int tokens.
    Returns logits (B, T-1, vocab)."""
    B, Cin, L = x.shape
    Cout = CNN_DIM
    Lc = (L - CNN_K) // CNN_STRIDE + 1
    Lg = (Lc - GEM_K) // GEM_K + 1
    Tdec = trg.shape[1] - 1
    n_sig = B * Lc

    # --- wrapper-side glue (gathers): im2col patches + decoder embedding --------
    idx = jnp.arange(Lc)[:, None] * CNN_STRIDE + jnp.arange(CNN_K)[None, :]
    patches = x[:, :, idx]                                        # (B, Cin, Lc, K)
    patches = jnp.transpose(patches, (0, 2, 1, 3)).reshape(n_sig, Cin * CNN_K)

    dec_in = trg[:, :-1]                                          # (B, Tdec)
    tok = jnp.take(params["tok_emb"], dec_in, axis=0)             # (B, Tdec, n_embd)
    emb = tok + params["pos_emb"][None, :Tdec, :]
    emb_tm = jnp.transpose(emb, (1, 0, 2)).reshape(Tdec * B, N_EMBD)   # time-major

    # --- constants folded on the wrapper side ------------------------------------
    inv_std = 1.0 / jnp.sqrt(params["bn_var"] + BN_EPS)
    bn_scale = params["bn_gamma"] * inv_std
    bn_shift = params["bn_beta"] - params["bn_mean"] * bn_scale
    chanvec = jnp.stack([params["conv_b"], bn_scale, bn_shift], axis=0)  # (3, Cout)

    convw = params["conv_w"].reshape(Cout, Cin * CNN_K).T         # (Cin*K, Cout)

    # avg_pool1d(kernel=GEM_K, stride=GEM_K) + (B,C,Lg)->time-major(Lg*B,C)
    # rearrangement as one (Lg*B, B*Lc) matrix.
    rt = jnp.arange(Lg * B) // B
    rb = jnp.arange(Lg * B) % B
    cb = jnp.arange(n_sig) // Lc
    cl = jnp.arange(n_sig) % Lc
    pool = ((cb[None, :] == rb[:, None]) &
            ((cl[None, :] // GEM_K) == rt[:, None])).astype(jnp.float32) / GEM_K

    (e_wi0, e_wh0, e_bi0, e_bh0), (e_wi1, e_wh1, e_bi1, e_bh1) = params["enc_gru"]
    (d_wi0, d_wh0, d_bi0, d_bh0), (d_wi1, d_wh1, d_bi1, d_bh1) = params["dec_gru"]

    def _row(v):
        v = v.reshape(1, -1)
        return jnp.pad(v, ((0, 0), (0, LANES - v.shape[1])))

    biasblk = jnp.concatenate(
        [_row(b) for b in (e_bi0, e_bh0, e_bi1, e_bh1,
                           d_bi0, d_bh0, d_bi1, d_bh1, params["fc_b"])], axis=0)

    # --- pack everything into two slabs: 2 input DMAs instead of ~27 -------------
    wslab, woff = _pack_slab([
        ("chanvec", chanvec), ("convw", convw), ("pool", pool),
        ("e_wi0", e_wi0), ("e_wh0", e_wh0), ("e_wi1", e_wi1), ("e_wh1", e_wh1),
        ("d_wie0", d_wi0[:N_EMBD]), ("d_wic0", d_wi0[N_EMBD:]),
        ("d_wh0", d_wh0), ("d_wi1", d_wi1), ("d_wh1", d_wh1),
        ("fc_w", params["fc_w"]), ("bias", biasblk),
    ])
    xslab, xoff = _pack_slab([("pat", patches), ("emb", emb_tm)])

    kernel = functools.partial(
        seq2seq_fused_kernel,
        batch=B, t_enc=Lg, t_dec=Tdec, n_sig=n_sig, woff=woff, xoff=xoff)

    logits_tm = pl.pallas_call(
        kernel,
        out_shape=jax.ShapeDtypeStruct((Tdec * B, VOCAB_SIZE), jnp.float32),
        scratch_shapes=[
            pltpu.VMEM((max(Lg, Tdec) * B, 3 * HID_DIM), jnp.float32),  # layer-0 gate proj
            pltpu.VMEM((Tdec * B, HID_DIM), jnp.float32),               # decoder L1 outputs
        ],
    )(wslab, xslab)

    # time-major (Tdec*B, V) -> (B, Tdec, V)
    return jnp.transpose(logits_tm.reshape(Tdec, B, VOCAB_SIZE), (1, 0, 2))


# ----------------------------- deterministic parameter init ---------------------
def init_gru_params(key, input_size, hidden, num_layers):
    """Gate-stacked PyTorch-style GRU params: wi (Din,3H), wh (H,3H), bi/bh (1,3H).
    Gate order along the 3H axis is [r, z, n]."""
    layers = []
    bound = 1.0 / np.sqrt(hidden)
    for l in range(num_layers):
        din = input_size if l == 0 else hidden
        key, k0, k1, k2, k3 = jax.random.split(key, 5)
        wi = jax.random.uniform(k0, (din, 3 * hidden), jnp.float32, -bound, bound)
        wh = jax.random.uniform(k1, (hidden, 3 * hidden), jnp.float32, -bound, bound)
        bi = jax.random.uniform(k2, (1, 3 * hidden), jnp.float32, -bound, bound)
        bh = jax.random.uniform(k3, (1, 3 * hidden), jnp.float32, -bound, bound)
        layers.append((wi, wh, bi, bh))
    return key, layers


def init_params(key):
    p = {}
    key, k = jax.random.split(key)
    p["conv_w"] = 0.2 * jax.random.normal(k, (CNN_DIM, INPUT_DIM, CNN_K), jnp.float32)
    key, k = jax.random.split(key)
    p["conv_b"] = 0.1 * jax.random.normal(k, (CNN_DIM,), jnp.float32)
    key, k = jax.random.split(key)
    p["bn_gamma"] = 1.0 + 0.1 * jax.random.normal(k, (CNN_DIM,), jnp.float32)
    key, k = jax.random.split(key)
    p["bn_beta"] = 0.1 * jax.random.normal(k, (CNN_DIM,), jnp.float32)
    p["bn_mean"] = jnp.zeros((CNN_DIM,), jnp.float32)
    p["bn_var"] = jnp.ones((CNN_DIM,), jnp.float32)
    key, p["enc_gru"] = init_gru_params(key, CNN_DIM, HID_DIM, NUM_LAYERS)
    key, p["dec_gru"] = init_gru_params(key, N_EMBD + HID_DIM, HID_DIM, NUM_LAYERS)
    key, k = jax.random.split(key)
    p["tok_emb"] = 0.1 * jax.random.normal(k, (VOCAB_SIZE, N_EMBD), jnp.float32)
    key, k = jax.random.split(key)
    p["pos_emb"] = 0.1 * jax.random.normal(k, (BLOCK_SIZE, N_EMBD), jnp.float32)
    key, k = jax.random.split(key)
    p["fc_w"] = 0.1 * jax.random.normal(k, (HID_DIM, VOCAB_SIZE), jnp.float32)
    key, k = jax.random.split(key)
    p["fc_b"] = 0.1 * jax.random.normal(k, (VOCAB_SIZE,), jnp.float32)
    return p


# ----------------------------- main ---------------------------------------------
if __name__ == "__main__":
    key = jax.random.PRNGKey(0)
    params = init_params(key)

    key_x, key_t = jax.random.split(jax.random.PRNGKey(0), 2)
    x = jax.random.normal(key_x, (B_SZ, INPUT_DIM, SEQ_L), jnp.float32)        # NCL
    trg = jax.random.randint(key_t, (B_SZ, TRG_LEN), 0, VOCAB_SIZE, jnp.int32)

    fwd = jax.jit(functools.partial(seq2seq_forward, params=params))
    out = fwd(x, trg)
    jax.block_until_ready(out)

    assert out.shape == (B_SZ, TRG_LEN - 1, VOCAB_SIZE), out.shape
    assert bool(jnp.all(jnp.isfinite(out)))
    print("KERNEL_OK")
</pallas_src>

<mosaic_0001>
module attributes {stable_mosaic.version = 11 : i64} {
  func.func @seq2seq_fused_kernel(%arg0: memref<344x128xf32, #tpu.memory_space<vmem>>, %arg1: memref<120x128xf32, #tpu.memory_space<vmem>>, %arg2: memref<16x24xf32, #tpu.memory_space<vmem>>, %arg3: memref<16x96xf32, #tpu.memory_space<vmem>>, %arg4: memref<16x32xf32, #tpu.memory_space<vmem>>) attributes {dimension_semantics = [], scalar_prefetch = 0 : i64, scratch_operands = 2 : i64, tpu.core_type = #tpu.core_type<tc>} {
    %c0 = arith.constant 0 : index
    %c0_0 = arith.constant 0 : index
    %0 = vector.load %arg0[%c0, %c0_0] : memref<344x128xf32, #tpu.memory_space<vmem>>, vector<1x16xf32>
    %c1 = arith.constant 1 : index
    %c0_1 = arith.constant 0 : index
    %1 = vector.load %arg0[%c1, %c0_1] : memref<344x128xf32, #tpu.memory_space<vmem>>, vector<1x16xf32>
    %c2 = arith.constant 2 : index
    %c0_2 = arith.constant 0 : index
    %2 = vector.load %arg0[%c2, %c0_2] : memref<344x128xf32, #tpu.memory_space<vmem>>, vector<1x16xf32>
    %c0_3 = arith.constant 0 : index
    %c0_4 = arith.constant 0 : index
    %3 = vector.load %arg1[%c0_3, %c0_4] : memref<120x128xf32, #tpu.memory_space<vmem>>, vector<100x12xf32>
    %c8 = arith.constant 8 : index
    %c0_5 = arith.constant 0 : index
    %4 = vector.load %arg0[%c8, %c0_5] : memref<344x128xf32, #tpu.memory_space<vmem>>, vector<12x16xf32>
    %cst = arith.constant dense<0.000000e+00> : vector<100x16xf32>
    %5 = tpu.matmul %3, %4, %cst {dimension_numbers = #tpu.dot_dimension_numbers<[1], [0], [0], [1], [0, 0, 1, 1], [], []>} : vector<100x12xf32>, vector<12x16xf32>, vector<100x16xf32> -> vector<100x16xf32>
    %6 = vector.broadcast %0 : vector<1x16xf32> to vector<100x16xf32>
    %7 = arith.addf %5, %6 : vector<100x16xf32>
    %cst_6 = arith.constant 9.99999997E-7 : f32
    %8 = vector.broadcast %cst_6 : f32 to vector<100x16xf32>
    %9 = arith.maximumf %7, %8 : vector<100x16xf32>
    %10 = arith.mulf %9, %9 : vector<100x16xf32>
    %11 = arith.mulf %10, %9 : vector<100x16xf32>
    %c24 = arith.constant 24 : index
    %c0_7 = arith.constant 0 : index
    %12 = vector.load %arg0[%c24, %c0_7] : memref<344x128xf32, #tpu.memory_space<vmem>>, vector<16x100xf32>
    %cst_8 = arith.constant dense<0.000000e+00> : vector<16x16xf32>
    %13 = tpu.matmul %12, %11, %cst_8 {dimension_numbers = #tpu.dot_dimension_numbers<[1], [0], [0], [1], [0, 0, 1, 1], [], []>} : vector<16x100xf32>, vector<100x16xf32>, vector<16x16xf32> -> vector<16x16xf32>
    %14 = math.log %13 : vector<16x16xf32>
    %cst_9 = arith.constant 0.333333343 : f32
    %15 = vector.broadcast %cst_9 : f32 to vector<16x16xf32>
    %16 = arith.mulf %14, %15 : vector<16x16xf32>
    %17 = math.exp %16 : vector<16x16xf32>
    %18 = vector.broadcast %1 : vector<1x16xf32> to vector<16x16xf32>
    %19 = arith.mulf %17, %18 : vector<16x16xf32>
    %20 = vector.broadcast %2 : vector<1x16xf32> to vector<16x16xf32>
    %21 = arith.addf %19, %20 : vector<16x16xf32>
    %22 = arith.negf %21 : vector<16x16xf32>
    %23 = math.exp %22 : vector<16x16xf32>
    %cst_10 = arith.constant 1.000000e+00 : f32
    %24 = vector.broadcast %cst_10 : f32 to vector<16x16xf32>
    %25 = arith.addf %24, %23 : vector<16x16xf32>
    %26 = arith.divf %24, %25 : vector<16x16xf32>
    %27 = arith.mulf %21, %26 : vector<16x16xf32>
    %c328 = arith.constant 328 : index
    %c0_11 = arith.constant 0 : index
    %28 = vector.load %arg0[%c328, %c0_11] : memref<344x128xf32, #tpu.memory_space<vmem>>, vector<1x96xf32>
    %c329 = arith.constant 329 : index
    %c0_12 = arith.constant 0 : index
    %29 = vector.load %arg0[%c329, %c0_12] : memref<344x128xf32, #tpu.memory_space<vmem>>, vector<1x96xf32>
    %c330 = arith.constant 330 : index
    %c0_13 = arith.constant 0 : index
    %30 = vector.load %arg0[%c330, %c0_13] : memref<344x128xf32, #tpu.memory_space<vmem>>, vector<1x96xf32>
    %c331 = arith.constant 331 : index
    %c0_14 = arith.constant 0 : index
    %31 = vector.load %arg0[%c331, %c0_14] : memref<344x128xf32, #tpu.memory_space<vmem>>, vector<1x96xf32>
    %c332 = arith.constant 332 : index
    %c0_15 = arith.constant 0 : index
    %32 = vector.load %arg0[%c332, %c0_15] : memref<344x128xf32, #tpu.memory_space<vmem>>, vector<1x96xf32>
    %c333 = arith.constant 333 : index
    %c0_16 = arith.constant 0 : index
    %33 = vector.load %arg0[%c333, %c0_16] : memref<344x128xf32, #tpu.memory_space<vmem>>, vector<1x96xf32>
    %c334 = arith.constant 334 : index
    %c0_17 = arith.constant 0 : index
    %34 = vector.load %arg0[%c334, %c0_17] : memref<344x128xf32, #tpu.memory_space<vmem>>, vector<1x96xf32>
    %c335 = arith.constant 335 : index
    %c0_18 = arith.constant 0 : index
    %35 = vector.load %arg0[%c335, %c0_18] : memref<344x128xf32, #tpu.memory_space<vmem>>, vector<1x96xf32>
    %c336 = arith.constant 336 : index
    %c0_19 = arith.constant 0 : index
    %36 = vector.load %arg0[%c336, %c0_19] : memref<344x128xf32, #tpu.memory_space<vmem>>, vector<1x24xf32>
    %c40 = arith.constant 40 : index
    %c0_20 = arith.constant 0 : index
    %37 = vector.load %arg0[%c40, %c0_20] : memref<344x128xf32, #tpu.memory_space<vmem>>, vector<16x96xf32>
    %cst_21 = arith.constant dense<0.000000e+00> : vector<16x96xf32>
    %38 = tpu.matmul %27, %37, %cst_21 {dimension_numbers = #tpu.dot_dimension_numbers<[1], [0], [0], [1], [0, 0, 1, 1], [], []>} : vector<16x16xf32>, vector<16x96xf32>, vector<16x96xf32> -> vector<16x96xf32>
    %39 = vector.broadcast %28 : vector<1x96xf32> to vector<16x96xf32>
    %40 = arith.addf %38, %39 : vector<16x96xf32>
    %c0_22 = arith.constant 0 : index
    %c0_23 = arith.constant 0 : index
    %41 = vector.load %arg3[%c0_22, %c0_23] : memref<16x96xf32, #tpu.memory_space<vmem>>, vector<16x96xf32>
    tpu.vector_store %arg3[%c0_22, %c0_23], %40 {strides = array<i32>} : memref<16x96xf32, #tpu.memory_space<vmem>>, vector<16x96xf32>,
    %cst_24 = arith.constant 0.000000e+00 : f32
    %42 = vector.broadcast %cst_24 : f32 to vector<2x32xf32>
    %c56 = arith.constant 56 : index
    %c0_25 = arith.constant 0 : index
    %43 = vector.load %arg0[%c56, %c0_25] : memref<344x128xf32, #tpu.memory_space<vmem>>, vector<32x96xf32>
    %c88 = arith.constant 88 : index
    %c0_26 = arith.constant 0 : index
    %44 = vector.load %arg0[%c88, %c0_26] : memref<344x128xf32, #tpu.memory_space<vmem>>, vector<32x96xf32>
    %c120 = arith.constant 120 : index
    %c0_27 = arith.constant 0 : index
    %45 = vector.load %arg0[%c120, %c0_27] : memref<344x128xf32, #tpu.memory_space<vmem>>, vector<32x96xf32>
    %c0_28 = arith.constant 0 : index
    %c0_29 = arith.constant 0 : index
    %46 = vector.load %arg3[%c0_28, %c0_29] : memref<16x96xf32, #tpu.memory_space<vmem>>, vector<2x96xf32>
    %cst_30 = arith.constant dense<0.000000e+00> : vector<2x96xf32>
    %47 = tpu.matmul %42, %43, %cst_30 {dimension_numbers = #tpu.dot_dimension_numbers<[1], [0], [0], [1], [0, 0, 1, 1], [], []>} : vector<2x32xf32>, vector<32x96xf32>, vector<2x96xf32> -> vector<2x96xf32>
    %48 = vector.broadcast %29 : vector<1x96xf32> to vector<2x96xf32>
    %49 = arith.addf %47, %48 : vector<2x96xf32>
    %50 = vector.extract_strided_slice %46 {offsets = [0, 0], sizes = [2, 64], strides = [1, 1]} : vector<2x96xf32> to vector<2x64xf32>
    %51 = vector.extract_strided_slice %49 {offsets = [0, 0], sizes = [2, 64], strides = [1, 1]} : vector<2x96xf32> to vector<2x64xf32>
    %52 = arith.addf %50, %51 : vector<2x64xf32>
    %53 = arith.negf %52 : vector<2x64xf32>
    %54 = math.exp %53 : vector<2x64xf32>
    %cst_31 = arith.constant 1.000000e+00 : f32
    %55 = vector.broadcast %cst_31 : f32 to vector<2x64xf32>
    %56 = arith.addf %55, %54 : vector<2x64xf32>
    %57 = arith.divf %55, %56 : vector<2x64xf32>
    %58 = vector.extract_strided_slice %46 {offsets = [0, 64], sizes = [2, 32], strides = [1, 1]} : vector<2x96xf32> to vector<2x32xf32>
    %59 = vector.extract_strided_slice %57 {offsets = [0, 0], sizes = [2, 32], strides = [1, 1]} : vector<2x64xf32> to vector<2x32xf32>
    %60 = vector.extract_strided_slice %49 {offsets = [0, 64], sizes = [2, 32], strides = [1, 1]} : vector<2x96xf32> to vector<2x32xf32>
    %61 = arith.mulf %59, %60 : vector<2x32xf32>
    %62 = arith.addf %58, %61 : vector<2x32xf32>
    %63 = math.tanh %62 : vector<2x32xf32>
    %64 = vector.extract_strided_slice %57 {offsets = [0, 32], sizes = [2, 32], strides = [1, 1]} : vector<2x64xf32> to vector<2x32xf32>
    %cst_32 = arith.constant 1.000000e+00 : f32
    %65 = vector.broadcast %cst_32 : f32 to vector<2x32xf32>
    %66 = arith.subf %65, %64 : vector<2x32xf32>
    %67 = arith.mulf %66, %63 : vector<2x32xf32>
    %68 = arith.mulf %64, %42 : vector<2x32xf32>
    %69 = arith.addf %67, %68 : vector<2x32xf32>
    %cst_33 = arith.constant dense<0.000000e+00> : vector<2x96xf32>
    %70 = tpu.matmul %69, %44, %cst_33 {dimension_numbers = #tpu.dot_dimension_numbers<[1], [0], [0], [1], [0, 0, 1, 1], [], []>} : vector<2x32xf32>, vector<32x96xf32>, vector<2x96xf32> -> vector<2x96xf32>
    %71 = vector.broadcast %30 : vector<1x96xf32> to vector<2x96xf32>
    %72 = arith.addf %70, %71 : vector<2x96xf32>
    %cst_34 = arith.constant dense<0.000000e+00> : vector<2x96xf32>
    %73 = tpu.matmul %42, %45, %cst_34 {dimension_numbers = #tpu.dot_dimension_numbers<[1], [0], [0], [1], [0, 0, 1, 1], [], []>} : vector<2x32xf32>, vector<32x96xf32>, vector<2x96xf32> -> vector<2x96xf32>
    %74 = vector.broadcast %31 : vector<1x96xf32> to vector<2x96xf32>
    %75 = arith.addf %73, %74 : vector<2x96xf32>
    %76 = vector.extract_strided_slice %72 {offsets = [0, 0], sizes = [2, 64], strides = [1, 1]} : vector<2x96xf32> to vector<2x64xf32>
    %77 = vector.extract_strided_slice %75 {offsets = [0, 0], sizes = [2, 64], strides = [1, 1]} : vector<2x96xf32> to vector<2x64xf32>
    %78 = arith.addf %76, %77 : vector<2x64xf32>
    %79 = arith.negf %78 : vector<2x64xf32>
    %80 = math.exp %79 : vector<2x64xf32>
    %cst_35 = arith.constant 1.000000e+00 : f32
    %81 = vector.broadcast %cst_35 : f32 to vector<2x64xf32>
    %82 = arith.addf %81, %80 : vector<2x64xf32>
    %83 = arith.divf %81, %82 : vector<2x64xf32>
    %84 = vector.extract_strided_slice %72 {offsets = [0, 64], sizes = [2, 32], strides = [1, 1]} : vector<2x96xf32> to vector<2x32xf32>
    %85 = vector.extract_strided_slice %83 {offsets = [0, 0], sizes = [2, 32], strides = [1, 1]} : vector<2x64xf32> to vector<2x32xf32>
    %86 = vector.extract_strided_slice %75 {offsets = [0, 64], sizes = [2, 32], strides = [1, 1]} : vector<2x96xf32> to vector<2x32xf32>
    %87 = arith.mulf %85, %86 : vector<2x32xf32>
    %88 = arith.addf %84, %87 : vector<2x32xf32>
    %89 = math.tanh %88 : vector<2x32xf32>
    %90 = vector.extract_strided_slice %83 {offsets = [0, 32], sizes = [2, 32], strides = [1, 1]} : vector<2x64xf32> to vector<2x32xf32>
    %cst_36 = arith.constant 1.000000e+00 : f32
    %91 = vector.broadcast %cst_36 : f32 to vector<2x32xf32>
    %92 = arith.subf %91, %90 : vector<2x32xf32>
    %93 = arith.mulf %92, %89 : vector<2x32xf32>
    %94 = arith.mulf %90, %42 : vector<2x32xf32>
    %95 = arith.addf %93, %94 : vector<2x32xf32>
    %c2_37 = arith.constant 2 : index
    %c0_38 = arith.constant 0 : index
    %96 = vector.load %arg3[%c2_37, %c0_38] : memref<16x96xf32, #tpu.memory_space<vmem>>, vector<2x96xf32>
    %cst_39 = arith.constant dense<0.000000e+00> : vector<2x96xf32>
    %97 = tpu.matmul %69, %43, %cst_39 {dimension_numbers = #tpu.dot_dimension_numbers<[1], [0], [0], [1], [0, 0, 1, 1], [], []>} : vector<2x32xf32>, vector<32x96xf32>, vector<2x96xf32> -> vector<2x96xf32>
    %98 = vector.broadcast %29 : vector<1x96xf32> to vector<2x96xf32>
    %99 = arith.addf %97, %98 : vector<2x96xf32>
    %100 = vector.extract_strided_slice %96 {offsets = [0, 0], sizes = [2, 64], strides = [1, 1]} : vector<2x96xf32> to vector<2x64xf32>
    %101 = vector.extract_strided_slice %99 {offsets = [0, 0], sizes = [2, 64], strides = [1, 1]} : vector<2x96xf32> to vector<2x64xf32>
    %102 = arith.addf %100, %101 : vector<2x64xf32>
    %103 = arith.negf %102 : vector<2x64xf32>
    %104 = math.exp %103 : vector<2x64xf32>
    %cst_40 = arith.constant 1.000000e+00 : f32
    %105 = vector.broadcast %cst_40 : f32 to vector<2x64xf32>
    %106 = arith.addf %105, %104 : vector<2x64xf32>
    %107 = arith.divf %105, %106 : vector<2x64xf32>
    %108 = vector.extract_strided_slice %96 {offsets = [0, 64], sizes = [2, 32], strides = [1, 1]} : vector<2x96xf32> to vector<2x32xf32>
    %109 = vector.extract_strided_slice %107 {offsets = [0, 0], sizes = [2, 32], strides = [1, 1]} : vector<2x64xf32> to vector<2x32xf32>
    %110 = vector.extract_strided_slice %99 {offsets = [0, 64], sizes = [2, 32], strides = [1, 1]} : vector<2x96xf32> to vector<2x32xf32>
    %111 = arith.mulf %109, %110 : vector<2x32xf32>
    %112 = arith.addf %108, %111 : vector<2x32xf32>
    %113 = math.tanh %112 : vector<2x32xf32>
    %114 = vector.extract_strided_slice %107 {offsets = [0, 32], sizes = [2, 32], strides = [1, 1]} : vector<2x64xf32> to vector<2x32xf32>
    %cst_41 = arith.constant 1.000000e+00 : f32
    %115 = vector.broadcast %cst_41 : f32 to vector<2x32xf32>
    %116 = arith.subf %115, %114 : vector<2x32xf32>
    %117 = arith.mulf %116, %113 : vector<2x32xf32>
    %118 = arith.mulf %114, %69 : vector<2x32xf32>
    %119 = arith.addf %117, %118 : vector<2x32xf32>
    %cst_42 = arith.constant dense<0.000000e+00> : vector<2x96xf32>
    %120 = tpu.matmul %119, %44, %cst_42 {dimension_numbers = #tpu.dot_dimension_numbers<[1], [0], [0], [1], [0, 0, 1, 1], [], []>} : vector<2x32xf32>, vector<32x96xf32>, vector<2x96xf32> -> vector<2x96xf32>
    %121 = vector.broadcast %30 : vector<1x96xf32> to vector<2x96xf32>
    %122 = arith.addf %120, %121 : vector<2x96xf32>
    %cst_43 = arith.constant dense<0.000000e+00> : vector<2x96xf32>
    %123 = tpu.matmul %95, %45, %cst_43 {dimension_numbers = #tpu.dot_dimension_numbers<[1], [0], [0], [1], [0, 0, 1, 1], [], []>} : vector<2x32xf32>, vector<32x96xf32>, vector<2x96xf32> -> vector<2x96xf32>
    %124 = vector.broadcast %31 : vector<1x96xf32> to vector<2x96xf32>
    %125 = arith.addf %123, %124 : vector<2x96xf32>
    %126 = vector.extract_strided_slice %122 {offsets = [0, 0], sizes = [2, 64], strides = [1, 1]} : vector<2x96xf32> to vector<2x64xf32>
    %127 = vector.extract_strided_slice %125 {offsets = [0, 0], sizes = [2, 64], strides = [1, 1]} : vector<2x96xf32> to vector<2x64xf32>
    %128 = arith.addf %126, %127 : vector<2x64xf32>
    %129 = arith.negf %128 : vector<2x64xf32>
    %130 = math.exp %129 : vector<2x64xf32>
    %cst_44 = arith.constant 1.000000e+00 : f32
    %131 = vector.broadcast %cst_44 : f32 to vector<2x64xf32>
    %132 = arith.addf %131, %130 : vector<2x64xf32>
    %133 = arith.divf %131, %132 : vector<2x64xf32>
    %134 = vector.extract_strided_slice %122 {offsets = [0, 64], sizes = [2, 32], strides = [1, 1]} : vector<2x96xf32> to vector<2x32xf32>
    %135 = vector.extract_strided_slice %133 {offsets = [0, 0], sizes = [2, 32], strides = [1, 1]} : vector<2x64xf32> to vector<2x32xf32>
    %136 = vector.extract_strided_slice %125 {offsets = [0, 64], sizes = [2, 32], strides = [1, 1]} : vector<2x96xf32> to vector<2x32xf32>
    %137 = arith.mulf %135, %136 : vector<2x32xf32>
    %138 = arith.addf %134, %137 : vector<2x32xf32>
    %139 = math.tanh %138 : vector<2x32xf32>
    %140 = vector.extract_strided_slice %133 {offsets = [0, 32], sizes = [2, 32], strides = [1, 1]} : vector<2x64xf32> to vector<2x32xf32>
    %cst_45 = arith.constant 1.000000e+00 : f32
    %141 = vector.broadcast %cst_45 : f32 to vector<2x32xf32>
    %142 = arith.subf %141, %140 : vector<2x32xf32>
    %143 = arith.mulf %142, %139 : vector<2x32xf32>
    %144 = arith.mulf %140, %95 : vector<2x32xf32>
    %145 = arith.addf %143, %144 : vector<2x32xf32>
    %c4 = arith.constant 4 : index
    %c0_46 = arith.constant 0 : index
    %146 = vector.load %arg3[%c4, %c0_46] : memref<16x96xf32, #tpu.memory_space<vmem>>, vector<2x96xf32>
    %cst_47 = arith.constant dense<0.000000e+00> : vector<2x96xf32>
    %147 = tpu.matmul %119, %43, %cst_47 {dimension_numbers = #tpu.dot_dimension_numbers<[1], [0], [0], [1], [0, 0, 1, 1], [], []>} : vector<2x32xf32>, vector<32x96xf32>, vector<2x96xf32> -> vector<2x96xf32>
    %148 = vector.broadcast %29 : vector<1x96xf32> to vector<2x96xf32>
    %149 = arith.addf %147, %148 : vector<2x96xf32>
    %150 = vector.extract_strided_slice %146 {offsets = [0, 0], sizes = [2, 64], strides = [1, 1]} : vector<2x96xf32> to vector<2x64xf32>
    %151 = vector.extract_strided_slice %149 {offsets = [0, 0], sizes = [2, 64], strides = [1, 1]} : vector<2x96xf32> to vector<2x64xf32>
    %152 = arith.addf %150, %151 : vector<2x64xf32>
    %153 = arith.negf %152 : vector<2x64xf32>
    %154 = math.exp %153 : vector<2x64xf32>
    %cst_48 = arith.constant 1.000000e+00 : f32
    %155 = vector.broadcast %cst_48 : f32 to vector<2x64xf32>
    %156 = arith.addf %155, %154 : vector<2x64xf32>
    %157 = arith.divf %155, %156 : vector<2x64xf32>
    %158 = vector.extract_strided_slice %146 {offsets = [0, 64], sizes = [2, 32], strides = [1, 1]} : vector<2x96xf32> to vector<2x32xf32>
    %159 = vector.extract_strided_slice %157 {offsets = [0, 0], sizes = [2, 32], strides = [1, 1]} : vector<2x64xf32> to vector<2x32xf32>
    %160 = vector.extract_strided_slice %149 {offsets = [0, 64], sizes = [2, 32], strides = [1, 1]} : vector<2x96xf32> to vector<2x32xf32>
    %161 = arith.mulf %159, %160 : vector<2x32xf32>
    %162 = arith.addf %158, %161 : vector<2x32xf32>
    %163 = math.tanh %162 : vector<2x32xf32>
    %164 = vector.extract_strided_slice %157 {offsets = [0, 32], sizes = [2, 32], strides = [1, 1]} : vector<2x64xf32> to vector<2x32xf32>
    %cst_49 = arith.constant 1.000000e+00 : f32
    %165 = vector.broadcast %cst_49 : f32 to vector<2x32xf32>
    %166 = arith.subf %165, %164 : vector<2x32xf32>
    %167 = arith.mulf %166, %163 : vector<2x32xf32>
    %168 = arith.mulf %164, %119 : vector<2x32xf32>
    %169 = arith.addf %167, %168 : vector<2x32xf32>
    %cst_50 = arith.constant dense<0.000000e+00> : vector<2x96xf32>
    %170 = tpu.matmul %169, %44, %cst_50 {dimension_numbers = #tpu.dot_dimension_numbers<[1], [0], [0], [1], [0, 0, 1, 1], [], []>} : vector<2x32xf32>, vector<32x96xf32>, vector<2x96xf32> -> vector<2x96xf32>
    %171 = vector.broadcast %30 : vector<1x96xf32> to vector<2x96xf32>
    %172 = arith.addf %170, %171 : vector<2x96xf32>
    %cst_51 = arith.constant dense<0.000000e+00> : vector<2x96xf32>
    %173 = tpu.matmul %145, %45, %cst_51 {dimension_numbers = #tpu.dot_dimension_numbers<[1], [0], [0], [1], [0, 0, 1, 1], [], []>} : vector<2x32xf32>, vector<32x96xf32>, vector<2x96xf32> -> vector<2x96xf32>
    %174 = vector.broadcast %31 : vector<1x96xf32> to vector<2x96xf32>
    %175 = arith.addf %173, %174 : vector<2x96xf32>
    %176 = vector.extract_strided_slice %172 {offsets = [0, 0], sizes = [2, 64], strides = [1, 1]} : vector<2x96xf32> to vector<2x64xf32>
    %177 = vector.extract_strided_slice %175 {offsets = [0, 0], sizes = [2, 64], strides = [1, 1]} : vector<2x96xf32> to vector<2x64xf32>
    %178 = arith.addf %176, %177 : vector<2x64xf32>
    %179 = arith.negf %178 : vector<2x64xf32>
    %180 = math.exp %179 : vector<2x64xf32>
    %cst_52 = arith.constant 1.000000e+00 : f32
    %181 = vector.broadcast %cst_52 : f32 to vector<2x64xf32>
    %182 = arith.addf %181, %180 : vector<2x64xf32>
    %183 = arith.divf %181, %182 : vector<2x64xf32>
    %184 = vector.extract_strided_slice %172 {offsets = [0, 64], sizes = [2, 32], strides = [1, 1]} : vector<2x96xf32> to vector<2x32xf32>
    %185 = vector.extract_strided_slice %183 {offsets = [0, 0], sizes = [2, 32], strides = [1, 1]} : vector<2x64xf32> to vector<2x32xf32>
    %186 = vector.extract_strided_slice %175 {offsets = [0, 64], sizes = [2, 32], strides = [1, 1]} : vector<2x96xf32> to vector<2x32xf32>
    %187 = arith.mulf %185, %186 : vector<2x32xf32>
    %188 = arith.addf %184, %187 : vector<2x32xf32>
    %189 = math.tanh %188 : vector<2x32xf32>
    %190 = vector.extract_strided_slice %183 {offsets = [0, 32], sizes = [2, 32], strides = [1, 1]} : vector<2x64xf32> to vector<2x32xf32>
    %cst_53 = arith.constant 1.000000e+00 : f32
    %191 = vector.broadcast %cst_53 : f32 to vector<2x32xf32>
    %192 = arith.subf %191, %190 : vector<2x32xf32>
    %193 = arith.mulf %192, %189 : vector<2x32xf32>
    %194 = arith.mulf %190, %145 : vector<2x32xf32>
    %195 = arith.addf %193, %194 : vector<2x32xf32>
    %c6 = arith.constant 6 : index
    %c0_54 = arith.constant 0 : index
    %196 = vector.load %arg3[%c6, %c0_54] : memref<16x96xf32, #tpu.memory_space<vmem>>, vector<2x96xf32>
    %cst_55 = arith.constant dense<0.000000e+00> : vector<2x96xf32>
    %197 = tpu.matmul %169, %43, %cst_55 {dimension_numbers = #tpu.dot_dimension_numbers<[1], [0], [0], [1], [0, 0, 1, 1], [], []>} : vector<2x32xf32>, vector<32x96xf32>, vector<2x96xf32> -> vector<2x96xf32>
    %198 = vector.broadcast %29 : vector<1x96xf32> to vector<2x96xf32>
    %199 = arith.addf %197, %198 : vector<2x96xf32>
    %200 = vector.extract_strided_slice %196 {offsets = [0, 0], sizes = [2, 64], strides = [1, 1]} : vector<2x96xf32> to vector<2x64xf32>
    %201 = vector.extract_strided_slice %199 {offsets = [0, 0], sizes = [2, 64], strides = [1, 1]} : vector<2x96xf32> to vector<2x64xf32>
    %202 = arith.addf %200, %201 : vector<2x64xf32>
    %203 = arith.negf %202 : vector<2x64xf32>
    %204 = math.exp %203 : vector<2x64xf32>
    %cst_56 = arith.constant 1.000000e+00 : f32
    %205 = vector.broadcast %cst_56 : f32 to vector<2x64xf32>
    %206 = arith.addf %205, %204 : vector<2x64xf32>
    %207 = arith.divf %205, %206 : vector<2x64xf32>
    %208 = vector.extract_strided_slice %196 {offsets = [0, 64], sizes = [2, 32], strides = [1, 1]} : vector<2x96xf32> to vector<2x32xf32>
    %209 = vector.extract_strided_slice %207 {offsets = [0, 0], sizes = [2, 32], strides = [1, 1]} : vector<2x64xf32> to vector<2x32xf32>
    %210 = vector.extract_strided_slice %199 {offsets = [0, 64], sizes = [2, 32], strides = [1, 1]} : vector<2x96xf32> to vector<2x32xf32>
    %211 = arith.mulf %209, %210 : vector<2x32xf32>
    %212 = arith.addf %208, %211 : vector<2x32xf32>
    %213 = math.tanh %212 : vector<2x32xf32>
    %214 = vector.extract_strided_slice %207 {offsets = [0, 32], sizes = [2, 32], strides = [1, 1]} : vector<2x64xf32> to vector<2x32xf32>
    %cst_57 = arith.constant 1.000000e+00 : f32
    %215 = vector.broadcast %cst_57 : f32 to vector<2x32xf32>
    %216 = arith.subf %215, %214 : vector<2x32xf32>
    %217 = arith.mulf %216, %213 : vector<2x32xf32>
    %218 = arith.mulf %214, %169 : vector<2x32xf32>
    %219 = arith.addf %217, %218 : vector<2x32xf32>
    %cst_58 = arith.constant dense<0.000000e+00> : vector<2x96xf32>
    %220 = tpu.matmul %219, %44, %cst_58 {dimension_numbers = #tpu.dot_dimension_numbers<[1], [0], [0], [1], [0, 0, 1, 1], [], []>} : vector<2x32xf32>, vector<32x96xf32>, vector<2x96xf32> -> vector<2x96xf32>
    %221 = vector.broadcast %30 : vector<1x96xf32> to vector<2x96xf32>
    %222 = arith.addf %220, %221 : vector<2x96xf32>
    %cst_59 = arith.constant dense<0.000000e+00> : vector<2x96xf32>
    %223 = tpu.matmul %195, %45, %cst_59 {dimension_numbers = #tpu.dot_dimension_numbers<[1], [0], [0], [1], [0, 0, 1, 1], [], []>} : vector<2x32xf32>, vector<32x96xf32>, vector<2x96xf32> -> vector<2x96xf32>
    %224 = vector.broadcast %31 : vector<1x96xf32> to vector<2x96xf32>
    %225 = arith.addf %223, %224 : vector<2x96xf32>
    %226 = vector.extract_strided_slice %222 {offsets = [0, 0], sizes = [2, 64], strides = [1, 1]} : vector<2x96xf32> to vector<2x64xf32>
    %227 = vector.extract_strided_slice %225 {offsets = [0, 0], sizes = [2, 64], strides = [1, 1]} : vector<2x96xf32> to vector<2x64xf32>
    %228 = arith.addf %226, %227 : vector<2x64xf32>
    %229 = arith.negf %228 : vector<2x64xf32>
    %230 = math.exp %229 : vector<2x64xf32>
    %cst_60 = arith.constant 1.000000e+00 : f32
    %231 = vector.broadcast %cst_60 : f32 to vector<2x64xf32>
    %232 = arith.addf %231, %230 : vector<2x64xf32>
    %233 = arith.divf %231, %232 : vector<2x64xf32>
    %234 = vector.extract_strided_slice %222 {offsets = [0, 64], sizes = [2, 32], strides = [1, 1]} : vector<2x96xf32> to vector<2x32xf32>
    %235 = vector.extract_strided_slice %233 {offsets = [0, 0], sizes = [2, 32], strides = [1, 1]} : vector<2x64xf32> to vector<2x32xf32>
    %236 = vector.extract_strided_slice %225 {offsets = [0, 64], sizes = [2, 32], strides = [1, 1]} : vector<2x96xf32> to vector<2x32xf32>
    %237 = arith.mulf %235, %236 : vector<2x32xf32>
    %238 = arith.addf %234, %237 : vector<2x32xf32>
    %239 = math.tanh %238 : vector<2x32xf32>
    %240 = vector.extract_strided_slice %233 {offsets = [0, 32], sizes = [2, 32], strides = [1, 1]} : vector<2x64xf32> to vector<2x32xf32>
    %cst_61 = arith.constant 1.000000e+00 : f32
    %241 = vector.broadcast %cst_61 : f32 to vector<2x32xf32>
    %242 = arith.subf %241, %240 : vector<2x32xf32>
    %243 = arith.mulf %242, %239 : vector<2x32xf32>
    %244 = arith.mulf %240, %195 : vector<2x32xf32>
    %245 = arith.addf %243, %244 : vector<2x32xf32>
    %c8_62 = arith.constant 8 : index
    %c0_63 = arith.constant 0 : index
    %246 = vector.load %arg3[%c8_62, %c0_63] : memref<16x96xf32, #tpu.memory_space<vmem>>, vector<2x96xf32>
    %cst_64 = arith.constant dense<0.000000e+00> : vector<2x96xf32>
    %247 = tpu.matmul %219, %43, %cst_64 {dimension_numbers = #tpu.dot_dimension_numbers<[1], [0], [0], [1], [0, 0, 1, 1], [], []>} : vector<2x32xf32>, vector<32x96xf32>, vector<2x96xf32> -> vector<2x96xf32>
    %248 = vector.broadcast %29 : vector<1x96xf32> to vector<2x96xf32>
    %249 = arith.addf %247, %248 : vector<2x96xf32>
    %250 = vector.extract_strided_slice %246 {offsets = [0, 0], sizes = [2, 64], strides = [1, 1]} : vector<2x96xf32> to vector<2x64xf32>
    %251 = vector.extract_strided_slice %249 {offsets = [0, 0], sizes = [2, 64], strides = [1, 1]} : vector<2x96xf32> to vector<2x64xf32>
    %252 = arith.addf %250, %251 : vector<2x64xf32>
    %253 = arith.negf %252 : vector<2x64xf32>
    %254 = math.exp %253 : vector<2x64xf32>
    %cst_65 = arith.constant 1.000000e+00 : f32
    %255 = vector.broadcast %cst_65 : f32 to vector<2x64xf32>
    %256 = arith.addf %255, %254 : vector<2x64xf32>
    %257 = arith.divf %255, %256 : vector<2x64xf32>
    %258 = vector.extract_strided_slice %246 {offsets = [0, 64], sizes = [2, 32], strides = [1, 1]} : vector<2x96xf32> to vector<2x32xf32>
    %259 = vector.extract_strided_slice %257 {offsets = [0, 0], sizes = [2, 32], strides = [1, 1]} : vector<2x64xf32> to vector<2x32xf32>
    %260 = vector.extract_strided_slice %249 {offsets = [0, 64], sizes = [2, 32], strides = [1, 1]} : vector<2x96xf32> to vector<2x32xf32>
    %261 = arith.mulf %259, %260 : vector<2x32xf32>
    %262 = arith.addf %258, %261 : vector<2x32xf32>
    %263 = math.tanh %262 : vector<2x32xf32>
    %264 = vector.extract_strided_slice %257 {offsets = [0, 32], sizes = [2, 32], strides = [1, 1]} : vector<2x64xf32> to vector<2x32xf32>
    %cst_66 = arith.constant 1.000000e+00 : f32
    %265 = vector.broadcast %cst_66 : f32 to vector<2x32xf32>
    %266 = arith.subf %265, %264 : vector<2x32xf32>
    %267 = arith.mulf %266, %263 : vector<2x32xf32>
    %268 = arith.mulf %264, %219 : vector<2x32xf32>
    %269 = arith.addf %267, %268 : vector<2x32xf32>
    %cst_67 = arith.constant dense<0.000000e+00> : vector<2x96xf32>
    %270 = tpu.matmul %269, %44, %cst_67 {dimension_numbers = #tpu.dot_dimension_numbers<[1], [0], [0], [1], [0, 0, 1, 1], [], []>} : vector<2x32xf32>, vector<32x96xf32>, vector<2x96xf32> -> vector<2x96xf32>
    %271 = vector.broadcast %30 : vector<1x96xf32> to vector<2x96xf32>
    %272 = arith.addf %270, %271 : vector<2x96xf32>
    %cst_68 = arith.constant dense<0.000000e+00> : vector<2x96xf32>
    %273 = tpu.matmul %245, %45, %cst_68 {dimension_numbers = #tpu.dot_dimension_numbers<[1], [0], [0], [1], [0, 0, 1, 1], [], []>} : vector<2x32xf32>, vector<32x96xf32>, vector<2x96xf32> -> vector<2x96xf32>
    %274 = vector.broadcast %31 : vector<1x96xf32> to vector<2x96xf32>
    %275 = arith.addf %273, %274 : vector<2x96xf32>
    %276 = vector.extract_strided_slice %272 {offsets = [0, 0], sizes = [2, 64], strides = [1, 1]} : vector<2x96xf32> to vector<2x64xf32>
    %277 = vector.extract_strided_slice %275 {offsets = [0, 0], sizes = [2, 64], strides = [1, 1]} : vector<2x96xf32> to vector<2x64xf32>
    %278 = arith.addf %276, %277 : vector<2x64xf32>
    %279 = arith.negf %278 : vector<2x64xf32>
    %280 = math.exp %279 : vector<2x64xf32>
    %cst_69 = arith.constant 1.000000e+00 : f32
    %281 = vector.broadcast %cst_69 : f32 to vector<2x64xf32>
    %282 = arith.addf %281, %280 : vector<2x64xf32>
    %283 = arith.divf %281, %282 : vector<2x64xf32>
    %284 = vector.extract_strided_slice %272 {offsets = [0, 64], sizes = [2, 32], strides = [1, 1]} : vector<2x96xf32> to vector<2x32xf32>
    %285 = vector.extract_strided_slice %283 {offsets = [0, 0], sizes = [2, 32], strides = [1, 1]} : vector<2x64xf32> to vector<2x32xf32>
    %286 = vector.extract_strided_slice %275 {offsets = [0, 64], sizes = [2, 32], strides = [1, 1]} : vector<2x96xf32> to vector<2x32xf32>
    %287 = arith.mulf %285, %286 : vector<2x32xf32>
    %288 = arith.addf %284, %287 : vector<2x32xf32>
    %289 = math.tanh %288 : vector<2x32xf32>
    %290 = vector.extract_strided_slice %283 {offsets = [0, 32], sizes = [2, 32], strides = [1, 1]} : vector<2x64xf32> to vector<2x32xf32>
    %cst_70 = arith.constant 1.000000e+00 : f32
    %291 = vector.broadcast %cst_70 : f32 to vector<2x32xf32>
    %292 = arith.subf %291, %290 : vector<2x32xf32>
    %293 = arith.mulf %292, %289 : vector<2x32xf32>
    %294 = arith.mulf %290, %245 : vector<2x32xf32>
    %295 = arith.addf %293, %294 : vector<2x32xf32>
    %c10 = arith.constant 10 : index
    %c0_71 = arith.constant 0 : index
    %296 = vector.load %arg3[%c10, %c0_71] : memref<16x96xf32, #tpu.memory_space<vmem>>, vector<2x96xf32>
    %cst_72 = arith.constant dense<0.000000e+00> : vector<2x96xf32>
    %297 = tpu.matmul %269, %43, %cst_72 {dimension_numbers = #tpu.dot_dimension_numbers<[1], [0], [0], [1], [0, 0, 1, 1], [], []>} : vector<2x32xf32>, vector<32x96xf32>, vector<2x96xf32> -> vector<2x96xf32>
    %298 = vector.broadcast %29 : vector<1x96xf32> to vector<2x96xf32>
    %299 = arith.addf %297, %298 : vector<2x96xf32>
    %300 = vector.extract_strided_slice %296 {offsets = [0, 0], sizes = [2, 64], strides = [1, 1]} : vector<2x96xf32> to vector<2x64xf32>
    %301 = vector.extract_strided_slice %299 {offsets = [0, 0], sizes = [2, 64], strides = [1, 1]} : vector<2x96xf32> to vector<2x64xf32>
    %302 = arith.addf %300, %301 : vector<2x64xf32>
    %303 = arith.negf %302 : vector<2x64xf32>
    %304 = math.exp %303 : vector<2x64xf32>
    %cst_73 = arith.constant 1.000000e+00 : f32
    %305 = vector.broadcast %cst_73 : f32 to vector<2x64xf32>
    %306 = arith.addf %305, %304 : vector<2x64xf32>
    %307 = arith.divf %305, %306 : vector<2x64xf32>
    %308 = vector.extract_strided_slice %296 {offsets = [0, 64], sizes = [2, 32], strides = [1, 1]} : vector<2x96xf32> to vector<2x32xf32>
    %309 = vector.extract_strided_slice %307 {offsets = [0, 0], sizes = [2, 32], strides = [1, 1]} : vector<2x64xf32> to vector<2x32xf32>
    %310 = vector.extract_strided_slice %299 {offsets = [0, 64], sizes = [2, 32], strides = [1, 1]} : vector<2x96xf32> to vector<2x32xf32>
    %311 = arith.mulf %309, %310 : vector<2x32xf32>
    %312 = arith.addf %308, %311 : vector<2x32xf32>
    %313 = math.tanh %312 : vector<2x32xf32>
    %314 = vector.extract_strided_slice %307 {offsets = [0, 32], sizes = [2, 32], strides = [1, 1]} : vector<2x64xf32> to vector<2x32xf32>
    %cst_74 = arith.constant 1.000000e+00 : f32
    %315 = vector.broadcast %cst_74 : f32 to vector<2x32xf32>
    %316 = arith.subf %315, %314 : vector<2x32xf32>
    %317 = arith.mulf %316, %313 : vector<2x32xf32>
    %318 = arith.mulf %314, %269 : vector<2x32xf32>
    %319 = arith.addf %317, %318 : vector<2x32xf32>
    %cst_75 = arith.constant dense<0.000000e+00> : vector<2x96xf32>
    %320 = tpu.matmul %319, %44, %cst_75 {dimension_numbers = #tpu.dot_dimension_numbers<[1], [0], [0], [1], [0, 0, 1, 1], [], []>} : vector<2x32xf32>, vector<32x96xf32>, vector<2x96xf32> -> vector<2x96xf32>
    %321 = vector.broadcast %30 : vector<1x96xf32> to vector<2x96xf32>
    %322 = arith.addf %320, %321 : vector<2x96xf32>
    %cst_76 = arith.constant dense<0.000000e+00> : vector<2x96xf32>
    %323 = tpu.matmul %295, %45, %cst_76 {dimension_numbers = #tpu.dot_dimension_numbers<[1], [0], [0], [1], [0, 0, 1, 1], [], []>} : vector<2x32xf32>, vector<32x96xf32>, vector<2x96xf32> -> vector<2x96xf32>
    %324 = vector.broadcast %31 : vector<1x96xf32> to vector<2x96xf32>
    %325 = arith.addf %323, %324 : vector<2x96xf32>
    %326 = vector.extract_strided_slice %322 {offsets = [0, 0], sizes = [2, 64], strides = [1, 1]} : vector<2x96xf32> to vector<2x64xf32>
    %327 = vector.extract_strided_slice %325 {offsets = [0, 0], sizes = [2, 64], strides = [1, 1]} : vector<2x96xf32> to vector<2x64xf32>
    %328 = arith.addf %326, %327 : vector<2x64xf32>
    %329 = arith.negf %328 : vector<2x64xf32>
    %330 = math.exp %329 : vector<2x64xf32>
    %cst_77 = arith.constant 1.000000e+00 : f32
    %331 = vector.broadcast %cst_77 : f32 to vector<2x64xf32>
    %332 = arith.addf %331, %330 : vector<2x64xf32>
    %333 = arith.divf %331, %332 : vector<2x64xf32>
    %334 = vector.extract_strided_slice %322 {offsets = [0, 64], sizes = [2, 32], strides = [1, 1]} : vector<2x96xf32> to vector<2x32xf32>
    %335 = vector.extract_strided_slice %333 {offsets = [0, 0], sizes = [2, 32], strides = [1, 1]} : vector<2x64xf32> to vector<2x32xf32>
    %336 = vector.extract_strided_slice %325 {offsets = [0, 64], sizes = [2, 32], strides = [1, 1]} : vector<2x96xf32> to vector<2x32xf32>
    %337 = arith.mulf %335, %336 : vector<2x32xf32>
    %338 = arith.addf %334, %337 : vector<2x32xf32>
    %339 = math.tanh %338 : vector<2x32xf32>
    %340 = vector.extract_strided_slice %333 {offsets = [0, 32], sizes = [2, 32], strides = [1, 1]} : vector<2x64xf32> to vector<2x32xf32>
    %cst_78 = arith.constant 1.000000e+00 : f32
    %341 = vector.broadcast %cst_78 : f32 to vector<2x32xf32>
    %342 = arith.subf %341, %340 : vector<2x32xf32>
    %343 = arith.mulf %342, %339 : vector<2x32xf32>
    %344 = arith.mulf %340, %295 : vector<2x32xf32>
    %345 = arith.addf %343, %344 : vector<2x32xf32>
    %c12 = arith.constant 12 : index
    %c0_79 = arith.constant 0 : index
    %346 = vector.load %arg3[%c12, %c0_79] : memref<16x96xf32, #tpu.memory_space<vmem>>, vector<2x96xf32>
    %cst_80 = arith.constant dense<0.000000e+00> : vector<2x96xf32>
    %347 = tpu.matmul %319, %43, %cst_80 {dimension_numbers = #tpu.dot_dimension_numbers<[1], [0], [0], [1], [0, 0, 1, 1], [], []>} : vector<2x32xf32>, vector<32x96xf32>, vector<2x96xf32> -> vector<2x96xf32>
    %348 = vector.broadcast %29 : vector<1x96xf32> to vector<2x96xf32>
    %349 = arith.addf %347, %348 : vector<2x96xf32>
    %350 = vector.extract_strided_slice %346 {offsets = [0, 0], sizes = [2, 64], strides = [1, 1]} : vector<2x96xf32> to vector<2x64xf32>
    %351 = vector.extract_strided_slice %349 {offsets = [0, 0], sizes = [2, 64], strides = [1, 1]} : vector<2x96xf32> to vector<2x64xf32>
    %352 = arith.addf %350, %351 : vector<2x64xf32>
    %353 = arith.negf %352 : vector<2x64xf32>
    %354 = math.exp %353 : vector<2x64xf32>
    %cst_81 = arith.constant 1.000000e+00 : f32
    %355 = vector.broadcast %cst_81 : f32 to vector<2x64xf32>
    %356 = arith.addf %355, %354 : vector<2x64xf32>
    %357 = arith.divf %355, %356 : vector<2x64xf32>
    %358 = vector.extract_strided_slice %346 {offsets = [0, 64], sizes = [2, 32], strides = [1, 1]} : vector<2x96xf32> to vector<2x32xf32>
    %359 = vector.extract_strided_slice %357 {offsets = [0, 0], sizes = [2, 32], strides = [1, 1]} : vector<2x64xf32> to vector<2x32xf32>
    %360 = vector.extract_strided_slice %349 {offsets = [0, 64], sizes = [2, 32], strides = [1, 1]} : vector<2x96xf32> to vector<2x32xf32>
    %361 = arith.mulf %359, %360 : vector<2x32xf32>
    %362 = arith.addf %358, %361 : vector<2x32xf32>
    %363 = math.tanh %362 : vector<2x32xf32>
    %364 = vector.extract_strided_slice %357 {offsets = [0, 32], sizes = [2, 32], strides = [1, 1]} : vector<2x64xf32> to vector<2x32xf32>
    %cst_82 = arith.constant 1.000000e+00 : f32
    %365 = vector.broadcast %cst_82 : f32 to vector<2x32xf32>
    %366 = arith.subf %365, %364 : vector<2x32xf32>
    %367 = arith.mulf %366, %363 : vector<2x32xf32>
    %368 = arith.mulf %364, %319 : vector<2x32xf32>
    %369 = arith.addf %367, %368 : vector<2x32xf32>
    %cst_83 = arith.constant dense<0.000000e+00> : vector<2x96xf32>
    %370 = tpu.matmul %369, %44, %cst_83 {dimension_numbers = #tpu.dot_dimension_numbers<[1], [0], [0], [1], [0, 0, 1, 1], [], []>} : vector<2x32xf32>, vector<32x96xf32>, vector<2x96xf32> -> vector<2x96xf32>
    %371 = vector.broadcast %30 : vector<1x96xf32> to vector<2x96xf32>
    %372 = arith.addf %370, %371 : vector<2x96xf32>
    %cst_84 = arith.constant dense<0.000000e+00> : vector<2x96xf32>
    %373 = tpu.matmul %345, %45, %cst_84 {dimension_numbers = #tpu.dot_dimension_numbers<[1], [0], [0], [1], [0, 0, 1, 1], [], []>} : vector<2x32xf32>, vector<32x96xf32>, vector<2x96xf32> -> vector<2x96xf32>
    %374 = vector.broadcast %31 : vector<1x96xf32> to vector<2x96xf32>
    %375 = arith.addf %373, %374 : vector<2x96xf32>
    %376 = vector.extract_strided_slice %372 {offsets = [0, 0], sizes = [2, 64], strides = [1, 1]} : vector<2x96xf32> to vector<2x64xf32>
    %377 = vector.extract_strided_slice %375 {offsets = [0, 0], sizes = [2, 64], strides = [1, 1]} : vector<2x96xf32> to vector<2x64xf32>
    %378 = arith.addf %376, %377 : vector<2x64xf32>
    %379 = arith.negf %378 : vector<2x64xf32>
    %380 = math.exp %379 : vector<2x64xf32>
    %cst_85 = arith.constant 1.000000e+00 : f32
    %381 = vector.broadcast %cst_85 : f32 to vector<2x64xf32>
    %382 = arith.addf %381, %380 : vector<2x64xf32>
    %383 = arith.divf %381, %382 : vector<2x64xf32>
    %384 = vector.extract_strided_slice %372 {offsets = [0, 64], sizes = [2, 32], strides = [1, 1]} : vector<2x96xf32> to vector<2x32xf32>
    %385 = vector.extract_strided_slice %383 {offsets = [0, 0], sizes = [2, 32], strides = [1, 1]} : vector<2x64xf32> to vector<2x32xf32>
    %386 = vector.extract_strided_slice %375 {offsets = [0, 64], sizes = [2, 32], strides = [1, 1]} : vector<2x96xf32> to vector<2x32xf32>
    %387 = arith.mulf %385, %386 : vector<2x32xf32>
    %388 = arith.addf %384, %387 : vector<2x32xf32>
    %389 = math.tanh %388 : vector<2x32xf32>
    %390 = vector.extract_strided_slice %383 {offsets = [0, 32], sizes = [2, 32], strides = [1, 1]} : vector<2x64xf32> to vector<2x32xf32>
    %cst_86 = arith.constant 1.000000e+00 : f32
    %391 = vector.broadcast %cst_86 : f32 to vector<2x32xf32>
    %392 = arith.subf %391, %390 : vector<2x32xf32>
    %393 = arith.mulf %392, %389 : vector<2x32xf32>
    %394 = arith.mulf %390, %345 : vector<2x32xf32>
    %395 = arith.addf %393, %394 : vector<2x32xf32>
    %c14 = arith.constant 14 : index
    %c0_87 = arith.constant 0 : index
    %396 = vector.load %arg3[%c14, %c0_87] : memref<16x96xf32, #tpu.memory_space<vmem>>, vector<2x96xf32>
    %cst_88 = arith.constant dense<0.000000e+00> : vector<2x96xf32>
    %397 = tpu.matmul %369, %43, %cst_88 {dimension_numbers = #tpu.dot_dimension_numbers<[1], [0], [0], [1], [0, 0, 1, 1], [], []>} : vector<2x32xf32>, vector<32x96xf32>, vector<2x96xf32> -> vector<2x96xf32>
    %398 = vector.broadcast %29 : vector<1x96xf32> to vector<2x96xf32>
    %399 = arith.addf %397, %398 : vector<2x96xf32>
    %400 = vector.extract_strided_slice %396 {offsets = [0, 0], sizes = [2, 64], strides = [1, 1]} : vector<2x96xf32> to vector<2x64xf32>
    %401 = vector.extract_strided_slice %399 {offsets = [0, 0], sizes = [2, 64], strides = [1, 1]} : vector<2x96xf32> to vector<2x64xf32>
    %402 = arith.addf %400, %401 : vector<2x64xf32>
    %403 = arith.negf %402 : vector<2x64xf32>
    %404 = math.exp %403 : vector<2x64xf32>
    %cst_89 = arith.constant 1.000000e+00 : f32
    %405 = vector.broadcast %cst_89 : f32 to vector<2x64xf32>
    %406 = arith.addf %405, %404 : vector<2x64xf32>
    %407 = arith.divf %405, %406 : vector<2x64xf32>
    %408 = vector.extract_strided_slice %396 {offsets = [0, 64], sizes = [2, 32], strides = [1, 1]} : vector<2x96xf32> to vector<2x32xf32>
    %409 = vector.extract_strided_slice %407 {offsets = [0, 0], sizes = [2, 32], strides = [1, 1]} : vector<2x64xf32> to vector<2x32xf32>
    %410 = vector.extract_strided_slice %399 {offsets = [0, 64], sizes = [2, 32], strides = [1, 1]} : vector<2x96xf32> to vector<2x32xf32>
    %411 = arith.mulf %409, %410 : vector<2x32xf32>
    %412 = arith.addf %408, %411 : vector<2x32xf32>
    %413 = math.tanh %412 : vector<2x32xf32>
    %414 = vector.extract_strided_slice %407 {offsets = [0, 32], sizes = [2, 32], strides = [1, 1]} : vector<2x64xf32> to vector<2x32xf32>
    %cst_90 = arith.constant 1.000000e+00 : f32
    %415 = vector.broadcast %cst_90 : f32 to vector<2x32xf32>
    %416 = arith.subf %415, %414 : vector<2x32xf32>
    %417 = arith.mulf %416, %413 : vector<2x32xf32>
    %418 = arith.mulf %414, %369 : vector<2x32xf32>
    %419 = arith.addf %417, %418 : vector<2x32xf32>
    %cst_91 = arith.constant dense<0.000000e+00> : vector<2x96xf32>
    %420 = tpu.matmul %419, %44, %cst_91 {dimension_numbers = #tpu.dot_dimension_numbers<[1], [0], [0], [1], [0, 0, 1, 1], [], []>} : vector<2x32xf32>, vector<32x96xf32>, vector<2x96xf32> -> vector<2x96xf32>
    %421 = vector.broadcast %30 : vector<1x96xf32> to vector<2x96xf32>
    %422 = arith.addf %420, %421 : vector<2x96xf32>
    %cst_92 = arith.constant dense<0.000000e+00> : vector<2x96xf32>
    %423 = tpu.matmul %395, %45, %cst_92 {dimension_numbers = #tpu.dot_dimension_numbers<[1], [0], [0], [1], [0, 0, 1, 1], [], []>} : vector<2x32xf32>, vector<32x96xf32>, vector<2x96xf32> -> vector<2x96xf32>
    %424 = vector.broadcast %31 : vector<1x96xf32> to vector<2x96xf32>
    %425 = arith.addf %423, %424 : vector<2x96xf32>
    %426 = vector.extract_strided_slice %422 {offsets = [0, 0], sizes = [2, 64], strides = [1, 1]} : vector<2x96xf32> to vector<2x64xf32>
    %427 = vector.extract_strided_slice %425 {offsets = [0, 0], sizes = [2, 64], strides = [1, 1]} : vector<2x96xf32> to vector<2x64xf32>
    %428 = arith.addf %426, %427 : vector<2x64xf32>
    %429 = arith.negf %428 : vector<2x64xf32>
    %430 = math.exp %429 : vector<2x64xf32>
    %cst_93 = arith.constant 1.000000e+00 : f32
    %431 = vector.broadcast %cst_93 : f32 to vector<2x64xf32>
    %432 = arith.addf %431, %430 : vector<2x64xf32>
    %433 = arith.divf %431, %432 : vector<2x64xf32>
    %434 = vector.extract_strided_slice %422 {offsets = [0, 64], sizes = [2, 32], strides = [1, 1]} : vector<2x96xf32> to vector<2x32xf32>
    %435 = vector.extract_strided_slice %433 {offsets = [0, 0], sizes = [2, 32], strides = [1, 1]} : vector<2x64xf32> to vector<2x32xf32>
    %436 = vector.extract_strided_slice %425 {offsets = [0, 64], sizes = [2, 32], strides = [1, 1]} : vector<2x96xf32> to vector<2x32xf32>
    %437 = arith.mulf %435, %436 : vector<2x32xf32>
    %438 = arith.addf %434, %437 : vector<2x32xf32>
    %439 = math.tanh %438 : vector<2x32xf32>
    %440 = vector.extract_strided_slice %433 {offsets = [0, 32], sizes = [2, 32], strides = [1, 1]} : vector<2x64xf32> to vector<2x32xf32>
    %cst_94 = arith.constant 1.000000e+00 : f32
    %441 = vector.broadcast %cst_94 : f32 to vector<2x32xf32>
    %442 = arith.subf %441, %440 : vector<2x32xf32>
    %443 = arith.mulf %442, %439 : vector<2x32xf32>
    %444 = arith.mulf %440, %395 : vector<2x32xf32>
    %445 = arith.addf %443, %444 : vector<2x32xf32>
    %c104 = arith.constant 104 : index
    %c0_95 = arith.constant 0 : index
    %446 = vector.load %arg1[%c104, %c0_95] : memref<120x128xf32, #tpu.memory_space<vmem>>, vector<16x16xf32>
    %c152 = arith.constant 152 : index
    %c0_96 = arith.constant 0 : index
    %447 = vector.load %arg0[%c152, %c0_96] : memref<344x128xf32, #tpu.memory_space<vmem>>, vector<16x96xf32>
    %cst_97 = arith.constant dense<0.000000e+00> : vector<16x96xf32>
    %448 = tpu.matmul %446, %447, %cst_97 {dimension_numbers = #tpu.dot_dimension_numbers<[1], [0], [0], [1], [0, 0, 1, 1], [], []>} : vector<16x16xf32>, vector<16x96xf32>, vector<16x96xf32> -> vector<16x96xf32>
    %449 = vector.broadcast %32 : vector<1x96xf32> to vector<16x96xf32>
    %450 = arith.addf %448, %449 : vector<16x96xf32>
    %c0_98 = arith.constant 0 : index
    %c0_99 = arith.constant 0 : index
    %451 = vector.load %arg3[%c0_98, %c0_99] : memref<16x96xf32, #tpu.memory_space<vmem>>, vector<16x96xf32>
    tpu.vector_store %arg3[%c0_98, %c0_99], %450 {strides = array<i32>} : memref<16x96xf32, #tpu.memory_space<vmem>>, vector<16x96xf32>,
    %c168 = arith.constant 168 : index
    %c0_100 = arith.constant 0 : index
    %452 = vector.load %arg0[%c168, %c0_100] : memref<344x128xf32, #tpu.memory_space<vmem>>, vector<32x96xf32>
    %cst_101 = arith.constant dense<0.000000e+00> : vector<2x96xf32>
    %453 = tpu.matmul %445, %452, %cst_101 {dimension_numbers = #tpu.dot_dimension_numbers<[1], [0], [0], [1], [0, 0, 1, 1], [], []>} : vector<2x32xf32>, vector<32x96xf32>, vector<2x96xf32> -> vector<2x96xf32>
    %c200 = arith.constant 200 : index
    %c0_102 = arith.constant 0 : index
    %454 = vector.load %arg0[%c200, %c0_102] : memref<344x128xf32, #tpu.memory_space<vmem>>, vector<32x96xf32>
    %c232 = arith.constant 232 : index
    %c0_103 = arith.constant 0 : index
    %455 = vector.load %arg0[%c232, %c0_103] : memref<344x128xf32, #tpu.memory_space<vmem>>, vector<32x96xf32>
    %c264 = arith.constant 264 : index
    %c0_104 = arith.constant 0 : index
    %456 = vector.load %arg0[%c264, %c0_104] : memref<344x128xf32, #tpu.memory_space<vmem>>, vector<32x96xf32>
    %c0_105 = arith.constant 0 : index
    %c0_106 = arith.constant 0 : index
    %457 = vector.load %arg3[%c0_105, %c0_106] : memref<16x96xf32, #tpu.memory_space<vmem>>, vector<2x96xf32>
    %458 = arith.addf %457, %453 : vector<2x96xf32>
    %cst_107 = arith.constant dense<0.000000e+00> : vector<2x96xf32>
    %459 = tpu.matmul %419, %454, %cst_107 {dimension_numbers = #tpu.dot_dimension_numbers<[1], [0], [0], [1], [0, 0, 1, 1], [], []>} : vector<2x32xf32>, vector<32x96xf32>, vector<2x96xf32> -> vector<2x96xf32>
    %460 = vector.broadcast %33 : vector<1x96xf32> to vector<2x96xf32>
    %461 = arith.addf %459, %460 : vector<2x96xf32>
    %462 = vector.extract_strided_slice %458 {offsets = [0, 0], sizes = [2, 64], strides = [1, 1]} : vector<2x96xf32> to vector<2x64xf32>
    %463 = vector.extract_strided_slice %461 {offsets = [0, 0], sizes = [2, 64], strides = [1, 1]} : vector<2x96xf32> to vector<2x64xf32>
    %464 = arith.addf %462, %463 : vector<2x64xf32>
    %465 = arith.negf %464 : vector<2x64xf32>
    %466 = math.exp %465 : vector<2x64xf32>
    %cst_108 = arith.constant 1.000000e+00 : f32
    %467 = vector.broadcast %cst_108 : f32 to vector<2x64xf32>
    %468 = arith.addf %467, %466 : vector<2x64xf32>
    %469 = arith.divf %467, %468 : vector<2x64xf32>
    %470 = vector.extract_strided_slice %458 {offsets = [0, 64], sizes = [2, 32], strides = [1, 1]} : vector<2x96xf32> to vector<2x32xf32>
    %471 = vector.extract_strided_slice %469 {offsets = [0, 0], sizes = [2, 32], strides = [1, 1]} : vector<2x64xf32> to vector<2x32xf32>
    %472 = vector.extract_strided_slice %461 {offsets = [0, 64], sizes = [2, 32], strides = [1, 1]} : vector<2x96xf32> to vector<2x32xf32>
    %473 = arith.mulf %471, %472 : vector<2x32xf32>
    %474 = arith.addf %470, %473 : vector<2x32xf32>
    %475 = math.tanh %474 : vector<2x32xf32>
    %476 = vector.extract_strided_slice %469 {offsets = [0, 32], sizes = [2, 32], strides = [1, 1]} : vector<2x64xf32> to vector<2x32xf32>
    %cst_109 = arith.constant 1.000000e+00 : f32
    %477 = vector.broadcast %cst_109 : f32 to vector<2x32xf32>
    %478 = arith.subf %477, %476 : vector<2x32xf32>
    %479 = arith.mulf %478, %475 : vector<2x32xf32>
    %480 = arith.mulf %476, %419 : vector<2x32xf32>
    %481 = arith.addf %479, %480 : vector<2x32xf32>
    %cst_110 = arith.constant dense<0.000000e+00> : vector<2x96xf32>
    %482 = tpu.matmul %481, %455, %cst_110 {dimension_numbers = #tpu.dot_dimension_numbers<[1], [0], [0], [1], [0, 0, 1, 1], [], []>} : vector<2x32xf32>, vector<32x96xf32>, vector<2x96xf32> -> vector<2x96xf32>
    %483 = vector.broadcast %34 : vector<1x96xf32> to vector<2x96xf32>
    %484 = arith.addf %482, %483 : vector<2x96xf32>
    %cst_111 = arith.constant dense<0.000000e+00> : vector<2x96xf32>
    %485 = tpu.matmul %445, %456, %cst_111 {dimension_numbers = #tpu.dot_dimension_numbers<[1], [0], [0], [1], [0, 0, 1, 1], [], []>} : vector<2x32xf32>, vector<32x96xf32>, vector<2x96xf32> -> vector<2x96xf32>
    %486 = vector.broadcast %35 : vector<1x96xf32> to vector<2x96xf32>
    %487 = arith.addf %485, %486 : vector<2x96xf32>
    %488 = vector.extract_strided_slice %484 {offsets = [0, 0], sizes = [2, 64], strides = [1, 1]} : vector<2x96xf32> to vector<2x64xf32>
    %489 = vector.extract_strided_slice %487 {offsets = [0, 0], sizes = [2, 64], strides = [1, 1]} : vector<2x96xf32> to vector<2x64xf32>
    %490 = arith.addf %488, %489 : vector<2x64xf32>
    %491 = arith.negf %490 : vector<2x64xf32>
    %492 = math.exp %491 : vector<2x64xf32>
    %cst_112 = arith.constant 1.000000e+00 : f32
    %493 = vector.broadcast %cst_112 : f32 to vector<2x64xf32>
    %494 = arith.addf %493, %492 : vector<2x64xf32>
    %495 = arith.divf %493, %494 : vector<2x64xf32>
    %496 = vector.extract_strided_slice %484 {offsets = [0, 64], sizes = [2, 32], strides = [1, 1]} : vector<2x96xf32> to vector<2x32xf32>
    %497 = vector.extract_strided_slice %495 {offsets = [0, 0], sizes = [2, 32], strides = [1, 1]} : vector<2x64xf32> to vector<2x32xf32>
    %498 = vector.extract_strided_slice %487 {offsets = [0, 64], sizes = [2, 32], strides = [1, 1]} : vector<2x96xf32> to vector<2x32xf32>
    %499 = arith.mulf %497, %498 : vector<2x32xf32>
    %500 = arith.addf %496, %499 : vector<2x32xf32>
    %501 = math.tanh %500 : vector<2x32xf32>
    %502 = vector.extract_strided_slice %495 {offsets = [0, 32], sizes = [2, 32], strides = [1, 1]} : vector<2x64xf32> to vector<2x32xf32>
    %cst_113 = arith.constant 1.000000e+00 : f32
    %503 = vector.broadcast %cst_113 : f32 to vector<2x32xf32>
    %504 = arith.subf %503, %502 : vector<2x32xf32>
    %505 = arith.mulf %504, %501 : vector<2x32xf32>
    %506 = arith.mulf %502, %445 : vector<2x32xf32>
    %507 = arith.addf %505, %506 : vector<2x32xf32>
    %c0_114 = arith.constant 0 : index
    %c0_115 = arith.constant 0 : index
    %508 = vector.load %arg4[%c0_114, %c0_115] : memref<16x32xf32, #tpu.memory_space<vmem>>, vector<2x32xf32>
    tpu.vector_store %arg4[%c0_114, %c0_115], %507 {strides = array<i32>} : memref<16x32xf32, #tpu.memory_space<vmem>>, vector<2x32xf32>,
    %c2_116 = arith.constant 2 : index
    %c0_117 = arith.constant 0 : index
    %509 = vector.load %arg3[%c2_116, %c0_117] : memref<16x96xf32, #tpu.memory_space<vmem>>, vector<2x96xf32>
    %510 = arith.addf %509, %453 : vector<2x96xf32>
    %cst_118 = arith.constant dense<0.000000e+00> : vector<2x96xf32>
    %511 = tpu.matmul %481, %454, %cst_118 {dimension_numbers = #tpu.dot_dimension_numbers<[1], [0], [0], [1], [0, 0, 1, 1], [], []>} : vector<2x32xf32>, vector<32x96xf32>, vector<2x96xf32> -> vector<2x96xf32>
    %512 = vector.broadcast %33 : vector<1x96xf32> to vector<2x96xf32>
    %513 = arith.addf %511, %512 : vector<2x96xf32>
    %514 = vector.extract_strided_slice %510 {offsets = [0, 0], sizes = [2, 64], strides = [1, 1]} : vector<2x96xf32> to vector<2x64xf32>
    %515 = vector.extract_strided_slice %513 {offsets = [0, 0], sizes = [2, 64], strides = [1, 1]} : vector<2x96xf32> to vector<2x64xf32>
    %516 = arith.addf %514, %515 : vector<2x64xf32>
    %517 = arith.negf %516 : vector<2x64xf32>
    %518 = math.exp %517 : vector<2x64xf32>
    %cst_119 = arith.constant 1.000000e+00 : f32
    %519 = vector.broadcast %cst_119 : f32 to vector<2x64xf32>
    %520 = arith.addf %519, %518 : vector<2x64xf32>
    %521 = arith.divf %519, %520 : vector<2x64xf32>
    %522 = vector.extract_strided_slice %510 {offsets = [0, 64], sizes = [2, 32], strides = [1, 1]} : vector<2x96xf32> to vector<2x32xf32>
    %523 = vector.extract_strided_slice %521 {offsets = [0, 0], sizes = [2, 32], strides = [1, 1]} : vector<2x64xf32> to vector<2x32xf32>
    %524 = vector.extract_strided_slice %513 {offsets = [0, 64], sizes = [2, 32], strides = [1, 1]} : vector<2x96xf32> to vector<2x32xf32>
    %525 = arith.mulf %523, %524 : vector<2x32xf32>
    %526 = arith.addf %522, %525 : vector<2x32xf32>
    %527 = math.tanh %526 : vector<2x32xf32>
    %528 = vector.extract_strided_slice %521 {offsets = [0, 32], sizes = [2, 32], strides = [1, 1]} : vector<2x64xf32> to vector<2x32xf32>
    %cst_120 = arith.constant 1.000000e+00 : f32
    %529 = vector.broadcast %cst_120 : f32 to vector<2x32xf32>
    %530 = arith.subf %529, %528 : vector<2x32xf32>
    %531 = arith.mulf %530, %527 : vector<2x32xf32>
    %532 = arith.mulf %528, %481 : vector<2x32xf32>
    %533 = arith.addf %531, %532 : vector<2x32xf32>
    %cst_121 = arith.constant dense<0.000000e+00> : vector<2x96xf32>
    %534 = tpu.matmul %533, %455, %cst_121 {dimension_numbers = #tpu.dot_dimension_numbers<[1], [0], [0], [1], [0, 0, 1, 1], [], []>} : vector<2x32xf32>, vector<32x96xf32>, vector<2x96xf32> -> vector<2x96xf32>
    %535 = vector.broadcast %34 : vector<1x96xf32> to vector<2x96xf32>
    %536 = arith.addf %534, %535 : vector<2x96xf32>
    %cst_122 = arith.constant dense<0.000000e+00> : vector<2x96xf32>
    %537 = tpu.matmul %507, %456, %cst_122 {dimension_numbers = #tpu.dot_dimension_numbers<[1], [0], [0], [1], [0, 0, 1, 1], [], []>} : vector<2x32xf32>, vector<32x96xf32>, vector<2x96xf32> -> vector<2x96xf32>
    %538 = vector.broadcast %35 : vector<1x96xf32> to vector<2x96xf32>
    %539 = arith.addf %537, %538 : vector<2x96xf32>
    %540 = vector.extract_strided_slice %536 {offsets = [0, 0], sizes = [2, 64], strides = [1, 1]} : vector<2x96xf32> to vector<2x64xf32>
    %541 = vector.extract_strided_slice %539 {offsets = [0, 0], sizes = [2, 64], strides = [1, 1]} : vector<2x96xf32> to vector<2x64xf32>
    %542 = arith.addf %540, %541 : vector<2x64xf32>
    %543 = arith.negf %542 : vector<2x64xf32>
    %544 = math.exp %543 : vector<2x64xf32>
    %cst_123 = arith.constant 1.000000e+00 : f32
    %545 = vector.broadcast %cst_123 : f32 to vector<2x64xf32>
    %546 = arith.addf %545, %544 : vector<2x64xf32>
    %547 = arith.divf %545, %546 : vector<2x64xf32>
    %548 = vector.extract_strided_slice %536 {offsets = [0, 64], sizes = [2, 32], strides = [1, 1]} : vector<2x96xf32> to vector<2x32xf32>
    %549 = vector.extract_strided_slice %547 {offsets = [0, 0], sizes = [2, 32], strides = [1, 1]} : vector<2x64xf32> to vector<2x32xf32>
    %550 = vector.extract_strided_slice %539 {offsets = [0, 64], sizes = [2, 32], strides = [1, 1]} : vector<2x96xf32> to vector<2x32xf32>
    %551 = arith.mulf %549, %550 : vector<2x32xf32>
    %552 = arith.addf %548, %551 : vector<2x32xf32>
    %553 = math.tanh %552 : vector<2x32xf32>
    %554 = vector.extract_strided_slice %547 {offsets = [0, 32], sizes = [2, 32], strides = [1, 1]} : vector<2x64xf32> to vector<2x32xf32>
    %cst_124 = arith.constant 1.000000e+00 : f32
    %555 = vector.broadcast %cst_124 : f32 to vector<2x32xf32>
    %556 = arith.subf %555, %554 : vector<2x32xf32>
    %557 = arith.mulf %556, %553 : vector<2x32xf32>
    %558 = arith.mulf %554, %507 : vector<2x32xf32>
    %559 = arith.addf %557, %558 : vector<2x32xf32>
    %c2_125 = arith.constant 2 : index
    %c0_126 = arith.constant 0 : index
    %560 = vector.load %arg4[%c2_125, %c0_126] : memref<16x32xf32, #tpu.memory_space<vmem>>, vector<2x32xf32>
    tpu.vector_store %arg4[%c2_125, %c0_126], %559 {strides = array<i32>} : memref<16x32xf32, #tpu.memory_space<vmem>>, vector<2x32xf32>,
    %c4_127 = arith.constant 4 : index
    %c0_128 = arith.constant 0 : index
    %561 = vector.load %arg3[%c4_127, %c0_128] : memref<16x96xf32, #tpu.memory_space<vmem>>, vector<2x96xf32>
    %562 = arith.addf %561, %453 : vector<2x96xf32>
    %cst_129 = arith.constant dense<0.000000e+00> : vector<2x96xf32>
    %563 = tpu.matmul %533, %454, %cst_129 {dimension_numbers = #tpu.dot_dimension_numbers<[1], [0], [0], [1], [0, 0, 1, 1], [], []>} : vector<2x32xf32>, vector<32x96xf32>, vector<2x96xf32> -> vector<2x96xf32>
    %564 = vector.broadcast %33 : vector<1x96xf32> to vector<2x96xf32>
    %565 = arith.addf %563, %564 : vector<2x96xf32>
    %566 = vector.extract_strided_slice %562 {offsets = [0, 0], sizes = [2, 64], strides = [1, 1]} : vector<2x96xf32> to vector<2x64xf32>
    %567 = vector.extract_strided_slice %565 {offsets = [0, 0], sizes = [2, 64], strides = [1, 1]} : vector<2x96xf32> to vector<2x64xf32>
    %568 = arith.addf %566, %567 : vector<2x64xf32>
    %569 = arith.negf %568 : vector<2x64xf32>
    %570 = math.exp %569 : vector<2x64xf32>
    %cst_130 = arith.constant 1.000000e+00 : f32
    %571 = vector.broadcast %cst_130 : f32 to vector<2x64xf32>
    %572 = arith.addf %571, %570 : vector<2x64xf32>
    %573 = arith.divf %571, %572 : vector<2x64xf32>
    %574 = vector.extract_strided_slice %562 {offsets = [0, 64], sizes = [2, 32], strides = [1, 1]} : vector<2x96xf32> to vector<2x32xf32>
    %575 = vector.extract_strided_slice %573 {offsets = [0, 0], sizes = [2, 32], strides = [1, 1]} : vector<2x64xf32> to vector<2x32xf32>
    %576 = vector.extract_strided_slice %565 {offsets = [0, 64], sizes = [2, 32], strides = [1, 1]} : vector<2x96xf32> to vector<2x32xf32>
    %577 = arith.mulf %575, %576 : vector<2x32xf32>
    %578 = arith.addf %574, %577 : vector<2x32xf32>
    %579 = math.tanh %578 : vector<2x32xf32>
    %580 = vector.extract_strided_slice %573 {offsets = [0, 32], sizes = [2, 32], strides = [1, 1]} : vector<2x64xf32> to vector<2x32xf32>
    %cst_131 = arith.constant 1.000000e+00 : f32
    %581 = vector.broadcast %cst_131 : f32 to vector<2x32xf32>
    %582 = arith.subf %581, %580 : vector<2x32xf32>
    %583 = arith.mulf %582, %579 : vector<2x32xf32>
    %584 = arith.mulf %580, %533 : vector<2x32xf32>
    %585 = arith.addf %583, %584 : vector<2x32xf32>
    %cst_132 = arith.constant dense<0.000000e+00> : vector<2x96xf32>
    %586 = tpu.matmul %585, %455, %cst_132 {dimension_numbers = #tpu.dot_dimension_numbers<[1], [0], [0], [1], [0, 0, 1, 1], [], []>} : vector<2x32xf32>, vector<32x96xf32>, vector<2x96xf32> -> vector<2x96xf32>
    %587 = vector.broadcast %34 : vector<1x96xf32> to vector<2x96xf32>
    %588 = arith.addf %586, %587 : vector<2x96xf32>
    %cst_133 = arith.constant dense<0.000000e+00> : vector<2x96xf32>
    %589 = tpu.matmul %559, %456, %cst_133 {dimension_numbers = #tpu.dot_dimension_numbers<[1], [0], [0], [1], [0, 0, 1, 1], [], []>} : vector<2x32xf32>, vector<32x96xf32>, vector<2x96xf32> -> vector<2x96xf32>
    %590 = vector.broadcast %35 : vector<1x96xf32> to vector<2x96xf32>
    %591 = arith.addf %589, %590 : vector<2x96xf32>
    %592 = vector.extract_strided_slice %588 {offsets = [0, 0], sizes = [2, 64], strides = [1, 1]} : vector<2x96xf32> to vector<2x64xf32>
    %593 = vector.extract_strided_slice %591 {offsets = [0, 0], sizes = [2, 64], strides = [1, 1]} : vector<2x96xf32> to vector<2x64xf32>
    %594 = arith.addf %592, %593 : vector<2x64xf32>
    %595 = arith.negf %594 : vector<2x64xf32>
    %596 = math.exp %595 : vector<2x64xf32>
    %cst_134 = arith.constant 1.000000e+00 : f32
    %597 = vector.broadcast %cst_134 : f32 to vector<2x64xf32>
    %598 = arith.addf %597, %596 : vector<2x64xf32>
    %599 = arith.divf %597, %598 : vector<2x64xf32>
    %600 = vector.extract_strided_slice %588 {offsets = [0, 64], sizes = [2, 32], strides = [1, 1]} : vector<2x96xf32> to vector<2x32xf32>
    %601 = vector.extract_strided_slice %599 {offsets = [0, 0], sizes = [2, 32], strides = [1, 1]} : vector<2x64xf32> to vector<2x32xf32>
    %602 = vector.extract_strided_slice %591 {offsets = [0, 64], sizes = [2, 32], strides = [1, 1]} : vector<2x96xf32> to vector<2x32xf32>
    %603 = arith.mulf %601, %602 : vector<2x32xf32>
    %604 = arith.addf %600, %603 : vector<2x32xf32>
    %605 = math.tanh %604 : vector<2x32xf32>
    %606 = vector.extract_strided_slice %599 {offsets = [0, 32], sizes = [2, 32], strides = [1, 1]} : vector<2x64xf32> to vector<2x32xf32>
    %cst_135 = arith.constant 1.000000e+00 : f32
    %607 = vector.broadcast %cst_135 : f32 to vector<2x32xf32>
    %608 = arith.subf %607, %606 : vector<2x32xf32>
    %609 = arith.mulf %608, %605 : vector<2x32xf32>
    %610 = arith.mulf %606, %559 : vector<2x32xf32>
    %611 = arith.addf %609, %610 : vector<2x32xf32>
    %c4_136 = arith.constant 4 : index
    %c0_137 = arith.constant 0 : index
    %612 = vector.load %arg4[%c4_136, %c0_137] : memref<16x32xf32, #tpu.memory_space<vmem>>, vector<2x32xf32>
    tpu.vector_store %arg4[%c4_136, %c0_137], %611 {strides = array<i32>} : memref<16x32xf32, #tpu.memory_space<vmem>>, vector<2x32xf32>,
    %c6_138 = arith.constant 6 : index
    %c0_139 = arith.constant 0 : index
    %613 = vector.load %arg3[%c6_138, %c0_139] : memref<16x96xf32, #tpu.memory_space<vmem>>, vector<2x96xf32>
    %614 = arith.addf %613, %453 : vector<2x96xf32>
    %cst_140 = arith.constant dense<0.000000e+00> : vector<2x96xf32>
    %615 = tpu.matmul %585, %454, %cst_140 {dimension_numbers = #tpu.dot_dimension_numbers<[1], [0], [0], [1], [0, 0, 1, 1], [], []>} : vector<2x32xf32>, vector<32x96xf32>, vector<2x96xf32> -> vector<2x96xf32>
    %616 = vector.broadcast %33 : vector<1x96xf32> to vector<2x96xf32>
    %617 = arith.addf %615, %616 : vector<2x96xf32>
    %618 = vector.extract_strided_slice %614 {offsets = [0, 0], sizes = [2, 64], strides = [1, 1]} : vector<2x96xf32> to vector<2x64xf32>
    %619 = vector.extract_strided_slice %617 {offsets = [0, 0], sizes = [2, 64], strides = [1, 1]} : vector<2x96xf32> to vector<2x64xf32>
    %620 = arith.addf %618, %619 : vector<2x64xf32>
    %621 = arith.negf %620 : vector<2x64xf32>
    %622 = math.exp %621 : vector<2x64xf32>
    %cst_141 = arith.constant 1.000000e+00 : f32
    %623 = vector.broadcast %cst_141 : f32 to vector<2x64xf32>
    %624 = arith.addf %623, %622 : vector<2x64xf32>
    %625 = arith.divf %623, %624 : vector<2x64xf32>
    %626 = vector.extract_strided_slice %614 {offsets = [0, 64], sizes = [2, 32], strides = [1, 1]} : vector<2x96xf32> to vector<2x32xf32>
    %627 = vector.extract_strided_slice %625 {offsets = [0, 0], sizes = [2, 32], strides = [1, 1]} : vector<2x64xf32> to vector<2x32xf32>
    %628 = vector.extract_strided_slice %617 {offsets = [0, 64], sizes = [2, 32], strides = [1, 1]} : vector<2x96xf32> to vector<2x32xf32>
    %629 = arith.mulf %627, %628 : vector<2x32xf32>
    %630 = arith.addf %626, %629 : vector<2x32xf32>
    %631 = math.tanh %630 : vector<2x32xf32>
    %632 = vector.extract_strided_slice %625 {offsets = [0, 32], sizes = [2, 32], strides = [1, 1]} : vector<2x64xf32> to vector<2x32xf32>
    %cst_142 = arith.constant 1.000000e+00 : f32
    %633 = vector.broadcast %cst_142 : f32 to vector<2x32xf32>
    %634 = arith.subf %633, %632 : vector<2x32xf32>
    %635 = arith.mulf %634, %631 : vector<2x32xf32>
    %636 = arith.mulf %632, %585 : vector<2x32xf32>
    %637 = arith.addf %635, %636 : vector<2x32xf32>
    %cst_143 = arith.constant dense<0.000000e+00> : vector<2x96xf32>
    %638 = tpu.matmul %637, %455, %cst_143 {dimension_numbers = #tpu.dot_dimension_numbers<[1], [0], [0], [1], [0, 0, 1, 1], [], []>} : vector<2x32xf32>, vector<32x96xf32>, vector<2x96xf32> -> vector<2x96xf32>
    %639 = vector.broadcast %34 : vector<1x96xf32> to vector<2x96xf32>
    %640 = arith.addf %638, %639 : vector<2x96xf32>
    %cst_144 = arith.constant dense<0.000000e+00> : vector<2x96xf32>
    %641 = tpu.matmul %611, %456, %cst_144 {dimension_numbers = #tpu.dot_dimension_numbers<[1], [0], [0], [1], [0, 0, 1, 1], [], []>} : vector<2x32xf32>, vector<32x96xf32>, vector<2x96xf32> -> vector<2x96xf32>
    %642 = vector.broadcast %35 : vector<1x96xf32> to vector<2x96xf32>
    %643 = arith.addf %641, %642 : vector<2x96xf32>
    %644 = vector.extract_strided_slice %640 {offsets = [0, 0], sizes = [2, 64], strides = [1, 1]} : vector<2x96xf32> to vector<2x64xf32>
    %645 = vector.extract_strided_slice %643 {offsets = [0, 0], sizes = [2, 64], strides = [1, 1]} : vector<2x96xf32> to vector<2x64xf32>
    %646 = arith.addf %644, %645 : vector<2x64xf32>
    %647 = arith.negf %646 : vector<2x64xf32>
    %648 = math.exp %647 : vector<2x64xf32>
    %cst_145 = arith.constant 1.000000e+00 : f32
    %649 = vector.broadcast %cst_145 : f32 to vector<2x64xf32>
    %650 = arith.addf %649, %648 : vector<2x64xf32>
    %651 = arith.divf %649, %650 : vector<2x64xf32>
    %652 = vector.extract_strided_slice %640 {offsets = [0, 64], sizes = [2, 32], strides = [1, 1]} : vector<2x96xf32> to vector<2x32xf32>
    %653 = vector.extract_strided_slice %651 {offsets = [0, 0], sizes = [2, 32], strides = [1, 1]} : vector<2x64xf32> to vector<2x32xf32>
    %654 = vector.extract_strided_slice %643 {offsets = [0, 64], sizes = [2, 32], strides = [1, 1]} : vector<2x96xf32> to vector<2x32xf32>
    %655 = arith.mulf %653, %654 : vector<2x32xf32>
    %656 = arith.addf %652, %655 : vector<2x32xf32>
    %657 = math.tanh %656 : vector<2x32xf32>
    %658 = vector.extract_strided_slice %651 {offsets = [0, 32], sizes = [2, 32], strides = [1, 1]} : vector<2x64xf32> to vector<2x32xf32>
    %cst_146 = arith.constant 1.000000e+00 : f32
    %659 = vector.broadcast %cst_146 : f32 to vector<2x32xf32>
    %660 = arith.subf %659, %658 : vector<2x32xf32>
    %661 = arith.mulf %660, %657 : vector<2x32xf32>
    %662 = arith.mulf %658, %611 : vector<2x32xf32>
    %663 = arith.addf %661, %662 : vector<2x32xf32>
    %c6_147 = arith.constant 6 : index
    %c0_148 = arith.constant 0 : index
    %664 = vector.load %arg4[%c6_147, %c0_148] : memref<16x32xf32, #tpu.memory_space<vmem>>, vector<2x32xf32>
    tpu.vector_store %arg4[%c6_147, %c0_148], %663 {strides = array<i32>} : memref<16x32xf32, #tpu.memory_space<vmem>>, vector<2x32xf32>,
    %c8_149 = arith.constant 8 : index
    %c0_150 = arith.constant 0 : index
    %665 = vector.load %arg3[%c8_149, %c0_150] : memref<16x96xf32, #tpu.memory_space<vmem>>, vector<2x96xf32>
    %666 = arith.addf %665, %453 : vector<2x96xf32>
    %cst_151 = arith.constant dense<0.000000e+00> : vector<2x96xf32>
    %667 = tpu.matmul %637, %454, %cst_151 {dimension_numbers = #tpu.dot_dimension_numbers<[1], [0], [0], [1], [0, 0, 1, 1], [], []>} : vector<2x32xf32>, vector<32x96xf32>, vector<2x96xf32> -> vector<2x96xf32>
    %668 = vector.broadcast %33 : vector<1x96xf32> to vector<2x96xf32>
    %669 = arith.addf %667, %668 : vector<2x96xf32>
    %670 = vector.extract_strided_slice %666 {offsets = [0, 0], sizes = [2, 64], strides = [1, 1]} : vector<2x96xf32> to vector<2x64xf32>
    %671 = vector.extract_strided_slice %669 {offsets = [0, 0], sizes = [2, 64], strides = [1, 1]} : vector<2x96xf32> to vector<2x64xf32>
    %672 = arith.addf %670, %671 : vector<2x64xf32>
    %673 = arith.negf %672 : vector<2x64xf32>
    %674 = math.exp %673 : vector<2x64xf32>
    %cst_152 = arith.constant 1.000000e+00 : f32
    %675 = vector.broadcast %cst_152 : f32 to vector<2x64xf32>
    %676 = arith.addf %675, %674 : vector<2x64xf32>
    %677 = arith.divf %675, %676 : vector<2x64xf32>
    %678 = vector.extract_strided_slice %666 {offsets = [0, 64], sizes = [2, 32], strides = [1, 1]} : vector<2x96xf32> to vector<2x32xf32>
    %679 = vector.extract_strided_slice %677 {offsets = [0, 0], sizes = [2, 32], strides = [1, 1]} : vector<2x64xf32> to vector<2x32xf32>
    %680 = vector.extract_strided_slice %669 {offsets = [0, 64], sizes = [2, 32], strides = [1, 1]} : vector<2x96xf32> to vector<2x32xf32>
    %681 = arith.mulf %679, %680 : vector<2x32xf32>
    %682 = arith.addf %678, %681 : vector<2x32xf32>
    %683 = math.tanh %682 : vector<2x32xf32>
    %684 = vector.extract_strided_slice %677 {offsets = [0, 32], sizes = [2, 32], strides = [1, 1]} : vector<2x64xf32> to vector<2x32xf32>
    %cst_153 = arith.constant 1.000000e+00 : f32
    %685 = vector.broadcast %cst_153 : f32 to vector<2x32xf32>
    %686 = arith.subf %685, %684 : vector<2x32xf32>
    %687 = arith.mulf %686, %683 : vector<2x32xf32>
    %688 = arith.mulf %684, %637 : vector<2x32xf32>
    %689 = arith.addf %687, %688 : vector<2x32xf32>
    %cst_154 = arith.constant dense<0.000000e+00> : vector<2x96xf32>
    %690 = tpu.matmul %689, %455, %cst_154 {dimension_numbers = #tpu.dot_dimension_numbers<[1], [0], [0], [1], [0, 0, 1, 1], [], []>} : vector<2x32xf32>, vector<32x96xf32>, vector<2x96xf32> -> vector<2x96xf32>
    %691 = vector.broadcast %34 : vector<1x96xf32> to vector<2x96xf32>
    %692 = arith.addf %690, %691 : vector<2x96xf32>
    %cst_155 = arith.constant dense<0.000000e+00> : vector<2x96xf32>
    %693 = tpu.matmul %663, %456, %cst_155 {dimension_numbers = #tpu.dot_dimension_numbers<[1], [0], [0], [1], [0, 0, 1, 1], [], []>} : vector<2x32xf32>, vector<32x96xf32>, vector<2x96xf32> -> vector<2x96xf32>
    %694 = vector.broadcast %35 : vector<1x96xf32> to vector<2x96xf32>
    %695 = arith.addf %693, %694 : vector<2x96xf32>
    %696 = vector.extract_strided_slice %692 {offsets = [0, 0], sizes = [2, 64], strides = [1, 1]} : vector<2x96xf32> to vector<2x64xf32>
    %697 = vector.extract_strided_slice %695 {offsets = [0, 0], sizes = [2, 64], strides = [1, 1]} : vector<2x96xf32> to vector<2x64xf32>
    %698 = arith.addf %696, %697 : vector<2x64xf32>
    %699 = arith.negf %698 : vector<2x64xf32>
    %700 = math.exp %699 : vector<2x64xf32>
    %cst_156 = arith.constant 1.000000e+00 : f32
    %701 = vector.broadcast %cst_156 : f32 to vector<2x64xf32>
    %702 = arith.addf %701, %700 : vector<2x64xf32>
    %703 = arith.divf %701, %702 : vector<2x64xf32>
    %704 = vector.extract_strided_slice %692 {offsets = [0, 64], sizes = [2, 32], strides = [1, 1]} : vector<2x96xf32> to vector<2x32xf32>
    %705 = vector.extract_strided_slice %703 {offsets = [0, 0], sizes = [2, 32], strides = [1, 1]} : vector<2x64xf32> to vector<2x32xf32>
    %706 = vector.extract_strided_slice %695 {offsets = [0, 64], sizes = [2, 32], strides = [1, 1]} : vector<2x96xf32> to vector<2x32xf32>
    %707 = arith.mulf %705, %706 : vector<2x32xf32>
    %708 = arith.addf %704, %707 : vector<2x32xf32>
    %709 = math.tanh %708 : vector<2x32xf32>
    %710 = vector.extract_strided_slice %703 {offsets = [0, 32], sizes = [2, 32], strides = [1, 1]} : vector<2x64xf32> to vector<2x32xf32>
    %cst_157 = arith.constant 1.000000e+00 : f32
    %711 = vector.broadcast %cst_157 : f32 to vector<2x32xf32>
    %712 = arith.subf %711, %710 : vector<2x32xf32>
    %713 = arith.mulf %712, %709 : vector<2x32xf32>
    %714 = arith.mulf %710, %663 : vector<2x32xf32>
    %715 = arith.addf %713, %714 : vector<2x32xf32>
    %c8_158 = arith.constant 8 : index
    %c0_159 = arith.constant 0 : index
    %716 = vector.load %arg4[%c8_158, %c0_159] : memref<16x32xf32, #tpu.memory_space<vmem>>, vector<2x32xf32>
    tpu.vector_store %arg4[%c8_158, %c0_159], %715 {strides = array<i32>} : memref<16x32xf32, #tpu.memory_space<vmem>>, vector<2x32xf32>,
    %c10_160 = arith.constant 10 : index
    %c0_161 = arith.constant 0 : index
    %717 = vector.load %arg3[%c10_160, %c0_161] : memref<16x96xf32, #tpu.memory_space<vmem>>, vector<2x96xf32>
    %718 = arith.addf %717, %453 : vector<2x96xf32>
    %cst_162 = arith.constant dense<0.000000e+00> : vector<2x96xf32>
    %719 = tpu.matmul %689, %454, %cst_162 {dimension_numbers = #tpu.dot_dimension_numbers<[1], [0], [0], [1], [0, 0, 1, 1], [], []>} : vector<2x32xf32>, vector<32x96xf32>, vector<2x96xf32> -> vector<2x96xf32>
    %720 = vector.broadcast %33 : vector<1x96xf32> to vector<2x96xf32>
    %721 = arith.addf %719, %720 : vector<2x96xf32>
    %722 = vector.extract_strided_slice %718 {offsets = [0, 0], sizes = [2, 64], strides = [1, 1]} : vector<2x96xf32> to vector<2x64xf32>
    %723 = vector.extract_strided_slice %721 {offsets = [0, 0], sizes = [2, 64], strides = [1, 1]} : vector<2x96xf32> to vector<2x64xf32>
    %724 = arith.addf %722, %723 : vector<2x64xf32>
    %725 = arith.negf %724 : vector<2x64xf32>
    %726 = math.exp %725 : vector<2x64xf32>
    %cst_163 = arith.constant 1.000000e+00 : f32
    %727 = vector.broadcast %cst_163 : f32 to vector<2x64xf32>
    %728 = arith.addf %727, %726 : vector<2x64xf32>
    %729 = arith.divf %727, %728 : vector<2x64xf32>
    %730 = vector.extract_strided_slice %718 {offsets = [0, 64], sizes = [2, 32], strides = [1, 1]} : vector<2x96xf32> to vector<2x32xf32>
    %731 = vector.extract_strided_slice %729 {offsets = [0, 0], sizes = [2, 32], strides = [1, 1]} : vector<2x64xf32> to vector<2x32xf32>
    %732 = vector.extract_strided_slice %721 {offsets = [0, 64], sizes = [2, 32], strides = [1, 1]} : vector<2x96xf32> to vector<2x32xf32>
    %733 = arith.mulf %731, %732 : vector<2x32xf32>
    %734 = arith.addf %730, %733 : vector<2x32xf32>
    %735 = math.tanh %734 : vector<2x32xf32>
    %736 = vector.extract_strided_slice %729 {offsets = [0, 32], sizes = [2, 32], strides = [1, 1]} : vector<2x64xf32> to vector<2x32xf32>
    %cst_164 = arith.constant 1.000000e+00 : f32
    %737 = vector.broadcast %cst_164 : f32 to vector<2x32xf32>
    %738 = arith.subf %737, %736 : vector<2x32xf32>
    %739 = arith.mulf %738, %735 : vector<2x32xf32>
    %740 = arith.mulf %736, %689 : vector<2x32xf32>
    %741 = arith.addf %739, %740 : vector<2x32xf32>
    %cst_165 = arith.constant dense<0.000000e+00> : vector<2x96xf32>
    %742 = tpu.matmul %741, %455, %cst_165 {dimension_numbers = #tpu.dot_dimension_numbers<[1], [0], [0], [1], [0, 0, 1, 1], [], []>} : vector<2x32xf32>, vector<32x96xf32>, vector<2x96xf32> -> vector<2x96xf32>
    %743 = vector.broadcast %34 : vector<1x96xf32> to vector<2x96xf32>
    %744 = arith.addf %742, %743 : vector<2x96xf32>
    %cst_166 = arith.constant dense<0.000000e+00> : vector<2x96xf32>
    %745 = tpu.matmul %715, %456, %cst_166 {dimension_numbers = #tpu.dot_dimension_numbers<[1], [0], [0], [1], [0, 0, 1, 1], [], []>} : vector<2x32xf32>, vector<32x96xf32>, vector<2x96xf32> -> vector<2x96xf32>
    %746 = vector.broadcast %35 : vector<1x96xf32> to vector<2x96xf32>
    %747 = arith.addf %745, %746 : vector<2x96xf32>
    %748 = vector.extract_strided_slice %744 {offsets = [0, 0], sizes = [2, 64], strides = [1, 1]} : vector<2x96xf32> to vector<2x64xf32>
    %749 = vector.extract_strided_slice %747 {offsets = [0, 0], sizes = [2, 64], strides = [1, 1]} : vector<2x96xf32> to vector<2x64xf32>
    %750 = arith.addf %748, %749 : vector<2x64xf32>
    %751 = arith.negf %750 : vector<2x64xf32>
    %752 = math.exp %751 : vector<2x64xf32>
    %cst_167 = arith.constant 1.000000e+00 : f32
    %753 = vector.broadcast %cst_167 : f32 to vector<2x64xf32>
    %754 = arith.addf %753, %752 : vector<2x64xf32>
    %755 = arith.divf %753, %754 : vector<2x64xf32>
    %756 = vector.extract_strided_slice %744 {offsets = [0, 64], sizes = [2, 32], strides = [1, 1]} : vector<2x96xf32> to vector<2x32xf32>
    %757 = vector.extract_strided_slice %755 {offsets = [0, 0], sizes = [2, 32], strides = [1, 1]} : vector<2x64xf32> to vector<2x32xf32>
    %758 = vector.extract_strided_slice %747 {offsets = [0, 64], sizes = [2, 32], strides = [1, 1]} : vector<2x96xf32> to vector<2x32xf32>
    %759 = arith.mulf %757, %758 : vector<2x32xf32>
    %760 = arith.addf %756, %759 : vector<2x32xf32>
    %761 = math.tanh %760 : vector<2x32xf32>
    %762 = vector.extract_strided_slice %755 {offsets = [0, 32], sizes = [2, 32], strides = [1, 1]} : vector<2x64xf32> to vector<2x32xf32>
    %cst_168 = arith.constant 1.000000e+00 : f32
    %763 = vector.broadcast %cst_168 : f32 to vector<2x32xf32>
    %764 = arith.subf %763, %762 : vector<2x32xf32>
    %765 = arith.mulf %764, %761 : vector<2x32xf32>
    %766 = arith.mulf %762, %715 : vector<2x32xf32>
    %767 = arith.addf %765, %766 : vector<2x32xf32>
    %c10_169 = arith.constant 10 : index
    %c0_170 = arith.constant 0 : index
    %768 = vector.load %arg4[%c10_169, %c0_170] : memref<16x32xf32, #tpu.memory_space<vmem>>, vector<2x32xf32>
    tpu.vector_store %arg4[%c10_169, %c0_170], %767 {strides = array<i32>} : memref<16x32xf32, #tpu.memory_space<vmem>>, vector<2x32xf32>,
    %c12_171 = arith.constant 12 : index
    %c0_172 = arith.constant 0 : index
    %769 = vector.load %arg3[%c12_171, %c0_172] : memref<16x96xf32, #tpu.memory_space<vmem>>, vector<2x96xf32>
    %770 = arith.addf %769, %453 : vector<2x96xf32>
    %cst_173 = arith.constant dense<0.000000e+00> : vector<2x96xf32>
    %771 = tpu.matmul %741, %454, %cst_173 {dimension_numbers = #tpu.dot_dimension_numbers<[1], [0], [0], [1], [0, 0, 1, 1], [], []>} : vector<2x32xf32>, vector<32x96xf32>, vector<2x96xf32> -> vector<2x96xf32>
    %772 = vector.broadcast %33 : vector<1x96xf32> to vector<2x96xf32>
    %773 = arith.addf %771, %772 : vector<2x96xf32>
    %774 = vector.extract_strided_slice %770 {offsets = [0, 0], sizes = [2, 64], strides = [1, 1]} : vector<2x96xf32> to vector<2x64xf32>
    %775 = vector.extract_strided_slice %773 {offsets = [0, 0], sizes = [2, 64], strides = [1, 1]} : vector<2x96xf32> to vector<2x64xf32>
    %776 = arith.addf %774, %775 : vector<2x64xf32>
    %777 = arith.negf %776 : vector<2x64xf32>
    %778 = math.exp %777 : vector<2x64xf32>
    %cst_174 = arith.constant 1.000000e+00 : f32
    %779 = vector.broadcast %cst_174 : f32 to vector<2x64xf32>
    %780 = arith.addf %779, %778 : vector<2x64xf32>
    %781 = arith.divf %779, %780 : vector<2x64xf32>
    %782 = vector.extract_strided_slice %770 {offsets = [0, 64], sizes = [2, 32], strides = [1, 1]} : vector<2x96xf32> to vector<2x32xf32>
    %783 = vector.extract_strided_slice %781 {offsets = [0, 0], sizes = [2, 32], strides = [1, 1]} : vector<2x64xf32> to vector<2x32xf32>
    %784 = vector.extract_strided_slice %773 {offsets = [0, 64], sizes = [2, 32], strides = [1, 1]} : vector<2x96xf32> to vector<2x32xf32>
    %785 = arith.mulf %783, %784 : vector<2x32xf32>
    %786 = arith.addf %782, %785 : vector<2x32xf32>
    %787 = math.tanh %786 : vector<2x32xf32>
    %788 = vector.extract_strided_slice %781 {offsets = [0, 32], sizes = [2, 32], strides = [1, 1]} : vector<2x64xf32> to vector<2x32xf32>
    %cst_175 = arith.constant 1.000000e+00 : f32
    %789 = vector.broadcast %cst_175 : f32 to vector<2x32xf32>
    %790 = arith.subf %789, %788 : vector<2x32xf32>
    %791 = arith.mulf %790, %787 : vector<2x32xf32>
    %792 = arith.mulf %788, %741 : vector<2x32xf32>
    %793 = arith.addf %791, %792 : vector<2x32xf32>
    %cst_176 = arith.constant dense<0.000000e+00> : vector<2x96xf32>
    %794 = tpu.matmul %793, %455, %cst_176 {dimension_numbers = #tpu.dot_dimension_numbers<[1], [0], [0], [1], [0, 0, 1, 1], [], []>} : vector<2x32xf32>, vector<32x96xf32>, vector<2x96xf32> -> vector<2x96xf32>
    %795 = vector.broadcast %34 : vector<1x96xf32> to vector<2x96xf32>
    %796 = arith.addf %794, %795 : vector<2x96xf32>
    %cst_177 = arith.constant dense<0.000000e+00> : vector<2x96xf32>
    %797 = tpu.matmul %767, %456, %cst_177 {dimension_numbers = #tpu.dot_dimension_numbers<[1], [0], [0], [1], [0, 0, 1, 1], [], []>} : vector<2x32xf32>, vector<32x96xf32>, vector<2x96xf32> -> vector<2x96xf32>
    %798 = vector.broadcast %35 : vector<1x96xf32> to vector<2x96xf32>
    %799 = arith.addf %797, %798 : vector<2x96xf32>
    %800 = vector.extract_strided_slice %796 {offsets = [0, 0], sizes = [2, 64], strides = [1, 1]} : vector<2x96xf32> to vector<2x64xf32>
    %801 = vector.extract_strided_slice %799 {offsets = [0, 0], sizes = [2, 64], strides = [1, 1]} : vector<2x96xf32> to vector<2x64xf32>
    %802 = arith.addf %800, %801 : vector<2x64xf32>
    %803 = arith.negf %802 : vector<2x64xf32>
    %804 = math.exp %803 : vector<2x64xf32>
    %cst_178 = arith.constant 1.000000e+00 : f32
    %805 = vector.broadcast %cst_178 : f32 to vector<2x64xf32>
    %806 = arith.addf %805, %804 : vector<2x64xf32>
    %807 = arith.divf %805, %806 : vector<2x64xf32>
    %808 = vector.extract_strided_slice %796 {offsets = [0, 64], sizes = [2, 32], strides = [1, 1]} : vector<2x96xf32> to vector<2x32xf32>
    %809 = vector.extract_strided_slice %807 {offsets = [0, 0], sizes = [2, 32], strides = [1, 1]} : vector<2x64xf32> to vector<2x32xf32>
    %810 = vector.extract_strided_slice %799 {offsets = [0, 64], sizes = [2, 32], strides = [1, 1]} : vector<2x96xf32> to vector<2x32xf32>
    %811 = arith.mulf %809, %810 : vector<2x32xf32>
    %812 = arith.addf %808, %811 : vector<2x32xf32>
    %813 = math.tanh %812 : vector<2x32xf32>
    %814 = vector.extract_strided_slice %807 {offsets = [0, 32], sizes = [2, 32], strides = [1, 1]} : vector<2x64xf32> to vector<2x32xf32>
    %cst_179 = arith.constant 1.000000e+00 : f32
    %815 = vector.broadcast %cst_179 : f32 to vector<2x32xf32>
    %816 = arith.subf %815, %814 : vector<2x32xf32>
    %817 = arith.mulf %816, %813 : vector<2x32xf32>
    %818 = arith.mulf %814, %767 : vector<2x32xf32>
    %819 = arith.addf %817, %818 : vector<2x32xf32>
    %c12_180 = arith.constant 12 : index
    %c0_181 = arith.constant 0 : index
    %820 = vector.load %arg4[%c12_180, %c0_181] : memref<16x32xf32, #tpu.memory_space<vmem>>, vector<2x32xf32>
    tpu.vector_store %arg4[%c12_180, %c0_181], %819 {strides = array<i32>} : memref<16x32xf32, #tpu.memory_space<vmem>>, vector<2x32xf32>,
    %c14_182 = arith.constant 14 : index
    %c0_183 = arith.constant 0 : index
    %821 = vector.load %arg3[%c14_182, %c0_183] : memref<16x96xf32, #tpu.memory_space<vmem>>, vector<2x96xf32>
    %822 = arith.addf %821, %453 : vector<2x96xf32>
    %cst_184 = arith.constant dense<0.000000e+00> : vector<2x96xf32>
    %823 = tpu.matmul %793, %454, %cst_184 {dimension_numbers = #tpu.dot_dimension_numbers<[1], [0], [0], [1], [0, 0, 1, 1], [], []>} : vector<2x32xf32>, vector<32x96xf32>, vector<2x96xf32> -> vector<2x96xf32>
    %824 = vector.broadcast %33 : vector<1x96xf32> to vector<2x96xf32>
    %825 = arith.addf %823, %824 : vector<2x96xf32>
    %826 = vector.extract_strided_slice %822 {offsets = [0, 0], sizes = [2, 64], strides = [1, 1]} : vector<2x96xf32> to vector<2x64xf32>
    %827 = vector.extract_strided_slice %825 {offsets = [0, 0], sizes = [2, 64], strides = [1, 1]} : vector<2x96xf32> to vector<2x64xf32>
    %828 = arith.addf %826, %827 : vector<2x64xf32>
    %829 = arith.negf %828 : vector<2x64xf32>
    %830 = math.exp %829 : vector<2x64xf32>
    %cst_185 = arith.constant 1.000000e+00 : f32
    %831 = vector.broadcast %cst_185 : f32 to vector<2x64xf32>
    %832 = arith.addf %831, %830 : vector<2x64xf32>
    %833 = arith.divf %831, %832 : vector<2x64xf32>
    %834 = vector.extract_strided_slice %822 {offsets = [0, 64], sizes = [2, 32], strides = [1, 1]} : vector<2x96xf32> to vector<2x32xf32>
    %835 = vector.extract_strided_slice %833 {offsets = [0, 0], sizes = [2, 32], strides = [1, 1]} : vector<2x64xf32> to vector<2x32xf32>
    %836 = vector.extract_strided_slice %825 {offsets = [0, 64], sizes = [2, 32], strides = [1, 1]} : vector<2x96xf32> to vector<2x32xf32>
    %837 = arith.mulf %835, %836 : vector<2x32xf32>
    %838 = arith.addf %834, %837 : vector<2x32xf32>
    %839 = math.tanh %838 : vector<2x32xf32>
    %840 = vector.extract_strided_slice %833 {offsets = [0, 32], sizes = [2, 32], strides = [1, 1]} : vector<2x64xf32> to vector<2x32xf32>
    %cst_186 = arith.constant 1.000000e+00 : f32
    %841 = vector.broadcast %cst_186 : f32 to vector<2x32xf32>
    %842 = arith.subf %841, %840 : vector<2x32xf32>
    %843 = arith.mulf %842, %839 : vector<2x32xf32>
    %844 = arith.mulf %840, %793 : vector<2x32xf32>
    %845 = arith.addf %843, %844 : vector<2x32xf32>
    %cst_187 = arith.constant dense<0.000000e+00> : vector<2x96xf32>
    %846 = tpu.matmul %845, %455, %cst_187 {dimension_numbers = #tpu.dot_dimension_numbers<[1], [0], [0], [1], [0, 0, 1, 1], [], []>} : vector<2x32xf32>, vector<32x96xf32>, vector<2x96xf32> -> vector<2x96xf32>
    %847 = vector.broadcast %34 : vector<1x96xf32> to vector<2x96xf32>
    %848 = arith.addf %846, %847 : vector<2x96xf32>
    %cst_188 = arith.constant dense<0.000000e+00> : vector<2x96xf32>
    %849 = tpu.matmul %819, %456, %cst_188 {dimension_numbers = #tpu.dot_dimension_numbers<[1], [0], [0], [1], [0, 0, 1, 1], [], []>} : vector<2x32xf32>, vector<32x96xf32>, vector<2x96xf32> -> vector<2x96xf32>
    %850 = vector.broadcast %35 : vector<1x96xf32> to vector<2x96xf32>
    %851 = arith.addf %849, %850 : vector<2x96xf32>
    %852 = vector.extract_strided_slice %848 {offsets = [0, 0], sizes = [2, 64], strides = [1, 1]} : vector<2x96xf32> to vector<2x64xf32>
    %853 = vector.extract_strided_slice %851 {offsets = [0, 0], sizes = [2, 64], strides = [1, 1]} : vector<2x96xf32> to vector<2x64xf32>
    %854 = arith.addf %852, %853 : vector<2x64xf32>
    %855 = arith.negf %854 : vector<2x64xf32>
    %856 = math.exp %855 : vector<2x64xf32>
    %cst_189 = arith.constant 1.000000e+00 : f32
    %857 = vector.broadcast %cst_189 : f32 to vector<2x64xf32>
    %858 = arith.addf %857, %856 : vector<2x64xf32>
    %859 = arith.divf %857, %858 : vector<2x64xf32>
    %860 = vector.extract_strided_slice %848 {offsets = [0, 64], sizes = [2, 32], strides = [1, 1]} : vector<2x96xf32> to vector<2x32xf32>
    %861 = vector.extract_strided_slice %859 {offsets = [0, 0], sizes = [2, 32], strides = [1, 1]} : vector<2x64xf32> to vector<2x32xf32>
    %862 = vector.extract_strided_slice %851 {offsets = [0, 64], sizes = [2, 32], strides = [1, 1]} : vector<2x96xf32> to vector<2x32xf32>
    %863 = arith.mulf %861, %862 : vector<2x32xf32>
    %864 = arith.addf %860, %863 : vector<2x32xf32>
    %865 = math.tanh %864 : vector<2x32xf32>
    %866 = vector.extract_strided_slice %859 {offsets = [0, 32], sizes = [2, 32], strides = [1, 1]} : vector<2x64xf32> to vector<2x32xf32>
    %cst_190 = arith.constant 1.000000e+00 : f32
    %867 = vector.broadcast %cst_190 : f32 to vector<2x32xf32>
    %868 = arith.subf %867, %866 : vector<2x32xf32>
    %869 = arith.mulf %868, %865 : vector<2x32xf32>
    %870 = arith.mulf %866, %819 : vector<2x32xf32>
    %871 = arith.addf %869, %870 : vector<2x32xf32>
    %c14_191 = arith.constant 14 : index
    %c0_192 = arith.constant 0 : index
    %872 = vector.load %arg4[%c14_191, %c0_192] : memref<16x32xf32, #tpu.memory_space<vmem>>, vector<2x32xf32>
    tpu.vector_store %arg4[%c14_191, %c0_192], %871 {strides = array<i32>} : memref<16x32xf32, #tpu.memory_space<vmem>>, vector<2x32xf32>,
    %c0_193 = arith.constant 0 : index
    %c0_194 = arith.constant 0 : index
    %873 = vector.load %arg4[%c0_193, %c0_194] : memref<16x32xf32, #tpu.memory_space<vmem>>, vector<16x32xf32>
    %c296 = arith.constant 296 : index
    %c0_195 = arith.constant 0 : index
    %874 = vector.load %arg0[%c296, %c0_195] : memref<344x128xf32, #tpu.memory_space<vmem>>, vector<32x24xf32>
    %cst_196 = arith.constant dense<0.000000e+00> : vector<16x24xf32>
    %875 = tpu.matmul %873, %874, %cst_196 {dimension_numbers = #tpu.dot_dimension_numbers<[1], [0], [0], [1], [0, 0, 1, 1], [], []>} : vector<16x32xf32>, vector<32x24xf32>, vector<16x24xf32> -> vector<16x24xf32>
    %876 = vector.broadcast %36 : vector<1x24xf32> to vector<16x24xf32>
    %877 = arith.addf %875, %876 : vector<16x24xf32>
    %c0_197 = arith.constant 0 : index
    %c0_198 = arith.constant 0 : index
    %878 = vector.load %arg2[%c0_197, %c0_198] : memref<16x24xf32, #tpu.memory_space<vmem>>, vector<16x24xf32>
    tpu.vector_store %arg2[%c0_197, %c0_198], %877 {strides = array<i32>} : memref<16x24xf32, #tpu.memory_space<vmem>>, vector<16x24xf32>,
    return
  }
}

</mosaic_0001>

<llo_original>
// kernel: seq2seq_forward.1
$region0: #{seq2seq_forward.1}
  #allocation0 [shape = 'u32[]', space=smem, size = 0x4, offset = 0x4, fixed_abs, tag = 'smem constant byte address 0x4 - core index']
  #allocation1 [shape = 'u32[144,128]{1,0:T(1,128)}', space=vmem, size = 0x12000, scoped, tag = 'internal scratch']
  #allocation2 [shape = 'f32[16,96]{1,0:T(8,128)}', space=vmem, size = 0x2000, scoped, tag = 'scratch operand']
  #allocation3 [shape = 'f32[16,32]{1,0:T(8,128)}', space=vmem, size = 0x2000, scoped, tag = 'scratch operand']
  %s0 = inlined_call_operand.vmem [shape: f32[344,128], index: 0, kind: input, shape index: {}]
  %s1 = inlined_call_operand.vmem [shape: f32[120,128], index: 1, kind: input, shape index: {}]
  %s2 = inlined_call_operand.vmem [shape: f32[16,24], index: 2, kind: output, shape index: {}]
  %s3 = sld [smem:[#allocation0]]
  $region18: #{seq2seq_forward.1} parent=0
    _
  %s5 = ssub.s32 1, %s3
  %s6 = scalar_select 0, %s5, %s3
  // Predicated region
  $region2: #{seq2seq_forward.1} parent=0 // pred_check
    _
  $region3: #{seq2seq_forward.1} parent=0 // pred_check_branch
    %8 = sbr.rel (0) target = $region5
  $region4: #{seq2seq_forward.1} parent=0 // pred_region
    _
  $region5: #{seq2seq_forward.1} parent=0 // pred_fallthru
    _
  // Predicated region
  $region6: #{seq2seq_forward.1} parent=0 // pred_check
    _
  $region7: #{seq2seq_forward.1} parent=0 // pred_check_branch
    %10 = sbr.rel (0) target = $region9
  $region8: #{seq2seq_forward.1} parent=0 // pred_region
    _
  $region9: #{seq2seq_forward.1} parent=0 // pred_fallthru
    _
  %v11 = vld [vmem:[%s0] sm:$0x1]
  %v12 = vld [vmem:[%s0 + $0x1] sm:$0x1]
  %v13 = vld [vmem:[%s0 + $0x2] sm:$0x1]
  %v14 = vld [vmem:[%s1] sm:$0xff]
  %v15 = vld [vmem:[%s1 + $0x8] sm:$0xff]
  %v16 = vld [vmem:[%s1 + $0x10] sm:$0xff]
  %v17 = vld [vmem:[%s1 + $0x18] sm:$0xff]
  %v18 = vld [vmem:[%s1 + $0x20] sm:$0xff]
  %v19 = vld [vmem:[%s1 + $0x28] sm:$0xff]
  %v20 = vld [vmem:[%s1 + $0x30] sm:$0xff]
  %v21 = vld [vmem:[%s1 + $0x38] sm:$0xff]
  %v22 = vld [vmem:[%s1 + $0x40] sm:$0xff]
  %v23 = vld [vmem:[%s1 + $0x48] sm:$0xff]
  %v24 = vld [vmem:[%s1 + $0x50] sm:$0xff]
  %v25 = vld [vmem:[%s1 + $0x58] sm:$0xff]
  %v26 = vld [vmem:[%s1 + $0x60] sm:$0xf]
  %v27 = vld [vmem:[%s0 + $0x8] sm:$0xff]
  %v28 = vld [vmem:[%s0 + $0x10] sm:$0xf]
  %v29 = vlaneseq
  %v30 = vshrl.u32 %v29, 7
  %v31 = vsub.s32 0, %v30
  %v32 = vrot.slane %v11, %v31
  %vm33 = vcmask 97280
  %v35 = vsel %vm33, %v14, 0
  %v38 = vsel %vm33, %v15, 0
  %v41 = vsel %vm33, %v16, 0
  %v44 = vsel %vm33, %v17, 0
  %v47 = vsel %vm33, %v18, 0
  %v50 = vsel %vm33, %v19, 0
  %v53 = vsel %vm33, %v20, 0
  %v56 = vsel %vm33, %v21, 0
  %v59 = vsel %vm33, %v22, 0
  %v62 = vsel %vm33, %v23, 0
  %v65 = vsel %vm33, %v24, 0
  %v68 = vsel %vm33, %v25, 0
  %v71 = vsel %vm33, %v26, 0
  %vm73 = vcmask 1043456
  %v75 = vsel %vm73, %v28, 0
  %77 = vmatprep.subr.mxu0 0.0
  %78 = vmatpush1.msra.mxu0 %v27
  %79 = vmatprep.subr.mxu0 0.0
  %80 = vmatpush1.msra.mxu0 %v75
  %81 = vmatprep.subr.mxu0 0.0
  %82 = vmatpush1.msra.mxu0 0.0
  %83 = vmatprep.subr.mxu0 0.0
  %84 = vmatpush1.msra.mxu0 0.0
  %85 = vmatprep.subr.mxu0 0.0
  %86 = vmatpush1.msra.mxu0 0.0
  %87 = vmatprep.subr.mxu0 0.0
  %88 = vmatpush1.msra.mxu0 0.0
  %89 = vmatprep.subr.mxu0 0.0
  %90 = vmatpush1.msra.mxu0 0.0
  %91 = vmatprep.subr.mxu0 0.0
  %92 = vmatpush1.msra.mxu0 0.0
  %93 = vmatprep.subr.mxu0 0.0
  %94 = vmatpush1.msra.mxu0 0.0
  %95 = vmatprep.subr.mxu0 0.0
  %96 = vmatpush1.msra.mxu0 0.0
  %97 = vmatprep.subr.mxu0 0.0
  %98 = vmatpush1.msra.mxu0 0.0
  %99 = vmatprep.subr.mxu0 0.0
  %100 = vmatpush1.msra.mxu0 0.0
  %101 = vmatprep.subr.mxu0 0.0
  %102 = vmatpush1.msra.mxu0 0.0
  %103 = vmatprep.subr.mxu0 0.0
  %104 = vmatpush1.msra.mxu0 0.0
  %105 = vmatprep.subr.mxu0 0.0
  %106 = vmatpush1.msra.mxu0 0.0
  %107 = vmatprep.subr.mxu0 0.0
  %108 = vmatpush1.msra.mxu0 0.0
  %109 = vmatprep.subr.mxu0 0.0
  %110 = vmatpush1.msra.mxu0 0.0
  %111 = vmatprep.subr.mxu0 0.0
  %112 = vmatpush1.msra.mxu0 0.0
  %113 = vmatprep.subr.mxu0 0.0
  %114 = vmatpush1.msra.mxu0 0.0
  %115 = vmatprep.subr.mxu0 0.0
  %116 = vmatpush1.msra.mxu0 0.0
  %117 = vmatprep.subr.mxu0 0.0
  %118 = vmatpush1.msra.mxu0 0.0
  %119 = vmatprep.subr.mxu0 0.0
  %120 = vmatpush1.msra.mxu0 0.0
  %121 = vmatprep.subr.mxu0 0.0
  %122 = vmatpush1.msra.mxu0 0.0
  %123 = vmatprep.subr.mxu0 0.0
  %124 = vmatpush1.msra.mxu0 0.0
  %125 = vmatprep.subr.mxu0 0.0
  %126 = vmatpush1.msra.mxu0 0.0
  %127 = vmatprep.subr.mxu0 0.0
  %128 = vmatpush1.msra.mxu0 0.0
  %129 = vmatprep.subr.mxu0 0.0
  %130 = vmatpush1.msra.mxu0 0.0
  %131 = vmatprep.subr.mxu0 0.0
  %132 = vmatpush1.msra.mxu0 0.0
  %133 = vmatprep.subr.mxu0 0.0
  %134 = vmatpush1.msra.mxu0 0.0
  %135 = vmatprep.subr.mxu0 0.0
  %136 = vmatpush1.msra.mxu0 0.0
  %137 = vmatprep.subr.mxu0 0.0
  %138 = vmatpush1.msra.mxu0 0.0
  %139 = vmatprep.subr.mxu0 0.0
  %140 = vmatpush1.msra.mxu0 0.0
  %141 = vmatprep.mubr.f32.mxu0 0.0
  %142 = vmatmul.mubr.f32.gmra.mrb[0].mxu0 %v35
  %v143 = vpop.f32.mrb[0].mxu0
  %v144 = vadd.f32 %v32, %v143
  %v145 = vpop.f32.mrb[0].mxu0
  %146 = vmatprep.mubr.f32.mxu0 0.0
  %147 = vmatmul.mubr.f32.gmra.mrb[0].mxu0 %v38
  %v148 = vpop.f32.mrb[0].mxu0
  %v149 = vadd.f32 %v32, %v148
  %v150 = vpop.f32.mrb[0].mxu0
  %151 = vmatprep.mubr.f32.mxu0 0.0
  %152 = vmatmul.mubr.f32.gmra.mrb[0].mxu0 %v41
  %v153 = vpop.f32.mrb[0].mxu0
  %v154 = vadd.f32 %v32, %v153
  %v155 = vpop.f32.mrb[0].mxu0
  %156 = vmatprep.mubr.f32.mxu0 0.0
  %157 = vmatmul.mubr.f32.gmra.mrb[0].mxu0 %v44
  %v158 = vpop.f32.mrb[0].mxu0
  %v159 = vadd.f32 %v32, %v158
  %v160 = vpop.f32.mrb[0].mxu0
  %161 = vmatprep.mubr.f32.mxu0 0.0
  %162 = vmatmul.mubr.f32.gmra.mrb[0].mxu0 %v47
  %v163 = vpop.f32.mrb[0].mxu0
  %v164 = vadd.f32 %v32, %v163
  %v165 = vpop.f32.mrb[0].mxu0
  %166 = vmatprep.mubr.f32.mxu0 0.0
  %167 = vmatmul.mubr.f32.gmra.mrb[0].mxu0 %v50
  %v168 = vpop.f32.mrb[0].mxu0
  %v169 = vadd.f32 %v32, %v168
  %v170 = vpop.f32.mrb[0].mxu0
  %171 = vmatprep.mubr.f32.mxu0 0.0
  %172 = vmatmul.mubr.f32.gmra.mrb[0].mxu0 %v53
  %v173 = vpop.f32.mrb[0].mxu0
  %v174 = vadd.f32 %v32, %v173
  %v175 = vpop.f32.mrb[0].mxu0
  %176 = vmatprep.mubr.f32.mxu0 0.0
  %177 = vmatmul.mubr.f32.gmra.mrb[0].mxu0 %v56
  %v178 = vpop.f32.mrb[0].mxu0
  %v179 = vadd.f32 %v32, %v178
  %v180 = vpop.f32.mrb[0].mxu0
  %181 = vmatprep.mubr.f32.mxu0 0.0
  %182 = vmatmul.mubr.f32.gmra.mrb[0].mxu0 %v59
  %v183 = vpop.f32.mrb[0].mxu0
  %v184 = vadd.f32 %v32, %v183
  %v185 = vpop.f32.mrb[0].mxu0
  %186 = vmatprep.mubr.f32.mxu0 0.0
  %187 = vmatmul.mubr.f32.gmra.mrb[0].mxu0 %v62
  %v188 = vpop.f32.mrb[0].mxu0
  %v189 = vadd.f32 %v32, %v188
  %v190 = vpop.f32.mrb[0].mxu0
  %191 = vmatprep.mubr.f32.mxu0 0.0
  %192 = vmatmul.mubr.f32.gmra.mrb[0].mxu0 %v65
  %v193 = vpop.f32.mrb[0].mxu0
  %v194 = vadd.f32 %v32, %v193
  %v195 = vpop.f32.mrb[0].mxu0
  %196 = vmatprep.mubr.f32.mxu0 0.0
  %197 = vmatmul.mubr.f32.gmra.mrb[0].mxu0 %v68
  %v198 = vpop.f32.mrb[0].mxu0
  %v199 = vadd.f32 %v32, %v198
  %v200 = vpop.f32.mrb[0].mxu0
  %201 = vmatprep.mubr.f32.mxu0 0.0
  %202 = vmatmul.mubr.f32.gmra.mrb[0].mxu0 %v71
  %v203 = vpop.f32.mrb[0].mxu0
  %v204 = vadd.f32 %v32, %v203
  %v205 = vpop.f32.mrb[0].mxu0
  %206 = vdwg.mxu0
  %v207 = vmax.f32 %v144, 1e-06
  %v208 = vmax.f32 %v149, 1e-06
  %v209 = vmax.f32 %v154, 1e-06
  %v210 = vmax.f32 %v159, 1e-06
  %v211 = vmax.f32 %v164, 1e-06
  %v212 = vmax.f32 %v169, 1e-06
  %v213 = vmax.f32 %v174, 1e-06
  %v214 = vmax.f32 %v179, 1e-06
  %v215 = vmax.f32 %v184, 1e-06
  %v216 = vmax.f32 %v189, 1e-06
  %v217 = vmax.f32 %v194, 1e-06
  %v218 = vmax.f32 %v199, 1e-06
  %v219 = vmax.f32 %v204, 1e-06
  %v220 = vmul.f32 %v207, %v207
  %v221 = vmul.f32 %v208, %v208
  %v222 = vmul.f32 %v209, %v209
  %v223 = vmul.f32 %v210, %v210
  %v224 = vmul.f32 %v211, %v211
  %v225 = vmul.f32 %v212, %v212
  %v226 = vmul.f32 %v213, %v213
  %v227 = vmul.f32 %v214, %v214
  %v228 = vmul.f32 %v215, %v215
  %v229 = vmul.f32 %v216, %v216
  %v230 = vmul.f32 %v217, %v217
  %v231 = vmul.f32 %v218, %v218
  %v232 = vmul.f32 %v219, %v219
  %v233 = vmul.f32 %v220, %v207
  %v234 = vmul.f32 %v221, %v208
  %v235 = vmul.f32 %v222, %v209
  %v236 = vmul.f32 %v223, %v210
  %v237 = vmul.f32 %v224, %v211
  %v238 = vmul.f32 %v225, %v212
  %v239 = vmul.f32 %v226, %v213
  %v240 = vmul.f32 %v227, %v214
  %v241 = vmul.f32 %v228, %v215
  %v242 = vmul.f32 %v229, %v216
  %v243 = vmul.f32 %v230, %v217
  %v244 = vmul.f32 %v231, %v218
  %v245 = vmul.f32 %v232, %v219
  %v246 = vld [vmem:[%s0 + $0x18] sm:$0xff]
  %v247 = vld [vmem:[%s0 + $0x20] sm:$0xff]
  %vm248 = vcmask 818176
  %v250 = vsel %vm248, %v246, 0
  %v253 = vsel %vm248, %v247, 0
  %v256 = vsel %vm73, %v245, 0
  %258 = vmatprep.subr.mxu0 0.0
  %259 = vmatpush1.msra.mxu0 %v233
  %260 = vmatprep.subr.mxu0 0.0
  %261 = vmatpush1.msra.mxu0 %v234
  %262 = vmatprep.subr.mxu0 0.0
  %263 = vmatpush1.msra.mxu0 %v235
  %264 = vmatprep.subr.mxu0 0.0
  %265 = vmatpush1.msra.mxu0 %v236
  %266 = vmatprep.subr.mxu0 0.0
  %267 = vmatpush1.msra.mxu0 %v237
  %268 = vmatprep.subr.mxu0 0.0
  %269 = vmatpush1.msra.mxu0 %v238
  %270 = vmatprep.subr.mxu0 0.0
  %271 = vmatpush1.msra.mxu0 %v239
  %272 = vmatprep.subr.mxu0 0.0
  %273 = vmatpush1.msra.mxu0 %v240
  %274 = vmatprep.subr.mxu0 0.0
  %275 = vmatpush1.msra.mxu0 %v241
  %276 = vmatprep.subr.mxu0 0.0
  %277 = vmatpush1.msra.mxu0 %v242
  %278 = vmatprep.subr.mxu0 0.0
  %279 = vmatpush1.msra.mxu0 %v243
  %280 = vmatprep.subr.mxu0 0.0
  %281 = vmatpush1.msra.mxu0 %v244
  %282 = vmatprep.subr.mxu0 0.0
  %283 = vmatpush1.msra.mxu0 %v256
  %284 = vmatprep.subr.mxu0 0.0
  %285 = vmatpush1.msra.mxu0 0.0
  %286 = vmatprep.subr.mxu0 0.0
  %287 = vmatpush1.msra.mxu0 0.0
  %288 = vmatprep.subr.mxu0 0.0
  %289 = vmatpush1.msra.mxu0 0.0
  %290 = vmatprep.subr.mxu0 0.0
  %291 = vmatpush1.msra.mxu0 0.0
  %292 = vmatprep.subr.mxu0 0.0
  %293 = vmatpush1.msra.mxu0 0.0
  %294 = vmatprep.subr.mxu0 0.0
  %295 = vmatpush1.msra.mxu0 0.0
  %296 = vmatprep.subr.mxu0 0.0
  %297 = vmatpush1.msra.mxu0 0.0
  %298 = vmatprep.subr.mxu0 0.0
  %299 = vmatpush1.msra.mxu0 0.0
  %300 = vmatprep.subr.mxu0 0.0
  %301 = vmatpush1.msra.mxu0 0.0
  %302 = vmatprep.subr.mxu0 0.0
  %303 = vmatpush1.msra.mxu0 0.0
  %304 = vmatprep.subr.mxu0 0.0
  %305 = vmatpush1.msra.mxu0 0.0
  %306 = vmatprep.subr.mxu0 0.0
  %307 = vmatpush1.msra.mxu0 0.0
  %308 = vmatprep.subr.mxu0 0.0
  %309 = vmatpush1.msra.mxu0 0.0
  %310 = vmatprep.subr.mxu0 0.0
  %311 = vmatpush1.msra.mxu0 0.0
  %312 = vmatprep.subr.mxu0 0.0
  %313 = vmatpush1.msra.mxu0 0.0
  %314 = vmatprep.subr.mxu0 0.0
  %315 = vmatpush1.msra.mxu0 0.0
  %316 = vmatprep.subr.mxu0 0.0
  %317 = vmatpush1.msra.mxu0 0.0
  %318 = vmatprep.subr.mxu0 0.0
  %319 = vmatpush1.msra.mxu0 0.0
  %320 = vmatprep.subr.mxu0 0.0
  %321 = vmatpush1.msra.mxu0 0.0
  %322 = vmatprep.mubr.f32.mxu0 0.0
  %323 = vmatmul.mubr.f32.gmra.mrb[0].mxu0 %v250
  %v324 = vpop.f32.mrb[0].mxu0
  %v325 = vadd.f32 0.0, %v324
  %v326 = vpop.f32.mrb[0].mxu0
  %327 = vmatprep.mubr.f32.mxu0 0.0
  %328 = vmatmul.mubr.f32.gmra.mrb[0].mxu0 %v253
  %v329 = vpop.f32.mrb[0].mxu0
  %v330 = vadd.f32 0.0, %v329
  %v331 = vpop.f32.mrb[0].mxu0
  %332 = vdwg.mxu0
  %v333 = vlog2.pop %v325
  %v334 = vmul.f32 %v333, 0.6931472
  %v335 = vlog2.pop %v330
  %v336 = vmul.f32 %v335, 0.6931472
  %v337 = vmul.f32 %v334, 0.33333334
  %v338 = vmul.f32 %v336, 0.33333334
  %v339 = vmul.f32 %v337, 1.442695
  %v340 = vpow.pop %v339
  %v341 = vmul.f32 %v338, 1.442695
  %v342 = vpow.pop %v341
  %v343 = vlaneseq
  %v344 = vshrl.u32 %v343, 7
  %v345 = vsub.s32 0, %v344
  %v346 = vrot.slane %v12, %v345
  %v347 = vmul.f32 %v340, %v346
  %v348 = vmul.f32 %v342, %v346
  %v349 = vlaneseq
  %v350 = vshrl.u32 %v349, 7
  %v351 = vsub.s32 0, %v350
  %v352 = vrot.slane %v13, %v351
  %v353 = vadd.f32 %v347, %v352
  %v354 = vadd.f32 %v348, %v352
  %v355 = vxor.u32 %v353, 2147483648
  %v356 = vxor.u32 %v354, 2147483648
  %v357 = vmul.f32 %v355, 1.442695
  %v358 = vpow.pop %v357
  %v359 = vmul.f32 %v356, 1.442695
  %v360 = vpow.pop %v359
  %v361 = vadd.f32 %v358, 1.0
  %v362 = vadd.f32 %v360, 1.0
  %v363 = vrcp.pop %v361
  %v364 = vmul.f32 1.0, %v363
  %v365 = vrcp.pop %v362
  %v366 = vmul.f32 1.0, %v365
  %v367 = vmul.f32 %v353, %v364
  %v368 = vmul.f32 %v354, %v366
  %v369 = vld [vmem:[%s0 + $0x148] sm:$0x1]
  %v370 = vld [vmem:[%s0 + $0x149] sm:$0x1]
  %v371 = vld [vmem:[%s0 + $0x14a] sm:$0x1]
  %v372 = vld [vmem:[%s0 + $0x14b] sm:$0x1]
  %v373 = vld [vmem:[%s0 + $0x14c] sm:$0x1]
  %v374 = vld [vmem:[%s0 + $0x14d] sm:$0x1]
  %v375 = vld [vmem:[%s0 + $0x14e] sm:$0x1]
  %v376 = vld [vmem:[%s0 + $0x14f] sm:$0x1]
  %v377 = vld [vmem:[%s0 + $0x150] sm:$0x1]
  %v378 = vld [vmem:[%s0 + $0x28] sm:$0xff]
  %v379 = vld [vmem:[%s0 + $0x30] sm:$0xff]
  %v380 = vlaneseq
  %v381 = vshrl.u32 %v380, 7
  %v382 = vsub.s32 0, %v381
  %v383 = vrot.slane %v369, %v382
  %vm384 = vcmask 130048
  %v386 = vsel %vm384, %v367, 0
  %v389 = vsel %vm384, %v368, 0
  %391 = vmatprep.subr.mxu0 0.0
  %392 = vmatpush1.msra.mxu0 %v378
  %393 = vmatprep.subr.mxu0 0.0
  %394 = vmatpush1.msra.mxu0 %v379
  %395 = vmatprep.subr.mxu0 0.0
  %396 = vmatpush1.msra.mxu0 0.0
  %397 = vmatprep.subr.mxu0 0.0
  %398 = vmatpush1.msra.mxu0 0.0
  %399 = vmatprep.subr.mxu0 0.0
  %400 = vmatpush1.msra.mxu0 0.0
  %401 = vmatprep.subr.mxu0 0.0
  %402 = vmatpush1.msra.mxu0 0.0
  %403 = vmatprep.subr.mxu0 0.0
  %404 = vmatpush1.msra.mxu0 0.0
  %405 = vmatprep.subr.mxu0 0.0
  %406 = vmatpush1.msra.mxu0 0.0
  %407 = vmatprep.subr.mxu0 0.0
  %408 = vmatpush1.msra.mxu0 0.0
  %409 = vmatprep.subr.mxu0 0.0
  %410 = vmatpush1.msra.mxu0 0.0
  %411 = vmatprep.subr.mxu0 0.0
  %412 = vmatpush1.msra.mxu0 0.0
  %413 = vmatprep.subr.mxu0 0.0
  %414 = vmatpush1.msra.mxu0 0.0
  %415 = vmatprep.subr.mxu0 0.0
  %416 = vmatpush1.msra.mxu0 0.0
  %417 = vmatprep.subr.mxu0 0.0
  %418 = vmatpush1.msra.mxu0 0.0
  %419 = vmatprep.subr.mxu0 0.0
  %420 = vmatpush1.msra.mxu0 0.0
  %421 = vmatprep.subr.mxu0 0.0
  %422 = vmatpush1.msra.mxu0 0.0
  %423 = vmatprep.subr.mxu0 0.0
  %424 = vmatpush1.msra.mxu0 0.0
  %425 = vmatprep.subr.mxu0 0.0
  %426 = vmatpush1.msra.mxu0 0.0
  %427 = vmatprep.subr.mxu0 0.0
  %428 = vmatpush1.msra.mxu0 0.0
  %429 = vmatprep.subr.mxu0 0.0
  %430 = vmatpush1.msra.mxu0 0.0
  %431 = vmatprep.subr.mxu0 0.0
  %432 = vmatpush1.msra.mxu0 0.0
  %433 = vmatprep.subr.mxu0 0.0
  %434 = vmatpush1.msra.mxu0 0.0
  %435 = vmatprep.subr.mxu0 0.0
  %436 = vmatpush1.msra.mxu0 0.0
  %437 = vmatprep.subr.mxu0 0.0
  %438 = vmatpush1.msra.mxu0 0.0
  %439 = vmatprep.subr.mxu0 0.0
  %440 = vmatpush1.msra.mxu0 0.0
  %441 = vmatprep.subr.mxu0 0.0
  %442 = vmatpush1.msra.mxu0 0.0
  %443 = vmatprep.subr.mxu0 0.0
  %444 = vmatpush1.msra.mxu0 0.0
  %445 = vmatprep.subr.mxu0 0.0
  %446 = vmatpush1.msra.mxu0 0.0
  %447 = vmatprep.subr.mxu0 0.0
  %448 = vmatpush1.msra.mxu0 0.0
  %449 = vmatprep.subr.mxu0 0.0
  %450 = vmatpush1.msra.mxu0 0.0
  %451 = vmatprep.subr.mxu0 0.0
  %452 = vmatpush1.msra.mxu0 0.0
  %453 = vmatprep.subr.mxu0 0.0
  %454 = vmatpush1.msra.mxu0 0.0
  %455 = vmatprep.mubr.f32.mxu0 0.0
  %456 = vmatmul.mubr.f32.gmra.mrb[0].mxu0 %v386
  %v457 = vpop.f32.mrb[0].mxu0
  %v458 = vadd.f32 %v383, %v457
  %v459 = vpop.f32.mrb[0].mxu0
  %460 = vmatprep.mubr.f32.mxu0 0.0
  %461 = vmatmul.mubr.f32.gmra.mrb[0].mxu0 %v389
  %v462 = vpop.f32.mrb[0].mxu0
  %v463 = vadd.f32 %v383, %v462
  %v464 = vpop.f32.mrb[0].mxu0
  %465 = vdwg.mxu0
  %vm466 = vcmask 785408
  %467 = vst.msk [vmem:[#allocation2] sm:$0xff] %vm466, %v458
  %468 = vst.msk [vmem:[#allocation2 + $0x8] sm:$0xff] %vm466, %v463
  %v469 = vld [vmem:[%s0 + $0x38] sm:$0xff]
  %v470 = vld [vmem:[%s0 + $0x40] sm:$0xff]
  %v471 = vld [vmem:[%s0 + $0x48] sm:$0xff]
  %v472 = vld [vmem:[%s0 + $0x50] sm:$0xff]
  %v473 = vld [vmem:[%s0 + $0x58] sm:$0xff]
  %v474 = vld [vmem:[%s0 + $0x60] sm:$0xff]
  %v475 = vld [vmem:[%s0 + $0x68] sm:$0xff]
  %v476 = vld [vmem:[%s0 + $0x70] sm:$0xff]
  %v477 = vld [vmem:[%s0 + $0x78] sm:$0xff]
  %v478 = vld [vmem:[%s0 + $0x80] sm:$0xff]
  %v479 = vld [vmem:[%s0 + $0x88] sm:$0xff]
  %v480 = vld [vmem:[%s0 + $0x90] sm:$0xff]
  %v481 = vld [vmem:[#allocation2] sm:$0x3]
  %v482 = vlaneseq
  %v483 = vshrl.u32 %v482, 7
  %v484 = vsub.s32 0, %v483
  %v485 = vrot.slane %v370, %v484
  %vm486 = vcmask 261120
  %v488 = vsel %vm486, 0.0, 0
  %490 = vmatprep.subr.mxu0 0.0
  %491 = vmatpush1.msra.mxu0 %v469
  %492 = vmatprep.subr.mxu0 0.0
  %493 = vmatpush1.msra.mxu0 %v470
  %494 = vmatprep.subr.mxu0 0.0
  %495 = vmatpush1.msra.mxu0 %v471
  %496 = vmatprep.subr.mxu0 0.0
  %497 = vmatpush1.msra.mxu0 %v472
  %498 = vmatprep.subr.mxu0 0.0
  %499 = vmatpush1.msra.mxu0 0.0
  %500 = vmatprep.subr.mxu0 0.0
  %501 = vmatpush1.msra.mxu0 0.0
  %502 = vmatprep.subr.mxu0 0.0
  %503 = vmatpush1.msra.mxu0 0.0
  %504 = vmatprep.subr.mxu0 0.0
  %505 = vmatpush1.msra.mxu0 0.0
  %506 = vmatprep.subr.mxu0 0.0
  %507 = vmatpush1.msra.mxu0 0.0
  %508 = vmatprep.subr.mxu0 0.0
  %509 = vmatpush1.msra.mxu0 0.0
  %510 = vmatprep.subr.mxu0 0.0
  %511 = vmatpush1.msra.mxu0 0.0
  %512 = vmatprep.subr.mxu0 0.0
  %513 = vmatpush1.msra.mxu0 0.0
  %514 = vmatprep.subr.mxu0 0.0
  %515 = vmatpush1.msra.mxu0 0.0
  %516 = vmatprep.subr.mxu0 0.0
  %517 = vmatpush1.msra.mxu0 0.0
  %518 = vmatprep.subr.mxu0 0.0
  %519 = vmatpush1.msra.mxu0 0.0
  %520 = vmatprep.subr.mxu0 0.0
  %521 = vmatpush1.msra.mxu0 0.0
  %522 = vmatprep.subr.mxu0 0.0
  %523 = vmatpush1.msra.mxu0 0.0
  %524 = vmatprep.subr.mxu0 0.0
  %525 = vmatpush1.msra.mxu0 0.0
  %526 = vmatprep.subr.mxu0 0.0
  %527 = vmatpush1.msra.mxu0 0.0
  %528 = vmatprep.subr.mxu0 0.0
  %529 = vmatpush1.msra.mxu0 0.0
  %530 = vmatprep.subr.mxu0 0.0
  %531 = vmatpush1.msra.mxu0 0.0
  %532 = vmatprep.subr.mxu0 0.0
  %533 = vmatpush1.msra.mxu0 0.0
  %534 = vmatprep.subr.mxu0 0.0
  %535 = vmatpush1.msra.mxu0 0.0
  %536 = vmatprep.subr.mxu0 0.0
  %537 = vmatpush1.msra.mxu0 0.0
  %538 = vmatprep.subr.mxu0 0.0
  %539 = vmatpush1.msra.mxu0 0.0
  %540 = vmatprep.subr.mxu0 0.0
  %541 = vmatpush1.msra.mxu0 0.0
  %542 = vmatprep.subr.mxu0 0.0
  %543 = vmatpush1.msra.mxu0 0.0
  %544 = vmatprep.subr.mxu0 0.0
  %545 = vmatpush1.msra.mxu0 0.0
  %546 = vmatprep.subr.mxu0 0.0
  %547 = vmatpush1.msra.mxu0 0.0
  %548 = vmatprep.subr.mxu0 0.0
  %549 = vmatpush1.msra.mxu0 0.0
  %550 = vmatprep.subr.mxu0 0.0
  %551 = vmatpush1.msra.mxu0 0.0
  %552 = vmatprep.subr.mxu0 0.0
  %553 = vmatpush1.msra.mxu0 0.0
  %554 = vmatprep.mubr.f32.mxu0 0.0
  %555 = vmatmul.mubr.f32.gmra.mrb[0].mxu0 %v488
  %v556 = vpop.f32.mrb[0].mxu0
  %v557 = vadd.f32 %v485, %v556
  %v558 = vpop.f32.mrb[0].mxu0
  %559 = vdwg.mxu0
  %v560 = vadd.f32 %v481, %v557
  %v561 = vxor.u32 %v560, 2147483648
  %v562 = vmul.f32 %v561, 1.442695
  %v563 = vpow.pop %v562
  %v564 = vadd.f32 %v563, 1.0
  %v565 = vrcp.pop %v564
  %v566 = vmul.f32 1.0, %v565
  %568 = vrot.lane.b32.xlu0 %v557, 64
  %v569 = vpop.permute.xlu0 %568
  %v571 = vmul.f32 %v566, %v569
  %573 = vrot.lane.b32.xlu0 %v571, 64
  %v574 = vpop.permute.xlu0 %573
  %v576 = vadd.f32 %v481, %v574
  %v577 = vtanh.pop %v576
  %v578 = vsub.f32 1.0, %v566
  %580 = vrot.lane.b32.xlu0 %v577, 96
  %v581 = vpop.permute.xlu0 %580
  %v583 = vmul.f32 %v578, %v581
  %v584 = vmul.f32 %v566, 0.0
  %v585 = vadd.f32 %v583, %v584
  %v586 = vlaneseq
  %v587 = vshrl.u32 %v586, 7
  %v588 = vsub.s32 0, %v587
  %v589 = vrot.slane %v371, %v588
  %591 = vrot.lane.b32.xlu0 %v585, 96
  %v592 = vpop.permute.xlu0 %591
  %v593 = vsel %vm486, %v592, 0
  %595 = vmatprep.subr.mxu0 0.0
  %596 = vmatpush1.msra.mxu0 %v473
  %597 = vmatprep.subr.mxu0 0.0
  %598 = vmatpush1.msra.mxu0 %v474
  %599 = vmatprep.subr.mxu0 0.0
  %600 = vmatpush1.msra.mxu0 %v475
  %601 = vmatprep.subr.mxu0 0.0
  %602 = vmatpush1.msra.mxu0 %v476
  %603 = vmatprep.subr.mxu0 0.0
  %604 = vmatpush1.msra.mxu0 0.0
  %605 = vmatprep.subr.mxu0 0.0
  %606 = vmatpush1.msra.mxu0 0.0
  %607 = vmatprep.subr.mxu0 0.0
  %608 = vmatpush1.msra.mxu0 0.0
  %609 = vmatprep.subr.mxu0 0.0
  %610 = vmatpush1.msra.mxu0 0.0
  %611 = vmatprep.subr.mxu0 0.0
  %612 = vmatpush1.msra.mxu0 0.0
  %613 = vmatprep.subr.mxu0 0.0
  %614 = vmatpush1.msra.mxu0 0.0
  %615 = vmatprep.subr.mxu0 0.0
  %616 = vmatpush1.msra.mxu0 0.0
  %617 = vmatprep.subr.mxu0 0.0
  %618 = vmatpush1.msra.mxu0 0.0
  %619 = vmatprep.subr.mxu0 0.0
  %620 = vmatpush1.msra.mxu0 0.0
  %621 = vmatprep.subr.mxu0 0.0
  %622 = vmatpush1.msra.mxu0 0.0
  %623 = vmatprep.subr.mxu0 0.0
  %624 = vmatpush1.msra.mxu0 0.0
  %625 = vmatprep.subr.mxu0 0.0
  %626 = vmatpush1.msra.mxu0 0.0
  %627 = vmatprep.subr.mxu0 0.0
  %628 = vmatpush1.msra.mxu0 0.0
  %629 = vmatprep.subr.mxu0 0.0
  %630 = vmatpush1.msra.mxu0 0.0
  %631 = vmatprep.subr.mxu0 0.0
  %632 = vmatpush1.msra.mxu0 0.0
  %633 = vmatprep.subr.mxu0 0.0
  %634 = vmatpush1.msra.mxu0 0.0
  %635 = vmatprep.subr.mxu0 0.0
  %636 = vmatpush1.msra.mxu0 0.0
  %637 = vmatprep.subr.mxu0 0.0
  %638 = vmatpush1.msra.mxu0 0.0
  %639 = vmatprep.subr.mxu0 0.0
  %640 = vmatpush1.msra.mxu0 0.0
  %641 = vmatprep.subr.mxu0 0.0
  %642 = vmatpush1.msra.mxu0 0.0
  %643 = vmatprep.subr.mxu0 0.0
  %644 = vmatpush1.msra.mxu0 0.0
  %645 = vmatprep.subr.mxu0 0.0
  %646 = vmatpush1.msra.mxu0 0.0
  %647 = vmatprep.subr.mxu0 0.0
  %648 = vmatpush1.msra.mxu0 0.0
  %649 = vmatprep.subr.mxu0 0.0
  %650 = vmatpush1.msra.mxu0 0.0
  %651 = vmatprep.subr.mxu0 0.0
  %652 = vmatpush1.msra.mxu0 0.0
  %653 = vmatprep.subr.mxu0 0.0
  %654 = vmatpush1.msra.mxu0 0.0
  %655 = vmatprep.subr.mxu0 0.0
  %656 = vmatpush1.msra.mxu0 0.0
  %657 = vmatprep.subr.mxu0 0.0
  %658 = vmatpush1.msra.mxu0 0.0
  %659 = vmatprep.mubr.f32.mxu0 0.0
  %660 = vmatmul.mubr.f32.gmra.mrb[0].mxu0 %v593
  %v661 = vpop.f32.mrb[0].mxu0
  %v662 = vadd.f32 %v589, %v661
  %v663 = vpop.f32.mrb[0].mxu0
  %664 = vdwg.mxu0
  %v665 = vlaneseq
  %v666 = vshrl.u32 %v665, 7
  %v667 = vsub.s32 0, %v666
  %v668 = vrot.slane %v372, %v667
  %669 = vmatprep.subr.mxu0 0.0
  %670 = vmatpush1.msra.mxu0 %v477
  %671 = vmatprep.subr.mxu0 0.0
  %672 = vmatpush1.msra.mxu0 %v478
  %673 = vmatprep.subr.mxu0 0.0
  %674 = vmatpush1.msra.mxu0 %v479
  %675 = vmatprep.subr.mxu0 0.0
  %676 = vmatpush1.msra.mxu0 %v480
  %677 = vmatprep.subr.mxu0 0.0
  %678 = vmatpush1.msra.mxu0 0.0
  %679 = vmatprep.subr.mxu0 0.0
  %680 = vmatpush1.msra.mxu0 0.0
  %681 = vmatprep.subr.mxu0 0.0
  %682 = vmatpush1.msra.mxu0 0.0
  %683 = vmatprep.subr.mxu0 0.0
  %684 = vmatpush1.msra.mxu0 0.0
  %685 = vmatprep.subr.mxu0 0.0
  %686 = vmatpush1.msra.mxu0 0.0
  %687 = vmatprep.subr.mxu0 0.0
  %688 = vmatpush1.msra.mxu0 0.0
  %689 = vmatprep.subr.mxu0 0.0
  %690 = vmatpush1.msra.mxu0 0.0
  %691 = vmatprep.subr.mxu0 0.0
  %692 = vmatpush1.msra.mxu0 0.0
  %693 = vmatprep.subr.mxu0 0.0
  %694 = vmatpush1.msra.mxu0 0.0
  %695 = vmatprep.subr.mxu0 0.0
  %696 = vmatpush1.msra.mxu0 0.0
  %697 = vmatprep.subr.mxu0 0.0
  %698 = vmatpush1.msra.mxu0 0.0
  %699 = vmatprep.subr.mxu0 0.0
  %700 = vmatpush1.msra.mxu0 0.0
  %701 = vmatprep.subr.mxu0 0.0
  %702 = vmatpush1.msra.mxu0 0.0
  %703 = vmatprep.subr.mxu0 0.0
  %704 = vmatpush1.msra.mxu0 0.0
  %705 = vmatprep.subr.mxu0 0.0
  %706 = vmatpush1.msra.mxu0 0.0
  %707 = vmatprep.subr.mxu0 0.0
  %708 = vmatpush1.msra.mxu0 0.0
  %709 = vmatprep.subr.mxu0 0.0
  %710 = vmatpush1.msra.mxu0 0.0
  %711 = vmatprep.subr.mxu0 0.0
  %712 = vmatpush1.msra.mxu0 0.0
  %713 = vmatprep.subr.mxu0 0.0
  %714 = vmatpush1.msra.mxu0 0.0
  %715 = vmatprep.subr.mxu0 0.0
  %716 = vmatpush1.msra.mxu0 0.0
  %717 = vmatprep.subr.mxu0 0.0
  %718 = vmatpush1.msra.mxu0 0.0
  %719 = vmatprep.subr.mxu0 0.0
  %720 = vmatpush1.msra.mxu0 0.0
  %721 = vmatprep.subr.mxu0 0.0
  %722 = vmatpush1.msra.mxu0 0.0
  %723 = vmatprep.subr.mxu0 0.0
  %724 = vmatpush1.msra.mxu0 0.0
  %725 = vmatprep.subr.mxu0 0.0
  %726 = vmatpush1.msra.mxu0 0.0
  %727 = vmatprep.subr.mxu0 0.0
  %728 = vmatpush1.msra.mxu0 0.0
  %729 = vmatprep.subr.mxu0 0.0
  %730 = vmatpush1.msra.mxu0 0.0
  %731 = vmatprep.subr.mxu0 0.0
  %732 = vmatpush1.msra.mxu0 0.0
  %733 = vmatprep.mubr.f32.mxu0 0.0
  %734 = vmatmul.mubr.f32.gmra.mrb[0].mxu0 %v488
  %v735 = vpop.f32.mrb[0].mxu0
  %v736 = vadd.f32 %v668, %v735
  %v737 = vpop.f32.mrb[0].mxu0
  %738 = vdwg.mxu0
  %v739 = vadd.f32 %v662, %v736
  %v740 = vxor.u32 %v739, 2147483648
  %v741 = vmul.f32 %v740, 1.442695
  %v742 = vpow.pop %v741
  %v743 = vadd.f32 %v742, 1.0
  %v744 = vrcp.pop %v743
  %v745 = vmul.f32 1.0, %v744
  %747 = vrot.lane.b32.xlu0 %v736, 64
  %v748 = vpop.permute.xlu0 %747
  %v750 = vmul.f32 %v745, %v748
  %752 = vrot.lane.b32.xlu0 %v750, 64
  %v753 = vpop.permute.xlu0 %752
  %v755 = vadd.f32 %v662, %v753
  %v756 = vtanh.pop %v755
  %v757 = vsub.f32 1.0, %v745
  %759 = vrot.lane.b32.xlu0 %v756, 96
  %v760 = vpop.permute.xlu0 %759
  %v762 = vmul.f32 %v757, %v760
  %v763 = vmul.f32 %v745, 0.0
  %v764 = vadd.f32 %v762, %v763
  %v765 = vld [vmem:[#allocation2 + $0x2] sm:$0x3]
  %766 = vmatprep.subr.mxu0 0.0
  %767 = vmatpush1.msra.mxu0 %v469
  %768 = vmatprep.subr.mxu0 0.0
  %769 = vmatpush1.msra.mxu0 %v470
  %770 = vmatprep.subr.mxu0 0.0
  %771 = vmatpush1.msra.mxu0 %v471
  %772 = vmatprep.subr.mxu0 0.0
  %773 = vmatpush1.msra.mxu0 %v472
  %774 = vmatprep.subr.mxu0 0.0
  %775 = vmatpush1.msra.mxu0 0.0
  %776 = vmatprep.subr.mxu0 0.0
  %777 = vmatpush1.msra.mxu0 0.0
  %778 = vmatprep.subr.mxu0 0.0
  %779 = vmatpush1.msra.mxu0 0.0
  %780 = vmatprep.subr.mxu0 0.0
  %781 = vmatpush1.msra.mxu0 0.0
  %782 = vmatprep.subr.mxu0 0.0
  %783 = vmatpush1.msra.mxu0 0.0
  %784 = vmatprep.subr.mxu0 0.0
  %785 = vmatpush1.msra.mxu0 0.0
  %786 = vmatprep.subr.mxu0 0.0
  %787 = vmatpush1.msra.mxu0 0.0
  %788 = vmatprep.subr.mxu0 0.0
  %789 = vmatpush1.msra.mxu0 0.0
  %790 = vmatprep.subr.mxu0 0.0
  %791 = vmatpush1.msra.mxu0 0.0
  %792 = vmatprep.subr.mxu0 0.0
  %793 = vmatpush1.msra.mxu0 0.0
  %794 = vmatprep.subr.mxu0 0.0
  %795 = vmatpush1.msra.mxu0 0.0
  %796 = vmatprep.subr.mxu0 0.0
  %797 = vmatpush1.msra.mxu0 0.0
  %798 = vmatprep.subr.mxu0 0.0
  %799 = vmatpush1.msra.mxu0 0.0
  %800 = vmatprep.subr.mxu0 0.0
  %801 = vmatpush1.msra.mxu0 0.0
  %802 = vmatprep.subr.mxu0 0.0
  %803 = vmatpush1.msra.mxu0 0.0
  %804 = vmatprep.subr.mxu0 0.0
  %805 = vmatpush1.msra.mxu0 0.0
  %806 = vmatprep.subr.mxu0 0.0
  %807 = vmatpush1.msra.mxu0 0.0
  %808 = vmatprep.subr.mxu0 0.0
  %809 = vmatpush1.msra.mxu0 0.0
  %810 = vmatprep.subr.mxu0 0.0
  %811 = vmatpush1.msra.mxu0 0.0
  %812 = vmatprep.subr.mxu0 0.0
  %813 = vmatpush1.msra.mxu0 0.0
  %814 = vmatprep.subr.mxu0 0.0
  %815 = vmatpush1.msra.mxu0 0.0
  %816 = vmatprep.subr.mxu0 0.0
  %817 = vmatpush1.msra.mxu0 0.0
  %818 = vmatprep.subr.mxu0 0.0
  %819 = vmatpush1.msra.mxu0 0.0
  %820 = vmatprep.subr.mxu0 0.0
  %821 = vmatpush1.msra.mxu0 0.0
  %822 = vmatprep.subr.mxu0 0.0
  %823 = vmatpush1.msra.mxu0 0.0
  %824 = vmatprep.subr.mxu0 0.0
  %825 = vmatpush1.msra.mxu0 0.0
  %826 = vmatprep.subr.mxu0 0.0
  %827 = vmatpush1.msra.mxu0 0.0
  %828 = vmatprep.subr.mxu0 0.0
  %829 = vmatpush1.msra.mxu0 0.0
  %830 = vmatprep.mubr.f32.mxu0 0.0
  %831 = vmatmul.mubr.f32.gmra.mrb[0].mxu0 %v593
  %v832 = vpop.f32.mrb[0].mxu0
  %v833 = vadd.f32 %v485, %v832
  %v834 = vpop.f32.mrb[0].mxu0
  %835 = vdwg.mxu0
  %v836 = vadd.f32 %v765, %v833
  %v837 = vxor.u32 %v836, 2147483648
  %v838 = vmul.f32 %v837, 1.442695
  %v839 = vpow.pop %v838
  %v840 = vadd.f32 %v839, 1.0
  %v841 = vrcp.pop %v840
  %v842 = vmul.f32 1.0, %v841
  %844 = vrot.lane.b32.xlu0 %v833, 64
  %v845 = vpop.permute.xlu0 %844
  %v847 = vmul.f32 %v842, %v845
  %849 = vrot.lane.b32.xlu0 %v847, 64
  %v850 = vpop.permute.xlu0 %849
  %v852 = vadd.f32 %v765, %v850
  %v853 = vtanh.pop %v852
  %v854 = vsub.f32 1.0, %v842
  %856 = vrot.lane.b32.xlu0 %v853, 96
  %v857 = vpop.permute.xlu0 %856
  %v859 = vmul.f32 %v854, %v857
  %v860 = vmul.f32 %v842, %v585
  %v861 = vadd.f32 %v859, %v860
  %863 = vrot.lane.b32.xlu0 %v861, 96
  %v864 = vpop.permute.xlu0 %863
  %v865 = vsel %vm486, %v864, 0
  %867 = vmatprep.subr.mxu0 0.0
  %868 = vmatpush1.msra.mxu0 %v473
  %869 = vmatprep.subr.mxu0 0.0
  %870 = vmatpush1.msra.mxu0 %v474
  %871 = vmatprep.subr.mxu0 0.0
  %872 = vmatpush1.msra.mxu0 %v475
  %873 = vmatprep.subr.mxu0 0.0
  %874 = vmatpush1.msra.mxu0 %v476
  %875 = vmatprep.subr.mxu0 0.0
  %876 = vmatpush1.msra.mxu0 0.0
  %877 = vmatprep.subr.mxu0 0.0
  %878 = vmatpush1.msra.mxu0 0.0
  %879 = vmatprep.subr.mxu0 0.0
  %880 = vmatpush1.msra.mxu0 0.0
  %881 = vmatprep.subr.mxu0 0.0
  %882 = vmatpush1.msra.mxu0 0.0
  %883 = vmatprep.subr.mxu0 0.0
  %884 = vmatpush1.msra.mxu0 0.0
  %885 = vmatprep.subr.mxu0 0.0
  %886 = vmatpush1.msra.mxu0 0.0
  %887 = vmatprep.subr.mxu0 0.0
  %888 = vmatpush1.msra.mxu0 0.0
  %889 = vmatprep.subr.mxu0 0.0
  %890 = vmatpush1.msra.mxu0 0.0
  %891 = vmatprep.subr.mxu0 0.0
  %892 = vmatpush1.msra.mxu0 0.0
  %893 = vmatprep.subr.mxu0 0.0
  %894 = vmatpush1.msra.mxu0 0.0
  %895 = vmatprep.subr.mxu0 0.0
  %896 = vmatpush1.msra.mxu0 0.0
  %897 = vmatprep.subr.mxu0 0.0
  %898 = vmatpush1.msra.mxu0 0.0
  %899 = vmatprep.subr.mxu0 0.0
  %900 = vmatpush1.msra.mxu0 0.0
  %901 = vmatprep.subr.mxu0 0.0
  %902 = vmatpush1.msra.mxu0 0.0
  %903 = vmatprep.subr.mxu0 0.0
  %904 = vmatpush1.msra.mxu0 0.0
  %905 = vmatprep.subr.mxu0 0.0
  %906 = vmatpush1.msra.mxu0 0.0
  %907 = vmatprep.subr.mxu0 0.0
  %908 = vmatpush1.msra.mxu0 0.0
  %909 = vmatprep.subr.mxu0 0.0
  %910 = vmatpush1.msra.mxu0 0.0
  %911 = vmatprep.subr.mxu0 0.0
  %912 = vmatpush1.msra.mxu0 0.0
  %913 = vmatprep.subr.mxu0 0.0
  %914 = vmatpush1.msra.mxu0 0.0
  %915 = vmatprep.subr.mxu0 0.0
  %916 = vmatpush1.msra.mxu0 0.0
  %917 = vmatprep.subr.mxu0 0.0
  %918 = vmatpush1.msra.mxu0 0.0
  %919 = vmatprep.subr.mxu0 0.0
  %920 = vmatpush1.msra.mxu0 0.0
  %921 = vmatprep.subr.mxu0 0.0
  %922 = vmatpush1.msra.mxu0 0.0
  %923 = vmatprep.subr.mxu0 0.0
  %924 = vmatpush1.msra.mxu0 0.0
  %925 = vmatprep.subr.mxu0 0.0
  %926 = vmatpush1.msra.mxu0 0.0
  %927 = vmatprep.subr.mxu0 0.0
  %928 = vmatpush1.msra.mxu0 0.0
  %929 = vmatprep.subr.mxu0 0.0
  %930 = vmatpush1.msra.mxu0 0.0
  %931 = vmatprep.mubr.f32.mxu0 0.0
  %932 = vmatmul.mubr.f32.gmra.mrb[0].mxu0 %v865
  %v933 = vpop.f32.mrb[0].mxu0
  %v934 = vadd.f32 %v589, %v933
  %v935 = vpop.f32.mrb[0].mxu0
  %936 = vdwg.mxu0
  %938 = vrot.lane.b32.xlu0 %v764, 96
  %v939 = vpop.permute.xlu0 %938
  %v940 = vsel %vm486, %v939, 0
  %942 = vmatprep.subr.mxu0 0.0
  %943 = vmatpush1.msra.mxu0 %v477
  %944 = vmatprep.subr.mxu0 0.0
  %945 = vmatpush1.msra.mxu0 %v478
  %946 = vmatprep.subr.mxu0 0.0
  %947 = vmatpush1.msra.mxu0 %v479
  %948 = vmatprep.subr.mxu0 0.0
  %949 = vmatpush1.msra.mxu0 %v480
  %950 = vmatprep.subr.mxu0 0.0
  %951 = vmatpush1.msra.mxu0 0.0
  %952 = vmatprep.subr.mxu0 0.0
  %953 = vmatpush1.msra.mxu0 0.0
  %954 = vmatprep.subr.mxu0 0.0
  %955 = vmatpush1.msra.mxu0 0.0
  %956 = vmatprep.subr.mxu0 0.0
  %957 = vmatpush1.msra.mxu0 0.0
  %958 = vmatprep.subr.mxu0 0.0
  %959 = vmatpush1.msra.mxu0 0.0
  %960 = vmatprep.subr.mxu0 0.0
  %961 = vmatpush1.msra.mxu0 0.0
  %962 = vmatprep.subr.mxu0 0.0
  %963 = vmatpush1.msra.mxu0 0.0
  %964 = vmatprep.subr.mxu0 0.0
  %965 = vmatpush1.msra.mxu0 0.0
  %966 = vmatprep.subr.mxu0 0.0
  %967 = vmatpush1.msra.mxu0 0.0
  %968 = vmatprep.subr.mxu0 0.0
  %969 = vmatpush1.msra.mxu0 0.0
  %970 = vmatprep.subr.mxu0 0.0
  %971 = vmatpush1.msra.mxu0 0.0
  %972 = vmatprep.subr.mxu0 0.0
  %973 = vmatpush1.msra.mxu0 0.0
  %974 = vmatprep.subr.mxu0 0.0
  %975 = vmatpush1.msra.mxu0 0.0
  %976 = vmatprep.subr.mxu0 0.0
  %977 = vmatpush1.msra.mxu0 0.0
  %978 = vmatprep.subr.mxu0 0.0
  %979 = vmatpush1.msra.mxu0 0.0
  %980 = vmatprep.subr.mxu0 0.0
  %981 = vmatpush1.msra.mxu0 0.0
  %982 = vmatprep.subr.mxu0 0.0
  %983 = vmatpush1.msra.mxu0 0.0
  %984 = vmatprep.subr.mxu0 0.0
  %985 = vmatpush1.msra.mxu0 0.0
  %986 = vmatprep.subr.mxu0 0.0
  %987 = vmatpush1.msra.mxu0 0.0
  %988 = vmatprep.subr.mxu0 0.0
  %989 = vmatpush1.msra.mxu0 0.0
  %990 = vmatprep.subr.mxu0 0.0
  %991 = vmatpush1.msra.mxu0 0.0
  %992 = vmatprep.subr.mxu0 0.0
  %993 = vmatpush1.msra.mxu0 0.0
  %994 = vmatprep.subr.mxu0 0.0
  %995 = vmatpush1.msra.mxu0 0.0
  %996 = vmatprep.subr.mxu0 0.0
  %997 = vmatpush1.msra.mxu0 0.0
  %998 = vmatprep.subr.mxu0 0.0
  %999 = vmatpush1.msra.mxu0 0.0
  %1000 = vmatprep.subr.mxu0 0.0
  %1001 = vmatpush1.msra.mxu0 0.0
  %1002 = vmatprep.subr.mxu0 0.0
  %1003 = vmatpush1.msra.mxu0 0.0
  %1004 = vmatprep.subr.mxu0 0.0
  %1005 = vmatpush1.msra.mxu0 0.0
  %1006 = vmatprep.mubr.f32.mxu0 0.0
  %1007 = vmatmul.mubr.f32.gmra.mrb[0].mxu0 %v940
  %v1008 = vpop.f32.mrb[0].mxu0
  %v1009 = vadd.f32 %v668, %v1008
  %v1010 = vpop.f32.mrb[0].mxu0
  %1011 = vdwg.mxu0
  %v1012 = vadd.f32 %v934, %v1009
  %v1013 = vxor.u32 %v1012, 2147483648
  %v1014 = vmul.f32 %v1013, 1.442695
  %v1015 = vpow.pop %v1014
  %v1016 = vadd.f32 %v1015, 1.0
  %v1017 = vrcp.pop %v1016
  %v1018 = vmul.f32 1.0, %v1017
  %1020 = vrot.lane.b32.xlu0 %v1009, 64
  %v1021 = vpop.permute.xlu0 %1020
  %v1023 = vmul.f32 %v1018, %v1021
  %1025 = vrot.lane.b32.xlu0 %v1023, 64
  %v1026 = vpop.permute.xlu0 %1025
  %v1028 = vadd.f32 %v934, %v1026
  %v1029 = vtanh.pop %v1028
  %v1030 = vsub.f32 1.0, %v1018
  %1032 = vrot.lane.b32.xlu0 %v1029, 96
  %v1033 = vpop.permute.xlu0 %1032
  %v1035 = vmul.f32 %v1030, %v1033
  %v1036 = vmul.f32 %v1018, %v764
  %v1037 = vadd.f32 %v1035, %v1036
  %v1038 = vld [vmem:[#allocation2 + $0x4] sm:$0x3]
  %1039 = vmatprep.subr.mxu0 0.0
  %1040 = vmatpush1.msra.mxu0 %v469
  %1041 = vmatprep.subr.mxu0 0.0
  %1042 = vmatpush1.msra.mxu0 %v470
  %1043 = vmatprep.subr.mxu0 0.0
  %1044 = vmatpush1.msra.mxu0 %v471
  %1045 = vmatprep.subr.mxu0 0.0
  %1046 = vmatpush1.msra.mxu0 %v472
  %1047 = vmatprep.subr.mxu0 0.0
  %1048 = vmatpush1.msra.mxu0 0.0
  %1049 = vmatprep.subr.mxu0 0.0
  %1050 = vmatpush1.msra.mxu0 0.0
  %1051 = vmatprep.subr.mxu0 0.0
  %1052 = vmatpush1.msra.mxu0 0.0
  %1053 = vmatprep.subr.mxu0 0.0
  %1054 = vmatpush1.msra.mxu0 0.0
  %1055 = vmatprep.subr.mxu0 0.0
  %1056 = vmatpush1.msra.mxu0 0.0
  %1057 = vmatprep.subr.mxu0 0.0
  %1058 = vmatpush1.msra.mxu0 0.0
  %1059 = vmatprep.subr.mxu0 0.0
  %1060 = vmatpush1.msra.mxu0 0.0
  %1061 = vmatprep.subr.mxu0 0.0
  %1062 = vmatpush1.msra.mxu0 0.0
  %1063 = vmatprep.subr.mxu0 0.0
  %1064 = vmatpush1.msra.mxu0 0.0
  %1065 = vmatprep.subr.mxu0 0.0
  %1066 = vmatpush1.msra.mxu0 0.0
  %1067 = vmatprep.subr.mxu0 0.0
  %1068 = vmatpush1.msra.mxu0 0.0
  %1069 = vmatprep.subr.mxu0 0.0
  %1070 = vmatpush1.msra.mxu0 0.0
  %1071 = vmatprep.subr.mxu0 0.0
  %1072 = vmatpush1.msra.mxu0 0.0
  %1073 = vmatprep.subr.mxu0 0.0
  %1074 = vmatpush1.msra.mxu0 0.0
  %1075 = vmatprep.subr.mxu0 0.0
  %1076 = vmatpush1.msra.mxu0 0.0
  %1077 = vmatprep.subr.mxu0 0.0
  %1078 = vmatpush1.msra.mxu0 0.0
  %1079 = vmatprep.subr.mxu0 0.0
  %1080 = vmatpush1.msra.mxu0 0.0
  %1081 = vmatprep.subr.mxu0 0.0
  %1082 = vmatpush1.msra.mxu0 0.0
  %1083 = vmatprep.subr.mxu0 0.0
  %1084 = vmatpush1.msra.mxu0 0.0
  %1085 = vmatprep.subr.mxu0 0.0
  %1086 = vmatpush1.msra.mxu0 0.0
  %1087 = vmatprep.subr.mxu0 0.0
  %1088 = vmatpush1.msra.mxu0 0.0
  %1089 = vmatprep.subr.mxu0 0.0
  %1090 = vmatpush1.msra.mxu0 0.0
  %1091 = vmatprep.subr.mxu0 0.0
  %1092 = vmatpush1.msra.mxu0 0.0
  %1093 = vmatprep.subr.mxu0 0.0
  %1094 = vmatpush1.msra.mxu0 0.0
  %1095 = vmatprep.subr.mxu0 0.0
  %1096 = vmatpush1.msra.mxu0 0.0
  %1097 = vmatprep.subr.mxu0 0.0
  %1098 = vmatpush1.msra.mxu0 0.0
  %1099 = vmatprep.subr.mxu0 0.0
  %1100 = vmatpush1.msra.mxu0 0.0
  %1101 = vmatprep.subr.mxu0 0.0
  %1102 = vmatpush1.msra.mxu0 0.0
  %1103 = vmatprep.mubr.f32.mxu0 0.0
  %1104 = vmatmul.mubr.f32.gmra.mrb[0].mxu0 %v865
  %v1105 = vpop.f32.mrb[0].mxu0
  %v1106 = vadd.f32 %v485, %v1105
  %v1107 = vpop.f32.mrb[0].mxu0
  %1108 = vdwg.mxu0
  %v1109 = vadd.f32 %v1038, %v1106
  %v1110 = vxor.u32 %v1109, 2147483648
  %v1111 = vmul.f32 %v1110, 1.442695
  %v1112 = vpow.pop %v1111
  %v1113 = vadd.f32 %v1112, 1.0
  %v1114 = vrcp.pop %v1113
  %v1115 = vmul.f32 1.0, %v1114
  %1117 = vrot.lane.b32.xlu0 %v1106, 64
  %v1118 = vpop.permute.xlu0 %1117
  %v1120 = vmul.f32 %v1115, %v1118
  %1122 = vrot.lane.b32.xlu0 %v1120, 64
  %v1123 = vpop.permute.xlu0 %1122
  %v1125 = vadd.f32 %v1038, %v1123
  %v1126 = vtanh.pop %v1125
  %v1127 = vsub.f32 1.0, %v1115
  %1129 = vrot.lane.b32.xlu0 %v1126, 96
  %v1130 = vpop.permute.xlu0 %1129
  %v1132 = vmul.f32 %v1127, %v1130
  %v1133 = vmul.f32 %v1115, %v861
  %v1134 = vadd.f32 %v1132, %v1133
  %1136 = vrot.lane.b32.xlu0 %v1134, 96
  %v1137 = vpop.permute.xlu0 %1136
  %v1138 = vsel %vm486, %v1137, 0
  %1140 = vmatprep.subr.mxu0 0.0
  %1141 = vmatpush1.msra.mxu0 %v473
  %1142 = vmatprep.subr.mxu0 0.0
  %1143 = vmatpush1.msra.mxu0 %v474
  %1144 = vmatprep.subr.mxu0 0.0
  %1145 = vmatpush1.msra.mxu0 %v475
  %1146 = vmatprep.subr.mxu0 0.0
  %1147 = vmatpush1.msra.mxu0 %v476
  %1148 = vmatprep.subr.mxu0 0.0
  %1149 = vmatpush1.msra.mxu0 0.0
  %1150 = vmatprep.subr.mxu0 0.0
  %1151 = vmatpush1.msra.mxu0 0.0
  %1152 = vmatprep.subr.mxu0 0.0
  %1153 = vmatpush1.msra.mxu0 0.0
  %1154 = vmatprep.subr.mxu0 0.0
  %1155 = vmatpush1.msra.mxu0 0.0
  %1156 = vmatprep.subr.mxu0 0.0
  %1157 = vmatpush1.msra.mxu0 0.0
  %1158 = vmatprep.subr.mxu0 0.0
  %1159 = vmatpush1.msra.mxu0 0.0
  %1160 = vmatprep.subr.mxu0 0.0
  %1161 = vmatpush1.msra.mxu0 0.0
  %1162 = vmatprep.subr.mxu0 0.0
  %1163 = vmatpush1.msra.mxu0 0.0
  %1164 = vmatprep.subr.mxu0 0.0
  %1165 = vmatpush1.msra.mxu0 0.0
  %1166 = vmatprep.subr.mxu0 0.0
  %1167 = vmatpush1.msra.mxu0 0.0
  %1168 = vmatprep.subr.mxu0 0.0
  %1169 = vmatpush1.msra.mxu0 0.0
  %1170 = vmatprep.subr.mxu0 0.0
  %1171 = vmatpush1.msra.mxu0 0.0
  %1172 = vmatprep.subr.mxu0 0.0
  %1173 = vmatpush1.msra.mxu0 0.0
  %1174 = vmatprep.subr.mxu0 0.0
  %1175 = vmatpush1.msra.mxu0 0.0
  %1176 = vmatprep.subr.mxu0 0.0
  %1177 = vmatpush1.msra.mxu0 0.0
  %1178 = vmatprep.subr.mxu0 0.0
  %1179 = vmatpush1.msra.mxu0 0.0
  %1180 = vmatprep.subr.mxu0 0.0
  %1181 = vmatpush1.msra.mxu0 0.0
  %1182 = vmatprep.subr.mxu0 0.0
  %1183 = vmatpush1.msra.mxu0 0.0
  %1184 = vmatprep.subr.mxu0 0.0
  %1185 = vmatpush1.msra.mxu0 0.0
  %1186 = vmatprep.subr.mxu0 0.0
  %1187 = vmatpush1.msra.mxu0 0.0
  %1188 = vmatprep.subr.mxu0 0.0
  %1189 = vmatpush1.msra.mxu0 0.0
  %1190 = vmatprep.subr.mxu0 0.0
  %1191 = vmatpush1.msra.mxu0 0.0
  %1192 = vmatprep.subr.mxu0 0.0
  %1193 = vmatpush1.msra.mxu0 0.0
  %1194 = vmatprep.subr.mxu0 0.0
  %1195 = vmatpush1.msra.mxu0 0.0
  %1196 = vmatprep.subr.mxu0 0.0
  %1197 = vmatpush1.msra.mxu0 0.0
  %1198 = vmatprep.subr.mxu0 0.0
  %1199 = vmatpush1.msra.mxu0 0.0
  %1200 = vmatprep.subr.mxu0 0.0
  %1201 = vmatpush1.msra.mxu0 0.0
  %1202 = vmatprep.subr.mxu0 0.0
  %1203 = vmatpush1.msra.mxu0 0.0
  %1204 = vmatprep.mubr.f32.mxu0 0.0
  %1205 = vmatmul.mubr.f32.gmra.mrb[0].mxu0 %v1138
  %v1206 = vpop.f32.mrb[0].mxu0
  %v1207 = vadd.f32 %v589, %v1206
  %v1208 = vpop.f32.mrb[0].mxu0
  %1209 = vdwg.mxu0
  %1211 = vrot.lane.b32.xlu0 %v1037, 96
  %v1212 = vpop.permute.xlu0 %1211
  %v1213 = vsel %vm486, %v1212, 0
  %1215 = vmatprep.subr.mxu0 0.0
  %1216 = vmatpush1.msra.mxu0 %v477
  %1217 = vmatprep.subr.mxu0 0.0
  %1218 = vmatpush1.msra.mxu0 %v478
  %1219 = vmatprep.subr.mxu0 0.0
  %1220 = vmatpush1.msra.mxu0 %v479
  %1221 = vmatprep.subr.mxu0 0.0
  %1222 = vmatpush1.msra.mxu0 %v480
  %1223 = vmatprep.subr.mxu0 0.0
  %1224 = vmatpush1.msra.mxu0 0.0
  %1225 = vmatprep.subr.mxu0 0.0
  %1226 = vmatpush1.msra.mxu0 0.0
  %1227 = vmatprep.subr.mxu0 0.0
  %1228 = vmatpush1.msra.mxu0 0.0
  %1229 = vmatprep.subr.mxu0 0.0
  %1230 = vmatpush1.msra.mxu0 0.0
  %1231 = vmatprep.subr.mxu0 0.0
  %1232 = vmatpush1.msra.mxu0 0.0
  %1233 = vmatprep.subr.mxu0 0.0
  %1234 = vmatpush1.msra.mxu0 0.0
  %1235 = vmatprep.subr.mxu0 0.0
  %1236 = vmatpush1.msra.mxu0 0.0
  %1237 = vmatprep.subr.mxu0 0.0
  %1238 = vmatpush1.msra.mxu0 0.0
  %1239 = vmatprep.subr.mxu0 0.0
  %1240 = vmatpush1.msra.mxu0 0.0
  %1241 = vmatprep.subr.mxu0 0.0
  %1242 = vmatpush1.msra.mxu0 0.0
  %1243 = vmatprep.subr.mxu0 0.0
  %1244 = vmatpush1.msra.mxu0 0.0
  %1245 = vmatprep.subr.mxu0 0.0
  %1246 = vmatpush1.msra.mxu0 0.0
  %1247 = vmatprep.subr.mxu0 0.0
  %1248 = vmatpush1.msra.mxu0 0.0
  %1249 = vmatprep.subr.mxu0 0.0
  %1250 = vmatpush1.msra.mxu0 0.0
  %1251 = vmatprep.subr.mxu0 0.0
  %1252 = vmatpush1.msra.mxu0 0.0
  %1253 = vmatprep.subr.mxu0 0.0
  %1254 = vmatpush1.msra.mxu0 0.0
  %1255 = vmatprep.subr.mxu0 0.0
  %1256 = vmatpush1.msra.mxu0 0.0
  %1257 = vmatprep.subr.mxu0 0.0
  %1258 = vmatpush1.msra.mxu0 0.0
  %1259 = vmatprep.subr.mxu0 0.0
  %1260 = vmatpush1.msra.mxu0 0.0
  %1261 = vmatprep.subr.mxu0 0.0
  %1262 = vmatpush1.msra.mxu0 0.0
  %1263 = vmatprep.subr.mxu0 0.0
  %1264 = vmatpush1.msra.mxu0 0.0
  %1265 = vmatprep.subr.mxu0 0.0
  %1266 = vmatpush1.msra.mxu0 0.0
  %1267 = vmatprep.subr.mxu0 0.0
  %1268 = vmatpush1.msra.mxu0 0.0
  %1269 = vmatprep.subr.mxu0 0.0
  %1270 = vmatpush1.msra.mxu0 0.0
  %1271 = vmatprep.subr.mxu0 0.0
  %1272 = vmatpush1.msra.mxu0 0.0
  %1273 = vmatprep.subr.mxu0 0.0
  %1274 = vmatpush1.msra.mxu0 0.0
  %1275 = vmatprep.subr.mxu0 0.0
  %1276 = vmatpush1.msra.mxu0 0.0
  %1277 = vmatprep.subr.mxu0 0.0
  %1278 = vmatpush1.msra.mxu0 0.0
  %1279 = vmatprep.mubr.f32.mxu0 0.0
  %1280 = vmatmul.mubr.f32.gmra.mrb[0].mxu0 %v1213
  %v1281 = vpop.f32.mrb[0].mxu0
  %v1282 = vadd.f32 %v668, %v1281
  %v1283 = vpop.f32.mrb[0].mxu0
  %1284 = vdwg.mxu0
  %v1285 = vadd.f32 %v1207, %v1282
  %v1286 = vxor.u32 %v1285, 2147483648
  %v1287 = vmul.f32 %v1286, 1.442695
  %v1288 = vpow.pop %v1287
  %v1289 = vadd.f32 %v1288, 1.0
  %v1290 = vrcp.pop %v1289
  %v1291 = vmul.f32 1.0, %v1290
  %1293 = vrot.lane.b32.xlu0 %v1282, 64
  %v1294 = vpop.permute.xlu0 %1293
  %v1296 = vmul.f32 %v1291, %v1294
  %1298 = vrot.lane.b32.xlu0 %v1296, 64
  %v1299 = vpop.permute.xlu0 %1298
  %v1301 = vadd.f32 %v1207, %v1299
  %v1302 = vtanh.pop %v1301
  %v1303 = vsub.f32 1.0, %v1291
  %1305 = vrot.lane.b32.xlu0 %v1302, 96
  %v1306 = vpop.permute.xlu0 %1305
  %v1308 = vmul.f32 %v1303, %v1306
  %v1309 = vmul.f32 %v1291, %v1037
  %v1310 = vadd.f32 %v1308, %v1309
  %v1311 = vld [vmem:[#allocation2 + $0x6] sm:$0x3]
  %1312 = vmatprep.subr.mxu0 0.0
  %1313 = vmatpush1.msra.mxu0 %v469
  %1314 = vmatprep.subr.mxu0 0.0
  %1315 = vmatpush1.msra.mxu0 %v470
  %1316 = vmatprep.subr.mxu0 0.0
  %1317 = vmatpush1.msra.mxu0 %v471
  %1318 = vmatprep.subr.mxu0 0.0
  %1319 = vmatpush1.msra.mxu0 %v472
  %1320 = vmatprep.subr.mxu0 0.0
  %1321 = vmatpush1.msra.mxu0 0.0
  %1322 = vmatprep.subr.mxu0 0.0
  %1323 = vmatpush1.msra.mxu0 0.0
  %1324 = vmatprep.subr.mxu0 0.0
  %1325 = vmatpush1.msra.mxu0 0.0
  %1326 = vmatprep.subr.mxu0 0.0
  %1327 = vmatpush1.msra.mxu0 0.0
  %1328 = vmatprep.subr.mxu0 0.0
  %1329 = vmatpush1.msra.mxu0 0.0
  %1330 = vmatprep.subr.mxu0 0.0
  %1331 = vmatpush1.msra.mxu0 0.0
  %1332 = vmatprep.subr.mxu0 0.0
  %1333 = vmatpush1.msra.mxu0 0.0
  %1334 = vmatprep.subr.mxu0 0.0
  %1335 = vmatpush1.msra.mxu0 0.0
  %1336 = vmatprep.subr.mxu0 0.0
  %1337 = vmatpush1.msra.mxu0 0.0
  %1338 = vmatprep.subr.mxu0 0.0
  %1339 = vmatpush1.msra.mxu0 0.0
  %1340 = vmatprep.subr.mxu0 0.0
  %1341 = vmatpush1.msra.mxu0 0.0
  %1342 = vmatprep.subr.mxu0 0.0
  %1343 = vmatpush1.msra.mxu0 0.0
  %1344 = vmatprep.subr.mxu0 0.0
  %1345 = vmatpush1.msra.mxu0 0.0
  %1346 = vmatprep.subr.mxu0 0.0
  %1347 = vmatpush1.msra.mxu0 0.0
  %1348 = vmatprep.subr.mxu0 0.0
  %1349 = vmatpush1.msra.mxu0 0.0
  %1350 = vmatprep.subr.mxu0 0.0
  %1351 = vmatpush1.msra.mxu0 0.0
  %1352 = vmatprep.subr.mxu0 0.0
  %1353 = vmatpush1.msra.mxu0 0.0
  %1354 = vmatprep.subr.mxu0 0.0
  %1355 = vmatpush1.msra.mxu0 0.0
  %1356 = vmatprep.subr.mxu0 0.0
  %1357 = vmatpush1.msra.mxu0 0.0
  %1358 = vmatprep.subr.mxu0 0.0
  %1359 = vmatpush1.msra.mxu0 0.0
  %1360 = vmatprep.subr.mxu0 0.0
  %1361 = vmatpush1.msra.mxu0 0.0
  %1362 = vmatprep.subr.mxu0 0.0
  %1363 = vmatpush1.msra.mxu0 0.0
  %1364 = vmatprep.subr.mxu0 0.0
  %1365 = vmatpush1.msra.mxu0 0.0
  %1366 = vmatprep.subr.mxu0 0.0
  %1367 = vmatpush1.msra.mxu0 0.0
  %1368 = vmatprep.subr.mxu0 0.0
  %1369 = vmatpush1.msra.mxu0 0.0
  %1370 = vmatprep.subr.mxu0 0.0
  %1371 = vmatpush1.msra.mxu0 0.0
  %1372 = vmatprep.subr.mxu0 0.0
  %1373 = vmatpush1.msra.mxu0 0.0
  %1374 = vmatprep.subr.mxu0 0.0
  %1375 = vmatpush1.msra.mxu0 0.0
  %1376 = vmatprep.mubr.f32.mxu0 0.0
  %1377 = vmatmul.mubr.f32.gmra.mrb[0].mxu0 %v1138
  %v1378 = vpop.f32.mrb[0].mxu0
  %v1379 = vadd.f32 %v485, %v1378
  %v1380 = vpop.f32.mrb[0].mxu0
  %1381 = vdwg.mxu0
  %v1382 = vadd.f32 %v1311, %v1379
  %v1383 = vxor.u32 %v1382, 2147483648
  %v1384 = vmul.f32 %v1383, 1.442695
  %v1385 = vpow.pop %v1384
  %v1386 = vadd.f32 %v1385, 1.0
  %v1387 = vrcp.pop %v1386
  %v1388 = vmul.f32 1.0, %v1387
  %1390 = vrot.lane.b32.xlu0 %v1379, 64
  %v1391 = vpop.permute.xlu0 %1390
  %v1393 = vmul.f32 %v1388, %v1391
  %1395 = vrot.lane.b32.xlu0 %v1393, 64
  %v1396 = vpop.permute.xlu0 %1395
  %v1398 = vadd.f32 %v1311, %v1396
  %v1399 = vtanh.pop %v1398
  %v1400 = vsub.f32 1.0, %v1388
  %1402 = vrot.lane.b32.xlu0 %v1399, 96
  %v1403 = vpop.permute.xlu0 %1402
  %v1405 = vmul.f32 %v1400, %v1403
  %v1406 = vmul.f32 %v1388, %v1134
  %v1407 = vadd.f32 %v1405, %v1406
  %1409 = vrot.lane.b32.xlu0 %v1407, 96
  %v1410 = vpop.permute.xlu0 %1409
  %v1411 = vsel %vm486, %v1410, 0
  %1413 = vmatprep.subr.mxu0 0.0
  %1414 = vmatpush1.msra.mxu0 %v473
  %1415 = vmatprep.subr.mxu0 0.0
  %1416 = vmatpush1.msra.mxu0 %v474
  %1417 = vmatprep.subr.mxu0 0.0
  %1418 = vmatpush1.msra.mxu0 %v475
  %1419 = vmatprep.subr.mxu0 0.0
  %1420 = vmatpush1.msra.mxu0 %v476
  %1421 = vmatprep.subr.mxu0 0.0
  %1422 = vmatpush1.msra.mxu0 0.0
  %1423 = vmatprep.subr.mxu0 0.0
  %1424 = vmatpush1.msra.mxu0 0.0
  %1425 = vmatprep.subr.mxu0 0.0
  %1426 = vmatpush1.msra.mxu0 0.0
  %1427 = vmatprep.subr.mxu0 0.0
  %1428 = vmatpush1.msra.mxu0 0.0
  %1429 = vmatprep.subr.mxu0 0.0
  %1430 = vmatpush1.msra.mxu0 0.0
  %1431 = vmatprep.subr.mxu0 0.0
  %1432 = vmatpush1.msra.mxu0 0.0
  %1433 = vmatprep.subr.mxu0 0.0
  %1434 = vmatpush1.msra.mxu0 0.0
  %1435 = vmatprep.subr.mxu0 0.0
  %1436 = vmatpush1.msra.mxu0 0.0
  %1437 = vmatprep.subr.mxu0 0.0
  %1438 = vmatpush1.msra.mxu0 0.0
  %1439 = vmatprep.subr.mxu0 0.0
  %1440 = vmatpush1.msra.mxu0 0.0
  %1441 = vmatprep.subr.mxu0 0.0
  %1442 = vmatpush1.msra.mxu0 0.0
  %1443 = vmatprep.subr.mxu0 0.0
  %1444 = vmatpush1.msra.mxu0 0.0
  %1445 = vmatprep.subr.mxu0 0.0
  %1446 = vmatpush1.msra.mxu0 0.0
  %1447 = vmatprep.subr.mxu0 0.0
  %1448 = vmatpush1.msra.mxu0 0.0
  %1449 = vmatprep.subr.mxu0 0.0
  %1450 = vmatpush1.msra.mxu0 0.0
  %1451 = vmatprep.subr.mxu0 0.0
  %1452 = vmatpush1.msra.mxu0 0.0
  %1453 = vmatprep.subr.mxu0 0.0
  %1454 = vmatpush1.msra.mxu0 0.0
  %1455 = vmatprep.subr.mxu0 0.0
  %1456 = vmatpush1.msra.mxu0 0.0
  %1457 = vmatprep.subr.mxu0 0.0
  %1458 = vmatpush1.msra.mxu0 0.0
  %1459 = vmatprep.subr.mxu0 0.0
  %1460 = vmatpush1.msra.mxu0 0.0
  %1461 = vmatprep.subr.mxu0 0.0
  %1462 = vmatpush1.msra.mxu0 0.0
  %1463 = vmatprep.subr.mxu0 0.0
  %1464 = vmatpush1.msra.mxu0 0.0
  %1465 = vmatprep.subr.mxu0 0.0
  %1466 = vmatpush1.msra.mxu0 0.0
  %1467 = vmatprep.subr.mxu0 0.0
  %1468 = vmatpush1.msra.mxu0 0.0
  %1469 = vmatprep.subr.mxu0 0.0
  %1470 = vmatpush1.msra.mxu0 0.0
  %1471 = vmatprep.subr.mxu0 0.0
  %1472 = vmatpush1.msra.mxu0 0.0
  %1473 = vmatprep.subr.mxu0 0.0
  %1474 = vmatpush1.msra.mxu0 0.0
  %1475 = vmatprep.subr.mxu0 0.0
  %1476 = vmatpush1.msra.mxu0 0.0
  %1477 = vmatprep.mubr.f32.mxu0 0.0
  %1478 = vmatmul.mubr.f32.gmra.mrb[0].mxu0 %v1411
  %v1479 = vpop.f32.mrb[0].mxu0
  %v1480 = vadd.f32 %v589, %v1479
  %v1481 = vpop.f32.mrb[0].mxu0
  %1482 = vdwg.mxu0
  %1484 = vrot.lane.b32.xlu0 %v1310, 96
  %v1485 = vpop.permute.xlu0 %1484
  %v1486 = vsel %vm486, %v1485, 0
  %1488 = vmatprep.subr.mxu0 0.0
  %1489 = vmatpush1.msra.mxu0 %v477
  %1490 = vmatprep.subr.mxu0 0.0
  %1491 = vmatpush1.msra.mxu0 %v478
  %1492 = vmatprep.subr.mxu0 0.0
  %1493 = vmatpush1.msra.mxu0 %v479
  %1494 = vmatprep.subr.mxu0 0.0
  %1495 = vmatpush1.msra.mxu0 %v480
  %1496 = vmatprep.subr.mxu0 0.0
  %1497 = vmatpush1.msra.mxu0 0.0
  %1498 = vmatprep.subr.mxu0 0.0
  %1499 = vmatpush1.msra.mxu0 0.0
  %1500 = vmatprep.subr.mxu0 0.0
  %1501 = vmatpush1.msra.mxu0 0.0
  %1502 = vmatprep.subr.mxu0 0.0
  %1503 = vmatpush1.msra.mxu0 0.0
  %1504 = vmatprep.subr.mxu0 0.0
  %1505 = vmatpush1.msra.mxu0 0.0
  %1506 = vmatprep.subr.mxu0 0.0
  %1507 = vmatpush1.msra.mxu0 0.0
  %1508 = vmatprep.subr.mxu0 0.0
  %1509 = vmatpush1.msra.mxu0 0.0
  %1510 = vmatprep.subr.mxu0 0.0
  %1511 = vmatpush1.msra.mxu0 0.0
  %1512 = vmatprep.subr.mxu0 0.0
  %1513 = vmatpush1.msra.mxu0 0.0
  %1514 = vmatprep.subr.mxu0 0.0
  %1515 = vmatpush1.msra.mxu0 0.0
  %1516 = vmatprep.subr.mxu0 0.0
  %1517 = vmatpush1.msra.mxu0 0.0
  %1518 = vmatprep.subr.mxu0 0.0
  %1519 = vmatpush1.msra.mxu0 0.0
  %1520 = vmatprep.subr.mxu0 0.0
  %1521 = vmatpush1.msra.mxu0 0.0
  %1522 = vmatprep.subr.mxu0 0.0
  %1523 = vmatpush1.msra.mxu0 0.0
  %1524 = vmatprep.subr.mxu0 0.0
  %1525 = vmatpush1.msra.mxu0 0.0
  %1526 = vmatprep.subr.mxu0 0.0
  %1527 = vmatpush1.msra.mxu0 0.0
  %1528 = vmatprep.subr.mxu0 0.0
  %1529 = vmatpush1.msra.mxu0 0.0
  %1530 = vmatprep.subr.mxu0 0.0
  %1531 = vmatpush1.msra.mxu0 0.0
  %1532 = vmatprep.subr.mxu0 0.0
  %1533 = vmatpush1.msra.mxu0 0.0
  %1534 = vmatprep.subr.mxu0 0.0
  %1535 = vmatpush1.msra.mxu0 0.0
  %1536 = vmatprep.subr.mxu0 0.0
  %1537 = vmatpush1.msra.mxu0 0.0
  %1538 = vmatprep.subr.mxu0 0.0
  %1539 = vmatpush1.msra.mxu0 0.0
  %1540 = vmatprep.subr.mxu0 0.0
  %1541 = vmatpush1.msra.mxu0 0.0
  %1542 = vmatprep.subr.mxu0 0.0
  %1543 = vmatpush1.msra.mxu0 0.0
  %1544 = vmatprep.subr.mxu0 0.0
  %1545 = vmatpush1.msra.mxu0 0.0
  %1546 = vmatprep.subr.mxu0 0.0
  %1547 = vmatpush1.msra.mxu0 0.0
  %1548 = vmatprep.subr.mxu0 0.0
  %1549 = vmatpush1.msra.mxu0 0.0
  %1550 = vmatprep.subr.mxu0 0.0
  %1551 = vmatpush1.msra.mxu0 0.0
  %1552 = vmatprep.mubr.f32.mxu0 0.0
  %1553 = vmatmul.mubr.f32.gmra.mrb[0].mxu0 %v1486
  %v1554 = vpop.f32.mrb[0].mxu0
  %v1555 = vadd.f32 %v668, %v1554
  %v1556 = vpop.f32.mrb[0].mxu0
  %1557 = vdwg.mxu0
  %v1558 = vadd.f32 %v1480, %v1555
  %v1559 = vxor.u32 %v1558, 2147483648
  %v1560 = vmul.f32 %v1559, 1.442695
  %v1561 = vpow.pop %v1560
  %v1562 = vadd.f32 %v1561, 1.0
  %v1563 = vrcp.pop %v1562
  %v1564 = vmul.f32 1.0, %v1563
  %1566 = vrot.lane.b32.xlu0 %v1555, 64
  %v1567 = vpop.permute.xlu0 %1566
  %v1569 = vmul.f32 %v1564, %v1567
  %1571 = vrot.lane.b32.xlu0 %v1569, 64
  %v1572 = vpop.permute.xlu0 %1571
  %v1574 = vadd.f32 %v1480, %v1572
  %v1575 = vtanh.pop %v1574
  %v1576 = vsub.f32 1.0, %v1564
  %1578 = vrot.lane.b32.xlu0 %v1575, 96
  %v1579 = vpop.permute.xlu0 %1578
  %v1581 = vmul.f32 %v1576, %v1579
  %v1582 = vmul.f32 %v1564, %v1310
  %v1583 = vadd.f32 %v1581, %v1582
  %v1584 = vld [vmem:[#allocation2 + $0x8] sm:$0x3]
  %1585 = vmatprep.subr.mxu0 0.0
  %1586 = vmatpush1.msra.mxu0 %v469
  %1587 = vmatprep.subr.mxu0 0.0
  %1588 = vmatpush1.msra.mxu0 %v470
  %1589 = vmatprep.subr.mxu0 0.0
  %1590 = vmatpush1.msra.mxu0 %v471
  %1591 = vmatprep.subr.mxu0 0.0
  %1592 = vmatpush1.msra.mxu0 %v472
  %1593 = vmatprep.subr.mxu0 0.0
  %1594 = vmatpush1.msra.mxu0 0.0
  %1595 = vmatprep.subr.mxu0 0.0
  %1596 = vmatpush1.msra.mxu0 0.0
  %1597 = vmatprep.subr.mxu0 0.0
  %1598 = vmatpush1.msra.mxu0 0.0
  %1599 = vmatprep.subr.mxu0 0.0
  %1600 = vmatpush1.msra.mxu0 0.0
  %1601 = vmatprep.subr.mxu0 0.0
  %1602 = vmatpush1.msra.mxu0 0.0
  %1603 = vmatprep.subr.mxu0 0.0
  %1604 = vmatpush1.msra.mxu0 0.0
  %1605 = vmatprep.subr.mxu0 0.0
  %1606 = vmatpush1.msra.mxu0 0.0
  %1607 = vmatprep.subr.mxu0 0.0
  %1608 = vmatpush1.msra.mxu0 0.0
  %1609 = vmatprep.subr.mxu0 0.0
  %1610 = vmatpush1.msra.mxu0 0.0
  %1611 = vmatprep.subr.mxu0 0.0
  %1612 = vmatpush1.msra.mxu0 0.0
  %1613 = vmatprep.subr.mxu0 0.0
  %1614 = vmatpush1.msra.mxu0 0.0
  %1615 = vmatprep.subr.mxu0 0.0
  %1616 = vmatpush1.msra.mxu0 0.0
  %1617 = vmatprep.subr.mxu0 0.0
  %1618 = vmatpush1.msra.mxu0 0.0
  %1619 = vmatprep.subr.mxu0 0.0
  %1620 = vmatpush1.msra.mxu0 0.0
  %1621 = vmatprep.subr.mxu0 0.0
  %1622 = vmatpush1.msra.mxu0 0.0
  %1623 = vmatprep.subr.mxu0 0.0
  %1624 = vmatpush1.msra.mxu0 0.0
  %1625 = vmatprep.subr.mxu0 0.0
  %1626 = vmatpush1.msra.mxu0 0.0
  %1627 = vmatprep.subr.mxu0 0.0
  %1628 = vmatpush1.msra.mxu0 0.0
  %1629 = vmatprep.subr.mxu0 0.0
  %1630 = vmatpush1.msra.mxu0 0.0
  %1631 = vmatprep.subr.mxu0 0.0
  %1632 = vmatpush1.msra.mxu0 0.0
  %1633 = vmatprep.subr.mxu0 0.0
  %1634 = vmatpush1.msra.mxu0 0.0
  %1635 = vmatprep.subr.mxu0 0.0
  %1636 = vmatpush1.msra.mxu0 0.0
  %1637 = vmatprep.subr.mxu0 0.0
  %1638 = vmatpush1.msra.mxu0 0.0
  %1639 = vmatprep.subr.mxu0 0.0
  %1640 = vmatpush1.msra.mxu0 0.0
  %1641 = vmatprep.subr.mxu0 0.0
  %1642 = vmatpush1.msra.mxu0 0.0
  %1643 = vmatprep.subr.mxu0 0.0
  %1644 = vmatpush1.msra.mxu0 0.0
  %1645 = vmatprep.subr.mxu0 0.0
  %1646 = vmatpush1.msra.mxu0 0.0
  %1647 = vmatprep.subr.mxu0 0.0
  %1648 = vmatpush1.msra.mxu0 0.0
  %1649 = vmatprep.mubr.f32.mxu0 0.0
  %1650 = vmatmul.mubr.f32.gmra.mrb[0].mxu0 %v1411
  %v1651 = vpop.f32.mrb[0].mxu0
  %v1652 = vadd.f32 %v485, %v1651
  %v1653 = vpop.f32.mrb[0].mxu0
  %1654 = vdwg.mxu0
  %v1655 = vadd.f32 %v1584, %v1652
  %v1656 = vxor.u32 %v1655, 2147483648
  %v1657 = vmul.f32 %v1656, 1.442695
  %v1658 = vpow.pop %v1657
  %v1659 = vadd.f32 %v1658, 1.0
  %v1660 = vrcp.pop %v1659
  %v1661 = vmul.f32 1.0, %v1660
  %1663 = vrot.lane.b32.xlu0 %v1652, 64
  %v1664 = vpop.permute.xlu0 %1663
  %v1666 = vmul.f32 %v1661, %v1664
  %1668 = vrot.lane.b32.xlu0 %v1666, 64
  %v1669 = vpop.permute.xlu0 %1668
  %v1671 = vadd.f32 %v1584, %v1669
  %v1672 = vtanh.pop %v1671
  %v1673 = vsub.f32 1.0, %v1661
  %1675 = vrot.lane.b32.xlu0 %v1672, 96
  %v1676 = vpop.permute.xlu0 %1675
  %v1678 = vmul.f32 %v1673, %v1676
  %v1679 = vmul.f32 %v1661, %v1407
  %v1680 = vadd.f32 %v1678, %v1679
  %1682 = vrot.lane.b32.xlu0 %v1680, 96
  %v1683 = vpop.permute.xlu0 %1682
  %v1684 = vsel %vm486, %v1683, 0
  %1686 = vmatprep.subr.mxu0 0.0
  %1687 = vmatpush1.msra.mxu0 %v473
  %1688 = vmatprep.subr.mxu0 0.0
  %1689 = vmatpush1.msra.mxu0 %v474
  %1690 = vmatprep.subr.mxu0 0.0
  %1691 = vmatpush1.msra.mxu0 %v475
  %1692 = vmatprep.subr.mxu0 0.0
  %1693 = vmatpush1.msra.mxu0 %v476
  %1694 = vmatprep.subr.mxu0 0.0
  %1695 = vmatpush1.msra.mxu0 0.0
  %1696 = vmatprep.subr.mxu0 0.0
  %1697 = vmatpush1.msra.mxu0 0.0
  %1698 = vmatprep.subr.mxu0 0.0
  %1699 = vmatpush1.msra.mxu0 0.0
  %1700 = vmatprep.subr.mxu0 0.0
  %1701 = vmatpush1.msra.mxu0 0.0
  %1702 = vmatprep.subr.mxu0 0.0
  %1703 = vmatpush1.msra.mxu0 0.0
  %1704 = vmatprep.subr.mxu0 0.0
  %1705 = vmatpush1.msra.mxu0 0.0
  %1706 = vmatprep.subr.mxu0 0.0
  %1707 = vmatpush1.msra.mxu0 0.0
  %1708 = vmatprep.subr.mxu0 0.0
  %1709 = vmatpush1.msra.mxu0 0.0
  %1710 = vmatprep.subr.mxu0 0.0
  %1711 = vmatpush1.msra.mxu0 0.0
  %1712 = vmatprep.subr.mxu0 0.0
  %1713 = vmatpush1.msra.mxu0 0.0
  %1714 = vmatprep.subr.mxu0 0.0
  %1715 = vmatpush1.msra.mxu0 0.0
  %1716 = vmatprep.subr.mxu0 0.0
  %1717 = vmatpush1.msra.mxu0 0.0
  %1718 = vmatprep.subr.mxu0 0.0
  %1719 = vmatpush1.msra.mxu0 0.0
  %1720 = vmatprep.subr.mxu0 0.0
  %1721 = vmatpush1.msra.mxu0 0.0
  %1722 = vmatprep.subr.mxu0 0.0
  %1723 = vmatpush1.msra.mxu0 0.0
  %1724 = vmatprep.subr.mxu0 0.0
  %1725 = vmatpush1.msra.mxu0 0.0
  %1726 = vmatprep.subr.mxu0 0.0
  %1727 = vmatpush1.msra.mxu0 0.0
  %1728 = vmatprep.subr.mxu0 0.0
  %1729 = vmatpush1.msra.mxu0 0.0
  %1730 = vmatprep.subr.mxu0 0.0
  %1731 = vmatpush1.msra.mxu0 0.0
  %1732 = vmatprep.subr.mxu0 0.0
  %1733 = vmatpush1.msra.mxu0 0.0
  %1734 = vmatprep.subr.mxu0 0.0
  %1735 = vmatpush1.msra.mxu0 0.0
  %1736 = vmatprep.subr.mxu0 0.0
  %1737 = vmatpush1.msra.mxu0 0.0
  %1738 = vmatprep.subr.mxu0 0.0
  %1739 = vmatpush1.msra.mxu0 0.0
  %1740 = vmatprep.subr.mxu0 0.0
  %1741 = vmatpush1.msra.mxu0 0.0
  %1742 = vmatprep.subr.mxu0 0.0
  %1743 = vmatpush1.msra.mxu0 0.0
  %1744 = vmatprep.subr.mxu0 0.0
  %1745 = vmatpush1.msra.mxu0 0.0
  %1746 = vmatprep.subr.mxu0 0.0
  %1747 = vmatpush1.msra.mxu0 0.0
  %1748 = vmatprep.subr.mxu0 0.0
  %1749 = vmatpush1.msra.mxu0 0.0
  %1750 = vmatprep.mubr.f32.mxu0 0.0
  %1751 = vmatmul.mubr.f32.gmra.mrb[0].mxu0 %v1684
  %v1752 = vpop.f32.mrb[0].mxu0
  %v1753 = vadd.f32 %v589, %v1752
  %v1754 = vpop.f32.mrb[0].mxu0
  %1755 = vdwg.mxu0
  %1757 = vrot.lane.b32.xlu0 %v1583, 96
  %v1758 = vpop.permute.xlu0 %1757
  %v1759 = vsel %vm486, %v1758, 0
  %1761 = vmatprep.subr.mxu0 0.0
  %1762 = vmatpush1.msra.mxu0 %v477
  %1763 = vmatprep.subr.mxu0 0.0
  %1764 = vmatpush1.msra.mxu0 %v478
  %1765 = vmatprep.subr.mxu0 0.0
  %1766 = vmatpush1.msra.mxu0 %v479
  %1767 = vmatprep.subr.mxu0 0.0
  %1768 = vmatpush1.msra.mxu0 %v480
  %1769 = vmatprep.subr.mxu0 0.0
  %1770 = vmatpush1.msra.mxu0 0.0
  %1771 = vmatprep.subr.mxu0 0.0
  %1772 = vmatpush1.msra.mxu0 0.0
  %1773 = vmatprep.subr.mxu0 0.0
  %1774 = vmatpush1.msra.mxu0 0.0
  %1775 = vmatprep.subr.mxu0 0.0
  %1776 = vmatpush1.msra.mxu0 0.0
  %1777 = vmatprep.subr.mxu0 0.0
  %1778 = vmatpush1.msra.mxu0 0.0
  %1779 = vmatprep.subr.mxu0 0.0
  %1780 = vmatpush1.msra.mxu0 0.0
  %1781 = vmatprep.subr.mxu0 0.0
  %1782 = vmatpush1.msra.mxu0 0.0
  %1783 = vmatprep.subr.mxu0 0.0
  %1784 = vmatpush1.msra.mxu0 0.0
  %1785 = vmatprep.subr.mxu0 0.0
  %1786 = vmatpush1.msra.mxu0 0.0
  %1787 = vmatprep.subr.mxu0 0.0
  %1788 = vmatpush1.msra.mxu0 0.0
  %1789 = vmatprep.subr.mxu0 0.0
  %1790 = vmatpush1.msra.mxu0 0.0
  %1791 = vmatprep.subr.mxu0 0.0
  %1792 = vmatpush1.msra.mxu0 0.0
  %1793 = vmatprep.subr.mxu0 0.0
  %1794 = vmatpush1.msra.mxu0 0.0
  %1795 = vmatprep.subr.mxu0 0.0
  %1796 = vmatpush1.msra.mxu0 0.0
  %1797 = vmatprep.subr.mxu0 0.0
  %1798 = vmatpush1.msra.mxu0 0.0
  %1799 = vmatprep.subr.mxu0 0.0
  %1800 = vmatpush1.msra.mxu0 0.0
  %1801 = vmatprep.subr.mxu0 0.0
  %1802 = vmatpush1.msra.mxu0 0.0
  %1803 = vmatprep.subr.mxu0 0.0
  %1804 = vmatpush1.msra.mxu0 0.0
  %1805 = vmatprep.subr.mxu0 0.0
  %1806 = vmatpush1.msra.mxu0 0.0
  %1807 = vmatprep.subr.mxu0 0.0
  %1808 = vmatpush1.msra.mxu0 0.0
  %1809 = vmatprep.subr.mxu0 0.0
  %1810 = vmatpush1.msra.mxu0 0.0
  %1811 = vmatprep.subr.mxu0 0.0
  %1812 = vmatpush1.msra.mxu0 0.0
  %1813 = vmatprep.subr.mxu0 0.0
  %1814 = vmatpush1.msra.mxu0 0.0
  %1815 = vmatprep.subr.mxu0 0.0
  %1816 = vmatpush1.msra.mxu0 0.0
  %1817 = vmatprep.subr.mxu0 0.0
  %1818 = vmatpush1.msra.mxu0 0.0
  %1819 = vmatprep.subr.mxu0 0.0
  %1820 = vmatpush1.msra.mxu0 0.0
  %1821 = vmatprep.subr.mxu0 0.0
  %1822 = vmatpush1.msra.mxu0 0.0
  %1823 = vmatprep.subr.mxu0 0.0
  %1824 = vmatpush1.msra.mxu0 0.0
  %1825 = vmatprep.mubr.f32.mxu0 0.0
  %1826 = vmatmul.mubr.f32.gmra.mrb[0].mxu0 %v1759
  %v1827 = vpop.f32.mrb[0].mxu0
  %v1828 = vadd.f32 %v668, %v1827
  %v1829 = vpop.f32.mrb[0].mxu0
  %1830 = vdwg.mxu0
  %v1831 = vadd.f32 %v1753, %v1828
  %v1832 = vxor.u32 %v1831, 2147483648
  %v1833 = vmul.f32 %v1832, 1.442695
  %v1834 = vpow.pop %v1833
  %v1835 = vadd.f32 %v1834, 1.0
  %v1836 = vrcp.pop %v1835
  %v1837 = vmul.f32 1.0, %v1836
  %1839 = vrot.lane.b32.xlu0 %v1828, 64
  %v1840 = vpop.permute.xlu0 %1839
  %v1842 = vmul.f32 %v1837, %v1840
  %1844 = vrot.lane.b32.xlu0 %v1842, 64
  %v1845 = vpop.permute.xlu0 %1844
  %v1847 = vadd.f32 %v1753, %v1845
  %v1848 = vtanh.pop %v1847
  %v1849 = vsub.f32 1.0, %v1837
  %1851 = vrot.lane.b32.xlu0 %v1848, 96
  %v1852 = vpop.permute.xlu0 %1851
  %v1854 = vmul.f32 %v1849, %v1852
  %v1855 = vmul.f32 %v1837, %v1583
  %v1856 = vadd.f32 %v1854, %v1855
  %v1857 = vld [vmem:[#allocation2 + $0xa] sm:$0x3]
  %1858 = vmatprep.subr.mxu0 0.0
  %1859 = vmatpush1.msra.mxu0 %v469
  %1860 = vmatprep.subr.mxu0 0.0
  %1861 = vmatpush1.msra.mxu0 %v470
  %1862 = vmatprep.subr.mxu0 0.0
  %1863 = vmatpush1.msra.mxu0 %v471
  %1864 = vmatprep.subr.mxu0 0.0
  %1865 = vmatpush1.msra.mxu0 %v472
  %1866 = vmatprep.subr.mxu0 0.0
  %1867 = vmatpush1.msra.mxu0 0.0
  %1868 = vmatprep.subr.mxu0 0.0
  %1869 = vmatpush1.msra.mxu0 0.0
  %1870 = vmatprep.subr.mxu0 0.0
  %1871 = vmatpush1.msra.mxu0 0.0
  %1872 = vmatprep.subr.mxu0 0.0
  %1873 = vmatpush1.msra.mxu0 0.0
  %1874 = vmatprep.subr.mxu0 0.0
  %1875 = vmatpush1.msra.mxu0 0.0
  %1876 = vmatprep.subr.mxu0 0.0
  %1877 = vmatpush1.msra.mxu0 0.0
  %1878 = vmatprep.subr.mxu0 0.0
  %1879 = vmatpush1.msra.mxu0 0.0
  %1880 = vmatprep.subr.mxu0 0.0
  %1881 = vmatpush1.msra.mxu0 0.0
  %1882 = vmatprep.subr.mxu0 0.0
  %1883 = vmatpush1.msra.mxu0 0.0
  %1884 = vmatprep.subr.mxu0 0.0
  %1885 = vmatpush1.msra.mxu0 0.0
  %1886 = vmatprep.subr.mxu0 0.0
  %1887 = vmatpush1.msra.mxu0 0.0
  %1888 = vmatprep.subr.mxu0 0.0
  %1889 = vmatpush1.msra.mxu0 0.0
  %1890 = vmatprep.subr.mxu0 0.0
  %1891 = vmatpush1.msra.mxu0 0.0
  %1892 = vmatprep.subr.mxu0 0.0
  %1893 = vmatpush1.msra.mxu0 0.0
  %1894 = vmatprep.subr.mxu0 0.0
  %1895 = vmatpush1.msra.mxu0 0.0
  %1896 = vmatprep.subr.mxu0 0.0
  %1897 = vmatpush1.msra.mxu0 0.0
  %1898 = vmatprep.subr.mxu0 0.0
  %1899 = vmatpush1.msra.mxu0 0.0
  %1900 = vmatprep.subr.mxu0 0.0
  %1901 = vmatpush1.msra.mxu0 0.0
  %1902 = vmatprep.subr.mxu0 0.0
  %1903 = vmatpush1.msra.mxu0 0.0
  %1904 = vmatprep.subr.mxu0 0.0
  %1905 = vmatpush1.msra.mxu0 0.0
  %1906 = vmatprep.subr.mxu0 0.0
  %1907 = vmatpush1.msra.mxu0 0.0
  %1908 = vmatprep.subr.mxu0 0.0
  %1909 = vmatpush1.msra.mxu0 0.0
  %1910 = vmatprep.subr.mxu0 0.0
  %1911 = vmatpush1.msra.mxu0 0.0
  %1912 = vmatprep.subr.mxu0 0.0
  %1913 = vmatpush1.msra.mxu0 0.0
  %1914 = vmatprep.subr.mxu0 0.0
  %1915 = vmatpush1.msra.mxu0 0.0
  %1916 = vmatprep.subr.mxu0 0.0
  %1917 = vmatpush1.msra.mxu0 0.0
  %1918 = vmatprep.subr.mxu0 0.0
  %1919 = vmatpush1.msra.mxu0 0.0
  %1920 = vmatprep.subr.mxu0 0.0
  %1921 = vmatpush1.msra.mxu0 0.0
  %1922 = vmatprep.mubr.f32.mxu0 0.0
  %1923 = vmatmul.mubr.f32.gmra.mrb[0].mxu0 %v1684
  %v1924 = vpop.f32.mrb[0].mxu0
  %v1925 = vadd.f32 %v485, %v1924
  %v1926 = vpop.f32.mrb[0].mxu0
  %1927 = vdwg.mxu0
  %v1928 = vadd.f32 %v1857, %v1925
  %v1929 = vxor.u32 %v1928, 2147483648
  %v1930 = vmul.f32 %v1929, 1.442695
  %v1931 = vpow.pop %v1930
  %v1932 = vadd.f32 %v1931, 1.0
  %v1933 = vrcp.pop %v1932
  %v1934 = vmul.f32 1.0, %v1933
  %1936 = vrot.lane.b32.xlu0 %v1925, 64
  %v1937 = vpop.permute.xlu0 %1936
  %v1939 = vmul.f32 %v1934, %v1937
  %1941 = vrot.lane.b32.xlu0 %v1939, 64
  %v1942 = vpop.permute.xlu0 %1941
  %v1944 = vadd.f32 %v1857, %v1942
  %v1945 = vtanh.pop %v1944
  %v1946 = vsub.f32 1.0, %v1934
  %1948 = vrot.lane.b32.xlu0 %v1945, 96
  %v1949 = vpop.permute.xlu0 %1948
  %v1951 = vmul.f32 %v1946, %v1949
  %v1952 = vmul.f32 %v1934, %v1680
  %v1953 = vadd.f32 %v1951, %v1952
  %1955 = vrot.lane.b32.xlu0 %v1953, 96
  %v1956 = vpop.permute.xlu0 %1955
  %v1957 = vsel %vm486, %v1956, 0
  %1959 = vmatprep.subr.mxu0 0.0
  %1960 = vmatpush1.msra.mxu0 %v473
  %1961 = vmatprep.subr.mxu0 0.0
  %1962 = vmatpush1.msra.mxu0 %v474
  %1963 = vmatprep.subr.mxu0 0.0
  %1964 = vmatpush1.msra.mxu0 %v475
  %1965 = vmatprep.subr.mxu0 0.0
  %1966 = vmatpush1.msra.mxu0 %v476
  %1967 = vmatprep.subr.mxu0 0.0
  %1968 = vmatpush1.msra.mxu0 0.0
  %1969 = vmatprep.subr.mxu0 0.0
  %1970 = vmatpush1.msra.mxu0 0.0
  %1971 = vmatprep.subr.mxu0 0.0
  %1972 = vmatpush1.msra.mxu0 0.0
  %1973 = vmatprep.subr.mxu0 0.0
  %1974 = vmatpush1.msra.mxu0 0.0
  %1975 = vmatprep.subr.mxu0 0.0
  %1976 = vmatpush1.msra.mxu0 0.0
  %1977 = vmatprep.subr.mxu0 0.0
  %1978 = vmatpush1.msra.mxu0 0.0
  %1979 = vmatprep.subr.mxu0 0.0
  %1980 = vmatpush1.msra.mxu0 0.0
  %1981 = vmatprep.subr.mxu0 0.0
  %1982 = vmatpush1.msra.mxu0 0.0
  %1983 = vmatprep.subr.mxu0 0.0
  %1984 = vmatpush1.msra.mxu0 0.0
  %1985 = vmatprep.subr.mxu0 0.0
  %1986 = vmatpush1.msra.mxu0 0.0
  %1987 = vmatprep.subr.mxu0 0.0
  %1988 = vmatpush1.msra.mxu0 0.0
  %1989 = vmatprep.subr.mxu0 0.0
  %1990 = vmatpush1.msra.mxu0 0.0
  %1991 = vmatprep.subr.mxu0 0.0
  %1992 = vmatpush1.msra.mxu0 0.0
  %1993 = vmatprep.subr.mxu0 0.0
  %1994 = vmatpush1.msra.mxu0 0.0
  %1995 = vmatprep.subr.mxu0 0.0
  %1996 = vmatpush1.msra.mxu0 0.0
  %1997 = vmatprep.subr.mxu0 0.0
  %1998 = vmatpush1.msra.mxu0 0.0
  %1999 = vmatprep.subr.mxu0 0.0
  %2000 = vmatpush1.msra.mxu0 0.0
  %2001 = vmatprep.subr.mxu0 0.0
  %2002 = vmatpush1.msra.mxu0 0.0
  %2003 = vmatprep.subr.mxu0 0.0
  %2004 = vmatpush1.msra.mxu0 0.0
  %2005 = vmatprep.subr.mxu0 0.0
  %2006 = vmatpush1.msra.mxu0 0.0
  %2007 = vmatprep.subr.mxu0 0.0
  %2008 = vmatpush1.msra.mxu0 0.0
  %2009 = vmatprep.subr.mxu0 0.0
  %2010 = vmatpush1.msra.mxu0 0.0
  %2011 = vmatprep.subr.mxu0 0.0
  %2012 = vmatpush1.msra.mxu0 0.0
  %2013 = vmatprep.subr.mxu0 0.0
  %2014 = vmatpush1.msra.mxu0 0.0
  %2015 = vmatprep.subr.mxu0 0.0
  %2016 = vmatpush1.msra.mxu0 0.0
  %2017 = vmatprep.subr.mxu0 0.0
  %2018 = vmatpush1.msra.mxu0 0.0
  %2019 = vmatprep.subr.mxu0 0.0
  %2020 = vmatpush1.msra.mxu0 0.0
  %2021 = vmatprep.subr.mxu0 0.0
  %2022 = vmatpush1.msra.mxu0 0.0
  %2023 = vmatprep.mubr.f32.mxu0 0.0
  %2024 = vmatmul.mubr.f32.gmra.mrb[0].mxu0 %v1957
  %v2025 = vpop.f32.mrb[0].mxu0
  %v2026 = vadd.f32 %v589, %v2025
  %v2027 = vpop.f32.mrb[0].mxu0
  %2028 = vdwg.mxu0
  %2030 = vrot.lane.b32.xlu0 %v1856, 96
  %v2031 = vpop.permute.xlu0 %2030
  %v2032 = vsel %vm486, %v2031, 0
  %2034 = vmatprep.subr.mxu0 0.0
  %2035 = vmatpush1.msra.mxu0 %v477
  %2036 = vmatprep.subr.mxu0 0.0
  %2037 = vmatpush1.msra.mxu0 %v478
  %2038 = vmatprep.subr.mxu0 0.0
  %2039 = vmatpush1.msra.mxu0 %v479
  %2040 = vmatprep.subr.mxu0 0.0
  %2041 = vmatpush1.msra.mxu0 %v480
  %2042 = vmatprep.subr.mxu0 0.0
  %2043 = vmatpush1.msra.mxu0 0.0
  %2044 = vmatprep.subr.mxu0 0.0
  %2045 = vmatpush1.msra.mxu0 0.0
  %2046 = vmatprep.subr.mxu0 0.0
  %2047 = vmatpush1.msra.mxu0 0.0
  %2048 = vmatprep.subr.mxu0 0.0
  %2049 = vmatpush1.msra.mxu0 0.0
  %2050 = vmatprep.subr.mxu0 0.0
  %2051 = vmatpush1.msra.mxu0 0.0
  %2052 = vmatprep.subr.mxu0 0.0
  %2053 = vmatpush1.msra.mxu0 0.0
  %2054 = vmatprep.subr.mxu0 0.0
  %2055 = vmatpush1.msra.mxu0 0.0
  %2056 = vmatprep.subr.mxu0 0.0
  %2057 = vmatpush1.msra.mxu0 0.0
  %2058 = vmatprep.subr.mxu0 0.0
  %2059 = vmatpush1.msra.mxu0 0.0
  %2060 = vmatprep.subr.mxu0 0.0
  %2061 = vmatpush1.msra.mxu0 0.0
  %2062 = vmatprep.subr.mxu0 0.0
  %2063 = vmatpush1.msra.mxu0 0.0
  %2064 = vmatprep.subr.mxu0 0.0
  %2065 = vmatpush1.msra.mxu0 0.0
  %2066 = vmatprep.subr.mxu0 0.0
  %2067 = vmatpush1.msra.mxu0 0.0
  %2068 = vmatprep.subr.mxu0 0.0
  %2069 = vmatpush1.msra.mxu0 0.0
  %2070 = vmatprep.subr.mxu0 0.0
  %2071 = vmatpush1.msra.mxu0 0.0
  %2072 = vmatprep.subr.mxu0 0.0
  %2073 = vmatpush1.msra.mxu0 0.0
  %2074 = vmatprep.subr.mxu0 0.0
  %2075 = vmatpush1.msra.mxu0 0.0
  %2076 = vmatprep.subr.mxu0 0.0
  %2077 = vmatpush1.msra.mxu0 0.0
  %2078 = vmatprep.subr.mxu0 0.0
  %2079 = vmatpush1.msra.mxu0 0.0
  %2080 = vmatprep.subr.mxu0 0.0
  %2081 = vmatpush1.msra.mxu0 0.0
  %2082 = vmatprep.subr.mxu0 0.0
  %2083 = vmatpush1.msra.mxu0 0.0
  %2084 = vmatprep.subr.mxu0 0.0
  %2085 = vmatpush1.msra.mxu0 0.0
  %2086 = vmatprep.subr.mxu0 0.0
  %2087 = vmatpush1.msra.mxu0 0.0
  %2088 = vmatprep.subr.mxu0 0.0
  %2089 = vmatpush1.msra.mxu0 0.0
  %2090 = vmatprep.subr.mxu0 0.0
  %2091 = vmatpush1.msra.mxu0 0.0
  %2092 = vmatprep.subr.mxu0 0.0
  %2093 = vmatpush1.msra.mxu0 0.0
  %2094 = vmatprep.subr.mxu0 0.0
  %2095 = vmatpush1.msra.mxu0 0.0
  %2096 = vmatprep.subr.mxu0 0.0
  %2097 = vmatpush1.msra.mxu0 0.0
  %2098 = vmatprep.mubr.f32.mxu0 0.0
  %2099 = vmatmul.mubr.f32.gmra.mrb[0].mxu0 %v2032
  %v2100 = vpop.f32.mrb[0].mxu0
  %v2101 = vadd.f32 %v668, %v2100
  %v2102 = vpop.f32.mrb[0].mxu0
  %2103 = vdwg.mxu0
  %v2104 = vadd.f32 %v2026, %v2101
  %v2105 = vxor.u32 %v2104, 2147483648
  %v2106 = vmul.f32 %v2105, 1.442695
  %v2107 = vpow.pop %v2106
  %v2108 = vadd.f32 %v2107, 1.0
  %v2109 = vrcp.pop %v2108
  %v2110 = vmul.f32 1.0, %v2109
  %2112 = vrot.lane.b32.xlu0 %v2101, 64
  %v2113 = vpop.permute.xlu0 %2112
  %v2115 = vmul.f32 %v2110, %v2113
  %2117 = vrot.lane.b32.xlu0 %v2115, 64
  %v2118 = vpop.permute.xlu0 %2117
  %v2120 = vadd.f32 %v2026, %v2118
  %v2121 = vtanh.pop %v2120
  %v2122 = vsub.f32 1.0, %v2110
  %2124 = vrot.lane.b32.xlu0 %v2121, 96
  %v2125 = vpop.permute.xlu0 %2124
  %v2127 = vmul.f32 %v2122, %v2125
  %v2128 = vmul.f32 %v2110, %v1856
  %v2129 = vadd.f32 %v2127, %v2128
  %v2130 = vld [vmem:[#allocation2 + $0xc] sm:$0x3]
  %2131 = vmatprep.subr.mxu0 0.0
  %2132 = vmatpush1.msra.mxu0 %v469
  %2133 = vmatprep.subr.mxu0 0.0
  %2134 = vmatpush1.msra.mxu0 %v470
  %2135 = vmatprep.subr.mxu0 0.0
  %2136 = vmatpush1.msra.mxu0 %v471
  %2137 = vmatprep.subr.mxu0 0.0
  %2138 = vmatpush1.msra.mxu0 %v472
  %2139 = vmatprep.subr.mxu0 0.0
  %2140 = vmatpush1.msra.mxu0 0.0
  %2141 = vmatprep.subr.mxu0 0.0
  %2142 = vmatpush1.msra.mxu0 0.0
  %2143 = vmatprep.subr.mxu0 0.0
  %2144 = vmatpush1.msra.mxu0 0.0
  %2145 = vmatprep.subr.mxu0 0.0
  %2146 = vmatpush1.msra.mxu0 0.0
  %2147 = vmatprep.subr.mxu0 0.0
  %2148 = vmatpush1.msra.mxu0 0.0
  %2149 = vmatprep.subr.mxu0 0.0
  %2150 = vmatpush1.msra.mxu0 0.0
  %2151 = vmatprep.subr.mxu0 0.0
  %2152 = vmatpush1.msra.mxu0 0.0
  %2153 = vmatprep.subr.mxu0 0.0
  %2154 = vmatpush1.msra.mxu0 0.0
  %2155 = vmatprep.subr.mxu0 0.0
  %2156 = vmatpush1.msra.mxu0 0.0
  %2157 = vmatprep.subr.mxu0 0.0
  %2158 = vmatpush1.msra.mxu0 0.0
  %2159 = vmatprep.subr.mxu0 0.0
  %2160 = vmatpush1.msra.mxu0 0.0
  %2161 = vmatprep.subr.mxu0 0.0
  %2162 = vmatpush1.msra.mxu0 0.0
  %2163 = vmatprep.subr.mxu0 0.0
  %2164 = vmatpush1.msra.mxu0 0.0
  %2165 = vmatprep.subr.mxu0 0.0
  %2166 = vmatpush1.msra.mxu0 0.0
  %2167 = vmatprep.subr.mxu0 0.0
  %2168 = vmatpush1.msra.mxu0 0.0
  %2169 = vmatprep.subr.mxu0 0.0
  %2170 = vmatpush1.msra.mxu0 0.0
  %2171 = vmatprep.subr.mxu0 0.0
  %2172 = vmatpush1.msra.mxu0 0.0
  %2173 = vmatprep.subr.mxu0 0.0
  %2174 = vmatpush1.msra.mxu0 0.0
  %2175 = vmatprep.subr.mxu0 0.0
  %2176 = vmatpush1.msra.mxu0 0.0
  %2177 = vmatprep.subr.mxu0 0.0
  %2178 = vmatpush1.msra.mxu0 0.0
  %2179 = vmatprep.subr.mxu0 0.0
  %2180 = vmatpush1.msra.mxu0 0.0
  %2181 = vmatprep.subr.mxu0 0.0
  %2182 = vmatpush1.msra.mxu0 0.0
  %2183 = vmatprep.subr.mxu0 0.0
  %2184 = vmatpush1.msra.mxu0 0.0
  %2185 = vmatprep.subr.mxu0 0.0
  %2186 = vmatpush1.msra.mxu0 0.0
  %2187 = vmatprep.subr.mxu0 0.0
  %2188 = vmatpush1.msra.mxu0 0.0
  %2189 = vmatprep.subr.mxu0 0.0
  %2190 = vmatpush1.msra.mxu0 0.0
  %2191 = vmatprep.subr.mxu0 0.0
  %2192 = vmatpush1.msra.mxu0 0.0
  %2193 = vmatprep.subr.mxu0 0.0
  %2194 = vmatpush1.msra.mxu0 0.0
  %2195 = vmatprep.mubr.f32.mxu0 0.0
  %2196 = vmatmul.mubr.f32.gmra.mrb[0].mxu0 %v1957
  %v2197 = vpop.f32.mrb[0].mxu0
  %v2198 = vadd.f32 %v485, %v2197
  %v2199 = vpop.f32.mrb[0].mxu0
  %2200 = vdwg.mxu0
  %v2201 = vadd.f32 %v2130, %v2198
  %v2202 = vxor.u32 %v2201, 2147483648
  %v2203 = vmul.f32 %v2202, 1.442695
  %v2204 = vpow.pop %v2203
  %v2205 = vadd.f32 %v2204, 1.0
  %v2206 = vrcp.pop %v2205
  %v2207 = vmul.f32 1.0, %v2206
  %2209 = vrot.lane.b32.xlu0 %v2198, 64
  %v2210 = vpop.permute.xlu0 %2209
  %v2212 = vmul.f32 %v2207, %v2210
  %2214 = vrot.lane.b32.xlu0 %v2212, 64
  %v2215 = vpop.permute.xlu0 %2214
  %v2217 = vadd.f32 %v2130, %v2215
  %v2218 = vtanh.pop %v2217
  %v2219 = vsub.f32 1.0, %v2207
  %2221 = vrot.lane.b32.xlu0 %v2218, 96
  %v2222 = vpop.permute.xlu0 %2221
  %v2224 = vmul.f32 %v2219, %v2222
  %v2225 = vmul.f32 %v2207, %v1953
  %v2226 = vadd.f32 %v2224, %v2225
  %2228 = vrot.lane.b32.xlu0 %v2226, 96
  %v2229 = vpop.permute.xlu0 %2228
  %v2230 = vsel %vm486, %v2229, 0
  %2232 = vmatprep.subr.mxu0 0.0
  %2233 = vmatpush1.msra.mxu0 %v473
  %2234 = vmatprep.subr.mxu0 0.0
  %2235 = vmatpush1.msra.mxu0 %v474
  %2236 = vmatprep.subr.mxu0 0.0
  %2237 = vmatpush1.msra.mxu0 %v475
  %2238 = vmatprep.subr.mxu0 0.0
  %2239 = vmatpush1.msra.mxu0 %v476
  %2240 = vmatprep.subr.mxu0 0.0
  %2241 = vmatpush1.msra.mxu0 0.0
  %2242 = vmatprep.subr.mxu0 0.0
  %2243 = vmatpush1.msra.mxu0 0.0
  %2244 = vmatprep.subr.mxu0 0.0
  %2245 = vmatpush1.msra.mxu0 0.0
  %2246 = vmatprep.subr.mxu0 0.0
  %2247 = vmatpush1.msra.mxu0 0.0
  %2248 = vmatprep.subr.mxu0 0.0
  %2249 = vmatpush1.msra.mxu0 0.0
  %2250 = vmatprep.subr.mxu0 0.0
  %2251 = vmatpush1.msra.mxu0 0.0
  %2252 = vmatprep.subr.mxu0 0.0
  %2253 = vmatpush1.msra.mxu0 0.0
  %2254 = vmatprep.subr.mxu0 0.0
  %2255 = vmatpush1.msra.mxu0 0.0
  %2256 = vmatprep.subr.mxu0 0.0
  %2257 = vmatpush1.msra.mxu0 0.0
  %2258 = vmatprep.subr.mxu0 0.0
  %2259 = vmatpush1.msra.mxu0 0.0
  %2260 = vmatprep.subr.mxu0 0.0
  %2261 = vmatpush1.msra.mxu0 0.0
  %2262 = vmatprep.subr.mxu0 0.0
  %2263 = vmatpush1.msra.mxu0 0.0
  %2264 = vmatprep.subr.mxu0 0.0
  %2265 = vmatpush1.msra.mxu0 0.0
  %2266 = vmatprep.subr.mxu0 0.0
  %2267 = vmatpush1.msra.mxu0 0.0
  %2268 = vmatprep.subr.mxu0 0.0
  %2269 = vmatpush1.msra.mxu0 0.0
  %2270 = vmatprep.subr.mxu0 0.0
  %2271 = vmatpush1.msra.mxu0 0.0
  %2272 = vmatprep.subr.mxu0 0.0
  %2273 = vmatpush1.msra.mxu0 0.0
  %2274 = vmatprep.subr.mxu0 0.0
  %2275 = vmatpush1.msra.mxu0 0.0
  %2276 = vmatprep.subr.mxu0 0.0
  %2277 = vmatpush1.msra.mxu0 0.0
  %2278 = vmatprep.subr.mxu0 0.0
  %2279 = vmatpush1.msra.mxu0 0.0
  %2280 = vmatprep.subr.mxu0 0.0
  %2281 = vmatpush1.msra.mxu0 0.0
  %2282 = vmatprep.subr.mxu0 0.0
  %2283 = vmatpush1.msra.mxu0 0.0
  %2284 = vmatprep.subr.mxu0 0.0
  %2285 = vmatpush1.msra.mxu0 0.0
  %2286 = vmatprep.subr.mxu0 0.0
  %2287 = vmatpush1.msra.mxu0 0.0
  %2288 = vmatprep.subr.mxu0 0.0
  %2289 = vmatpush1.msra.mxu0 0.0
  %2290 = vmatprep.subr.mxu0 0.0
  %2291 = vmatpush1.msra.mxu0 0.0
  %2292 = vmatprep.subr.mxu0 0.0
  %2293 = vmatpush1.msra.mxu0 0.0
  %2294 = vmatprep.subr.mxu0 0.0
  %2295 = vmatpush1.msra.mxu0 0.0
  %2296 = vmatprep.mubr.f32.mxu0 0.0
  %2297 = vmatmul.mubr.f32.gmra.mrb[0].mxu0 %v2230
  %v2298 = vpop.f32.mrb[0].mxu0
  %v2299 = vadd.f32 %v589, %v2298
  %v2300 = vpop.f32.mrb[0].mxu0
  %2301 = vdwg.mxu0
  %2303 = vrot.lane.b32.xlu0 %v2129, 96
  %v2304 = vpop.permute.xlu0 %2303
  %v2305 = vsel %vm486, %v2304, 0
  %2307 = vmatprep.subr.mxu0 0.0
  %2308 = vmatpush1.msra.mxu0 %v477
  %2309 = vmatprep.subr.mxu0 0.0
  %2310 = vmatpush1.msra.mxu0 %v478
  %2311 = vmatprep.subr.mxu0 0.0
  %2312 = vmatpush1.msra.mxu0 %v479
  %2313 = vmatprep.subr.mxu0 0.0
  %2314 = vmatpush1.msra.mxu0 %v480
  %2315 = vmatprep.subr.mxu0 0.0
  %2316 = vmatpush1.msra.mxu0 0.0
  %2317 = vmatprep.subr.mxu0 0.0
  %2318 = vmatpush1.msra.mxu0 0.0
  %2319 = vmatprep.subr.mxu0 0.0
  %2320 = vmatpush1.msra.mxu0 0.0
  %2321 = vmatprep.subr.mxu0 0.0
  %2322 = vmatpush1.msra.mxu0 0.0
  %2323 = vmatprep.subr.mxu0 0.0
  %2324 = vmatpush1.msra.mxu0 0.0
  %2325 = vmatprep.subr.mxu0 0.0
  %2326 = vmatpush1.msra.mxu0 0.0
  %2327 = vmatprep.subr.mxu0 0.0
  %2328 = vmatpush1.msra.mxu0 0.0
  %2329 = vmatprep.subr.mxu0 0.0
  %2330 = vmatpush1.msra.mxu0 0.0
  %2331 = vmatprep.subr.mxu0 0.0
  %2332 = vmatpush1.msra.mxu0 0.0
  %2333 = vmatprep.subr.mxu0 0.0
  %2334 = vmatpush1.msra.mxu0 0.0
  %2335 = vmatprep.subr.mxu0 0.0
  %2336 = vmatpush1.msra.mxu0 0.0
  %2337 = vmatprep.subr.mxu0 0.0
  %2338 = vmatpush1.msra.mxu0 0.0
  %2339 = vmatprep.subr.mxu0 0.0
  %2340 = vmatpush1.msra.mxu0 0.0
  %2341 = vmatprep.subr.mxu0 0.0
  %2342 = vmatpush1.msra.mxu0 0.0
  %2343 = vmatprep.subr.mxu0 0.0
  %2344 = vmatpush1.msra.mxu0 0.0
  %2345 = vmatprep.subr.mxu0 0.0
  %2346 = vmatpush1.msra.mxu0 0.0
  %2347 = vmatprep.subr.mxu0 0.0
  %2348 = vmatpush1.msra.mxu0 0.0
  %2349 = vmatprep.subr.mxu0 0.0
  %2350 = vmatpush1.msra.mxu0 0.0
  %2351 = vmatprep.subr.mxu0 0.0
  %2352 = vmatpush1.msra.mxu0 0.0
  %2353 = vmatprep.subr.mxu0 0.0
  %2354 = vmatpush1.msra.mxu0 0.0
  %2355 = vmatprep.subr.mxu0 0.0
  %2356 = vmatpush1.msra.mxu0 0.0
  %2357 = vmatprep.subr.mxu0 0.0
  %2358 = vmatpush1.msra.mxu0 0.0
  %2359 = vmatprep.subr.mxu0 0.0
  %2360 = vmatpush1.msra.mxu0 0.0
  %2361 = vmatprep.subr.mxu0 0.0
  %2362 = vmatpush1.msra.mxu0 0.0
  %2363 = vmatprep.subr.mxu0 0.0
  %2364 = vmatpush1.msra.mxu0 0.0
  %2365 = vmatprep.subr.mxu0 0.0
  %2366 = vmatpush1.msra.mxu0 0.0
  %2367 = vmatprep.subr.mxu0 0.0
  %2368 = vmatpush1.msra.mxu0 0.0
  %2369 = vmatprep.subr.mxu0 0.0
  %2370 = vmatpush1.msra.mxu0 0.0
  %2371 = vmatprep.mubr.f32.mxu0 0.0
  %2372 = vmatmul.mubr.f32.gmra.mrb[0].mxu0 %v2305
  %v2373 = vpop.f32.mrb[0].mxu0
  %v2374 = vadd.f32 %v668, %v2373
  %v2375 = vpop.f32.mrb[0].mxu0
  %2376 = vdwg.mxu0
  %v2377 = vadd.f32 %v2299, %v2374
  %v2378 = vxor.u32 %v2377, 2147483648
  %v2379 = vmul.f32 %v2378, 1.442695
  %v2380 = vpow.pop %v2379
  %v2381 = vadd.f32 %v2380, 1.0
  %v2382 = vrcp.pop %v2381
  %v2383 = vmul.f32 1.0, %v2382
  %2385 = vrot.lane.b32.xlu0 %v2374, 64
  %v2386 = vpop.permute.xlu0 %2385
  %v2388 = vmul.f32 %v2383, %v2386
  %2390 = vrot.lane.b32.xlu0 %v2388, 64
  %v2391 = vpop.permute.xlu0 %2390
  %v2393 = vadd.f32 %v2299, %v2391
  %v2394 = vtanh.pop %v2393
  %v2395 = vsub.f32 1.0, %v2383
  %2397 = vrot.lane.b32.xlu0 %v2394, 96
  %v2398 = vpop.permute.xlu0 %2397
  %v2400 = vmul.f32 %v2395, %v2398
  %v2401 = vmul.f32 %v2383, %v2129
  %v2402 = vadd.f32 %v2400, %v2401
  %v2403 = vld [vmem:[#allocation2 + $0xe] sm:$0x3]
  %2404 = vmatprep.subr.mxu0 0.0
  %2405 = vmatpush1.msra.mxu0 %v469
  %2406 = vmatprep.subr.mxu0 0.0
  %2407 = vmatpush1.msra.mxu0 %v470
  %2408 = vmatprep.subr.mxu0 0.0
  %2409 = vmatpush1.msra.mxu0 %v471
  %2410 = vmatprep.subr.mxu0 0.0
  %2411 = vmatpush1.msra.mxu0 %v472
  %2412 = vmatprep.subr.mxu0 0.0
  %2413 = vmatpush1.msra.mxu0 0.0
  %2414 = vmatprep.subr.mxu0 0.0
  %2415 = vmatpush1.msra.mxu0 0.0
  %2416 = vmatprep.subr.mxu0 0.0
  %2417 = vmatpush1.msra.mxu0 0.0
  %2418 = vmatprep.subr.mxu0 0.0
  %2419 = vmatpush1.msra.mxu0 0.0
  %2420 = vmatprep.subr.mxu0 0.0
  %2421 = vmatpush1.msra.mxu0 0.0
  %2422 = vmatprep.subr.mxu0 0.0
  %2423 = vmatpush1.msra.mxu0 0.0
  %2424 = vmatprep.subr.mxu0 0.0
  %2425 = vmatpush1.msra.mxu0 0.0
  %2426 = vmatprep.subr.mxu0 0.0
  %2427 = vmatpush1.msra.mxu0 0.0
  %2428 = vmatprep.subr.mxu0 0.0
  %2429 = vmatpush1.msra.mxu0 0.0
  %2430 = vmatprep.subr.mxu0 0.0
  %2431 = vmatpush1.msra.mxu0 0.0
  %2432 = vmatprep.subr.mxu0 0.0
  %2433 = vmatpush1.msra.mxu0 0.0
  %2434 = vmatprep.subr.mxu0 0.0
  %2435 = vmatpush1.msra.mxu0 0.0
  %2436 = vmatprep.subr.mxu0 0.0
  %2437 = vmatpush1.msra.mxu0 0.0
  %2438 = vmatprep.subr.mxu0 0.0
  %2439 = vmatpush1.msra.mxu0 0.0
  %2440 = vmatprep.subr.mxu0 0.0
  %2441 = vmatpush1.msra.mxu0 0.0
  %2442 = vmatprep.subr.mxu0 0.0
  %2443 = vmatpush1.msra.mxu0 0.0
  %2444 = vmatprep.subr.mxu0 0.0
  %2445 = vmatpush1.msra.mxu0 0.0
  %2446 = vmatprep.subr.mxu0 0.0
  %2447 = vmatpush1.msra.mxu0 0.0
  %2448 = vmatprep.subr.mxu0 0.0
  %2449 = vmatpush1.msra.mxu0 0.0
  %2450 = vmatprep.subr.mxu0 0.0
  %2451 = vmatpush1.msra.mxu0 0.0
  %2452 = vmatprep.subr.mxu0 0.0
  %2453 = vmatpush1.msra.mxu0 0.0
  %2454 = vmatprep.subr.mxu0 0.0
  %2455 = vmatpush1.msra.mxu0 0.0
  %2456 = vmatprep.subr.mxu0 0.0
  %2457 = vmatpush1.msra.mxu0 0.0
  %2458 = vmatprep.subr.mxu0 0.0
  %2459 = vmatpush1.msra.mxu0 0.0
  %2460 = vmatprep.subr.mxu0 0.0
  %2461 = vmatpush1.msra.mxu0 0.0
  %2462 = vmatprep.subr.mxu0 0.0
  %2463 = vmatpush1.msra.mxu0 0.0
  %2464 = vmatprep.subr.mxu0 0.0
  %2465 = vmatpush1.msra.mxu0 0.0
  %2466 = vmatprep.subr.mxu0 0.0
  %2467 = vmatpush1.msra.mxu0 0.0
  %2468 = vmatprep.mubr.f32.mxu0 0.0
  %2469 = vmatmul.mubr.f32.gmra.mrb[0].mxu0 %v2230
  %v2470 = vpop.f32.mrb[0].mxu0
  %v2471 = vadd.f32 %v485, %v2470
  %v2472 = vpop.f32.mrb[0].mxu0
  %2473 = vdwg.mxu0
  %v2474 = vadd.f32 %v2403, %v2471
  %v2475 = vxor.u32 %v2474, 2147483648
  %v2476 = vmul.f32 %v2475, 1.442695
  %v2477 = vpow.pop %v2476
  %v2478 = vadd.f32 %v2477, 1.0
  %v2479 = vrcp.pop %v2478
  %v2480 = vmul.f32 1.0, %v2479
  %2482 = vrot.lane.b32.xlu0 %v2471, 64
  %v2483 = vpop.permute.xlu0 %2482
  %v2485 = vmul.f32 %v2480, %v2483
  %2487 = vrot.lane.b32.xlu0 %v2485, 64
  %v2488 = vpop.permute.xlu0 %2487
  %v2490 = vadd.f32 %v2403, %v2488
  %v2491 = vtanh.pop %v2490
  %v2492 = vsub.f32 1.0, %v2480
  %2494 = vrot.lane.b32.xlu0 %v2491, 96
  %v2495 = vpop.permute.xlu0 %2494
  %v2497 = vmul.f32 %v2492, %v2495
  %v2498 = vmul.f32 %v2480, %v2226
  %v2499 = vadd.f32 %v2497, %v2498
  %2501 = vrot.lane.b32.xlu0 %v2499, 96
  %v2502 = vpop.permute.xlu0 %2501
  %v2503 = vsel %vm486, %v2502, 0
  %2505 = vmatprep.subr.mxu0 0.0
  %2506 = vmatpush1.msra.mxu0 %v473
  %2507 = vmatprep.subr.mxu0 0.0
  %2508 = vmatpush1.msra.mxu0 %v474
  %2509 = vmatprep.subr.mxu0 0.0
  %2510 = vmatpush1.msra.mxu0 %v475
  %2511 = vmatprep.subr.mxu0 0.0
  %2512 = vmatpush1.msra.mxu0 %v476
  %2513 = vmatprep.subr.mxu0 0.0
  %2514 = vmatpush1.msra.mxu0 0.0
  %2515 = vmatprep.subr.mxu0 0.0
  %2516 = vmatpush1.msra.mxu0 0.0
  %2517 = vmatprep.subr.mxu0 0.0
  %2518 = vmatpush1.msra.mxu0 0.0
  %2519 = vmatprep.subr.mxu0 0.0
  %2520 = vmatpush1.msra.mxu0 0.0
  %2521 = vmatprep.subr.mxu0 0.0
  %2522 = vmatpush1.msra.mxu0 0.0
  %2523 = vmatprep.subr.mxu0 0.0
  %2524 = vmatpush1.msra.mxu0 0.0
  %2525 = vmatprep.subr.mxu0 0.0
  %2526 = vmatpush1.msra.mxu0 0.0
  %2527 = vmatprep.subr.mxu0 0.0
  %2528 = vmatpush1.msra.mxu0 0.0
  %2529 = vmatprep.subr.mxu0 0.0
  %2530 = vmatpush1.msra.mxu0 0.0
  %2531 = vmatprep.subr.mxu0 0.0
  %2532 = vmatpush1.msra.mxu0 0.0
  %2533 = vmatprep.subr.mxu0 0.0
  %2534 = vmatpush1.msra.mxu0 0.0
  %2535 = vmatprep.subr.mxu0 0.0
  %2536 = vmatpush1.msra.mxu0 0.0
  %2537 = vmatprep.subr.mxu0 0.0
  %2538 = vmatpush1.msra.mxu0 0.0
  %2539 = vmatprep.subr.mxu0 0.0
  %2540 = vmatpush1.msra.mxu0 0.0
  %2541 = vmatprep.subr.mxu0 0.0
  %2542 = vmatpush1.msra.mxu0 0.0
  %2543 = vmatprep.subr.mxu0 0.0
  %2544 = vmatpush1.msra.mxu0 0.0
  %2545 = vmatprep.subr.mxu0 0.0
  %2546 = vmatpush1.msra.mxu0 0.0
  %2547 = vmatprep.subr.mxu0 0.0
  %2548 = vmatpush1.msra.mxu0 0.0
  %2549 = vmatprep.subr.mxu0 0.0
  %2550 = vmatpush1.msra.mxu0 0.0
  %2551 = vmatprep.subr.mxu0 0.0
  %2552 = vmatpush1.msra.mxu0 0.0
  %2553 = vmatprep.subr.mxu0 0.0
  %2554 = vmatpush1.msra.mxu0 0.0
  %2555 = vmatprep.subr.mxu0 0.0
  %2556 = vmatpush1.msra.mxu0 0.0
  %2557 = vmatprep.subr.mxu0 0.0
  %2558 = vmatpush1.msra.mxu0 0.0
  %2559 = vmatprep.subr.mxu0 0.0
  %2560 = vmatpush1.msra.mxu0 0.0
  %2561 = vmatprep.subr.mxu0 0.0
  %2562 = vmatpush1.msra.mxu0 0.0
  %2563 = vmatprep.subr.mxu0 0.0
  %2564 = vmatpush1.msra.mxu0 0.0
  %2565 = vmatprep.subr.mxu0 0.0
  %2566 = vmatpush1.msra.mxu0 0.0
  %2567 = vmatprep.subr.mxu0 0.0
  %2568 = vmatpush1.msra.mxu0 0.0
  %2569 = vmatprep.mubr.f32.mxu0 0.0
  %2570 = vmatmul.mubr.f32.gmra.mrb[0].mxu0 %v2503
  %v2571 = vpop.f32.mrb[0].mxu0
  %v2572 = vadd.f32 %v589, %v2571
  %v2573 = vpop.f32.mrb[0].mxu0
  %2574 = vdwg.mxu0
  %2576 = vrot.lane.b32.xlu0 %v2402, 96
  %v2577 = vpop.permute.xlu0 %2576
  %v2578 = vsel %vm486, %v2577, 0
  %2580 = vmatprep.subr.mxu0 0.0
  %2581 = vmatpush1.msra.mxu0 %v477
  %2582 = vmatprep.subr.mxu0 0.0
  %2583 = vmatpush1.msra.mxu0 %v478
  %2584 = vmatprep.subr.mxu0 0.0
  %2585 = vmatpush1.msra.mxu0 %v479
  %2586 = vmatprep.subr.mxu0 0.0
  %2587 = vmatpush1.msra.mxu0 %v480
  %2588 = vmatprep.subr.mxu0 0.0
  %2589 = vmatpush1.msra.mxu0 0.0
  %2590 = vmatprep.subr.mxu0 0.0
  %2591 = vmatpush1.msra.mxu0 0.0
  %2592 = vmatprep.subr.mxu0 0.0
  %2593 = vmatpush1.msra.mxu0 0.0
  %2594 = vmatprep.subr.mxu0 0.0
  %2595 = vmatpush1.msra.mxu0 0.0
  %2596 = vmatprep.subr.mxu0 0.0
  %2597 = vmatpush1.msra.mxu0 0.0
  %2598 = vmatprep.subr.mxu0 0.0
  %2599 = vmatpush1.msra.mxu0 0.0
  %2600 = vmatprep.subr.mxu0 0.0
  %2601 = vmatpush1.msra.mxu0 0.0
  %2602 = vmatprep.subr.mxu0 0.0
  %2603 = vmatpush1.msra.mxu0 0.0
  %2604 = vmatprep.subr.mxu0 0.0
  %2605 = vmatpush1.msra.mxu0 0.0
  %2606 = vmatprep.subr.mxu0 0.0
  %2607 = vmatpush1.msra.mxu0 0.0
  %2608 = vmatprep.subr.mxu0 0.0
  %2609 = vmatpush1.msra.mxu0 0.0
  %2610 = vmatprep.subr.mxu0 0.0
  %2611 = vmatpush1.msra.mxu0 0.0
  %2612 = vmatprep.subr.mxu0 0.0
  %2613 = vmatpush1.msra.mxu0 0.0
  %2614 = vmatprep.subr.mxu0 0.0
  %2615 = vmatpush1.msra.mxu0 0.0
  %2616 = vmatprep.subr.mxu0 0.0
  %2617 = vmatpush1.msra.mxu0 0.0
  %2618 = vmatprep.subr.mxu0 0.0
  %2619 = vmatpush1.msra.mxu0 0.0
  %2620 = vmatprep.subr.mxu0 0.0
  %2621 = vmatpush1.msra.mxu0 0.0
  %2622 = vmatprep.subr.mxu0 0.0
  %2623 = vmatpush1.msra.mxu0 0.0
  %2624 = vmatprep.subr.mxu0 0.0
  %2625 = vmatpush1.msra.mxu0 0.0
  %2626 = vmatprep.subr.mxu0 0.0
  %2627 = vmatpush1.msra.mxu0 0.0
  %2628 = vmatprep.subr.mxu0 0.0
  %2629 = vmatpush1.msra.mxu0 0.0
  %2630 = vmatprep.subr.mxu0 0.0
  %2631 = vmatpush1.msra.mxu0 0.0
  %2632 = vmatprep.subr.mxu0 0.0
  %2633 = vmatpush1.msra.mxu0 0.0
  %2634 = vmatprep.subr.mxu0 0.0
  %2635 = vmatpush1.msra.mxu0 0.0
  %2636 = vmatprep.subr.mxu0 0.0
  %2637 = vmatpush1.msra.mxu0 0.0
  %2638 = vmatprep.subr.mxu0 0.0
  %2639 = vmatpush1.msra.mxu0 0.0
  %2640 = vmatprep.subr.mxu0 0.0
  %2641 = vmatpush1.msra.mxu0 0.0
  %2642 = vmatprep.subr.mxu0 0.0
  %2643 = vmatpush1.msra.mxu0 0.0
  %2644 = vmatprep.mubr.f32.mxu0 0.0
  %2645 = vmatmul.mubr.f32.gmra.mrb[0].mxu0 %v2578
  %v2646 = vpop.f32.mrb[0].mxu0
  %v2647 = vadd.f32 %v668, %v2646
  %v2648 = vpop.f32.mrb[0].mxu0
  %2649 = vdwg.mxu0
  %v2650 = vadd.f32 %v2572, %v2647
  %v2651 = vxor.u32 %v2650, 2147483648
  %v2652 = vmul.f32 %v2651, 1.442695
  %v2653 = vpow.pop %v2652
  %v2654 = vadd.f32 %v2653, 1.0
  %v2655 = vrcp.pop %v2654
  %v2656 = vmul.f32 1.0, %v2655
  %2658 = vrot.lane.b32.xlu0 %v2647, 64
  %v2659 = vpop.permute.xlu0 %2658
  %v2661 = vmul.f32 %v2656, %v2659
  %2663 = vrot.lane.b32.xlu0 %v2661, 64
  %v2664 = vpop.permute.xlu0 %2663
  %v2666 = vadd.f32 %v2572, %v2664
  %v2667 = vtanh.pop %v2666
  %v2668 = vsub.f32 1.0, %v2656
  %2670 = vrot.lane.b32.xlu0 %v2667, 96
  %v2671 = vpop.permute.xlu0 %2670
  %v2673 = vmul.f32 %v2668, %v2671
  %v2674 = vmul.f32 %v2656, %v2402
  %v2675 = vadd.f32 %v2673, %v2674
  %v2676 = vld [vmem:[%s1 + $0x68] sm:$0xff]
  %v2677 = vld [vmem:[%s1 + $0x70] sm:$0xff]
  %v2678 = vld [vmem:[%s0 + $0x98] sm:$0xff]
  %v2679 = vld [vmem:[%s0 + $0xa0] sm:$0xff]
  %v2680 = vlaneseq
  %v2681 = vshrl.u32 %v2680, 7
  %v2682 = vsub.s32 0, %v2681
  %v2683 = vrot.slane %v373, %v2682
  %v2685 = vsel %vm384, %v2676, 0
  %v2688 = vsel %vm384, %v2677, 0
  %2690 = vmatprep.subr.mxu0 0.0
  %2691 = vmatpush1.msra.mxu0 %v2678
  %2692 = vmatprep.subr.mxu0 0.0
  %2693 = vmatpush1.msra.mxu0 %v2679
  %2694 = vmatprep.subr.mxu0 0.0
  %2695 = vmatpush1.msra.mxu0 0.0
  %2696 = vmatprep.subr.mxu0 0.0
  %2697 = vmatpush1.msra.mxu0 0.0
  %2698 = vmatprep.subr.mxu0 0.0
  %2699 = vmatpush1.msra.mxu0 0.0
  %2700 = vmatprep.subr.mxu0 0.0
  %2701 = vmatpush1.msra.mxu0 0.0
  %2702 = vmatprep.subr.mxu0 0.0
  %2703 = vmatpush1.msra.mxu0 0.0
  %2704 = vmatprep.subr.mxu0 0.0
  %2705 = vmatpush1.msra.mxu0 0.0
  %2706 = vmatprep.subr.mxu0 0.0
  %2707 = vmatpush1.msra.mxu0 0.0
  %2708 = vmatprep.subr.mxu0 0.0
  %2709 = vmatpush1.msra.mxu0 0.0
  %2710 = vmatprep.subr.mxu0 0.0
  %2711 = vmatpush1.msra.mxu0 0.0
  %2712 = vmatprep.subr.mxu0 0.0
  %2713 = vmatpush1.msra.mxu0 0.0
  %2714 = vmatprep.subr.mxu0 0.0
  %2715 = vmatpush1.msra.mxu0 0.0
  %2716 = vmatprep.subr.mxu0 0.0
  %2717 = vmatpush1.msra.mxu0 0.0
  %2718 = vmatprep.subr.mxu0 0.0
  %2719 = vmatpush1.msra.mxu0 0.0
  %2720 = vmatprep.subr.mxu0 0.0
  %2721 = vmatpush1.msra.mxu0 0.0
  %2722 = vmatprep.subr.mxu0 0.0
  %2723 = vmatpush1.msra.mxu0 0.0
  %2724 = vmatprep.subr.mxu0 0.0
  %2725 = vmatpush1.msra.mxu0 0.0
  %2726 = vmatprep.subr.mxu0 0.0
  %2727 = vmatpush1.msra.mxu0 0.0
  %2728 = vmatprep.subr.mxu0 0.0
  %2729 = vmatpush1.msra.mxu0 0.0
  %2730 = vmatprep.subr.mxu0 0.0
  %2731 = vmatpush1.msra.mxu0 0.0
  %2732 = vmatprep.subr.mxu0 0.0
  %2733 = vmatpush1.msra.mxu0 0.0
  %2734 = vmatprep.subr.mxu0 0.0
  %2735 = vmatpush1.msra.mxu0 0.0
  %2736 = vmatprep.subr.mxu0 0.0
  %2737 = vmatpush1.msra.mxu0 0.0
  %2738 = vmatprep.subr.mxu0 0.0
  %2739 = vmatpush1.msra.mxu0 0.0
  %2740 = vmatprep.subr.mxu0 0.0
  %2741 = vmatpush1.msra.mxu0 0.0
  %2742 = vmatprep.subr.mxu0 0.0
  %2743 = vmatpush1.msra.mxu0 0.0
  %2744 = vmatprep.subr.mxu0 0.0
  %2745 = vmatpush1.msra.mxu0 0.0
  %2746 = vmatprep.subr.mxu0 0.0
  %2747 = vmatpush1.msra.mxu0 0.0
  %2748 = vmatprep.subr.mxu0 0.0
  %2749 = vmatpush1.msra.mxu0 0.0
  %2750 = vmatprep.subr.mxu0 0.0
  %2751 = vmatpush1.msra.mxu0 0.0
  %2752 = vmatprep.subr.mxu0 0.0
  %2753 = vmatpush1.msra.mxu0 0.0
  %2754 = vmatprep.mubr.f32.mxu0 0.0
  %2755 = vmatmul.mubr.f32.gmra.mrb[0].mxu0 %v2685
  %v2756 = vpop.f32.mrb[0].mxu0
  %v2757 = vadd.f32 %v2683, %v2756
  %v2758 = vpop.f32.mrb[0].mxu0
  %2759 = vmatprep.mubr.f32.mxu0 0.0
  %2760 = vmatmul.mubr.f32.gmra.mrb[0].mxu0 %v2688
  %v2761 = vpop.f32.mrb[0].mxu0
  %v2762 = vadd.f32 %v2683, %v2761
  %v2763 = vpop.f32.mrb[0].mxu0
  %2764 = vdwg.mxu0
  %2765 = vst.msk [vmem:[#allocation2] sm:$0xff] %vm466, %v2757
  %2766 = vst.msk [vmem:[#allocation2 + $0x8] sm:$0xff] %vm466, %v2762
  %v2767 = vld [vmem:[%s0 + $0xa8] sm:$0xff]
  %v2768 = vld [vmem:[%s0 + $0xb0] sm:$0xff]
  %v2769 = vld [vmem:[%s0 + $0xb8] sm:$0xff]
  %v2770 = vld [vmem:[%s0 + $0xc0] sm:$0xff]
  %2772 = vrot.lane.b32.xlu0 %v2675, 96
  %v2773 = vpop.permute.xlu0 %2772
  %v2774 = vsel %vm486, %v2773, 0
  %2776 = vmatprep.subr.mxu0 0.0
  %2777 = vmatpush1.msra.mxu0 %v2767
  %2778 = vmatprep.subr.mxu0 0.0
  %2779 = vmatpush1.msra.mxu0 %v2768
  %2780 = vmatprep.subr.mxu0 0.0
  %2781 = vmatpush1.msra.mxu0 %v2769
  %2782 = vmatprep.subr.mxu0 0.0
  %2783 = vmatpush1.msra.mxu0 %v2770
  %2784 = vmatprep.subr.mxu0 0.0
  %2785 = vmatpush1.msra.mxu0 0.0
  %2786 = vmatprep.subr.mxu0 0.0
  %2787 = vmatpush1.msra.mxu0 0.0
  %2788 = vmatprep.subr.mxu0 0.0
  %2789 = vmatpush1.msra.mxu0 0.0
  %2790 = vmatprep.subr.mxu0 0.0
  %2791 = vmatpush1.msra.mxu0 0.0
  %2792 = vmatprep.subr.mxu0 0.0
  %2793 = vmatpush1.msra.mxu0 0.0
  %2794 = vmatprep.subr.mxu0 0.0
  %2795 = vmatpush1.msra.mxu0 0.0
  %2796 = vmatprep.subr.mxu0 0.0
  %2797 = vmatpush1.msra.mxu0 0.0
  %2798 = vmatprep.subr.mxu0 0.0
  %2799 = vmatpush1.msra.mxu0 0.0
  %2800 = vmatprep.subr.mxu0 0.0
  %2801 = vmatpush1.msra.mxu0 0.0
  %2802 = vmatprep.subr.mxu0 0.0
  %2803 = vmatpush1.msra.mxu0 0.0
  %2804 = vmatprep.subr.mxu0 0.0
  %2805 = vmatpush1.msra.mxu0 0.0
  %2806 = vmatprep.subr.mxu0 0.0
  %2807 = vmatpush1.msra.mxu0 0.0
  %2808 = vmatprep.subr.mxu0 0.0
  %2809 = vmatpush1.msra.mxu0 0.0
  %2810 = vmatprep.subr.mxu0 0.0
  %2811 = vmatpush1.msra.mxu0 0.0
  %2812 = vmatprep.subr.mxu0 0.0
  %2813 = vmatpush1.msra.mxu0 0.0
  %2814 = vmatprep.subr.mxu0 0.0
  %2815 = vmatpush1.msra.mxu0 0.0
  %2816 = vmatprep.subr.mxu0 0.0
  %2817 = vmatpush1.msra.mxu0 0.0
  %2818 = vmatprep.subr.mxu0 0.0
  %2819 = vmatpush1.msra.mxu0 0.0
  %2820 = vmatprep.subr.mxu0 0.0
  %2821 = vmatpush1.msra.mxu0 0.0
  %2822 = vmatprep.subr.mxu0 0.0
  %2823 = vmatpush1.msra.mxu0 0.0
  %2824 = vmatprep.subr.mxu0 0.0
  %2825 = vmatpush1.msra.mxu0 0.0
  %2826 = vmatprep.subr.mxu0 0.0
  %2827 = vmatpush1.msra.mxu0 0.0
  %2828 = vmatprep.subr.mxu0 0.0
  %2829 = vmatpush1.msra.mxu0 0.0
  %2830 = vmatprep.subr.mxu0 0.0
  %2831 = vmatpush1.msra.mxu0 0.0
  %2832 = vmatprep.subr.mxu0 0.0
  %2833 = vmatpush1.msra.mxu0 0.0
  %2834 = vmatprep.subr.mxu0 0.0
  %2835 = vmatpush1.msra.mxu0 0.0
  %2836 = vmatprep.subr.mxu0 0.0
  %2837 = vmatpush1.msra.mxu0 0.0
  %2838 = vmatprep.subr.mxu0 0.0
  %2839 = vmatpush1.msra.mxu0 0.0
  %2840 = vmatprep.mubr.f32.mxu0 0.0
  %2841 = vmatmul.mubr.f32.gmra.mrb[0].mxu0 %v2774
  %v2842 = vpop.f32.mrb[0].mxu0
  %v2843 = vadd.f32 0.0, %v2842
  %v2844 = vpop.f32.mrb[0].mxu0
  %2845 = vdwg.mxu0
  %v2846 = vld [vmem:[%s0 + $0xc8] sm:$0xff]
  %v2847 = vld [vmem:[%s0 + $0xd0] sm:$0xff]
  %v2848 = vld [vmem:[%s0 + $0xd8] sm:$0xff]
  %v2849 = vld [vmem:[%s0 + $0xe0] sm:$0xff]
  %v2850 = vld [vmem:[%s0 + $0xe8] sm:$0xff]
  %v2851 = vld [vmem:[%s0 + $0xf0] sm:$0xff]
  %v2852 = vld [vmem:[%s0 + $0xf8] sm:$0xff]
  %v2853 = vld [vmem:[%s0 + $0x100] sm:$0xff]
  %v2854 = vld [vmem:[%s0 + $0x108] sm:$0xff]
  %v2855 = vld [vmem:[%s0 + $0x110] sm:$0xff]
  %v2856 = vld [vmem:[%s0 + $0x118] sm:$0xff]
  %v2857 = vld [vmem:[%s0 + $0x120] sm:$0xff]
  %v2858 = vld [vmem:[#allocation2] sm:$0x3]
  %v2859 = vadd.f32 %v2858, %v2843
  %v2860 = vlaneseq
  %v2861 = vshrl.u32 %v2860, 7
  %v2862 = vsub.s32 0, %v2861
  %v2863 = vrot.slane %v374, %v2862
  %2864 = vmatprep.subr.mxu0 0.0
  %2865 = vmatpush1.msra.mxu0 %v2846
  %2866 = vmatprep.subr.mxu0 0.0
  %2867 = vmatpush1.msra.mxu0 %v2847
  %2868 = vmatprep.subr.mxu0 0.0
  %2869 = vmatpush1.msra.mxu0 %v2848
  %2870 = vmatprep.subr.mxu0 0.0
  %2871 = vmatpush1.msra.mxu0 %v2849
  %2872 = vmatprep.subr.mxu0 0.0
  %2873 = vmatpush1.msra.mxu0 0.0
  %2874 = vmatprep.subr.mxu0 0.0
  %2875 = vmatpush1.msra.mxu0 0.0
  %2876 = vmatprep.subr.mxu0 0.0
  %2877 = vmatpush1.msra.mxu0 0.0
  %2878 = vmatprep.subr.mxu0 0.0
  %2879 = vmatpush1.msra.mxu0 0.0
  %2880 = vmatprep.subr.mxu0 0.0
  %2881 = vmatpush1.msra.mxu0 0.0
  %2882 = vmatprep.subr.mxu0 0.0
  %2883 = vmatpush1.msra.mxu0 0.0
  %2884 = vmatprep.subr.mxu0 0.0
  %2885 = vmatpush1.msra.mxu0 0.0
  %2886 = vmatprep.subr.mxu0 0.0
  %2887 = vmatpush1.msra.mxu0 0.0
  %2888 = vmatprep.subr.mxu0 0.0
  %2889 = vmatpush1.msra.mxu0 0.0
  %2890 = vmatprep.subr.mxu0 0.0
  %2891 = vmatpush1.msra.mxu0 0.0
  %2892 = vmatprep.subr.mxu0 0.0
  %2893 = vmatpush1.msra.mxu0 0.0
  %2894 = vmatprep.subr.mxu0 0.0
  %2895 = vmatpush1.msra.mxu0 0.0
  %2896 = vmatprep.subr.mxu0 0.0
  %2897 = vmatpush1.msra.mxu0 0.0
  %2898 = vmatprep.subr.mxu0 0.0
  %2899 = vmatpush1.msra.mxu0 0.0
  %2900 = vmatprep.subr.mxu0 0.0
  %2901 = vmatpush1.msra.mxu0 0.0
  %2902 = vmatprep.subr.mxu0 0.0
  %2903 = vmatpush1.msra.mxu0 0.0
  %2904 = vmatprep.subr.mxu0 0.0
  %2905 = vmatpush1.msra.mxu0 0.0
  %2906 = vmatprep.subr.mxu0 0.0
  %2907 = vmatpush1.msra.mxu0 0.0
  %2908 = vmatprep.subr.mxu0 0.0
  %2909 = vmatpush1.msra.mxu0 0.0
  %2910 = vmatprep.subr.mxu0 0.0
  %2911 = vmatpush1.msra.mxu0 0.0
  %2912 = vmatprep.subr.mxu0 0.0
  %2913 = vmatpush1.msra.mxu0 0.0
  %2914 = vmatprep.subr.mxu0 0.0
  %2915 = vmatpush1.msra.mxu0 0.0
  %2916 = vmatprep.subr.mxu0 0.0
  %2917 = vmatpush1.msra.mxu0 0.0
  %2918 = vmatprep.subr.mxu0 0.0
  %2919 = vmatpush1.msra.mxu0 0.0
  %2920 = vmatprep.subr.mxu0 0.0
  %2921 = vmatpush1.msra.mxu0 0.0
  %2922 = vmatprep.subr.mxu0 0.0
  %2923 = vmatpush1.msra.mxu0 0.0
  %2924 = vmatprep.subr.mxu0 0.0
  %2925 = vmatpush1.msra.mxu0 0.0
  %2926 = vmatprep.subr.mxu0 0.0
  %2927 = vmatpush1.msra.mxu0 0.0
  %2928 = vmatprep.mubr.f32.mxu0 0.0
  %2929 = vmatmul.mubr.f32.gmra.mrb[0].mxu0 %v2503
  %v2930 = vpop.f32.mrb[0].mxu0
  %v2931 = vadd.f32 %v2863, %v2930
  %v2932 = vpop.f32.mrb[0].mxu0
  %2933 = vdwg.mxu0
  %v2934 = vadd.f32 %v2859, %v2931
  %v2935 = vxor.u32 %v2934, 2147483648
  %v2936 = vmul.f32 %v2935, 1.442695
  %v2937 = vpow.pop %v2936
  %v2938 = vadd.f32 %v2937, 1.0
  %v2939 = vrcp.pop %v2938
  %v2940 = vmul.f32 1.0, %v2939
  %2942 = vrot.lane.b32.xlu0 %v2931, 64
  %v2943 = vpop.permute.xlu0 %2942
  %v2945 = vmul.f32 %v2940, %v2943
  %2947 = vrot.lane.b32.xlu0 %v2945, 64
  %v2948 = vpop.permute.xlu0 %2947
  %v2950 = vadd.f32 %v2859, %v2948
  %v2951 = vtanh.pop %v2950
  %v2952 = vsub.f32 1.0, %v2940
  %2954 = vrot.lane.b32.xlu0 %v2951, 96
  %v2955 = vpop.permute.xlu0 %2954
  %v2957 = vmul.f32 %v2952, %v2955
  %v2958 = vmul.f32 %v2940, %v2499
  %v2959 = vadd.f32 %v2957, %v2958
  %v2960 = vlaneseq
  %v2961 = vshrl.u32 %v2960, 7
  %v2962 = vsub.s32 0, %v2961
  %v2963 = vrot.slane %v375, %v2962
  %2965 = vrot.lane.b32.xlu0 %v2959, 96
  %v2966 = vpop.permute.xlu0 %2965
  %v2967 = vsel %vm486, %v2966, 0
  %2969 = vmatprep.subr.mxu0 0.0
  %2970 = vmatpush1.msra.mxu0 %v2850
  %2971 = vmatprep.subr.mxu0 0.0
  %2972 = vmatpush1.msra.mxu0 %v2851
  %2973 = vmatprep.subr.mxu0 0.0
  %2974 = vmatpush1.msra.mxu0 %v2852
  %2975 = vmatprep.subr.mxu0 0.0
  %2976 = vmatpush1.msra.mxu0 %v2853
  %2977 = vmatprep.subr.mxu0 0.0
  %2978 = vmatpush1.msra.mxu0 0.0
  %2979 = vmatprep.subr.mxu0 0.0
  %2980 = vmatpush1.msra.mxu0 0.0
  %2981 = vmatprep.subr.mxu0 0.0
  %2982 = vmatpush1.msra.mxu0 0.0
  %2983 = vmatprep.subr.mxu0 0.0
  %2984 = vmatpush1.msra.mxu0 0.0
  %2985 = vmatprep.subr.mxu0 0.0
  %2986 = vmatpush1.msra.mxu0 0.0
  %2987 = vmatprep.subr.mxu0 0.0
  %2988 = vmatpush1.msra.mxu0 0.0
  %2989 = vmatprep.subr.mxu0 0.0
  %2990 = vmatpush1.msra.mxu0 0.0
  %2991 = vmatprep.subr.mxu0 0.0
  %2992 = vmatpush1.msra.mxu0 0.0
  %2993 = vmatprep.subr.mxu0 0.0
  %2994 = vmatpush1.msra.mxu0 0.0
  %2995 = vmatprep.subr.mxu0 0.0
  %2996 = vmatpush1.msra.mxu0 0.0
  %2997 = vmatprep.subr.mxu0 0.0
  %2998 = vmatpush1.msra.mxu0 0.0
  %2999 = vmatprep.subr.mxu0 0.0
  %3000 = vmatpush1.msra.mxu0 0.0
  %3001 = vmatprep.subr.mxu0 0.0
  %3002 = vmatpush1.msra.mxu0 0.0
  %3003 = vmatprep.subr.mxu0 0.0
  %3004 = vmatpush1.msra.mxu0 0.0
  %3005 = vmatprep.subr.mxu0 0.0
  %3006 = vmatpush1.msra.mxu0 0.0
  %3007 = vmatprep.subr.mxu0 0.0
  %3008 = vmatpush1.msra.mxu0 0.0
  %3009 = vmatprep.subr.mxu0 0.0
  %3010 = vmatpush1.msra.mxu0 0.0
  %3011 = vmatprep.subr.mxu0 0.0
  %3012 = vmatpush1.msra.mxu0 0.0
  %3013 = vmatprep.subr.mxu0 0.0
  %3014 = vmatpush1.msra.mxu0 0.0
  %3015 = vmatprep.subr.mxu0 0.0
  %3016 = vmatpush1.msra.mxu0 0.0
  %3017 = vmatprep.subr.mxu0 0.0
  %3018 = vmatpush1.msra.mxu0 0.0
  %3019 = vmatprep.subr.mxu0 0.0
  %3020 = vmatpush1.msra.mxu0 0.0
  %3021 = vmatprep.subr.mxu0 0.0
  %3022 = vmatpush1.msra.mxu0 0.0
  %3023 = vmatprep.subr.mxu0 0.0
  %3024 = vmatpush1.msra.mxu0 0.0
  %3025 = vmatprep.subr.mxu0 0.0
  %3026 = vmatpush1.msra.mxu0 0.0
  %3027 = vmatprep.subr.mxu0 0.0
  %3028 = vmatpush1.msra.mxu0 0.0
  %3029 = vmatprep.subr.mxu0 0.0
  %3030 = vmatpush1.msra.mxu0 0.0
  %3031 = vmatprep.subr.mxu0 0.0
  %3032 = vmatpush1.msra.mxu0 0.0
  %3033 = vmatprep.mubr.f32.mxu0 0.0
  %3034 = vmatmul.mubr.f32.gmra.mrb[0].mxu0 %v2967
  %v3035 = vpop.f32.mrb[0].mxu0
  %v3036 = vadd.f32 %v2963, %v3035
  %v3037 = vpop.f32.mrb[0].mxu0
  %3038 = vdwg.mxu0
  %v3039 = vlaneseq
  %v3040 = vshrl.u32 %v3039, 7
  %v3041 = vsub.s32 0, %v3040
  %v3042 = vrot.slane %v376, %v3041
  %3043 = vmatprep.subr.mxu0 0.0
  %3044 = vmatpush1.msra.mxu0 %v2854
  %3045 = vmatprep.subr.mxu0 0.0
  %3046 = vmatpush1.msra.mxu0 %v2855
  %3047 = vmatprep.subr.mxu0 0.0
  %3048 = vmatpush1.msra.mxu0 %v2856
  %3049 = vmatprep.subr.mxu0 0.0
  %3050 = vmatpush1.msra.mxu0 %v2857
  %3051 = vmatprep.subr.mxu0 0.0
  %3052 = vmatpush1.msra.mxu0 0.0
  %3053 = vmatprep.subr.mxu0 0.0
  %3054 = vmatpush1.msra.mxu0 0.0
  %3055 = vmatprep.subr.mxu0 0.0
  %3056 = vmatpush1.msra.mxu0 0.0
  %3057 = vmatprep.subr.mxu0 0.0
  %3058 = vmatpush1.msra.mxu0 0.0
  %3059 = vmatprep.subr.mxu0 0.0
  %3060 = vmatpush1.msra.mxu0 0.0
  %3061 = vmatprep.subr.mxu0 0.0
  %3062 = vmatpush1.msra.mxu0 0.0
  %3063 = vmatprep.subr.mxu0 0.0
  %3064 = vmatpush1.msra.mxu0 0.0
  %3065 = vmatprep.subr.mxu0 0.0
  %3066 = vmatpush1.msra.mxu0 0.0
  %3067 = vmatprep.subr.mxu0 0.0
  %3068 = vmatpush1.msra.mxu0 0.0
  %3069 = vmatprep.subr.mxu0 0.0
  %3070 = vmatpush1.msra.mxu0 0.0
  %3071 = vmatprep.subr.mxu0 0.0
  %3072 = vmatpush1.msra.mxu0 0.0
  %3073 = vmatprep.subr.mxu0 0.0
  %3074 = vmatpush1.msra.mxu0 0.0
  %3075 = vmatprep.subr.mxu0 0.0
  %3076 = vmatpush1.msra.mxu0 0.0
  %3077 = vmatprep.subr.mxu0 0.0
  %3078 = vmatpush1.msra.mxu0 0.0
  %3079 = vmatprep.subr.mxu0 0.0
  %3080 = vmatpush1.msra.mxu0 0.0
  %3081 = vmatprep.subr.mxu0 0.0
  %3082 = vmatpush1.msra.mxu0 0.0
  %3083 = vmatprep.subr.mxu0 0.0
  %3084 = vmatpush1.msra.mxu0 0.0
  %3085 = vmatprep.subr.mxu0 0.0
  %3086 = vmatpush1.msra.mxu0 0.0
  %3087 = vmatprep.subr.mxu0 0.0
  %3088 = vmatpush1.msra.mxu0 0.0
  %3089 = vmatprep.subr.mxu0 0.0
  %3090 = vmatpush1.msra.mxu0 0.0
  %3091 = vmatprep.subr.mxu0 0.0
  %3092 = vmatpush1.msra.mxu0 0.0
  %3093 = vmatprep.subr.mxu0 0.0
  %3094 = vmatpush1.msra.mxu0 0.0
  %3095 = vmatprep.subr.mxu0 0.0
  %3096 = vmatpush1.msra.mxu0 0.0
  %3097 = vmatprep.subr.mxu0 0.0
  %3098 = vmatpush1.msra.mxu0 0.0
  %3099 = vmatprep.subr.mxu0 0.0
  %3100 = vmatpush1.msra.mxu0 0.0
  %3101 = vmatprep.subr.mxu0 0.0
  %3102 = vmatpush1.msra.mxu0 0.0
  %3103 = vmatprep.subr.mxu0 0.0
  %3104 = vmatpush1.msra.mxu0 0.0
  %3105 = vmatprep.subr.mxu0 0.0
  %3106 = vmatpush1.msra.mxu0 0.0
  %3107 = vmatprep.mubr.f32.mxu0 0.0
  %3108 = vmatmul.mubr.f32.gmra.mrb[0].mxu0 %v2774
  %v3109 = vpop.f32.mrb[0].mxu0
  %v3110 = vadd.f32 %v3042, %v3109
  %v3111 = vpop.f32.mrb[0].mxu0
  %3112 = vdwg.mxu0
  %v3113 = vadd.f32 %v3036, %v3110
  %v3114 = vxor.u32 %v3113, 2147483648
  %v3115 = vmul.f32 %v3114, 1.442695
  %v3116 = vpow.pop %v3115
  %v3117 = vadd.f32 %v3116, 1.0
  %v3118 = vrcp.pop %v3117
  %v3119 = vmul.f32 1.0, %v3118
  %3121 = vrot.lane.b32.xlu0 %v3110, 64
  %v3122 = vpop.permute.xlu0 %3121
  %v3124 = vmul.f32 %v3119, %v3122
  %3126 = vrot.lane.b32.xlu0 %v3124, 64
  %v3127 = vpop.permute.xlu0 %3126
  %v3129 = vadd.f32 %v3036, %v3127
  %v3130 = vtanh.pop %v3129
  %v3131 = vsub.f32 1.0, %v3119
  %3133 = vrot.lane.b32.xlu0 %v3130, 96
  %v3134 = vpop.permute.xlu0 %3133
  %v3136 = vmul.f32 %v3131, %v3134
  %v3137 = vmul.f32 %v3119, %v2675
  %v3138 = vadd.f32 %v3136, %v3137
  %3140 = vrot.lane.b32.xlu0 %v3138, 96
  %v3141 = vpop.permute.xlu0 %3140
  %vm3143 = vcmask 254976
  %3144 = vst.msk [vmem:[#allocation3] sm:$0x3] %vm3143, %v3141
  %v3145 = vld [vmem:[#allocation2 + $0x2] sm:$0x3]
  %v3146 = vadd.f32 %v3145, %v2843
  %3147 = vmatprep.subr.mxu0 0.0
  %3148 = vmatpush1.msra.mxu0 %v2846
  %3149 = vmatprep.subr.mxu0 0.0
  %3150 = vmatpush1.msra.mxu0 %v2847
  %3151 = vmatprep.subr.mxu0 0.0
  %3152 = vmatpush1.msra.mxu0 %v2848
  %3153 = vmatprep.subr.mxu0 0.0
  %3154 = vmatpush1.msra.mxu0 %v2849
  %3155 = vmatprep.subr.mxu0 0.0
  %3156 = vmatpush1.msra.mxu0 0.0
  %3157 = vmatprep.subr.mxu0 0.0
  %3158 = vmatpush1.msra.mxu0 0.0
  %3159 = vmatprep.subr.mxu0 0.0
  %3160 = vmatpush1.msra.mxu0 0.0
  %3161 = vmatprep.subr.mxu0 0.0
  %3162 = vmatpush1.msra.mxu0 0.0
  %3163 = vmatprep.subr.mxu0 0.0
  %3164 = vmatpush1.msra.mxu0 0.0
  %3165 = vmatprep.subr.mxu0 0.0
  %3166 = vmatpush1.msra.mxu0 0.0
  %3167 = vmatprep.subr.mxu0 0.0
  %3168 = vmatpush1.msra.mxu0 0.0
  %3169 = vmatprep.subr.mxu0 0.0
  %3170 = vmatpush1.msra.mxu0 0.0
  %3171 = vmatprep.subr.mxu0 0.0
  %3172 = vmatpush1.msra.mxu0 0.0
  %3173 = vmatprep.subr.mxu0 0.0
  %3174 = vmatpush1.msra.mxu0 0.0
  %3175 = vmatprep.subr.mxu0 0.0
  %3176 = vmatpush1.msra.mxu0 0.0
  %3177 = vmatprep.subr.mxu0 0.0
  %3178 = vmatpush1.msra.mxu0 0.0
  %3179 = vmatprep.subr.mxu0 0.0
  %3180 = vmatpush1.msra.mxu0 0.0
  %3181 = vmatprep.subr.mxu0 0.0
  %3182 = vmatpush1.msra.mxu0 0.0
  %3183 = vmatprep.subr.mxu0 0.0
  %3184 = vmatpush1.msra.mxu0 0.0
  %3185 = vmatprep.subr.mxu0 0.0
  %3186 = vmatpush1.msra.mxu0 0.0
  %3187 = vmatprep.subr.mxu0 0.0
  %3188 = vmatpush1.msra.mxu0 0.0
  %3189 = vmatprep.subr.mxu0 0.0
  %3190 = vmatpush1.msra.mxu0 0.0
  %3191 = vmatprep.subr.mxu0 0.0
  %3192 = vmatpush1.msra.mxu0 0.0
  %3193 = vmatprep.subr.mxu0 0.0
  %3194 = vmatpush1.msra.mxu0 0.0
  %3195 = vmatprep.subr.mxu0 0.0
  %3196 = vmatpush1.msra.mxu0 0.0
  %3197 = vmatprep.subr.mxu0 0.0
  %3198 = vmatpush1.msra.mxu0 0.0
  %3199 = vmatprep.subr.mxu0 0.0
  %3200 = vmatpush1.msra.mxu0 0.0
  %3201 = vmatprep.subr.mxu0 0.0
  %3202 = vmatpush1.msra.mxu0 0.0
  %3203 = vmatprep.subr.mxu0 0.0
  %3204 = vmatpush1.msra.mxu0 0.0
  %3205 = vmatprep.subr.mxu0 0.0
  %3206 = vmatpush1.msra.mxu0 0.0
  %3207 = vmatprep.subr.mxu0 0.0
  %3208 = vmatpush1.msra.mxu0 0.0
  %3209 = vmatprep.subr.mxu0 0.0
  %3210 = vmatpush1.msra.mxu0 0.0
  %3211 = vmatprep.mubr.f32.mxu0 0.0
  %3212 = vmatmul.mubr.f32.gmra.mrb[0].mxu0 %v2967
  %v3213 = vpop.f32.mrb[0].mxu0
  %v3214 = vadd.f32 %v2863, %v3213
  %v3215 = vpop.f32.mrb[0].mxu0
  %3216 = vdwg.mxu0
  %v3217 = vadd.f32 %v3146, %v3214
  %v3218 = vxor.u32 %v3217, 2147483648
  %v3219 = vmul.f32 %v3218, 1.442695
  %v3220 = vpow.pop %v3219
  %v3221 = vadd.f32 %v3220, 1.0
  %v3222 = vrcp.pop %v3221
  %v3223 = vmul.f32 1.0, %v3222
  %3225 = vrot.lane.b32.xlu0 %v3214, 64
  %v3226 = vpop.permute.xlu0 %3225
  %v3228 = vmul.f32 %v3223, %v3226
  %3230 = vrot.lane.b32.xlu0 %v3228, 64
  %v3231 = vpop.permute.xlu0 %3230
  %v3233 = vadd.f32 %v3146, %v3231
  %v3234 = vtanh.pop %v3233
  %v3235 = vsub.f32 1.0, %v3223
  %3237 = vrot.lane.b32.xlu0 %v3234, 96
  %v3238 = vpop.permute.xlu0 %3237
  %v3240 = vmul.f32 %v3235, %v3238
  %v3241 = vmul.f32 %v3223, %v2959
  %v3242 = vadd.f32 %v3240, %v3241
  %3244 = vrot.lane.b32.xlu0 %v3242, 96
  %v3245 = vpop.permute.xlu0 %3244
  %v3246 = vsel %vm486, %v3245, 0
  %3248 = vmatprep.subr.mxu0 0.0
  %3249 = vmatpush1.msra.mxu0 %v2850
  %3250 = vmatprep.subr.mxu0 0.0
  %3251 = vmatpush1.msra.mxu0 %v2851
  %3252 = vmatprep.subr.mxu0 0.0
  %3253 = vmatpush1.msra.mxu0 %v2852
  %3254 = vmatprep.subr.mxu0 0.0
  %3255 = vmatpush1.msra.mxu0 %v2853
  %3256 = vmatprep.subr.mxu0 0.0
  %3257 = vmatpush1.msra.mxu0 0.0
  %3258 = vmatprep.subr.mxu0 0.0
  %3259 = vmatpush1.msra.mxu0 0.0
  %3260 = vmatprep.subr.mxu0 0.0
  %3261 = vmatpush1.msra.mxu0 0.0
  %3262 = vmatprep.subr.mxu0 0.0
  %3263 = vmatpush1.msra.mxu0 0.0
  %3264 = vmatprep.subr.mxu0 0.0
  %3265 = vmatpush1.msra.mxu0 0.0
  %3266 = vmatprep.subr.mxu0 0.0
  %3267 = vmatpush1.msra.mxu0 0.0
  %3268 = vmatprep.subr.mxu0 0.0
  %3269 = vmatpush1.msra.mxu0 0.0
  %3270 = vmatprep.subr.mxu0 0.0
  %3271 = vmatpush1.msra.mxu0 0.0
  %3272 = vmatprep.subr.mxu0 0.0
  %3273 = vmatpush1.msra.mxu0 0.0
  %3274 = vmatprep.subr.mxu0 0.0
  %3275 = vmatpush1.msra.mxu0 0.0
  %3276 = vmatprep.subr.mxu0 0.0
  %3277 = vmatpush1.msra.mxu0 0.0
  %3278 = vmatprep.subr.mxu0 0.0
  %3279 = vmatpush1.msra.mxu0 0.0
  %3280 = vmatprep.subr.mxu0 0.0
  %3281 = vmatpush1.msra.mxu0 0.0
  %3282 = vmatprep.subr.mxu0 0.0
  %3283 = vmatpush1.msra.mxu0 0.0
  %3284 = vmatprep.subr.mxu0 0.0
  %3285 = vmatpush1.msra.mxu0 0.0
  %3286 = vmatprep.subr.mxu0 0.0
  %3287 = vmatpush1.msra.mxu0 0.0
  %3288 = vmatprep.subr.mxu0 0.0
  %3289 = vmatpush1.msra.mxu0 0.0
  %3290 = vmatprep.subr.mxu0 0.0
  %3291 = vmatpush1.msra.mxu0 0.0
  %3292 = vmatprep.subr.mxu0 0.0
  %3293 = vmatpush1.msra.mxu0 0.0
  %3294 = vmatprep.subr.mxu0 0.0
  %3295 = vmatpush1.msra.mxu0 0.0
  %3296 = vmatprep.subr.mxu0 0.0
  %3297 = vmatpush1.msra.mxu0 0.0
  %3298 = vmatprep.subr.mxu0 0.0
  %3299 = vmatpush1.msra.mxu0 0.0
  %3300 = vmatprep.subr.mxu0 0.0
  %3301 = vmatpush1.msra.mxu0 0.0
  %3302 = vmatprep.subr.mxu0 0.0
  %3303 = vmatpush1.msra.mxu0 0.0
  %3304 = vmatprep.subr.mxu0 0.0
  %3305 = vmatpush1.msra.mxu0 0.0
  %3306 = vmatprep.subr.mxu0 0.0
  %3307 = vmatpush1.msra.mxu0 0.0
  %3308 = vmatprep.subr.mxu0 0.0
  %3309 = vmatpush1.msra.mxu0 0.0
  %3310 = vmatprep.subr.mxu0 0.0
  %3311 = vmatpush1.msra.mxu0 0.0
  %3312 = vmatprep.mubr.f32.mxu0 0.0
  %3313 = vmatmul.mubr.f32.gmra.mrb[0].mxu0 %v3246
  %v3314 = vpop.f32.mrb[0].mxu0
  %v3315 = vadd.f32 %v2963, %v3314
  %v3316 = vpop.f32.mrb[0].mxu0
  %3317 = vdwg.mxu0
  %v3318 = vsel %vm486, %v3141, 0
  %3320 = vmatprep.subr.mxu0 0.0
  %3321 = vmatpush1.msra.mxu0 %v2854
  %3322 = vmatprep.subr.mxu0 0.0
  %3323 = vmatpush1.msra.mxu0 %v2855
  %3324 = vmatprep.subr.mxu0 0.0
  %3325 = vmatpush1.msra.mxu0 %v2856
  %3326 = vmatprep.subr.mxu0 0.0
  %3327 = vmatpush1.msra.mxu0 %v2857
  %3328 = vmatprep.subr.mxu0 0.0
  %3329 = vmatpush1.msra.mxu0 0.0
  %3330 = vmatprep.subr.mxu0 0.0
  %3331 = vmatpush1.msra.mxu0 0.0
  %3332 = vmatprep.subr.mxu0 0.0
  %3333 = vmatpush1.msra.mxu0 0.0
  %3334 = vmatprep.subr.mxu0 0.0
  %3335 = vmatpush1.msra.mxu0 0.0
  %3336 = vmatprep.subr.mxu0 0.0
  %3337 = vmatpush1.msra.mxu0 0.0
  %3338 = vmatprep.subr.mxu0 0.0
  %3339 = vmatpush1.msra.mxu0 0.0
  %3340 = vmatprep.subr.mxu0 0.0
  %3341 = vmatpush1.msra.mxu0 0.0
  %3342 = vmatprep.subr.mxu0 0.0
  %3343 = vmatpush1.msra.mxu0 0.0
  %3344 = vmatprep.subr.mxu0 0.0
  %3345 = vmatpush1.msra.mxu0 0.0
  %3346 = vmatprep.subr.mxu0 0.0
  %3347 = vmatpush1.msra.mxu0 0.0
  %3348 = vmatprep.subr.mxu0 0.0
  %3349 = vmatpush1.msra.mxu0 0.0
  %3350 = vmatprep.subr.mxu0 0.0
  %3351 = vmatpush1.msra.mxu0 0.0
  %3352 = vmatprep.subr.mxu0 0.0
  %3353 = vmatpush1.msra.mxu0 0.0
  %3354 = vmatprep.subr.mxu0 0.0
  %3355 = vmatpush1.msra.mxu0 0.0
  %3356 = vmatprep.subr.mxu0 0.0
  %3357 = vmatpush1.msra.mxu0 0.0
  %3358 = vmatprep.subr.mxu0 0.0
  %3359 = vmatpush1.msra.mxu0 0.0
  %3360 = vmatprep.subr.mxu0 0.0
  %3361 = vmatpush1.msra.mxu0 0.0
  %3362 = vmatprep.subr.mxu0 0.0
  %3363 = vmatpush1.msra.mxu0 0.0
  %3364 = vmatprep.subr.mxu0 0.0
  %3365 = vmatpush1.msra.mxu0 0.0
  %3366 = vmatprep.subr.mxu0 0.0
  %3367 = vmatpush1.msra.mxu0 0.0
  %3368 = vmatprep.subr.mxu0 0.0
  %3369 = vmatpush1.msra.mxu0 0.0
  %3370 = vmatprep.subr.mxu0 0.0
  %3371 = vmatpush1.msra.mxu0 0.0
  %3372 = vmatprep.subr.mxu0 0.0
  %3373 = vmatpush1.msra.mxu0 0.0
  %3374 = vmatprep.subr.mxu0 0.0
  %3375 = vmatpush1.msra.mxu0 0.0
  %3376 = vmatprep.subr.mxu0 0.0
  %3377 = vmatpush1.msra.mxu0 0.0
  %3378 = vmatprep.subr.mxu0 0.0
  %3379 = vmatpush1.msra.mxu0 0.0
  %3380 = vmatprep.subr.mxu0 0.0
  %3381 = vmatpush1.msra.mxu0 0.0
  %3382 = vmatprep.subr.mxu0 0.0
  %3383 = vmatpush1.msra.mxu0 0.0
  %3384 = vmatprep.mubr.f32.mxu0 0.0
  %3385 = vmatmul.mubr.f32.gmra.mrb[0].mxu0 %v3318
  %v3386 = vpop.f32.mrb[0].mxu0
  %v3387 = vadd.f32 %v3042, %v3386
  %v3388 = vpop.f32.mrb[0].mxu0
  %3389 = vdwg.mxu0
  %v3390 = vadd.f32 %v3315, %v3387
  %v3391 = vxor.u32 %v3390, 2147483648
  %v3392 = vmul.f32 %v3391, 1.442695
  %v3393 = vpow.pop %v3392
  %v3394 = vadd.f32 %v3393, 1.0
  %v3395 = vrcp.pop %v3394
  %v3396 = vmul.f32 1.0, %v3395
  %3398 = vrot.lane.b32.xlu0 %v3387, 64
  %v3399 = vpop.permute.xlu0 %3398
  %v3401 = vmul.f32 %v3396, %v3399
  %3403 = vrot.lane.b32.xlu0 %v3401, 64
  %v3404 = vpop.permute.xlu0 %3403
  %v3406 = vadd.f32 %v3315, %v3404
  %v3407 = vtanh.pop %v3406
  %v3408 = vsub.f32 1.0, %v3396
  %3410 = vrot.lane.b32.xlu0 %v3407, 96
  %v3411 = vpop.permute.xlu0 %3410
  %v3413 = vmul.f32 %v3408, %v3411
  %v3414 = vmul.f32 %v3396, %v3138
  %v3415 = vadd.f32 %v3413, %v3414
  %3417 = vrot.lane.b32.xlu0 %v3415, 96
  %v3418 = vpop.permute.xlu0 %3417
  %3420 = vst.msk [vmem:[#allocation3 + $0x2] sm:$0x3] %vm3143, %v3418
  %v3421 = vld [vmem:[#allocation2 + $0x4] sm:$0x3]
  %v3422 = vadd.f32 %v3421, %v2843
  %3423 = vmatprep.subr.mxu0 0.0
  %3424 = vmatpush1.msra.mxu0 %v2846
  %3425 = vmatprep.subr.mxu0 0.0
  %3426 = vmatpush1.msra.mxu0 %v2847
  %3427 = vmatprep.subr.mxu0 0.0
  %3428 = vmatpush1.msra.mxu0 %v2848
  %3429 = vmatprep.subr.mxu0 0.0
  %3430 = vmatpush1.msra.mxu0 %v2849
  %3431 = vmatprep.subr.mxu0 0.0
  %3432 = vmatpush1.msra.mxu0 0.0
  %3433 = vmatprep.subr.mxu0 0.0
  %3434 = vmatpush1.msra.mxu0 0.0
  %3435 = vmatprep.subr.mxu0 0.0
  %3436 = vmatpush1.msra.mxu0 0.0
  %3437 = vmatprep.subr.mxu0 0.0
  %3438 = vmatpush1.msra.mxu0 0.0
  %3439 = vmatprep.subr.mxu0 0.0
  %3440 = vmatpush1.msra.mxu0 0.0
  %3441 = vmatprep.subr.mxu0 0.0
  %3442 = vmatpush1.msra.mxu0 0.0
  %3443 = vmatprep.subr.mxu0 0.0
  %3444 = vmatpush1.msra.mxu0 0.0
  %3445 = vmatprep.subr.mxu0 0.0
  %3446 = vmatpush1.msra.mxu0 0.0
  %3447 = vmatprep.subr.mxu0 0.0
  %3448 = vmatpush1.msra.mxu0 0.0
  %3449 = vmatprep.subr.mxu0 0.0
  %3450 = vmatpush1.msra.mxu0 0.0
  %3451 = vmatprep.subr.mxu0 0.0
  %3452 = vmatpush1.msra.mxu0 0.0
  %3453 = vmatprep.subr.mxu0 0.0
  %3454 = vmatpush1.msra.mxu0 0.0
  %3455 = vmatprep.subr.mxu0 0.0
  %3456 = vmatpush1.msra.mxu0 0.0
  %3457 = vmatprep.subr.mxu0 0.0
  %3458 = vmatpush1.msra.mxu0 0.0
  %3459 = vmatprep.subr.mxu0 0.0
  %3460 = vmatpush1.msra.mxu0 0.0
  %3461 = vmatprep.subr.mxu0 0.0
  %3462 = vmatpush1.msra.mxu0 0.0
  %3463 = vmatprep.subr.mxu0 0.0
  %3464 = vmatpush1.msra.mxu0 0.0
  %3465 = vmatprep.subr.mxu0 0.0
  %3466 = vmatpush1.msra.mxu0 0.0
  %3467 = vmatprep.subr.mxu0 0.0
  %3468 = vmatpush1.msra.mxu0 0.0
  %3469 = vmatprep.subr.mxu0 0.0
  %3470 = vmatpush1.msra.mxu0 0.0
  %3471 = vmatprep.subr.mxu0 0.0
  %3472 = vmatpush1.msra.mxu0 0.0
  %3473 = vmatprep.subr.mxu0 0.0
  %3474 = vmatpush1.msra.mxu0 0.0
  %3475 = vmatprep.subr.mxu0 0.0
  %3476 = vmatpush1.msra.mxu0 0.0
  %3477 = vmatprep.subr.mxu0 0.0
  %3478 = vmatpush1.msra.mxu0 0.0
  %3479 = vmatprep.subr.mxu0 0.0
  %3480 = vmatpush1.msra.mxu0 0.0
  %3481 = vmatprep.subr.mxu0 0.0
  %3482 = vmatpush1.msra.mxu0 0.0
  %3483 = vmatprep.subr.mxu0 0.0
  %3484 = vmatpush1.msra.mxu0 0.0
  %3485 = vmatprep.subr.mxu0 0.0
  %3486 = vmatpush1.msra.mxu0 0.0
  %3487 = vmatprep.mubr.f32.mxu0 0.0
  %3488 = vmatmul.mubr.f32.gmra.mrb[0].mxu0 %v3246
  %v3489 = vpop.f32.mrb[0].mxu0
  %v3490 = vadd.f32 %v2863, %v3489
  %v3491 = vpop.f32.mrb[0].mxu0
  %3492 = vdwg.mxu0
  %v3493 = vadd.f32 %v3422, %v3490
  %v3494 = vxor.u32 %v3493, 2147483648
  %v3495 = vmul.f32 %v3494, 1.442695
  %v3496 = vpow.pop %v3495
  %v3497 = vadd.f32 %v3496, 1.0
  %v3498 = vrcp.pop %v3497
  %v3499 = vmul.f32 1.0, %v3498
  %3501 = vrot.lane.b32.xlu0 %v3490, 64
  %v3502 = vpop.permute.xlu0 %3501
  %v3504 = vmul.f32 %v3499, %v3502
  %3506 = vrot.lane.b32.xlu0 %v3504, 64
  %v3507 = vpop.permute.xlu0 %3506
  %v3509 = vadd.f32 %v3422, %v3507
  %v3510 = vtanh.pop %v3509
  %v3511 = vsub.f32 1.0, %v3499
  %3513 = vrot.lane.b32.xlu0 %v3510, 96
  %v3514 = vpop.permute.xlu0 %3513
  %v3516 = vmul.f32 %v3511, %v3514
  %v3517 = vmul.f32 %v3499, %v3242
  %v3518 = vadd.f32 %v3516, %v3517
  %3520 = vrot.lane.b32.xlu0 %v3518, 96
  %v3521 = vpop.permute.xlu0 %3520
  %v3522 = vsel %vm486, %v3521, 0
  %3524 = vmatprep.subr.mxu0 0.0
  %3525 = vmatpush1.msra.mxu0 %v2850
  %3526 = vmatprep.subr.mxu0 0.0
  %3527 = vmatpush1.msra.mxu0 %v2851
  %3528 = vmatprep.subr.mxu0 0.0
  %3529 = vmatpush1.msra.mxu0 %v2852
  %3530 = vmatprep.subr.mxu0 0.0
  %3531 = vmatpush1.msra.mxu0 %v2853
  %3532 = vmatprep.subr.mxu0 0.0
  %3533 = vmatpush1.msra.mxu0 0.0
  %3534 = vmatprep.subr.mxu0 0.0
  %3535 = vmatpush1.msra.mxu0 0.0
  %3536 = vmatprep.subr.mxu0 0.0
  %3537 = vmatpush1.msra.mxu0 0.0
  %3538 = vmatprep.subr.mxu0 0.0
  %3539 = vmatpush1.msra.mxu0 0.0
  %3540 = vmatprep.subr.mxu0 0.0
  %3541 = vmatpush1.msra.mxu0 0.0
  %3542 = vmatprep.subr.mxu0 0.0
  %3543 = vmatpush1.msra.mxu0 0.0
  %3544 = vmatprep.subr.mxu0 0.0
  %3545 = vmatpush1.msra.mxu0 0.0
  %3546 = vmatprep.subr.mxu0 0.0
  %3547 = vmatpush1.msra.mxu0 0.0
  %3548 = vmatprep.subr.mxu0 0.0
  %3549 = vmatpush1.msra.mxu0 0.0
  %3550 = vmatprep.subr.mxu0 0.0
  %3551 = vmatpush1.msra.mxu0 0.0
  %3552 = vmatprep.subr.mxu0 0.0
  %3553 = vmatpush1.msra.mxu0 0.0
  %3554 = vmatprep.subr.mxu0 0.0
  %3555 = vmatpush1.msra.mxu0 0.0
  %3556 = vmatprep.subr.mxu0 0.0
  %3557 = vmatpush1.msra.mxu0 0.0
  %3558 = vmatprep.subr.mxu0 0.0
  %3559 = vmatpush1.msra.mxu0 0.0
  %3560 = vmatprep.subr.mxu0 0.0
  %3561 = vmatpush1.msra.mxu0 0.0
  %3562 = vmatprep.subr.mxu0 0.0
  %3563 = vmatpush1.msra.mxu0 0.0
  %3564 = vmatprep.subr.mxu0 0.0
  %3565 = vmatpush1.msra.mxu0 0.0
  %3566 = vmatprep.subr.mxu0 0.0
  %3567 = vmatpush1.msra.mxu0 0.0
  %3568 = vmatprep.subr.mxu0 0.0
  %3569 = vmatpush1.msra.mxu0 0.0
  %3570 = vmatprep.subr.mxu0 0.0
  %3571 = vmatpush1.msra.mxu0 0.0
  %3572 = vmatprep.subr.mxu0 0.0
  %3573 = vmatpush1.msra.mxu0 0.0
  %3574 = vmatprep.subr.mxu0 0.0
  %3575 = vmatpush1.msra.mxu0 0.0
  %3576 = vmatprep.subr.mxu0 0.0
  %3577 = vmatpush1.msra.mxu0 0.0
  %3578 = vmatprep.subr.mxu0 0.0
  %3579 = vmatpush1.msra.mxu0 0.0
  %3580 = vmatprep.subr.mxu0 0.0
  %3581 = vmatpush1.msra.mxu0 0.0
  %3582 = vmatprep.subr.mxu0 0.0
  %3583 = vmatpush1.msra.mxu0 0.0
  %3584 = vmatprep.subr.mxu0 0.0
  %3585 = vmatpush1.msra.mxu0 0.0
  %3586 = vmatprep.subr.mxu0 0.0
  %3587 = vmatpush1.msra.mxu0 0.0
  %3588 = vmatprep.mubr.f32.mxu0 0.0
  %3589 = vmatmul.mubr.f32.gmra.mrb[0].mxu0 %v3522
  %v3590 = vpop.f32.mrb[0].mxu0
  %v3591 = vadd.f32 %v2963, %v3590
  %v3592 = vpop.f32.mrb[0].mxu0
  %3593 = vdwg.mxu0
  %v3594 = vsel %vm486, %v3418, 0
  %3596 = vmatprep.subr.mxu0 0.0
  %3597 = vmatpush1.msra.mxu0 %v2854
  %3598 = vmatprep.subr.mxu0 0.0
  %3599 = vmatpush1.msra.mxu0 %v2855
  %3600 = vmatprep.subr.mxu0 0.0
  %3601 = vmatpush1.msra.mxu0 %v2856
  %3602 = vmatprep.subr.mxu0 0.0
  %3603 = vmatpush1.msra.mxu0 %v2857
  %3604 = vmatprep.subr.mxu0 0.0
  %3605 = vmatpush1.msra.mxu0 0.0
  %3606 = vmatprep.subr.mxu0 0.0
  %3607 = vmatpush1.msra.mxu0 0.0
  %3608 = vmatprep.subr.mxu0 0.0
  %3609 = vmatpush1.msra.mxu0 0.0
  %3610 = vmatprep.subr.mxu0 0.0
  %3611 = vmatpush1.msra.mxu0 0.0
  %3612 = vmatprep.subr.mxu0 0.0
  %3613 = vmatpush1.msra.mxu0 0.0
  %3614 = vmatprep.subr.mxu0 0.0
  %3615 = vmatpush1.msra.mxu0 0.0
  %3616 = vmatprep.subr.mxu0 0.0
  %3617 = vmatpush1.msra.mxu0 0.0
  %3618 = vmatprep.subr.mxu0 0.0
  %3619 = vmatpush1.msra.mxu0 0.0
  %3620 = vmatprep.subr.mxu0 0.0
  %3621 = vmatpush1.msra.mxu0 0.0
  %3622 = vmatprep.subr.mxu0 0.0
  %3623 = vmatpush1.msra.mxu0 0.0
  %3624 = vmatprep.subr.mxu0 0.0
  %3625 = vmatpush1.msra.mxu0 0.0
  %3626 = vmatprep.subr.mxu0 0.0
  %3627 = vmatpush1.msra.mxu0 0.0
  %3628 = vmatprep.subr.mxu0 0.0
  %3629 = vmatpush1.msra.mxu0 0.0
  %3630 = vmatprep.subr.mxu0 0.0
  %3631 = vmatpush1.msra.mxu0 0.0
  %3632 = vmatprep.subr.mxu0 0.0
  %3633 = vmatpush1.msra.mxu0 0.0
  %3634 = vmatprep.subr.mxu0 0.0
  %3635 = vmatpush1.msra.mxu0 0.0
  %3636 = vmatprep.subr.mxu0 0.0
  %3637 = vmatpush1.msra.mxu0 0.0
  %3638 = vmatprep.subr.mxu0 0.0
  %3639 = vmatpush1.msra.mxu0 0.0
  %3640 = vmatprep.subr.mxu0 0.0
  %3641 = vmatpush1.msra.mxu0 0.0
  %3642 = vmatprep.subr.mxu0 0.0
  %3643 = vmatpush1.msra.mxu0 0.0
  %3644 = vmatprep.subr.mxu0 0.0
  %3645 = vmatpush1.msra.mxu0 0.0
  %3646 = vmatprep.subr.mxu0 0.0
  %3647 = vmatpush1.msra.mxu0 0.0
  %3648 = vmatprep.subr.mxu0 0.0
  %3649 = vmatpush1.msra.mxu0 0.0
  %3650 = vmatprep.subr.mxu0 0.0
  %3651 = vmatpush1.msra.mxu0 0.0
  %3652 = vmatprep.subr.mxu0 0.0
  %3653 = vmatpush1.msra.mxu0 0.0
  %3654 = vmatprep.subr.mxu0 0.0
  %3655 = vmatpush1.msra.mxu0 0.0
  %3656 = vmatprep.subr.mxu0 0.0
  %3657 = vmatpush1.msra.mxu0 0.0
  %3658 = vmatprep.subr.mxu0 0.0
  %3659 = vmatpush1.msra.mxu0 0.0
  %3660 = vmatprep.mubr.f32.mxu0 0.0
  %3661 = vmatmul.mubr.f32.gmra.mrb[0].mxu0 %v3594
  %v3662 = vpop.f32.mrb[0].mxu0
  %v3663 = vadd.f32 %v3042, %v3662
  %v3664 = vpop.f32.mrb[0].mxu0
  %3665 = vdwg.mxu0
  %v3666 = vadd.f32 %v3591, %v3663
  %v3667 = vxor.u32 %v3666, 2147483648
  %v3668 = vmul.f32 %v3667, 1.442695
  %v3669 = vpow.pop %v3668
  %v3670 = vadd.f32 %v3669, 1.0
  %v3671 = vrcp.pop %v3670
  %v3672 = vmul.f32 1.0, %v3671
  %3674 = vrot.lane.b32.xlu0 %v3663, 64
  %v3675 = vpop.permute.xlu0 %3674
  %v3677 = vmul.f32 %v3672, %v3675
  %3679 = vrot.lane.b32.xlu0 %v3677, 64
  %v3680 = vpop.permute.xlu0 %3679
  %v3682 = vadd.f32 %v3591, %v3680
  %v3683 = vtanh.pop %v3682
  %v3684 = vsub.f32 1.0, %v3672
  %3686 = vrot.lane.b32.xlu0 %v3683, 96
  %v3687 = vpop.permute.xlu0 %3686
  %v3689 = vmul.f32 %v3684, %v3687
  %v3690 = vmul.f32 %v3672, %v3415
  %v3691 = vadd.f32 %v3689, %v3690
  %3693 = vrot.lane.b32.xlu0 %v3691, 96
  %v3694 = vpop.permute.xlu0 %3693
  %3696 = vst.msk [vmem:[#allocation3 + $0x4] sm:$0x3] %vm3143, %v3694
  %v3697 = vld [vmem:[#allocation2 + $0x6] sm:$0x3]
  %v3698 = vadd.f32 %v3697, %v2843
  %3699 = vmatprep.subr.mxu0 0.0
  %3700 = vmatpush1.msra.mxu0 %v2846
  %3701 = vmatprep.subr.mxu0 0.0
  %3702 = vmatpush1.msra.mxu0 %v2847
  %3703 = vmatprep.subr.mxu0 0.0
  %3704 = vmatpush1.msra.mxu0 %v2848
  %3705 = vmatprep.subr.mxu0 0.0
  %3706 = vmatpush1.msra.mxu0 %v2849
  %3707 = vmatprep.subr.mxu0 0.0
  %3708 = vmatpush1.msra.mxu0 0.0
  %3709 = vmatprep.subr.mxu0 0.0
  %3710 = vmatpush1.msra.mxu0 0.0
  %3711 = vmatprep.subr.mxu0 0.0
  %3712 = vmatpush1.msra.mxu0 0.0
  %3713 = vmatprep.subr.mxu0 0.0
  %3714 = vmatpush1.msra.mxu0 0.0
  %3715 = vmatprep.subr.mxu0 0.0
  %3716 = vmatpush1.msra.mxu0 0.0
  %3717 = vmatprep.subr.mxu0 0.0
  %3718 = vmatpush1.msra.mxu0 0.0
  %3719 = vmatprep.subr.mxu0 0.0
  %3720 = vmatpush1.msra.mxu0 0.0
  %3721 = vmatprep.subr.mxu0 0.0
  %3722 = vmatpush1.msra.mxu0 0.0
  %3723 = vmatprep.subr.mxu0 0.0
  %3724 = vmatpush1.msra.mxu0 0.0
  %3725 = vmatprep.subr.mxu0 0.0
  %3726 = vmatpush1.msra.mxu0 0.0
  %3727 = vmatprep.subr.mxu0 0.0
  %3728 = vmatpush1.msra.mxu0 0.0
  %3729 = vmatprep.subr.mxu0 0.0
  %3730 = vmatpush1.msra.mxu0 0.0
  %3731 = vmatprep.subr.mxu0 0.0
  %3732 = vmatpush1.msra.mxu0 0.0
  %3733 = vmatprep.subr.mxu0 0.0
  %3734 = vmatpush1.msra.mxu0 0.0
  %3735 = vmatprep.subr.mxu0 0.0
  %3736 = vmatpush1.msra.mxu0 0.0
  %3737 = vmatprep.subr.mxu0 0.0
  %3738 = vmatpush1.msra.mxu0 0.0
  %3739 = vmatprep.subr.mxu0 0.0
  %3740 = vmatpush1.msra.mxu0 0.0
  %3741 = vmatprep.subr.mxu0 0.0
  %3742 = vmatpush1.msra.mxu0 0.0
  %3743 = vmatprep.subr.mxu0 0.0
  %3744 = vmatpush1.msra.mxu0 0.0
  %3745 = vmatprep.subr.mxu0 0.0
  %3746 = vmatpush1.msra.mxu0 0.0
  %3747 = vmatprep.subr.mxu0 0.0
  %3748 = vmatpush1.msra.mxu0 0.0
  %3749 = vmatprep.subr.mxu0 0.0
  %3750 = vmatpush1.msra.mxu0 0.0
  %3751 = vmatprep.subr.mxu0 0.0
  %3752 = vmatpush1.msra.mxu0 0.0
  %3753 = vmatprep.subr.mxu0 0.0
  %3754 = vmatpush1.msra.mxu0 0.0
  %3755 = vmatprep.subr.mxu0 0.0
  %3756 = vmatpush1.msra.mxu0 0.0
  %3757 = vmatprep.subr.mxu0 0.0
  %3758 = vmatpush1.msra.mxu0 0.0
  %3759 = vmatprep.subr.mxu0 0.0
  %3760 = vmatpush1.msra.mxu0 0.0
  %3761 = vmatprep.subr.mxu0 0.0
  %3762 = vmatpush1.msra.mxu0 0.0
  %3763 = vmatprep.mubr.f32.mxu0 0.0
  %3764 = vmatmul.mubr.f32.gmra.mrb[0].mxu0 %v3522
  %v3765 = vpop.f32.mrb[0].mxu0
  %v3766 = vadd.f32 %v2863, %v3765
  %v3767 = vpop.f32.mrb[0].mxu0
  %3768 = vdwg.mxu0
  %v3769 = vadd.f32 %v3698, %v3766
  %v3770 = vxor.u32 %v3769, 2147483648
  %v3771 = vmul.f32 %v3770, 1.442695
  %v3772 = vpow.pop %v3771
  %v3773 = vadd.f32 %v3772, 1.0
  %v3774 = vrcp.pop %v3773
  %v3775 = vmul.f32 1.0, %v3774
  %3777 = vrot.lane.b32.xlu0 %v3766, 64
  %v3778 = vpop.permute.xlu0 %3777
  %v3780 = vmul.f32 %v3775, %v3778
  %3782 = vrot.lane.b32.xlu0 %v3780, 64
  %v3783 = vpop.permute.xlu0 %3782
  %v3785 = vadd.f32 %v3698, %v3783
  %v3786 = vtanh.pop %v3785
  %v3787 = vsub.f32 1.0, %v3775
  %3789 = vrot.lane.b32.xlu0 %v3786, 96
  %v3790 = vpop.permute.xlu0 %3789
  %v3792 = vmul.f32 %v3787, %v3790
  %v3793 = vmul.f32 %v3775, %v3518
  %v3794 = vadd.f32 %v3792, %v3793
  %3796 = vrot.lane.b32.xlu0 %v3794, 96
  %v3797 = vpop.permute.xlu0 %3796
  %v3798 = vsel %vm486, %v3797, 0
  %3800 = vmatprep.subr.mxu0 0.0
  %3801 = vmatpush1.msra.mxu0 %v2850
  %3802 = vmatprep.subr.mxu0 0.0
  %3803 = vmatpush1.msra.mxu0 %v2851
  %3804 = vmatprep.subr.mxu0 0.0
  %3805 = vmatpush1.msra.mxu0 %v2852
  %3806 = vmatprep.subr.mxu0 0.0
  %3807 = vmatpush1.msra.mxu0 %v2853
  %3808 = vmatprep.subr.mxu0 0.0
  %3809 = vmatpush1.msra.mxu0 0.0
  %3810 = vmatprep.subr.mxu0 0.0
  %3811 = vmatpush1.msra.mxu0 0.0
  %3812 = vmatprep.subr.mxu0 0.0
  %3813 = vmatpush1.msra.mxu0 0.0
  %3814 = vmatprep.subr.mxu0 0.0
  %3815 = vmatpush1.msra.mxu0 0.0
  %3816 = vmatprep.subr.mxu0 0.0
  %3817 = vmatpush1.msra.mxu0 0.0
  %3818 = vmatprep.subr.mxu0 0.0
  %3819 = vmatpush1.msra.mxu0 0.0
  %3820 = vmatprep.subr.mxu0 0.0
  %3821 = vmatpush1.msra.mxu0 0.0
  %3822 = vmatprep.subr.mxu0 0.0
  %3823 = vmatpush1.msra.mxu0 0.0
  %3824 = vmatprep.subr.mxu0 0.0
  %3825 = vmatpush1.msra.mxu0 0.0
  %3826 = vmatprep.subr.mxu0 0.0
  %3827 = vmatpush1.msra.mxu0 0.0
  %3828 = vmatprep.subr.mxu0 0.0
  %3829 = vmatpush1.msra.mxu0 0.0
  %3830 = vmatprep.subr.mxu0 0.0
  %3831 = vmatpush1.msra.mxu0 0.0
  %3832 = vmatprep.subr.mxu0 0.0
  %3833 = vmatpush1.msra.mxu0 0.0
  %3834 = vmatprep.subr.mxu0 0.0
  %3835 = vmatpush1.msra.mxu0 0.0
  %3836 = vmatprep.subr.mxu0 0.0
  %3837 = vmatpush1.msra.mxu0 0.0
  %3838 = vmatprep.subr.mxu0 0.0
  %3839 = vmatpush1.msra.mxu0 0.0
  %3840 = vmatprep.subr.mxu0 0.0
  %3841 = vmatpush1.msra.mxu0 0.0
  %3842 = vmatprep.subr.mxu0 0.0
  %3843 = vmatpush1.msra.mxu0 0.0
  %3844 = vmatprep.subr.mxu0 0.0
  %3845 = vmatpush1.msra.mxu0 0.0
  %3846 = vmatprep.subr.mxu0 0.0
  %3847 = vmatpush1.msra.mxu0 0.0
  %3848 = vmatprep.subr.mxu0 0.0
  %3849 = vmatpush1.msra.mxu0 0.0
  %3850 = vmatprep.subr.mxu0 0.0
  %3851 = vmatpush1.msra.mxu0 0.0
  %3852 = vmatprep.subr.mxu0 0.0
  %3853 = vmatpush1.msra.mxu0 0.0
  %3854 = vmatprep.subr.mxu0 0.0
  %3855 = vmatpush1.msra.mxu0 0.0
  %3856 = vmatprep.subr.mxu0 0.0
  %3857 = vmatpush1.msra.mxu0 0.0
  %3858 = vmatprep.subr.mxu0 0.0
  %3859 = vmatpush1.msra.mxu0 0.0
  %3860 = vmatprep.subr.mxu0 0.0
  %3861 = vmatpush1.msra.mxu0 0.0
  %3862 = vmatprep.subr.mxu0 0.0
  %3863 = vmatpush1.msra.mxu0 0.0
  %3864 = vmatprep.mubr.f32.mxu0 0.0
  %3865 = vmatmul.mubr.f32.gmra.mrb[0].mxu0 %v3798
  %v3866 = vpop.f32.mrb[0].mxu0
  %v3867 = vadd.f32 %v2963, %v3866
  %v3868 = vpop.f32.mrb[0].mxu0
  %3869 = vdwg.mxu0
  %v3870 = vsel %vm486, %v3694, 0
  %3872 = vmatprep.subr.mxu0 0.0
  %3873 = vmatpush1.msra.mxu0 %v2854
  %3874 = vmatprep.subr.mxu0 0.0
  %3875 = vmatpush1.msra.mxu0 %v2855
  %3876 = vmatprep.subr.mxu0 0.0
  %3877 = vmatpush1.msra.mxu0 %v2856
  %3878 = vmatprep.subr.mxu0 0.0
  %3879 = vmatpush1.msra.mxu0 %v2857
  %3880 = vmatprep.subr.mxu0 0.0
  %3881 = vmatpush1.msra.mxu0 0.0
  %3882 = vmatprep.subr.mxu0 0.0
  %3883 = vmatpush1.msra.mxu0 0.0
  %3884 = vmatprep.subr.mxu0 0.0
  %3885 = vmatpush1.msra.mxu0 0.0
  %3886 = vmatprep.subr.mxu0 0.0
  %3887 = vmatpush1.msra.mxu0 0.0
  %3888 = vmatprep.subr.mxu0 0.0
  %3889 = vmatpush1.msra.mxu0 0.0
  %3890 = vmatprep.subr.mxu0 0.0
  %3891 = vmatpush1.msra.mxu0 0.0
  %3892 = vmatprep.subr.mxu0 0.0
  %3893 = vmatpush1.msra.mxu0 0.0
  %3894 = vmatprep.subr.mxu0 0.0
  %3895 = vmatpush1.msra.mxu0 0.0
  %3896 = vmatprep.subr.mxu0 0.0
  %3897 = vmatpush1.msra.mxu0 0.0
  %3898 = vmatprep.subr.mxu0 0.0
  %3899 = vmatpush1.msra.mxu0 0.0
  %3900 = vmatprep.subr.mxu0 0.0
  %3901 = vmatpush1.msra.mxu0 0.0
  %3902 = vmatprep.subr.mxu0 0.0
  %3903 = vmatpush1.msra.mxu0 0.0
  %3904 = vmatprep.subr.mxu0 0.0
  %3905 = vmatpush1.msra.mxu0 0.0
  %3906 = vmatprep.subr.mxu0 0.0
  %3907 = vmatpush1.msra.mxu0 0.0
  %3908 = vmatprep.subr.mxu0 0.0
  %3909 = vmatpush1.msra.mxu0 0.0
  %3910 = vmatprep.subr.mxu0 0.0
  %3911 = vmatpush1.msra.mxu0 0.0
  %3912 = vmatprep.subr.mxu0 0.0
  %3913 = vmatpush1.msra.mxu0 0.0
  %3914 = vmatprep.subr.mxu0 0.0
  %3915 = vmatpush1.msra.mxu0 0.0
  %3916 = vmatprep.subr.mxu0 0.0
  %3917 = vmatpush1.msra.mxu0 0.0
  %3918 = vmatprep.subr.mxu0 0.0
  %3919 = vmatpush1.msra.mxu0 0.0
  %3920 = vmatprep.subr.mxu0 0.0
  %3921 = vmatpush1.msra.mxu0 0.0
  %3922 = vmatprep.subr.mxu0 0.0
  %3923 = vmatpush1.msra.mxu0 0.0
  %3924 = vmatprep.subr.mxu0 0.0
  %3925 = vmatpush1.msra.mxu0 0.0
  %3926 = vmatprep.subr.mxu0 0.0
  %3927 = vmatpush1.msra.mxu0 0.0
  %3928 = vmatprep.subr.mxu0 0.0
  %3929 = vmatpush1.msra.mxu0 0.0
  %3930 = vmatprep.subr.mxu0 0.0
  %3931 = vmatpush1.msra.mxu0 0.0
  %3932 = vmatprep.subr.mxu0 0.0
  %3933 = vmatpush1.msra.mxu0 0.0
  %3934 = vmatprep.subr.mxu0 0.0
  %3935 = vmatpush1.msra.mxu0 0.0
  %3936 = vmatprep.mubr.f32.mxu0 0.0
  %3937 = vmatmul.mubr.f32.gmra.mrb[0].mxu0 %v3870
  %v3938 = vpop.f32.mrb[0].mxu0
  %v3939 = vadd.f32 %v3042, %v3938
  %v3940 = vpop.f32.mrb[0].mxu0
  %3941 = vdwg.mxu0
  %v3942 = vadd.f32 %v3867, %v3939
  %v3943 = vxor.u32 %v3942, 2147483648
  %v3944 = vmul.f32 %v3943, 1.442695
  %v3945 = vpow.pop %v3944
  %v3946 = vadd.f32 %v3945, 1.0
  %v3947 = vrcp.pop %v3946
  %v3948 = vmul.f32 1.0, %v3947
  %3950 = vrot.lane.b32.xlu0 %v3939, 64
  %v3951 = vpop.permute.xlu0 %3950
  %v3953 = vmul.f32 %v3948, %v3951
  %3955 = vrot.lane.b32.xlu0 %v3953, 64
  %v3956 = vpop.permute.xlu0 %3955
  %v3958 = vadd.f32 %v3867, %v3956
  %v3959 = vtanh.pop %v3958
  %v3960 = vsub.f32 1.0, %v3948
  %3962 = vrot.lane.b32.xlu0 %v3959, 96
  %v3963 = vpop.permute.xlu0 %3962
  %v3965 = vmul.f32 %v3960, %v3963
  %v3966 = vmul.f32 %v3948, %v3691
  %v3967 = vadd.f32 %v3965, %v3966
  %3969 = vrot.lane.b32.xlu0 %v3967, 96
  %v3970 = vpop.permute.xlu0 %3969
  %3972 = vst.msk [vmem:[#allocation3 + $0x6] sm:$0x3] %vm3143, %v3970
  %v3973 = vld [vmem:[#allocation2 + $0x8] sm:$0x3]
  %v3974 = vadd.f32 %v3973, %v2843
  %3975 = vmatprep.subr.mxu0 0.0
  %3976 = vmatpush1.msra.mxu0 %v2846
  %3977 = vmatprep.subr.mxu0 0.0
  %3978 = vmatpush1.msra.mxu0 %v2847
  %3979 = vmatprep.subr.mxu0 0.0
  %3980 = vmatpush1.msra.mxu0 %v2848
  %3981 = vmatprep.subr.mxu0 0.0
  %3982 = vmatpush1.msra.mxu0 %v2849
  %3983 = vmatprep.subr.mxu0 0.0
  %3984 = vmatpush1.msra.mxu0 0.0
  %3985 = vmatprep.subr.mxu0 0.0
  %3986 = vmatpush1.msra.mxu0 0.0
  %3987 = vmatprep.subr.mxu0 0.0
  %3988 = vmatpush1.msra.mxu0 0.0
  %3989 = vmatprep.subr.mxu0 0.0
  %3990 = vmatpush1.msra.mxu0 0.0
  %3991 = vmatprep.subr.mxu0 0.0
  %3992 = vmatpush1.msra.mxu0 0.0
  %3993 = vmatprep.subr.mxu0 0.0
  %3994 = vmatpush1.msra.mxu0 0.0
  %3995 = vmatprep.subr.mxu0 0.0
  %3996 = vmatpush1.msra.mxu0 0.0
  %3997 = vmatprep.subr.mxu0 0.0
  %3998 = vmatpush1.msra.mxu0 0.0
  %3999 = vmatprep.subr.mxu0 0.0
  %4000 = vmatpush1.msra.mxu0 0.0
  %4001 = vmatprep.subr.mxu0 0.0
  %4002 = vmatpush1.msra.mxu0 0.0
  %4003 = vmatprep.subr.mxu0 0.0
  %4004 = vmatpush1.msra.mxu0 0.0
  %4005 = vmatprep.subr.mxu0 0.0
  %4006 = vmatpush1.msra.mxu0 0.0
  %4007 = vmatprep.subr.mxu0 0.0
  %4008 = vmatpush1.msra.mxu0 0.0
  %4009 = vmatprep.subr.mxu0 0.0
  %4010 = vmatpush1.msra.mxu0 0.0
  %4011 = vmatprep.subr.mxu0 0.0
  %4012 = vmatpush1.msra.mxu0 0.0
  %4013 = vmatprep.subr.mxu0 0.0
  %4014 = vmatpush1.msra.mxu0 0.0
  %4015 = vmatprep.subr.mxu0 0.0
  %4016 = vmatpush1.msra.mxu0 0.0
  %4017 = vmatprep.subr.mxu0 0.0
  %4018 = vmatpush1.msra.mxu0 0.0
  %4019 = vmatprep.subr.mxu0 0.0
  %4020 = vmatpush1.msra.mxu0 0.0
  %4021 = vmatprep.subr.mxu0 0.0
  %4022 = vmatpush1.msra.mxu0 0.0
  %4023 = vmatprep.subr.mxu0 0.0
  %4024 = vmatpush1.msra.mxu0 0.0
  %4025 = vmatprep.subr.mxu0 0.0
  %4026 = vmatpush1.msra.mxu0 0.0
  %4027 = vmatprep.subr.mxu0 0.0
  %4028 = vmatpush1.msra.mxu0 0.0
  %4029 = vmatprep.subr.mxu0 0.0
  %4030 = vmatpush1.msra.mxu0 0.0
  %4031 = vmatprep.subr.mxu0 0.0
  %4032 = vmatpush1.msra.mxu0 0.0
  %4033 = vmatprep.subr.mxu0 0.0
  %4034 = vmatpush1.msra.mxu0 0.0
  %4035 = vmatprep.subr.mxu0 0.0
  %4036 = vmatpush1.msra.mxu0 0.0
  %4037 = vmatprep.subr.mxu0 0.0
  %4038 = vmatpush1.msra.mxu0 0.0
  %4039 = vmatprep.mubr.f32.mxu0 0.0
  %4040 = vmatmul.mubr.f32.gmra.mrb[0].mxu0 %v3798
  %v4041 = vpop.f32.mrb[0].mxu0
  %v4042 = vadd.f32 %v2863, %v4041
  %v4043 = vpop.f32.mrb[0].mxu0
  %4044 = vdwg.mxu0
  %v4045 = vadd.f32 %v3974, %v4042
  %v4046 = vxor.u32 %v4045, 2147483648
  %v4047 = vmul.f32 %v4046, 1.442695
  %v4048 = vpow.pop %v4047
  %v4049 = vadd.f32 %v4048, 1.0
  %v4050 = vrcp.pop %v4049
  %v4051 = vmul.f32 1.0, %v4050
  %4053 = vrot.lane.b32.xlu0 %v4042, 64
  %v4054 = vpop.permute.xlu0 %4053
  %v4056 = vmul.f32 %v4051, %v4054
  %4058 = vrot.lane.b32.xlu0 %v4056, 64
  %v4059 = vpop.permute.xlu0 %4058
  %v4061 = vadd.f32 %v3974, %v4059
  %v4062 = vtanh.pop %v4061
  %v4063 = vsub.f32 1.0, %v4051
  %4065 = vrot.lane.b32.xlu0 %v4062, 96
  %v4066 = vpop.permute.xlu0 %4065
  %v4068 = vmul.f32 %v4063, %v4066
  %v4069 = vmul.f32 %v4051, %v3794
  %v4070 = vadd.f32 %v4068, %v4069
  %4072 = vrot.lane.b32.xlu0 %v4070, 96
  %v4073 = vpop.permute.xlu0 %4072
  %v4074 = vsel %vm486, %v4073, 0
  %4076 = vmatprep.subr.mxu0 0.0
  %4077 = vmatpush1.msra.mxu0 %v2850
  %4078 = vmatprep.subr.mxu0 0.0
  %4079 = vmatpush1.msra.mxu0 %v2851
  %4080 = vmatprep.subr.mxu0 0.0
  %4081 = vmatpush1.msra.mxu0 %v2852
  %4082 = vmatprep.subr.mxu0 0.0
  %4083 = vmatpush1.msra.mxu0 %v2853
  %4084 = vmatprep.subr.mxu0 0.0
  %4085 = vmatpush1.msra.mxu0 0.0
  %4086 = vmatprep.subr.mxu0 0.0
  %4087 = vmatpush1.msra.mxu0 0.0
  %4088 = vmatprep.subr.mxu0 0.0
  %4089 = vmatpush1.msra.mxu0 0.0
  %4090 = vmatprep.subr.mxu0 0.0
  %4091 = vmatpush1.msra.mxu0 0.0
  %4092 = vmatprep.subr.mxu0 0.0
  %4093 = vmatpush1.msra.mxu0 0.0
  %4094 = vmatprep.subr.mxu0 0.0
  %4095 = vmatpush1.msra.mxu0 0.0
  %4096 = vmatprep.subr.mxu0 0.0
  %4097 = vmatpush1.msra.mxu0 0.0
  %4098 = vmatprep.subr.mxu0 0.0
  %4099 = vmatpush1.msra.mxu0 0.0
  %4100 = vmatprep.subr.mxu0 0.0
  %4101 = vmatpush1.msra.mxu0 0.0
  %4102 = vmatprep.subr.mxu0 0.0
  %4103 = vmatpush1.msra.mxu0 0.0
  %4104 = vmatprep.subr.mxu0 0.0
  %4105 = vmatpush1.msra.mxu0 0.0
  %4106 = vmatprep.subr.mxu0 0.0
  %4107 = vmatpush1.msra.mxu0 0.0
  %4108 = vmatprep.subr.mxu0 0.0
  %4109 = vmatpush1.msra.mxu0 0.0
  %4110 = vmatprep.subr.mxu0 0.0
  %4111 = vmatpush1.msra.mxu0 0.0
  %4112 = vmatprep.subr.mxu0 0.0
  %4113 = vmatpush1.msra.mxu0 0.0
  %4114 = vmatprep.subr.mxu0 0.0
  %4115 = vmatpush1.msra.mxu0 0.0
  %4116 = vmatprep.subr.mxu0 0.0
  %4117 = vmatpush1.msra.mxu0 0.0
  %4118 = vmatprep.subr.mxu0 0.0
  %4119 = vmatpush1.msra.mxu0 0.0
  %4120 = vmatprep.subr.mxu0 0.0
  %4121 = vmatpush1.msra.mxu0 0.0
  %4122 = vmatprep.subr.mxu0 0.0
  %4123 = vmatpush1.msra.mxu0 0.0
  %4124 = vmatprep.subr.mxu0 0.0
  %4125 = vmatpush1.msra.mxu0 0.0
  %4126 = vmatprep.subr.mxu0 0.0
  %4127 = vmatpush1.msra.mxu0 0.0
  %4128 = vmatprep.subr.mxu0 0.0
  %4129 = vmatpush1.msra.mxu0 0.0
  %4130 = vmatprep.subr.mxu0 0.0
  %4131 = vmatpush1.msra.mxu0 0.0
  %4132 = vmatprep.subr.mxu0 0.0
  %4133 = vmatpush1.msra.mxu0 0.0
  %4134 = vmatprep.subr.mxu0 0.0
  %4135 = vmatpush1.msra.mxu0 0.0
  %4136 = vmatprep.subr.mxu0 0.0
  %4137 = vmatpush1.msra.mxu0 0.0
  %4138 = vmatprep.subr.mxu0 0.0
  %4139 = vmatpush1.msra.mxu0 0.0
  %4140 = vmatprep.mubr.f32.mxu0 0.0
  %4141 = vmatmul.mubr.f32.gmra.mrb[0].mxu0 %v4074
  %v4142 = vpop.f32.mrb[0].mxu0
  %v4143 = vadd.f32 %v2963, %v4142
  %v4144 = vpop.f32.mrb[0].mxu0
  %4145 = vdwg.mxu0
  %v4146 = vsel %vm486, %v3970, 0
  %4148 = vmatprep.subr.mxu0 0.0
  %4149 = vmatpush1.msra.mxu0 %v2854
  %4150 = vmatprep.subr.mxu0 0.0
  %4151 = vmatpush1.msra.mxu0 %v2855
  %4152 = vmatprep.subr.mxu0 0.0
  %4153 = vmatpush1.msra.mxu0 %v2856
  %4154 = vmatprep.subr.mxu0 0.0
  %4155 = vmatpush1.msra.mxu0 %v2857
  %4156 = vmatprep.subr.mxu0 0.0
  %4157 = vmatpush1.msra.mxu0 0.0
  %4158 = vmatprep.subr.mxu0 0.0
  %4159 = vmatpush1.msra.mxu0 0.0
  %4160 = vmatprep.subr.mxu0 0.0
  %4161 = vmatpush1.msra.mxu0 0.0
  %4162 = vmatprep.subr.mxu0 0.0
  %4163 = vmatpush1.msra.mxu0 0.0
  %4164 = vmatprep.subr.mxu0 0.0
  %4165 = vmatpush1.msra.mxu0 0.0
  %4166 = vmatprep.subr.mxu0 0.0
  %4167 = vmatpush1.msra.mxu0 0.0
  %4168 = vmatprep.subr.mxu0 0.0
  %4169 = vmatpush1.msra.mxu0 0.0
  %4170 = vmatprep.subr.mxu0 0.0
  %4171 = vmatpush1.msra.mxu0 0.0
  %4172 = vmatprep.subr.mxu0 0.0
  %4173 = vmatpush1.msra.mxu0 0.0
  %4174 = vmatprep.subr.mxu0 0.0
  %4175 = vmatpush1.msra.mxu0 0.0
  %4176 = vmatprep.subr.mxu0 0.0
  %4177 = vmatpush1.msra.mxu0 0.0
  %4178 = vmatprep.subr.mxu0 0.0
  %4179 = vmatpush1.msra.mxu0 0.0
  %4180 = vmatprep.subr.mxu0 0.0
  %4181 = vmatpush1.msra.mxu0 0.0
  %4182 = vmatprep.subr.mxu0 0.0
  %4183 = vmatpush1.msra.mxu0 0.0
  %4184 = vmatprep.subr.mxu0 0.0
  %4185 = vmatpush1.msra.mxu0 0.0
  %4186 = vmatprep.subr.mxu0 0.0
  %4187 = vmatpush1.msra.mxu0 0.0
  %4188 = vmatprep.subr.mxu0 0.0
  %4189 = vmatpush1.msra.mxu0 0.0
  %4190 = vmatprep.subr.mxu0 0.0
  %4191 = vmatpush1.msra.mxu0 0.0
  %4192 = vmatprep.subr.mxu0 0.0
  %4193 = vmatpush1.msra.mxu0 0.0
  %4194 = vmatprep.subr.mxu0 0.0
  %4195 = vmatpush1.msra.mxu0 0.0
  %4196 = vmatprep.subr.mxu0 0.0
  %4197 = vmatpush1.msra.mxu0 0.0
  %4198 = vmatprep.subr.mxu0 0.0
  %4199 = vmatpush1.msra.mxu0 0.0
  %4200 = vmatprep.subr.mxu0 0.0
  %4201 = vmatpush1.msra.mxu0 0.0
  %4202 = vmatprep.subr.mxu0 0.0
  %4203 = vmatpush1.msra.mxu0 0.0
  %4204 = vmatprep.subr.mxu0 0.0
  %4205 = vmatpush1.msra.mxu0 0.0
  %4206 = vmatprep.subr.mxu0 0.0
  %4207 = vmatpush1.msra.mxu0 0.0
  %4208 = vmatprep.subr.mxu0 0.0
  %4209 = vmatpush1.msra.mxu0 0.0
  %4210 = vmatprep.subr.mxu0 0.0
  %4211 = vmatpush1.msra.mxu0 0.0
  %4212 = vmatprep.mubr.f32.mxu0 0.0
  %4213 = vmatmul.mubr.f32.gmra.mrb[0].mxu0 %v4146
  %v4214 = vpop.f32.mrb[0].mxu0
  %v4215 = vadd.f32 %v3042, %v4214
  %v4216 = vpop.f32.mrb[0].mxu0
  %4217 = vdwg.mxu0
  %v4218 = vadd.f32 %v4143, %v4215
  %v4219 = vxor.u32 %v4218, 2147483648
  %v4220 = vmul.f32 %v4219, 1.442695
  %v4221 = vpow.pop %v4220
  %v4222 = vadd.f32 %v4221, 1.0
  %v4223 = vrcp.pop %v4222
  %v4224 = vmul.f32 1.0, %v4223
  %4226 = vrot.lane.b32.xlu0 %v4215, 64
  %v4227 = vpop.permute.xlu0 %4226
  %v4229 = vmul.f32 %v4224, %v4227
  %4231 = vrot.lane.b32.xlu0 %v4229, 64
  %v4232 = vpop.permute.xlu0 %4231
  %v4234 = vadd.f32 %v4143, %v4232
  %v4235 = vtanh.pop %v4234
  %v4236 = vsub.f32 1.0, %v4224
  %4238 = vrot.lane.b32.xlu0 %v4235, 96
  %v4239 = vpop.permute.xlu0 %4238
  %v4241 = vmul.f32 %v4236, %v4239
  %v4242 = vmul.f32 %v4224, %v3967
  %v4243 = vadd.f32 %v4241, %v4242
  %4245 = vrot.lane.b32.xlu0 %v4243, 96
  %v4246 = vpop.permute.xlu0 %4245
  %4248 = vst.msk [vmem:[#allocation3 + $0x8] sm:$0x3] %vm3143, %v4246
  %v4249 = vld [vmem:[#allocation2 + $0xa] sm:$0x3]
  %v4250 = vadd.f32 %v4249, %v2843
  %4251 = vmatprep.subr.mxu0 0.0
  %4252 = vmatpush1.msra.mxu0 %v2846
  %4253 = vmatprep.subr.mxu0 0.0
  %4254 = vmatpush1.msra.mxu0 %v2847
  %4255 = vmatprep.subr.mxu0 0.0
  %4256 = vmatpush1.msra.mxu0 %v2848
  %4257 = vmatprep.subr.mxu0 0.0
  %4258 = vmatpush1.msra.mxu0 %v2849
  %4259 = vmatprep.subr.mxu0 0.0
  %4260 = vmatpush1.msra.mxu0 0.0
  %4261 = vmatprep.subr.mxu0 0.0
  %4262 = vmatpush1.msra.mxu0 0.0
  %4263 = vmatprep.subr.mxu0 0.0
  %4264 = vmatpush1.msra.mxu0 0.0
  %4265 = vmatprep.subr.mxu0 0.0
  %4266 = vmatpush1.msra.mxu0 0.0
  %4267 = vmatprep.subr.mxu0 0.0
  %4268 = vmatpush1.msra.mxu0 0.0
  %4269 = vmatprep.subr.mxu0 0.0
  %4270 = vmatpush1.msra.mxu0 0.0
  %4271 = vmatprep.subr.mxu0 0.0
  %4272 = vmatpush1.msra.mxu0 0.0
  %4273 = vmatprep.subr.mxu0 0.0
  %4274 = vmatpush1.msra.mxu0 0.0
  %4275 = vmatprep.subr.mxu0 0.0
  %4276 = vmatpush1.msra.mxu0 0.0
  %4277 = vmatprep.subr.mxu0 0.0
  %4278 = vmatpush1.msra.mxu0 0.0
  %4279 = vmatprep.subr.mxu0 0.0
  %4280 = vmatpush1.msra.mxu0 0.0
  %4281 = vmatprep.subr.mxu0 0.0
  %4282 = vmatpush1.msra.mxu0 0.0
  %4283 = vmatprep.subr.mxu0 0.0
  %4284 = vmatpush1.msra.mxu0 0.0
  %4285 = vmatprep.subr.mxu0 0.0
  %4286 = vmatpush1.msra.mxu0 0.0
  %4287 = vmatprep.subr.mxu0 0.0
  %4288 = vmatpush1.msra.mxu0 0.0
  %4289 = vmatprep.subr.mxu0 0.0
  %4290 = vmatpush1.msra.mxu0 0.0
  %4291 = vmatprep.subr.mxu0 0.0
  %4292 = vmatpush1.msra.mxu0 0.0
  %4293 = vmatprep.subr.mxu0 0.0
  %4294 = vmatpush1.msra.mxu0 0.0
  %4295 = vmatprep.subr.mxu0 0.0
  %4296 = vmatpush1.msra.mxu0 0.0
  %4297 = vmatprep.subr.mxu0 0.0
  %4298 = vmatpush1.msra.mxu0 0.0
  %4299 = vmatprep.subr.mxu0 0.0
  %4300 = vmatpush1.msra.mxu0 0.0
  %4301 = vmatprep.subr.mxu0 0.0
  %4302 = vmatpush1.msra.mxu0 0.0
  %4303 = vmatprep.subr.mxu0 0.0
  %4304 = vmatpush1.msra.mxu0 0.0
  %4305 = vmatprep.subr.mxu0 0.0
  %4306 = vmatpush1.msra.mxu0 0.0
  %4307 = vmatprep.subr.mxu0 0.0
  %4308 = vmatpush1.msra.mxu0 0.0
  %4309 = vmatprep.subr.mxu0 0.0
  %4310 = vmatpush1.msra.mxu0 0.0
  %4311 = vmatprep.subr.mxu0 0.0
  %4312 = vmatpush1.msra.mxu0 0.0
  %4313 = vmatprep.subr.mxu0 0.0
  %4314 = vmatpush1.msra.mxu0 0.0
  %4315 = vmatprep.mubr.f32.mxu0 0.0
  %4316 = vmatmul.mubr.f32.gmra.mrb[0].mxu0 %v4074
  %v4317 = vpop.f32.mrb[0].mxu0
  %v4318 = vadd.f32 %v2863, %v4317
  %v4319 = vpop.f32.mrb[0].mxu0
  %4320 = vdwg.mxu0
  %v4321 = vadd.f32 %v4250, %v4318
  %v4322 = vxor.u32 %v4321, 2147483648
  %v4323 = vmul.f32 %v4322, 1.442695
  %v4324 = vpow.pop %v4323
  %v4325 = vadd.f32 %v4324, 1.0
  %v4326 = vrcp.pop %v4325
  %v4327 = vmul.f32 1.0, %v4326
  %4329 = vrot.lane.b32.xlu0 %v4318, 64
  %v4330 = vpop.permute.xlu0 %4329
  %v4332 = vmul.f32 %v4327, %v4330
  %4334 = vrot.lane.b32.xlu0 %v4332, 64
  %v4335 = vpop.permute.xlu0 %4334
  %v4337 = vadd.f32 %v4250, %v4335
  %v4338 = vtanh.pop %v4337
  %v4339 = vsub.f32 1.0, %v4327
  %4341 = vrot.lane.b32.xlu0 %v4338, 96
  %v4342 = vpop.permute.xlu0 %4341
  %v4344 = vmul.f32 %v4339, %v4342
  %v4345 = vmul.f32 %v4327, %v4070
  %v4346 = vadd.f32 %v4344, %v4345
  %4348 = vrot.lane.b32.xlu0 %v4346, 96
  %v4349 = vpop.permute.xlu0 %4348
  %v4350 = vsel %vm486, %v4349, 0
  %4352 = vmatprep.subr.mxu0 0.0
  %4353 = vmatpush1.msra.mxu0 %v2850
  %4354 = vmatprep.subr.mxu0 0.0
  %4355 = vmatpush1.msra.mxu0 %v2851
  %4356 = vmatprep.subr.mxu0 0.0
  %4357 = vmatpush1.msra.mxu0 %v2852
  %4358 = vmatprep.subr.mxu0 0.0
  %4359 = vmatpush1.msra.mxu0 %v2853
  %4360 = vmatprep.subr.mxu0 0.0
  %4361 = vmatpush1.msra.mxu0 0.0
  %4362 = vmatprep.subr.mxu0 0.0
  %4363 = vmatpush1.msra.mxu0 0.0
  %4364 = vmatprep.subr.mxu0 0.0
  %4365 = vmatpush1.msra.mxu0 0.0
  %4366 = vmatprep.subr.mxu0 0.0
  %4367 = vmatpush1.msra.mxu0 0.0
  %4368 = vmatprep.subr.mxu0 0.0
  %4369 = vmatpush1.msra.mxu0 0.0
  %4370 = vmatprep.subr.mxu0 0.0
  %4371 = vmatpush1.msra.mxu0 0.0
  %4372 = vmatprep.subr.mxu0 0.0
  %4373 = vmatpush1.msra.mxu0 0.0
  %4374 = vmatprep.subr.mxu0 0.0
  %4375 = vmatpush1.msra.mxu0 0.0
  %4376 = vmatprep.subr.mxu0 0.0
  %4377 = vmatpush1.msra.mxu0 0.0
  %4378 = vmatprep.subr.mxu0 0.0
  %4379 = vmatpush1.msra.mxu0 0.0
  %4380 = vmatprep.subr.mxu0 0.0
  %4381 = vmatpush1.msra.mxu0 0.0
  %4382 = vmatprep.subr.mxu0 0.0
  %4383 = vmatpush1.msra.mxu0 0.0
  %4384 = vmatprep.subr.mxu0 0.0
  %4385 = vmatpush1.msra.mxu0 0.0
  %4386 = vmatprep.subr.mxu0 0.0
  %4387 = vmatpush1.msra.mxu0 0.0
  %4388 = vmatprep.subr.mxu0 0.0
  %4389 = vmatpush1.msra.mxu0 0.0
  %4390 = vmatprep.subr.mxu0 0.0
  %4391 = vmatpush1.msra.mxu0 0.0
  %4392 = vmatprep.subr.mxu0 0.0
  %4393 = vmatpush1.msra.mxu0 0.0
  %4394 = vmatprep.subr.mxu0 0.0
  %4395 = vmatpush1.msra.mxu0 0.0
  %4396 = vmatprep.subr.mxu0 0.0
  %4397 = vmatpush1.msra.mxu0 0.0
  %4398 = vmatprep.subr.mxu0 0.0
  %4399 = vmatpush1.msra.mxu0 0.0
  %4400 = vmatprep.subr.mxu0 0.0
  %4401 = vmatpush1.msra.mxu0 0.0
  %4402 = vmatprep.subr.mxu0 0.0
  %4403 = vmatpush1.msra.mxu0 0.0
  %4404 = vmatprep.subr.mxu0 0.0
  %4405 = vmatpush1.msra.mxu0 0.0
  %4406 = vmatprep.subr.mxu0 0.0
  %4407 = vmatpush1.msra.mxu0 0.0
  %4408 = vmatprep.subr.mxu0 0.0
  %4409 = vmatpush1.msra.mxu0 0.0
  %4410 = vmatprep.subr.mxu0 0.0
  %4411 = vmatpush1.msra.mxu0 0.0
  %4412 = vmatprep.subr.mxu0 0.0
  %4413 = vmatpush1.msra.mxu0 0.0
  %4414 = vmatprep.subr.mxu0 0.0
  %4415 = vmatpush1.msra.mxu0 0.0
  %4416 = vmatprep.mubr.f32.mxu0 0.0
  %4417 = vmatmul.mubr.f32.gmra.mrb[0].mxu0 %v4350
  %v4418 = vpop.f32.mrb[0].mxu0
  %v4419 = vadd.f32 %v2963, %v4418
  %v4420 = vpop.f32.mrb[0].mxu0
  %4421 = vdwg.mxu0
  %v4422 = vsel %vm486, %v4246, 0
  %4424 = vmatprep.subr.mxu0 0.0
  %4425 = vmatpush1.msra.mxu0 %v2854
  %4426 = vmatprep.subr.mxu0 0.0
  %4427 = vmatpush1.msra.mxu0 %v2855
  %4428 = vmatprep.subr.mxu0 0.0
  %4429 = vmatpush1.msra.mxu0 %v2856
  %4430 = vmatprep.subr.mxu0 0.0
  %4431 = vmatpush1.msra.mxu0 %v2857
  %4432 = vmatprep.subr.mxu0 0.0
  %4433 = vmatpush1.msra.mxu0 0.0
  %4434 = vmatprep.subr.mxu0 0.0
  %4435 = vmatpush1.msra.mxu0 0.0
  %4436 = vmatprep.subr.mxu0 0.0
  %4437 = vmatpush1.msra.mxu0 0.0
  %4438 = vmatprep.subr.mxu0 0.0
  %4439 = vmatpush1.msra.mxu0 0.0
  %4440 = vmatprep.subr.mxu0 0.0
  %4441 = vmatpush1.msra.mxu0 0.0
  %4442 = vmatprep.subr.mxu0 0.0
  %4443 = vmatpush1.msra.mxu0 0.0
  %4444 = vmatprep.subr.mxu0 0.0
  %4445 = vmatpush1.msra.mxu0 0.0
  %4446 = vmatprep.subr.mxu0 0.0
  %4447 = vmatpush1.msra.mxu0 0.0
  %4448 = vmatprep.subr.mxu0 0.0
  %4449 = vmatpush1.msra.mxu0 0.0
  %4450 = vmatprep.subr.mxu0 0.0
  %4451 = vmatpush1.msra.mxu0 0.0
  %4452 = vmatprep.subr.mxu0 0.0
  %4453 = vmatpush1.msra.mxu0 0.0
  %4454 = vmatprep.subr.mxu0 0.0
  %4455 = vmatpush1.msra.mxu0 0.0
  %4456 = vmatprep.subr.mxu0 0.0
  %4457 = vmatpush1.msra.mxu0 0.0
  %4458 = vmatprep.subr.mxu0 0.0
  %4459 = vmatpush1.msra.mxu0 0.0
  %4460 = vmatprep.subr.mxu0 0.0
  %4461 = vmatpush1.msra.mxu0 0.0
  %4462 = vmatprep.subr.mxu0 0.0
  %4463 = vmatpush1.msra.mxu0 0.0
  %4464 = vmatprep.subr.mxu0 0.0
  %4465 = vmatpush1.msra.mxu0 0.0
  %4466 = vmatprep.subr.mxu0 0.0
  %4467 = vmatpush1.msra.mxu0 0.0
  %4468 = vmatprep.subr.mxu0 0.0
  %4469 = vmatpush1.msra.mxu0 0.0
  %4470 = vmatprep.subr.mxu0 0.0
  %4471 = vmatpush1.msra.mxu0 0.0
  %4472 = vmatprep.subr.mxu0 0.0
  %4473 = vmatpush1.msra.mxu0 0.0
  %4474 = vmatprep.subr.mxu0 0.0
  %4475 = vmatpush1.msra.mxu0 0.0
  %4476 = vmatprep.subr.mxu0 0.0
  %4477 = vmatpush1.msra.mxu0 0.0
  %4478 = vmatprep.subr.mxu0 0.0
  %4479 = vmatpush1.msra.mxu0 0.0
  %4480 = vmatprep.subr.mxu0 0.0
  %4481 = vmatpush1.msra.mxu0 0.0
  %4482 = vmatprep.subr.mxu0 0.0
  %4483 = vmatpush1.msra.mxu0 0.0
  %4484 = vmatprep.subr.mxu0 0.0
  %4485 = vmatpush1.msra.mxu0 0.0
  %4486 = vmatprep.subr.mxu0 0.0
  %4487 = vmatpush1.msra.mxu0 0.0
  %4488 = vmatprep.mubr.f32.mxu0 0.0
  %4489 = vmatmul.mubr.f32.gmra.mrb[0].mxu0 %v4422
  %v4490 = vpop.f32.mrb[0].mxu0
  %v4491 = vadd.f32 %v3042, %v4490
  %v4492 = vpop.f32.mrb[0].mxu0
  %4493 = vdwg.mxu0
  %v4494 = vadd.f32 %v4419, %v4491
  %v4495 = vxor.u32 %v4494, 2147483648
  %v4496 = vmul.f32 %v4495, 1.442695
  %v4497 = vpow.pop %v4496
  %v4498 = vadd.f32 %v4497, 1.0
  %v4499 = vrcp.pop %v4498
  %v4500 = vmul.f32 1.0, %v4499
  %4502 = vrot.lane.b32.xlu0 %v4491, 64
  %v4503 = vpop.permute.xlu0 %4502
  %v4505 = vmul.f32 %v4500, %v4503
  %4507 = vrot.lane.b32.xlu0 %v4505, 64
  %v4508 = vpop.permute.xlu0 %4507
  %v4510 = vadd.f32 %v4419, %v4508
  %v4511 = vtanh.pop %v4510
  %v4512 = vsub.f32 1.0, %v4500
  %4514 = vrot.lane.b32.xlu0 %v4511, 96
  %v4515 = vpop.permute.xlu0 %4514
  %v4517 = vmul.f32 %v4512, %v4515
  %v4518 = vmul.f32 %v4500, %v4243
  %v4519 = vadd.f32 %v4517, %v4518
  %4521 = vrot.lane.b32.xlu0 %v4519, 96
  %v4522 = vpop.permute.xlu0 %4521
  %4524 = vst.msk [vmem:[#allocation3 + $0xa] sm:$0x3] %vm3143, %v4522
  %v4525 = vld [vmem:[#allocation2 + $0xc] sm:$0x3]
  %v4526 = vadd.f32 %v4525, %v2843
  %4527 = vmatprep.subr.mxu0 0.0
  %4528 = vmatpush1.msra.mxu0 %v2846
  %4529 = vmatprep.subr.mxu0 0.0
  %4530 = vmatpush1.msra.mxu0 %v2847
  %4531 = vmatprep.subr.mxu0 0.0
  %4532 = vmatpush1.msra.mxu0 %v2848
  %4533 = vmatprep.subr.mxu0 0.0
  %4534 = vmatpush1.msra.mxu0 %v2849
  %4535 = vmatprep.subr.mxu0 0.0
  %4536 = vmatpush1.msra.mxu0 0.0
  %4537 = vmatprep.subr.mxu0 0.0
  %4538 = vmatpush1.msra.mxu0 0.0
  %4539 = vmatprep.subr.mxu0 0.0
  %4540 = vmatpush1.msra.mxu0 0.0
  %4541 = vmatprep.subr.mxu0 0.0
  %4542 = vmatpush1.msra.mxu0 0.0
  %4543 = vmatprep.subr.mxu0 0.0
  %4544 = vmatpush1.msra.mxu0 0.0
  %4545 = vmatprep.subr.mxu0 0.0
  %4546 = vmatpush1.msra.mxu0 0.0
  %4547 = vmatprep.subr.mxu0 0.0
  %4548 = vmatpush1.msra.mxu0 0.0
  %4549 = vmatprep.subr.mxu0 0.0
  %4550 = vmatpush1.msra.mxu0 0.0
  %4551 = vmatprep.subr.mxu0 0.0
  %4552 = vmatpush1.msra.mxu0 0.0
  %4553 = vmatprep.subr.mxu0 0.0
  %4554 = vmatpush1.msra.mxu0 0.0
  %4555 = vmatprep.subr.mxu0 0.0
  %4556 = vmatpush1.msra.mxu0 0.0
  %4557 = vmatprep.subr.mxu0 0.0
  %4558 = vmatpush1.msra.mxu0 0.0
  %4559 = vmatprep.subr.mxu0 0.0
  %4560 = vmatpush1.msra.mxu0 0.0
  %4561 = vmatprep.subr.mxu0 0.0
  %4562 = vmatpush1.msra.mxu0 0.0
  %4563 = vmatprep.subr.mxu0 0.0
  %4564 = vmatpush1.msra.mxu0 0.0
  %4565 = vmatprep.subr.mxu0 0.0
  %4566 = vmatpush1.msra.mxu0 0.0
  %4567 = vmatprep.subr.mxu0 0.0
  %4568 = vmatpush1.msra.mxu0 0.0
  %4569 = vmatprep.subr.mxu0 0.0
  %4570 = vmatpush1.msra.mxu0 0.0
  %4571 = vmatprep.subr.mxu0 0.0
  %4572 = vmatpush1.msra.mxu0 0.0
  %4573 = vmatprep.subr.mxu0 0.0
  %4574 = vmatpush1.msra.mxu0 0.0
  %4575 = vmatprep.subr.mxu0 0.0
  %4576 = vmatpush1.msra.mxu0 0.0
  %4577 = vmatprep.subr.mxu0 0.0
  %4578 = vmatpush1.msra.mxu0 0.0
  %4579 = vmatprep.subr.mxu0 0.0
  %4580 = vmatpush1.msra.mxu0 0.0
  %4581 = vmatprep.subr.mxu0 0.0
  %4582 = vmatpush1.msra.mxu0 0.0
  %4583 = vmatprep.subr.mxu0 0.0
  %4584 = vmatpush1.msra.mxu0 0.0
  %4585 = vmatprep.subr.mxu0 0.0
  %4586 = vmatpush1.msra.mxu0 0.0
  %4587 = vmatprep.subr.mxu0 0.0
  %4588 = vmatpush1.msra.mxu0 0.0
  %4589 = vmatprep.subr.mxu0 0.0
  %4590 = vmatpush1.msra.mxu0 0.0
  %4591 = vmatprep.mubr.f32.mxu0 0.0
  %4592 = vmatmul.mubr.f32.gmra.mrb[0].mxu0 %v4350
  %v4593 = vpop.f32.mrb[0].mxu0
  %v4594 = vadd.f32 %v2863, %v4593
  %v4595 = vpop.f32.mrb[0].mxu0
  %4596 = vdwg.mxu0
  %v4597 = vadd.f32 %v4526, %v4594
  %v4598 = vxor.u32 %v4597, 2147483648
  %v4599 = vmul.f32 %v4598, 1.442695
  %v4600 = vpow.pop %v4599
  %v4601 = vadd.f32 %v4600, 1.0
  %v4602 = vrcp.pop %v4601
  %v4603 = vmul.f32 1.0, %v4602
  %4605 = vrot.lane.b32.xlu0 %v4594, 64
  %v4606 = vpop.permute.xlu0 %4605
  %v4608 = vmul.f32 %v4603, %v4606
  %4610 = vrot.lane.b32.xlu0 %v4608, 64
  %v4611 = vpop.permute.xlu0 %4610
  %v4613 = vadd.f32 %v4526, %v4611
  %v4614 = vtanh.pop %v4613
  %v4615 = vsub.f32 1.0, %v4603
  %4617 = vrot.lane.b32.xlu0 %v4614, 96
  %v4618 = vpop.permute.xlu0 %4617
  %v4620 = vmul.f32 %v4615, %v4618
  %v4621 = vmul.f32 %v4603, %v4346
  %v4622 = vadd.f32 %v4620, %v4621
  %4624 = vrot.lane.b32.xlu0 %v4622, 96
  %v4625 = vpop.permute.xlu0 %4624
  %v4626 = vsel %vm486, %v4625, 0
  %4628 = vmatprep.subr.mxu0 0.0
  %4629 = vmatpush1.msra.mxu0 %v2850
  %4630 = vmatprep.subr.mxu0 0.0
  %4631 = vmatpush1.msra.mxu0 %v2851
  %4632 = vmatprep.subr.mxu0 0.0
  %4633 = vmatpush1.msra.mxu0 %v2852
  %4634 = vmatprep.subr.mxu0 0.0
  %4635 = vmatpush1.msra.mxu0 %v2853
  %4636 = vmatprep.subr.mxu0 0.0
  %4637 = vmatpush1.msra.mxu0 0.0
  %4638 = vmatprep.subr.mxu0 0.0
  %4639 = vmatpush1.msra.mxu0 0.0
  %4640 = vmatprep.subr.mxu0 0.0
  %4641 = vmatpush1.msra.mxu0 0.0
  %4642 = vmatprep.subr.mxu0 0.0
  %4643 = vmatpush1.msra.mxu0 0.0
  %4644 = vmatprep.subr.mxu0 0.0
  %4645 = vmatpush1.msra.mxu0 0.0
  %4646 = vmatprep.subr.mxu0 0.0
  %4647 = vmatpush1.msra.mxu0 0.0
  %4648 = vmatprep.subr.mxu0 0.0
  %4649 = vmatpush1.msra.mxu0 0.0
  %4650 = vmatprep.subr.mxu0 0.0
  %4651 = vmatpush1.msra.mxu0 0.0
  %4652 = vmatprep.subr.mxu0 0.0
  %4653 = vmatpush1.msra.mxu0 0.0
  %4654 = vmatprep.subr.mxu0 0.0
  %4655 = vmatpush1.msra.mxu0 0.0
  %4656 = vmatprep.subr.mxu0 0.0
  %4657 = vmatpush1.msra.mxu0 0.0
  %4658 = vmatprep.subr.mxu0 0.0
  %4659 = vmatpush1.msra.mxu0 0.0
  %4660 = vmatprep.subr.mxu0 0.0
  %4661 = vmatpush1.msra.mxu0 0.0
  %4662 = vmatprep.subr.mxu0 0.0
  %4663 = vmatpush1.msra.mxu0 0.0
  %4664 = vmatprep.subr.mxu0 0.0
  %4665 = vmatpush1.msra.mxu0 0.0
  %4666 = vmatprep.subr.mxu0 0.0
  %4667 = vmatpush1.msra.mxu0 0.0
  %4668 = vmatprep.subr.mxu0 0.0
  %4669 = vmatpush1.msra.mxu0 0.0
  %4670 = vmatprep.subr.mxu0 0.0
  %4671 = vmatpush1.msra.mxu0 0.0
  %4672 = vmatprep.subr.mxu0 0.0
  %4673 = vmatpush1.msra.mxu0 0.0
  %4674 = vmatprep.subr.mxu0 0.0
  %4675 = vmatpush1.msra.mxu0 0.0
  %4676 = vmatprep.subr.mxu0 0.0
  %4677 = vmatpush1.msra.mxu0 0.0
  %4678 = vmatprep.subr.mxu0 0.0
  %4679 = vmatpush1.msra.mxu0 0.0
  %4680 = vmatprep.subr.mxu0 0.0
  %4681 = vmatpush1.msra.mxu0 0.0
  %4682 = vmatprep.subr.mxu0 0.0
  %4683 = vmatpush1.msra.mxu0 0.0
  %4684 = vmatprep.subr.mxu0 0.0
  %4685 = vmatpush1.msra.mxu0 0.0
  %4686 = vmatprep.subr.mxu0 0.0
  %4687 = vmatpush1.msra.mxu0 0.0
  %4688 = vmatprep.subr.mxu0 0.0
  %4689 = vmatpush1.msra.mxu0 0.0
  %4690 = vmatprep.subr.mxu0 0.0
  %4691 = vmatpush1.msra.mxu0 0.0
  %4692 = vmatprep.mubr.f32.mxu0 0.0
  %4693 = vmatmul.mubr.f32.gmra.mrb[0].mxu0 %v4626
  %v4694 = vpop.f32.mrb[0].mxu0
  %v4695 = vadd.f32 %v2963, %v4694
  %v4696 = vpop.f32.mrb[0].mxu0
  %4697 = vdwg.mxu0
  %v4698 = vsel %vm486, %v4522, 0
  %4700 = vmatprep.subr.mxu0 0.0
  %4701 = vmatpush1.msra.mxu0 %v2854
  %4702 = vmatprep.subr.mxu0 0.0
  %4703 = vmatpush1.msra.mxu0 %v2855
  %4704 = vmatprep.subr.mxu0 0.0
  %4705 = vmatpush1.msra.mxu0 %v2856
  %4706 = vmatprep.subr.mxu0 0.0
  %4707 = vmatpush1.msra.mxu0 %v2857
  %4708 = vmatprep.subr.mxu0 0.0
  %4709 = vmatpush1.msra.mxu0 0.0
  %4710 = vmatprep.subr.mxu0 0.0
  %4711 = vmatpush1.msra.mxu0 0.0
  %4712 = vmatprep.subr.mxu0 0.0
  %4713 = vmatpush1.msra.mxu0 0.0
  %4714 = vmatprep.subr.mxu0 0.0
  %4715 = vmatpush1.msra.mxu0 0.0
  %4716 = vmatprep.subr.mxu0 0.0
  %4717 = vmatpush1.msra.mxu0 0.0
  %4718 = vmatprep.subr.mxu0 0.0
  %4719 = vmatpush1.msra.mxu0 0.0
  %4720 = vmatprep.subr.mxu0 0.0
  %4721 = vmatpush1.msra.mxu0 0.0
  %4722 = vmatprep.subr.mxu0 0.0
  %4723 = vmatpush1.msra.mxu0 0.0
  %4724 = vmatprep.subr.mxu0 0.0
  %4725 = vmatpush1.msra.mxu0 0.0
  %4726 = vmatprep.subr.mxu0 0.0
  %4727 = vmatpush1.msra.mxu0 0.0
  %4728 = vmatprep.subr.mxu0 0.0
  %4729 = vmatpush1.msra.mxu0 0.0
  %4730 = vmatprep.subr.mxu0 0.0
  %4731 = vmatpush1.msra.mxu0 0.0
  %4732 = vmatprep.subr.mxu0 0.0
  %4733 = vmatpush1.msra.mxu0 0.0
  %4734 = vmatprep.subr.mxu0 0.0
  %4735 = vmatpush1.msra.mxu0 0.0
  %4736 = vmatprep.subr.mxu0 0.0
  %4737 = vmatpush1.msra.mxu0 0.0
  %4738 = vmatprep.subr.mxu0 0.0
  %4739 = vmatpush1.msra.mxu0 0.0
  %4740 = vmatprep.subr.mxu0 0.0
  %4741 = vmatpush1.msra.mxu0 0.0
  %4742 = vmatprep.subr.mxu0 0.0
  %4743 = vmatpush1.msra.mxu0 0.0
  %4744 = vmatprep.subr.mxu0 0.0
  %4745 = vmatpush1.msra.mxu0 0.0
  %4746 = vmatprep.subr.mxu0 0.0
  %4747 = vmatpush1.msra.mxu0 0.0
  %4748 = vmatprep.subr.mxu0 0.0
  %4749 = vmatpush1.msra.mxu0 0.0
  %4750 = vmatprep.subr.mxu0 0.0
  %4751 = vmatpush1.msra.mxu0 0.0
  %4752 = vmatprep.subr.mxu0 0.0
  %4753 = vmatpush1.msra.mxu0 0.0
  %4754 = vmatprep.subr.mxu0 0.0
  %4755 = vmatpush1.msra.mxu0 0.0
  %4756 = vmatprep.subr.mxu0 0.0
  %4757 = vmatpush1.msra.mxu0 0.0
  %4758 = vmatprep.subr.mxu0 0.0
  %4759 = vmatpush1.msra.mxu0 0.0
  %4760 = vmatprep.subr.mxu0 0.0
  %4761 = vmatpush1.msra.mxu0 0.0
  %4762 = vmatprep.subr.mxu0 0.0
  %4763 = vmatpush1.msra.mxu0 0.0
  %4764 = vmatprep.mubr.f32.mxu0 0.0
  %4765 = vmatmul.mubr.f32.gmra.mrb[0].mxu0 %v4698
  %v4766 = vpop.f32.mrb[0].mxu0
  %v4767 = vadd.f32 %v3042, %v4766
  %v4768 = vpop.f32.mrb[0].mxu0
  %4769 = vdwg.mxu0
  %v4770 = vadd.f32 %v4695, %v4767
  %v4771 = vxor.u32 %v4770, 2147483648
  %v4772 = vmul.f32 %v4771, 1.442695
  %v4773 = vpow.pop %v4772
  %v4774 = vadd.f32 %v4773, 1.0
  %v4775 = vrcp.pop %v4774
  %v4776 = vmul.f32 1.0, %v4775
  %4778 = vrot.lane.b32.xlu0 %v4767, 64
  %v4779 = vpop.permute.xlu0 %4778
  %v4781 = vmul.f32 %v4776, %v4779
  %4783 = vrot.lane.b32.xlu0 %v4781, 64
  %v4784 = vpop.permute.xlu0 %4783
  %v4786 = vadd.f32 %v4695, %v4784
  %v4787 = vtanh.pop %v4786
  %v4788 = vsub.f32 1.0, %v4776
  %4790 = vrot.lane.b32.xlu0 %v4787, 96
  %v4791 = vpop.permute.xlu0 %4790
  %v4793 = vmul.f32 %v4788, %v4791
  %v4794 = vmul.f32 %v4776, %v4519
  %v4795 = vadd.f32 %v4793, %v4794
  %4797 = vrot.lane.b32.xlu0 %v4795, 96
  %v4798 = vpop.permute.xlu0 %4797
  %4800 = vst.msk [vmem:[#allocation3 + $0xc] sm:$0x3] %vm3143, %v4798
  %v4801 = vld [vmem:[#allocation2 + $0xe] sm:$0x3]
  %v4802 = vadd.f32 %v4801, %v2843
  %4803 = vmatprep.subr.mxu0 0.0
  %4804 = vmatpush1.msra.mxu0 %v2846
  %4805 = vmatprep.subr.mxu0 0.0
  %4806 = vmatpush1.msra.mxu0 %v2847
  %4807 = vmatprep.subr.mxu0 0.0
  %4808 = vmatpush1.msra.mxu0 %v2848
  %4809 = vmatprep.subr.mxu0 0.0
  %4810 = vmatpush1.msra.mxu0 %v2849
  %4811 = vmatprep.subr.mxu0 0.0
  %4812 = vmatpush1.msra.mxu0 0.0
  %4813 = vmatprep.subr.mxu0 0.0
  %4814 = vmatpush1.msra.mxu0 0.0
  %4815 = vmatprep.subr.mxu0 0.0
  %4816 = vmatpush1.msra.mxu0 0.0
  %4817 = vmatprep.subr.mxu0 0.0
  %4818 = vmatpush1.msra.mxu0 0.0
  %4819 = vmatprep.subr.mxu0 0.0
  %4820 = vmatpush1.msra.mxu0 0.0
  %4821 = vmatprep.subr.mxu0 0.0
  %4822 = vmatpush1.msra.mxu0 0.0
  %4823 = vmatprep.subr.mxu0 0.0
  %4824 = vmatpush1.msra.mxu0 0.0
  %4825 = vmatprep.subr.mxu0 0.0
  %4826 = vmatpush1.msra.mxu0 0.0
  %4827 = vmatprep.subr.mxu0 0.0
  %4828 = vmatpush1.msra.mxu0 0.0
  %4829 = vmatprep.subr.mxu0 0.0
  %4830 = vmatpush1.msra.mxu0 0.0
  %4831 = vmatprep.subr.mxu0 0.0
  %4832 = vmatpush1.msra.mxu0 0.0
  %4833 = vmatprep.subr.mxu0 0.0
  %4834 = vmatpush1.msra.mxu0 0.0
  %4835 = vmatprep.subr.mxu0 0.0
  %4836 = vmatpush1.msra.mxu0 0.0
  %4837 = vmatprep.subr.mxu0 0.0
  %4838 = vmatpush1.msra.mxu0 0.0
  %4839 = vmatprep.subr.mxu0 0.0
  %4840 = vmatpush1.msra.mxu0 0.0
  %4841 = vmatprep.subr.mxu0 0.0
  %4842 = vmatpush1.msra.mxu0 0.0
  %4843 = vmatprep.subr.mxu0 0.0
  %4844 = vmatpush1.msra.mxu0 0.0
  %4845 = vmatprep.subr.mxu0 0.0
  %4846 = vmatpush1.msra.mxu0 0.0
  %4847 = vmatprep.subr.mxu0 0.0
  %4848 = vmatpush1.msra.mxu0 0.0
  %4849 = vmatprep.subr.mxu0 0.0
  %4850 = vmatpush1.msra.mxu0 0.0
  %4851 = vmatprep.subr.mxu0 0.0
  %4852 = vmatpush1.msra.mxu0 0.0
  %4853 = vmatprep.subr.mxu0 0.0
  %4854 = vmatpush1.msra.mxu0 0.0
  %4855 = vmatprep.subr.mxu0 0.0
  %4856 = vmatpush1.msra.mxu0 0.0
  %4857 = vmatprep.subr.mxu0 0.0
  %4858 = vmatpush1.msra.mxu0 0.0
  %4859 = vmatprep.subr.mxu0 0.0
  %4860 = vmatpush1.msra.mxu0 0.0
  %4861 = vmatprep.subr.mxu0 0.0
  %4862 = vmatpush1.msra.mxu0 0.0
  %4863 = vmatprep.subr.mxu0 0.0
  %4864 = vmatpush1.msra.mxu0 0.0
  %4865 = vmatprep.subr.mxu0 0.0
  %4866 = vmatpush1.msra.mxu0 0.0
  %4867 = vmatprep.mubr.f32.mxu0 0.0
  %4868 = vmatmul.mubr.f32.gmra.mrb[0].mxu0 %v4626
  %v4869 = vpop.f32.mrb[0].mxu0
  %v4870 = vadd.f32 %v2863, %v4869
  %v4871 = vpop.f32.mrb[0].mxu0
  %4872 = vdwg.mxu0
  %v4873 = vadd.f32 %v4802, %v4870
  %v4874 = vxor.u32 %v4873, 2147483648
  %v4875 = vmul.f32 %v4874, 1.442695
  %v4876 = vpow.pop %v4875
  %v4877 = vadd.f32 %v4876, 1.0
  %v4878 = vrcp.pop %v4877
  %v4879 = vmul.f32 1.0, %v4878
  %4881 = vrot.lane.b32.xlu0 %v4870, 64
  %v4882 = vpop.permute.xlu0 %4881
  %v4884 = vmul.f32 %v4879, %v4882
  %4886 = vrot.lane.b32.xlu0 %v4884, 64
  %v4887 = vpop.permute.xlu0 %4886
  %v4889 = vadd.f32 %v4802, %v4887
  %v4890 = vtanh.pop %v4889
  %v4891 = vsub.f32 1.0, %v4879
  %4893 = vrot.lane.b32.xlu0 %v4890, 96
  %v4894 = vpop.permute.xlu0 %4893
  %v4896 = vmul.f32 %v4891, %v4894
  %v4897 = vmul.f32 %v4879, %v4622
  %v4898 = vadd.f32 %v4896, %v4897
  %4900 = vrot.lane.b32.xlu0 %v4898, 96
  %v4901 = vpop.permute.xlu0 %4900
  %v4902 = vsel %vm486, %v4901, 0
  %4904 = vmatprep.subr.mxu0 0.0
  %4905 = vmatpush1.msra.mxu0 %v2850
  %4906 = vmatprep.subr.mxu0 0.0
  %4907 = vmatpush1.msra.mxu0 %v2851
  %4908 = vmatprep.subr.mxu0 0.0
  %4909 = vmatpush1.msra.mxu0 %v2852
  %4910 = vmatprep.subr.mxu0 0.0
  %4911 = vmatpush1.msra.mxu0 %v2853
  %4912 = vmatprep.subr.mxu0 0.0
  %4913 = vmatpush1.msra.mxu0 0.0
  %4914 = vmatprep.subr.mxu0 0.0
  %4915 = vmatpush1.msra.mxu0 0.0
  %4916 = vmatprep.subr.mxu0 0.0
  %4917 = vmatpush1.msra.mxu0 0.0
  %4918 = vmatprep.subr.mxu0 0.0
  %4919 = vmatpush1.msra.mxu0 0.0
  %4920 = vmatprep.subr.mxu0 0.0
  %4921 = vmatpush1.msra.mxu0 0.0
  %4922 = vmatprep.subr.mxu0 0.0
  %4923 = vmatpush1.msra.mxu0 0.0
  %4924 = vmatprep.subr.mxu0 0.0
  %4925 = vmatpush1.msra.mxu0 0.0
  %4926 = vmatprep.subr.mxu0 0.0
  %4927 = vmatpush1.msra.mxu0 0.0
  %4928 = vmatprep.subr.mxu0 0.0
  %4929 = vmatpush1.msra.mxu0 0.0
  %4930 = vmatprep.subr.mxu0 0.0
  %4931 = vmatpush1.msra.mxu0 0.0
  %4932 = vmatprep.subr.mxu0 0.0
  %4933 = vmatpush1.msra.mxu0 0.0
  %4934 = vmatprep.subr.mxu0 0.0
  %4935 = vmatpush1.msra.mxu0 0.0
  %4936 = vmatprep.subr.mxu0 0.0
  %4937 = vmatpush1.msra.mxu0 0.0
  %4938 = vmatprep.subr.mxu0 0.0
  %4939 = vmatpush1.msra.mxu0 0.0
  %4940 = vmatprep.subr.mxu0 0.0
  %4941 = vmatpush1.msra.mxu0 0.0
  %4942 = vmatprep.subr.mxu0 0.0
  %4943 = vmatpush1.msra.mxu0 0.0
  %4944 = vmatprep.subr.mxu0 0.0
  %4945 = vmatpush1.msra.mxu0 0.0
  %4946 = vmatprep.subr.mxu0 0.0
  %4947 = vmatpush1.msra.mxu0 0.0
  %4948 = vmatprep.subr.mxu0 0.0
  %4949 = vmatpush1.msra.mxu0 0.0
  %4950 = vmatprep.subr.mxu0 0.0
  %4951 = vmatpush1.msra.mxu0 0.0
  %4952 = vmatprep.subr.mxu0 0.0
  %4953 = vmatpush1.msra.mxu0 0.0
  %4954 = vmatprep.subr.mxu0 0.0
  %4955 = vmatpush1.msra.mxu0 0.0
  %4956 = vmatprep.subr.mxu0 0.0
  %4957 = vmatpush1.msra.mxu0 0.0
  %4958 = vmatprep.subr.mxu0 0.0
  %4959 = vmatpush1.msra.mxu0 0.0
  %4960 = vmatprep.subr.mxu0 0.0
  %4961 = vmatpush1.msra.mxu0 0.0
  %4962 = vmatprep.subr.mxu0 0.0
  %4963 = vmatpush1.msra.mxu0 0.0
  %4964 = vmatprep.subr.mxu0 0.0
  %4965 = vmatpush1.msra.mxu0 0.0
  %4966 = vmatprep.subr.mxu0 0.0
  %4967 = vmatpush1.msra.mxu0 0.0
  %4968 = vmatprep.mubr.f32.mxu0 0.0
  %4969 = vmatmul.mubr.f32.gmra.mrb[0].mxu0 %v4902
  %v4970 = vpop.f32.mrb[0].mxu0
  %v4971 = vadd.f32 %v2963, %v4970
  %v4972 = vpop.f32.mrb[0].mxu0
  %4973 = vdwg.mxu0
  %v4974 = vsel %vm486, %v4798, 0
  %4976 = vmatprep.subr.mxu0 0.0
  %4977 = vmatpush1.msra.mxu0 %v2854
  %4978 = vmatprep.subr.mxu0 0.0
  %4979 = vmatpush1.msra.mxu0 %v2855
  %4980 = vmatprep.subr.mxu0 0.0
  %4981 = vmatpush1.msra.mxu0 %v2856
  %4982 = vmatprep.subr.mxu0 0.0
  %4983 = vmatpush1.msra.mxu0 %v2857
  %4984 = vmatprep.subr.mxu0 0.0
  %4985 = vmatpush1.msra.mxu0 0.0
  %4986 = vmatprep.subr.mxu0 0.0
  %4987 = vmatpush1.msra.mxu0 0.0
  %4988 = vmatprep.subr.mxu0 0.0
  %4989 = vmatpush1.msra.mxu0 0.0
  %4990 = vmatprep.subr.mxu0 0.0
  %4991 = vmatpush1.msra.mxu0 0.0
  %4992 = vmatprep.subr.mxu0 0.0
  %4993 = vmatpush1.msra.mxu0 0.0
  %4994 = vmatprep.subr.mxu0 0.0
  %4995 = vmatpush1.msra.mxu0 0.0
  %4996 = vmatprep.subr.mxu0 0.0
  %4997 = vmatpush1.msra.mxu0 0.0
  %4998 = vmatprep.subr.mxu0 0.0
  %4999 = vmatpush1.msra.mxu0 0.0
  %5000 = vmatprep.subr.mxu0 0.0
  %5001 = vmatpush1.msra.mxu0 0.0
  %5002 = vmatprep.subr.mxu0 0.0
  %5003 = vmatpush1.msra.mxu0 0.0
  %5004 = vmatprep.subr.mxu0 0.0
  %5005 = vmatpush1.msra.mxu0 0.0
  %5006 = vmatprep.subr.mxu0 0.0
  %5007 = vmatpush1.msra.mxu0 0.0
  %5008 = vmatprep.subr.mxu0 0.0
  %5009 = vmatpush1.msra.mxu0 0.0
  %5010 = vmatprep.subr.mxu0 0.0
  %5011 = vmatpush1.msra.mxu0 0.0
  %5012 = vmatprep.subr.mxu0 0.0
  %5013 = vmatpush1.msra.mxu0 0.0
  %5014 = vmatprep.subr.mxu0 0.0
  %5015 = vmatpush1.msra.mxu0 0.0
  %5016 = vmatprep.subr.mxu0 0.0
  %5017 = vmatpush1.msra.mxu0 0.0
  %5018 = vmatprep.subr.mxu0 0.0
  %5019 = vmatpush1.msra.mxu0 0.0
  %5020 = vmatprep.subr.mxu0 0.0
  %5021 = vmatpush1.msra.mxu0 0.0
  %5022 = vmatprep.subr.mxu0 0.0
  %5023 = vmatpush1.msra.mxu0 0.0
  %5024 = vmatprep.subr.mxu0 0.0
  %5025 = vmatpush1.msra.mxu0 0.0
  %5026 = vmatprep.subr.mxu0 0.0
  %5027 = vmatpush1.msra.mxu0 0.0
  %5028 = vmatprep.subr.mxu0 0.0
  %5029 = vmatpush1.msra.mxu0 0.0
  %5030 = vmatprep.subr.mxu0 0.0
  %5031 = vmatpush1.msra.mxu0 0.0
  %5032 = vmatprep.subr.mxu0 0.0
  %5033 = vmatpush1.msra.mxu0 0.0
  %5034 = vmatprep.subr.mxu0 0.0
  %5035 = vmatpush1.msra.mxu0 0.0
  %5036 = vmatprep.subr.mxu0 0.0
  %5037 = vmatpush1.msra.mxu0 0.0
  %5038 = vmatprep.subr.mxu0 0.0
  %5039 = vmatpush1.msra.mxu0 0.0
  %5040 = vmatprep.mubr.f32.mxu0 0.0
  %5041 = vmatmul.mubr.f32.gmra.mrb[0].mxu0 %v4974
  %v5042 = vpop.f32.mrb[0].mxu0
  %v5043 = vadd.f32 %v3042, %v5042
  %v5044 = vpop.f32.mrb[0].mxu0
  %5045 = vdwg.mxu0
  %v5046 = vadd.f32 %v4971, %v5043
  %v5047 = vxor.u32 %v5046, 2147483648
  %v5048 = vmul.f32 %v5047, 1.442695
  %v5049 = vpow.pop %v5048
  %v5050 = vadd.f32 %v5049, 1.0
  %v5051 = vrcp.pop %v5050
  %v5052 = vmul.f32 1.0, %v5051
  %5054 = vrot.lane.b32.xlu0 %v5043, 64
  %v5055 = vpop.permute.xlu0 %5054
  %v5057 = vmul.f32 %v5052, %v5055
  %5059 = vrot.lane.b32.xlu0 %v5057, 64
  %v5060 = vpop.permute.xlu0 %5059
  %v5062 = vadd.f32 %v4971, %v5060
  %v5063 = vtanh.pop %v5062
  %v5064 = vsub.f32 1.0, %v5052
  %5066 = vrot.lane.b32.xlu0 %v5063, 96
  %v5067 = vpop.permute.xlu0 %5066
  %v5069 = vmul.f32 %v5064, %v5067
  %v5070 = vmul.f32 %v5052, %v4795
  %v5071 = vadd.f32 %v5069, %v5070
  %5073 = vrot.lane.b32.xlu0 %v5071, 96
  %v5074 = vpop.permute.xlu0 %5073
  %5076 = vst.msk [vmem:[#allocation3 + $0xe] sm:$0x3] %vm3143, %v5074
  %v5077 = vld [vmem:[#allocation3] sm:$0xff]
  %v5078 = vld [vmem:[#allocation3 + $0x8] sm:$0xff]
  %v5079 = vld [vmem:[%s0 + $0x128] sm:$0xff]
  %v5080 = vld [vmem:[%s0 + $0x130] sm:$0xff]
  %v5081 = vld [vmem:[%s0 + $0x138] sm:$0xff]
  %v5082 = vld [vmem:[%s0 + $0x140] sm:$0xff]
  %v5083 = vlaneseq
  %v5084 = vshrl.u32 %v5083, 7
  %v5085 = vsub.s32 0, %v5084
  %v5086 = vrot.slane %v377, %v5085
  %v5088 = vsel %vm486, %v5077, 0
  %v5091 = vsel %vm486, %v5078, 0
  %5093 = vmatprep.subr.mxu0 0.0
  %5094 = vmatpush1.msra.mxu0 %v5079
  %5095 = vmatprep.subr.mxu0 0.0
  %5096 = vmatpush1.msra.mxu0 %v5080
  %5097 = vmatprep.subr.mxu0 0.0
  %5098 = vmatpush1.msra.mxu0 %v5081
  %5099 = vmatprep.subr.mxu0 0.0
  %5100 = vmatpush1.msra.mxu0 %v5082
  %5101 = vmatprep.subr.mxu0 0.0
  %5102 = vmatpush1.msra.mxu0 0.0
  %5103 = vmatprep.subr.mxu0 0.0
  %5104 = vmatpush1.msra.mxu0 0.0
  %5105 = vmatprep.subr.mxu0 0.0
  %5106 = vmatpush1.msra.mxu0 0.0
  %5107 = vmatprep.subr.mxu0 0.0
  %5108 = vmatpush1.msra.mxu0 0.0
  %5109 = vmatprep.subr.mxu0 0.0
  %5110 = vmatpush1.msra.mxu0 0.0
  %5111 = vmatprep.subr.mxu0 0.0
  %5112 = vmatpush1.msra.mxu0 0.0
  %5113 = vmatprep.subr.mxu0 0.0
  %5114 = vmatpush1.msra.mxu0 0.0
  %5115 = vmatprep.subr.mxu0 0.0
  %5116 = vmatpush1.msra.mxu0 0.0
  %5117 = vmatprep.subr.mxu0 0.0
  %5118 = vmatpush1.msra.mxu0 0.0
  %5119 = vmatprep.subr.mxu0 0.0
  %5120 = vmatpush1.msra.mxu0 0.0
  %5121 = vmatprep.subr.mxu0 0.0
  %5122 = vmatpush1.msra.mxu0 0.0
  %5123 = vmatprep.subr.mxu0 0.0
  %5124 = vmatpush1.msra.mxu0 0.0
  %5125 = vmatprep.subr.mxu0 0.0
  %5126 = vmatpush1.msra.mxu0 0.0
  %5127 = vmatprep.subr.mxu0 0.0
  %5128 = vmatpush1.msra.mxu0 0.0
  %5129 = vmatprep.subr.mxu0 0.0
  %5130 = vmatpush1.msra.mxu0 0.0
  %5131 = vmatprep.subr.mxu0 0.0
  %5132 = vmatpush1.msra.mxu0 0.0
  %5133 = vmatprep.subr.mxu0 0.0
  %5134 = vmatpush1.msra.mxu0 0.0
  %5135 = vmatprep.subr.mxu0 0.0
  %5136 = vmatpush1.msra.mxu0 0.0
  %5137 = vmatprep.subr.mxu0 0.0
  %5138 = vmatpush1.msra.mxu0 0.0
  %5139 = vmatprep.subr.mxu0 0.0
  %5140 = vmatpush1.msra.mxu0 0.0
  %5141 = vmatprep.subr.mxu0 0.0
  %5142 = vmatpush1.msra.mxu0 0.0
  %5143 = vmatprep.subr.mxu0 0.0
  %5144 = vmatpush1.msra.mxu0 0.0
  %5145 = vmatprep.subr.mxu0 0.0
  %5146 = vmatpush1.msra.mxu0 0.0
  %5147 = vmatprep.subr.mxu0 0.0
  %5148 = vmatpush1.msra.mxu0 0.0
  %5149 = vmatprep.subr.mxu0 0.0
  %5150 = vmatpush1.msra.mxu0 0.0
  %5151 = vmatprep.subr.mxu0 0.0
  %5152 = vmatpush1.msra.mxu0 0.0
  %5153 = vmatprep.subr.mxu0 0.0
  %5154 = vmatpush1.msra.mxu0 0.0
  %5155 = vmatprep.subr.mxu0 0.0
  %5156 = vmatpush1.msra.mxu0 0.0
  %5157 = vmatprep.mubr.f32.mxu0 0.0
  %5158 = vmatmul.mubr.f32.gmra.mrb[0].mxu0 %v5088
  %v5159 = vpop.f32.mrb[0].mxu0
  %v5160 = vadd.f32 %v5086, %v5159
  %v5161 = vpop.f32.mrb[0].mxu0
  %5162 = vmatprep.mubr.f32.mxu0 0.0
  %5163 = vmatmul.mubr.f32.gmra.mrb[0].mxu0 %v5091
  %v5164 = vpop.f32.mrb[0].mxu0
  %v5165 = vadd.f32 %v5086, %v5164
  %v5166 = vpop.f32.mrb[0].mxu0
  %5167 = vdwg.mxu0
  %vm5168 = vcmask 195584
  %5169 = vst.msk [vmem:[%s2] sm:$0xff] %vm5168, %v5160
  %5170 = vst.msk [vmem:[%s2 + $0x8] sm:$0xff] %vm5168, %v5165
  // Predicated region
  $region10: #{seq2seq_forward.1} parent=0 // pred_check
    _
  $region11: #{seq2seq_forward.1} parent=0 // pred_check_branch
    %5172 = sbr.rel (0) target = $region13
  $region12: #{seq2seq_forward.1} parent=0 // pred_region
    _
  $region13: #{seq2seq_forward.1} parent=0 // pred_fallthru
    _
  // Predicated region
  $region14: #{seq2seq_forward.1} parent=0 // pred_check
    _
  $region15: #{seq2seq_forward.1} parent=0 // pred_check_branch
    %5174 = sbr.rel (0) target = $region17
  $region16: #{seq2seq_forward.1} parent=0 // pred_region
    _
  $region17: #{seq2seq_forward.1} parent=0 // pred_fallthru
    _

</llo_original>
